<compile_context>
chip_gen: v5e
topology: v5e:2x2
jax: 0.10.0
libtpu: 0.0.40
codegen_flags: <defaults>
</compile_context>

<pallas_src>
import numpy as np

import jax
import jax.numpy as jnp
from jax.experimental import pallas as pl
from jax.experimental.pallas import tpu as pltpu

_VMEM_LIMIT = 32 * 1024 * 1024   # well above actual use (<10 MiB/step), safe on v5e..v7x
_HI = jax.lax.Precision.HIGHEST


def _round_up(x, m):
    return (x + m - 1) // m * m


# ------------- fused conv(5x5,'same') + bias + ReLU + 2x2 maxpool as one GEMM kernel ------------- #

def _conv_pool_kernel(xe_ref, xo_ref, we_ref, wo_ref, b_ref, out_ref):
    """Fused conv + bias + ReLU + 2x2 max-pool for TB samples per grid step.

    xe_ref/xo_ref: (TB*Hh, K)  even / odd output-row ("h-parity") im2col streams,
                   K = 5*Wp*Cin -- the full (dh, padded-w, cin) tap set folded into
                   the GEMM contraction.
    we_ref/wo_ref: (K, U*Cout) block-Toeplitz weights producing the even / odd output
                   columns ("w-parity") directly in a lane-dense (u, cout) layout.
    b_ref:         (1, U*Cout) f32 bias tiled per pooled column.
    out_ref:       (TB*Hh, U*Cout) pooled output (lane-dense store).
    """
    xe = xe_ref[...]
    xo = xo_ref[...]
    we = we_ref[...]
    wo = wo_ref[...]
    # Four MXU GEMMs, one per 2x2 pooling offset.  K is the whole folded contraction,
    # so there are no loop-carried partial sums (nothing to spill, no VALU adds).
    y00 = jnp.dot(xe, we, preferred_element_type=jnp.float32)   # rows 2v+0, cols 2u+0
    y01 = jnp.dot(xe, wo, preferred_element_type=jnp.float32)   # rows 2v+0, cols 2u+1
    y10 = jnp.dot(xo, we, preferred_element_type=jnp.float32)   # rows 2v+1, cols 2u+0
    y11 = jnp.dot(xo, wo, preferred_element_type=jnp.float32)   # rows 2v+1, cols 2u+1
    # 2x2 max-pool == elementwise max of the four pooling offsets (bias + ReLU commute
    # with max), all in the same lane layout -> pure VPU epilogue, no reshapes.
    m = jnp.maximum(jnp.maximum(y00, y01), jnp.maximum(y10, y11))
    out_ref[...] = jnp.maximum(m + b_ref[...], 0.0).astype(out_ref.dtype)


def _build_parity_streams(x_nhwc, n_pad, dtype):
    """XLA glue: (N,H,W,Cin) -> two (n_pad*Hh, 5*Wp*Cin) h-parity im2col streams.

    Row (n*Hh + v) of stream ph holds xpad[n, 2v+ph+dh, :, :] for dh=0..4 concatenated
    along the contraction axis.  ~5x the raw activation bytes (tens of KB per sample).
    """
    N, H, W, Cin = x_nhwc.shape
    Hh, Wp = H // 2, W + 4
    xp = jnp.pad(x_nhwc.astype(dtype),
                 ((0, n_pad - N), (2, 2), (2, 2), (0, 0)))       # (n_pad, H+4, W+4, Cin)
    streams = []
    for ph in (0, 1):
        taps = [xp[:, ph + dh: ph + dh + 2 * Hh: 2, :, :] for dh in range(5)]  # (n_pad,Hh,Wp,Cin)
        s = jnp.stack(taps, axis=2)                               # (n_pad, Hh, 5, Wp, Cin)
        streams.append(s.reshape(n_pad * Hh, 5 * Wp * Cin))
    return streams


def conv_relu_pool(x_nhwc, we, wo, b_tiled, *, out_dtype, tb=16):
    """x_nhwc: (N,H,W,Cin); we/wo: (5*Wp*Cin, U*Cout) Toeplitz; b_tiled: (1, U*Cout) f32.

    Returns (out2d, n_pad) with out2d: (n_pad*Hh, U*Cout), row (n*Hh+v), col (u*Cout+c).
    """
    N, H, W, Cin = x_nhwc.shape
    Hh, U, Wp = H // 2, W // 2, W + 4
    K = 5 * Wp * Cin
    UC = we.shape[1]                                  # == U * Cout
    # TB: multiple of 8 (keeps TB*Hh 8-aligned for Hh in {14,7}); aim for >=2 grid steps.
    tb = max(8, (min(tb, max(N // 2, 1)) // 8) * 8)
    n_pad = _round_up(N, tb)
    xe, xo = _build_parity_streams(x_nhwc, n_pad, we.dtype)

    out = pl.pallas_call(
        _conv_pool_kernel,
        grid=(n_pad // tb,),
        out_shape=jax.ShapeDtypeStruct((n_pad * Hh, UC), out_dtype),
        in_specs=[
            pl.BlockSpec((tb * Hh, K), lambda i: (i, 0)),
            pl.BlockSpec((tb * Hh, K), lambda i: (i, 0)),
            pl.BlockSpec(we.shape, lambda i: (0, 0)),        # resident weights (even w)
            pl.BlockSpec(wo.shape, lambda i: (0, 0)),        # resident weights (odd w)
            pl.BlockSpec(b_tiled.shape, lambda i: (0, 0)),   # resident tiled bias
        ],
        out_specs=pl.BlockSpec((tb * Hh, UC), lambda i: (i, 0)),
        compiler_params=pltpu.CompilerParams(
            dimension_semantics=("parallel",),
            vmem_limit_bytes=_VMEM_LIMIT),
    )(xe, xo, we, wo, b_tiled)
    return out, n_pad


# ---------------------------- fused fc1+ReLU -> fc2+ReLU -> fc3 ---------------------------- #

def _fc_stack_kernel(x_ref, w1_ref, b1_ref, w2_ref, b2_ref, w3_ref, b3_ref, o_ref):
    cdt = w1_ref.dtype
    h = jnp.dot(x_ref[...], w1_ref[...], preferred_element_type=jnp.float32) + b1_ref[...]
    h = jnp.maximum(h, 0.0).astype(cdt)          # (TM, 128) lane-dense, stays on chip
    h = jnp.dot(h, w2_ref[...], preferred_element_type=jnp.float32) + b2_ref[...]
    h = jnp.maximum(h, 0.0).astype(cdt)          # (TM, 128)
    y = jnp.dot(h, w3_ref[...], preferred_element_type=jnp.float32) + b3_ref[...]
    o_ref[...] = y.astype(o_ref.dtype)


def fc_stack(x, w1, b1, w2, b2, w3, b3):
    N, K = x.shape
    n_out = w3.shape[-1]
    if N >= 16:
        # Larger tiles per review (up to 512 rows), but keep >=2 grid steps for megacore.
        TM = min(512, _round_up(pl.cdiv(N, 2), 8))
    else:
        TM = N
    rep = lambda i: (0, 0)
    return pl.pallas_call(
        _fc_stack_kernel,
        grid=(pl.cdiv(N, TM),),
        out_shape=jax.ShapeDtypeStruct((N, n_out), jnp.float32),
        in_specs=[
            pl.BlockSpec((TM, K), lambda i: (i, 0)),
            pl.BlockSpec(w1.shape, rep), pl.BlockSpec(b1.shape, rep),
            pl.BlockSpec(w2.shape, rep), pl.BlockSpec(b2.shape, rep),
            pl.BlockSpec(w3.shape, rep), pl.BlockSpec(b3.shape, rep),
        ],
        out_specs=pl.BlockSpec((TM, n_out), lambda i: (i, 0)),
        compiler_params=pltpu.CompilerParams(
            dimension_semantics=("parallel",),
            vmem_limit_bytes=_VMEM_LIMIT),
    )(x, w1, b1, w2, b2, w3, b3)


# -------------------------------------- full forward -------------------------------------- #

def convnet_forward(x_nchw, pp):
    """Matches ConvNet.forward.  Input NCHW (N, 1, 28, 28) -> (N, 10) f32 logits."""
    N = x_nchw.shape[0]
    cdt = pp["conv1_we"].dtype
    x = jnp.transpose(x_nchw, (0, 2, 3, 1))                                    # (N, 28, 28, 1)
    y1, n1 = conv_relu_pool(x, pp["conv1_we"], pp["conv1_wo"], pp["conv1_b"],
                            out_dtype=cdt)                                     # (n1*14, 14*16)
    x2 = y1.reshape(n1, 14, 14, 16)                                            # NHWC, cheap glue
    y2, n2 = conv_relu_pool(x2, pp["conv2_we"], pp["conv2_wo"], pp["conv2_b"],
                            out_dtype=cdt)                                     # (n2*7, 7*32)
    feats = y2.reshape(n2, 7 * 7 * 32)[:N]     # NHWC flatten; fc1_w columns pre-permuted to match
    return fc_stack(feats, pp["fc1_w"], pp["fc1_b"], pp["fc2_w"], pp["fc2_b"],
                    pp["fc3_w"], pp["fc3_b"])                                  # (N, 10)


def prepare_params(params, compute_dtype=jnp.bfloat16):
    """One-time (outside jit) weight re-layout.  bf16 MXU operands are the default.

    conv OIHW -> two block-Toeplitz RHS (5*Wp*Cin, U*Cout), one per pooled-column parity;
    biases tiled to (1, U*Cout); fc weights transposed to (K,N), fc1 columns permuted to
    consume the NHWC flatten, hidden dims zero-padded to a lane-dense 128 (exact).
    """
    def conv_prep(w, b, W):
        wn = np.asarray(w, dtype=np.float32)             # (Cout, Cin, 5, 5)
        cout, cin = wn.shape[0], wn.shape[1]
        Wp, U = W + 4, W // 2
        mats = []
        for pw in (0, 1):
            R = np.zeros((5, Wp, cin, U, cout), np.float32)
            for dh in range(5):
                for dw in range(5):
                    wt = wn[:, :, dh, dw].T              # (cin, cout)
                    for u in range(U):
                        R[dh, 2 * u + pw + dw, :, u, :] = wt
            mats.append(jnp.asarray(R.reshape(5 * Wp * cin, U * cout), dtype=compute_dtype))
        b_t = jnp.asarray(np.tile(np.asarray(b, np.float32), U).reshape(1, U * cout))
        return mats[0], mats[1], b_t

    c1e, c1o, c1b = conv_prep(params["w1"], params["b1"], 28)
    c2e, c2o, c2b = conv_prep(params["w2"], params["b2"], 14)

    # torch.flatten on NCHW gives feature index c*49 + h*7 + w; our conv output is
    # NHWC-flattened (h*7 + w)*32 + c, so permute fc1's input columns once, here.
    w1 = np.asarray(params["fc1_w"], np.float32)
    w1 = w1.reshape(120, 32, 7, 7).transpose(0, 2, 3, 1).reshape(120, 1568)
    w1 = np.pad(w1.T, ((0, 0), (0, 8)))                                  # (1568, 128)
    w2 = np.pad(np.asarray(params["fc2_w"], np.float32).T, ((0, 8), (0, 44)))   # (128, 128)
    w3 = np.pad(np.asarray(params["fc3_w"], np.float32).T, ((0, 44), (0, 0)))   # (128, 10)
    b1 = np.pad(np.asarray(params["fc1_b"], np.float32), (0, 8)).reshape(1, 128)
    b2 = np.pad(np.asarray(params["fc2_b"], np.float32), (0, 44)).reshape(1, 128)
    b3 = np.asarray(params["fc3_b"], np.float32).reshape(1, 10)

    return {
        "conv1_we": c1e, "conv1_wo": c1o, "conv1_b": c1b,
        "conv2_we": c2e, "conv2_wo": c2o, "conv2_b": c2b,
        "fc1_w": jnp.asarray(w1, compute_dtype), "fc1_b": jnp.asarray(b1),
        "fc2_w": jnp.asarray(w2, compute_dtype), "fc2_b": jnp.asarray(b2),
        "fc3_w": jnp.asarray(w3, compute_dtype), "fc3_b": jnp.asarray(b3),
    }


# ------------------------------ pure-JAX reference & params ------------------------------ #

def reference_forward(x_nchw, params):
    def conv(x, w, b):
        y = jax.lax.conv_general_dilated(
            x, w, (1, 1), ((2, 2), (2, 2)),
            dimension_numbers=("NCHW", "OIHW", "NCHW"), precision=_HI)
        return jax.nn.relu(y + b[None, :, None, None])

    def pool(x):
        n, c, h, w = x.shape
        return x.reshape(n, c, h // 2, 2, w // 2, 2).max(axis=(3, 5))

    x = pool(conv(x_nchw, params["w1"], params["b1"]))
    x = pool(conv(x, params["w2"], params["b2"]))
    x = x.reshape(x.shape[0], -1)
    x = jax.nn.relu(jnp.dot(x, params["fc1_w"].T, precision=_HI) + params["fc1_b"])
    x = jax.nn.relu(jnp.dot(x, params["fc2_w"].T, precision=_HI) + params["fc2_b"])
    return jnp.dot(x, params["fc3_w"].T, precision=_HI) + params["fc3_b"]


def init_params(key):
    ks = jax.random.split(key, 10)

    def w(k, shape, fan_in):
        return jax.random.normal(k, shape, jnp.float32) / jnp.sqrt(fan_in)

    return {
        "w1": w(ks[0], (16, 1, 5, 5), 1 * 5 * 5),
        "b1": 0.01 * jax.random.normal(ks[1], (16,), jnp.float32),
        "w2": w(ks[2], (32, 16, 5, 5), 16 * 5 * 5),
        "b2": 0.01 * jax.random.normal(ks[3], (32,), jnp.float32),
        "fc1_w": w(ks[4], (120, 1568), 1568),
        "fc1_b": 0.01 * jax.random.normal(ks[5], (120,), jnp.float32),
        "fc2_w": w(ks[6], (84, 120), 120),
        "fc2_b": 0.01 * jax.random.normal(ks[7], (84,), jnp.float32),
        "fc3_w": w(ks[8], (10, 84), 84),
        "fc3_b": 0.01 * jax.random.normal(ks[9], (10,), jnp.float32),
    }


if __name__ == "__main__":
    key = jax.random.PRNGKey(0)
    k_param, k_x = jax.random.split(key)
    params = init_params(k_param)
    # fc1 expects 1568 = 32 * 7 * 7 features -> input must be (N, 1, 28, 28).
    x = jax.random.normal(k_x, (2, 1, 28, 28), jnp.float32)

    ref = jax.block_until_ready(reference_forward(x, params))
    fwd = jax.jit(convnet_forward)

    # f32 operand path: tight correctness gate (was 1e-2; an off-by-one tap would be O(0.1)).
    out32 = jax.block_until_ready(fwd(x, prepare_params(params, jnp.float32)))
    assert out32.shape == (2, 10), out32.shape
    if not jnp.allclose(out32, ref, rtol=1e-4, atol=5e-5):
        raise AssertionError(
            f"Pallas(f32)/reference mismatch: max abs err {jnp.max(jnp.abs(out32 - ref))}")

    # Default bf16 MXU-operand path (f32 accumulate + f32 epilogue).  The loose tolerance
    # intentionally absorbs bf16 quantization of BOTH weights and activations.
    outbf = jax.block_until_ready(fwd(x, prepare_params(params)))
    assert outbf.shape == (2, 10), outbf.shape
    if not jnp.allclose(outbf, ref, rtol=1e-1, atol=1e-1):
        raise AssertionError(
            f"Pallas(bf16)/reference mismatch: max abs err {jnp.max(jnp.abs(outbf - ref))}")

    print("KERNEL_OK")
</pallas_src>

<mosaic_0001>
module attributes {stable_mosaic.version = 11 : i64} {
  func.func @_conv_pool_kernel(%arg0: i32, %arg1: memref<112x160xf32, #tpu.memory_space<vmem>>, %arg2: memref<112x160xf32, #tpu.memory_space<vmem>>, %arg3: memref<160x224xf32, #tpu.memory_space<vmem>>, %arg4: memref<160x224xf32, #tpu.memory_space<vmem>>, %arg5: memref<1x224xf32, #tpu.memory_space<vmem>>, %arg6: memref<112x224xf32, #tpu.memory_space<vmem>>) attributes {dimension_semantics = [#tpu.dimension_semantics<parallel>], iteration_bounds = array<i64: 1>, scalar_prefetch = 0 : i64, scratch_operands = 0 : i64, tpu.core_type = #tpu.core_type<tc>, window_params = [{transform_indices = @transform_0, window_bounds = array<i64: 112, 160>}, {transform_indices = @transform_1, window_bounds = array<i64: 112, 160>}, {pipeline_mode = #tpu.pipeline_mode<synchronous>, transform_indices = @transform_2, window_bounds = array<i64: 160, 224>}, {pipeline_mode = #tpu.pipeline_mode<synchronous>, transform_indices = @transform_3, window_bounds = array<i64: 160, 224>}, {pipeline_mode = #tpu.pipeline_mode<synchronous>, transform_indices = @transform_4, window_bounds = array<i64: 1, 224>}, {transform_indices = @transform_5, window_bounds = array<i64: 112, 224>}]} {
    %c0 = arith.constant 0 : index
    %c0_0 = arith.constant 0 : index
    %0 = vector.load %arg1[%c0, %c0_0] : memref<112x160xf32, #tpu.memory_space<vmem>>, vector<112x160xf32>
    %c0_1 = arith.constant 0 : index
    %c0_2 = arith.constant 0 : index
    %1 = vector.load %arg2[%c0_1, %c0_2] : memref<112x160xf32, #tpu.memory_space<vmem>>, vector<112x160xf32>
    %c0_3 = arith.constant 0 : index
    %c0_4 = arith.constant 0 : index
    %2 = vector.load %arg3[%c0_3, %c0_4] : memref<160x224xf32, #tpu.memory_space<vmem>>, vector<160x224xf32>
    %c0_5 = arith.constant 0 : index
    %c0_6 = arith.constant 0 : index
    %3 = vector.load %arg4[%c0_5, %c0_6] : memref<160x224xf32, #tpu.memory_space<vmem>>, vector<160x224xf32>
    %cst = arith.constant dense<0.000000e+00> : vector<112x224xf32>
    %4 = tpu.matmul %0, %2, %cst {dimension_numbers = #tpu.dot_dimension_numbers<[1], [0], [0], [1], [0, 0, 1, 1], [], []>} : vector<112x160xf32>, vector<160x224xf32>, vector<112x224xf32> -> vector<112x224xf32>
    %cst_7 = arith.constant dense<0.000000e+00> : vector<112x224xf32>
    %5 = tpu.matmul %0, %3, %cst_7 {dimension_numbers = #tpu.dot_dimension_numbers<[1], [0], [0], [1], [0, 0, 1, 1], [], []>} : vector<112x160xf32>, vector<160x224xf32>, vector<112x224xf32> -> vector<112x224xf32>
    %cst_8 = arith.constant dense<0.000000e+00> : vector<112x224xf32>
    %6 = tpu.matmul %1, %2, %cst_8 {dimension_numbers = #tpu.dot_dimension_numbers<[1], [0], [0], [1], [0, 0, 1, 1], [], []>} : vector<112x160xf32>, vector<160x224xf32>, vector<112x224xf32> -> vector<112x224xf32>
    %cst_9 = arith.constant dense<0.000000e+00> : vector<112x224xf32>
    %7 = tpu.matmul %1, %3, %cst_9 {dimension_numbers = #tpu.dot_dimension_numbers<[1], [0], [0], [1], [0, 0, 1, 1], [], []>} : vector<112x160xf32>, vector<160x224xf32>, vector<112x224xf32> -> vector<112x224xf32>
    %8 = arith.maximumf %4, %5 : vector<112x224xf32>
    %9 = arith.maximumf %6, %7 : vector<112x224xf32>
    %10 = arith.maximumf %8, %9 : vector<112x224xf32>
    %c0_10 = arith.constant 0 : index
    %c0_11 = arith.constant 0 : index
    %11 = vector.load %arg5[%c0_10, %c0_11] : memref<1x224xf32, #tpu.memory_space<vmem>>, vector<1x224xf32>
    %12 = vector.broadcast %11 : vector<1x224xf32> to vector<112x224xf32>
    %13 = arith.addf %10, %12 : vector<112x224xf32>
    %cst_12 = arith.constant 0.000000e+00 : f32
    %14 = vector.broadcast %cst_12 : f32 to vector<112x224xf32>
    %15 = arith.maximumf %13, %14 : vector<112x224xf32>
    %c0_13 = arith.constant 0 : index
    %c0_14 = arith.constant 0 : index
    %16 = vector.load %arg6[%c0_13, %c0_14] : memref<112x224xf32, #tpu.memory_space<vmem>>, vector<112x224xf32>
    tpu.vector_store %arg6[%c0_13, %c0_14], %15 {strides = array<i32>} : memref<112x224xf32, #tpu.memory_space<vmem>>, vector<112x224xf32>,
    return
  }
  func.func @transform_0(%arg0: i32) -> (i32, i32) {
    %c0_i32 = arith.constant 0 : i32
    %c0_i32_0 = arith.constant 0 : i32
    return %arg0, %c0_i32 : i32, i32
  }
  func.func @transform_1(%arg0: i32) -> (i32, i32) {
    %c0_i32 = arith.constant 0 : i32
    %c0_i32_0 = arith.constant 0 : i32
    return %arg0, %c0_i32 : i32, i32
  }
  func.func @transform_2(%arg0: i32) -> (i32, i32) {
    %c0_i32 = arith.constant 0 : i32
    %c0_i32_0 = arith.constant 0 : i32
    %c0_i32_1 = arith.constant 0 : i32
    return %c0_i32, %c0_i32_0 : i32, i32
  }
  func.func @transform_3(%arg0: i32) -> (i32, i32) {
    %c0_i32 = arith.constant 0 : i32
    %c0_i32_0 = arith.constant 0 : i32
    %c0_i32_1 = arith.constant 0 : i32
    return %c0_i32, %c0_i32_0 : i32, i32
  }
  func.func @transform_4(%arg0: i32) -> (i32, i32) {
    %c0_i32 = arith.constant 0 : i32
    %c0_i32_0 = arith.constant 0 : i32
    %c0_i32_1 = arith.constant 0 : i32
    return %c0_i32, %c0_i32_0 : i32, i32
  }
  func.func @transform_5(%arg0: i32) -> (i32, i32) {
    %c0_i32 = arith.constant 0 : i32
    %c0_i32_0 = arith.constant 0 : i32
    return %arg0, %c0_i32 : i32, i32
  }
}

module attributes {stable_mosaic.version = 11 : i64} {
  func.func @_conv_pool_kernel(%arg0: i32, %arg1: memref<56x1440xf32, #tpu.memory_space<vmem>>, %arg2: memref<56x1440xf32, #tpu.memory_space<vmem>>, %arg3: memref<1440x224xf32, #tpu.memory_space<vmem>>, %arg4: memref<1440x224xf32, #tpu.memory_space<vmem>>, %arg5: memref<1x224xf32, #tpu.memory_space<vmem>>, %arg6: memref<56x224xf32, #tpu.memory_space<vmem>>) attributes {dimension_semantics = [#tpu.dimension_semantics<parallel>], iteration_bounds = array<i64: 1>, scalar_prefetch = 0 : i64, scratch_operands = 0 : i64, tpu.core_type = #tpu.core_type<tc>, window_params = [{transform_indices = @transform_0, window_bounds = array<i64: 56, 1440>}, {transform_indices = @transform_1, window_bounds = array<i64: 56, 1440>}, {pipeline_mode = #tpu.pipeline_mode<synchronous>, transform_indices = @transform_2, window_bounds = array<i64: 1440, 224>}, {pipeline_mode = #tpu.pipeline_mode<synchronous>, transform_indices = @transform_3, window_bounds = array<i64: 1440, 224>}, {pipeline_mode = #tpu.pipeline_mode<synchronous>, transform_indices = @transform_4, window_bounds = array<i64: 1, 224>}, {transform_indices = @transform_5, window_bounds = array<i64: 56, 224>}]} {
    %c0 = arith.constant 0 : index
    %c0_0 = arith.constant 0 : index
    %0 = vector.load %arg1[%c0, %c0_0] : memref<56x1440xf32, #tpu.memory_space<vmem>>, vector<56x1440xf32>
    %c0_1 = arith.constant 0 : index
    %c0_2 = arith.constant 0 : index
    %1 = vector.load %arg2[%c0_1, %c0_2] : memref<56x1440xf32, #tpu.memory_space<vmem>>, vector<56x1440xf32>
    %c0_3 = arith.constant 0 : index
    %c0_4 = arith.constant 0 : index
    %2 = vector.load %arg3[%c0_3, %c0_4] : memref<1440x224xf32, #tpu.memory_space<vmem>>, vector<1440x224xf32>
    %c0_5 = arith.constant 0 : index
    %c0_6 = arith.constant 0 : index
    %3 = vector.load %arg4[%c0_5, %c0_6] : memref<1440x224xf32, #tpu.memory_space<vmem>>, vector<1440x224xf32>
    %cst = arith.constant dense<0.000000e+00> : vector<56x224xf32>
    %4 = tpu.matmul %0, %2, %cst {dimension_numbers = #tpu.dot_dimension_numbers<[1], [0], [0], [1], [0, 0, 1, 1], [], []>} : vector<56x1440xf32>, vector<1440x224xf32>, vector<56x224xf32> -> vector<56x224xf32>
    %cst_7 = arith.constant dense<0.000000e+00> : vector<56x224xf32>
    %5 = tpu.matmul %0, %3, %cst_7 {dimension_numbers = #tpu.dot_dimension_numbers<[1], [0], [0], [1], [0, 0, 1, 1], [], []>} : vector<56x1440xf32>, vector<1440x224xf32>, vector<56x224xf32> -> vector<56x224xf32>
    %cst_8 = arith.constant dense<0.000000e+00> : vector<56x224xf32>
    %6 = tpu.matmul %1, %2, %cst_8 {dimension_numbers = #tpu.dot_dimension_numbers<[1], [0], [0], [1], [0, 0, 1, 1], [], []>} : vector<56x1440xf32>, vector<1440x224xf32>, vector<56x224xf32> -> vector<56x224xf32>
    %cst_9 = arith.constant dense<0.000000e+00> : vector<56x224xf32>
    %7 = tpu.matmul %1, %3, %cst_9 {dimension_numbers = #tpu.dot_dimension_numbers<[1], [0], [0], [1], [0, 0, 1, 1], [], []>} : vector<56x1440xf32>, vector<1440x224xf32>, vector<56x224xf32> -> vector<56x224xf32>
    %8 = arith.maximumf %4, %5 : vector<56x224xf32>
    %9 = arith.maximumf %6, %7 : vector<56x224xf32>
    %10 = arith.maximumf %8, %9 : vector<56x224xf32>
    %c0_10 = arith.constant 0 : index
    %c0_11 = arith.constant 0 : index
    %11 = vector.load %arg5[%c0_10, %c0_11] : memref<1x224xf32, #tpu.memory_space<vmem>>, vector<1x224xf32>
    %12 = vector.broadcast %11 : vector<1x224xf32> to vector<56x224xf32>
    %13 = arith.addf %10, %12 : vector<56x224xf32>
    %cst_12 = arith.constant 0.000000e+00 : f32
    %14 = vector.broadcast %cst_12 : f32 to vector<56x224xf32>
    %15 = arith.maximumf %13, %14 : vector<56x224xf32>
    %c0_13 = arith.constant 0 : index
    %c0_14 = arith.constant 0 : index
    %16 = vector.load %arg6[%c0_13, %c0_14] : memref<56x224xf32, #tpu.memory_space<vmem>>, vector<56x224xf32>
    tpu.vector_store %arg6[%c0_13, %c0_14], %15 {strides = array<i32>} : memref<56x224xf32, #tpu.memory_space<vmem>>, vector<56x224xf32>,
    return
  }
  func.func @transform_0(%arg0: i32) -> (i32, i32) {
    %c0_i32 = arith.constant 0 : i32
    %c0_i32_0 = arith.constant 0 : i32
    return %arg0, %c0_i32 : i32, i32
  }
  func.func @transform_1(%arg0: i32) -> (i32, i32) {
    %c0_i32 = arith.constant 0 : i32
    %c0_i32_0 = arith.constant 0 : i32
    return %arg0, %c0_i32 : i32, i32
  }
  func.func @transform_2(%arg0: i32) -> (i32, i32) {
    %c0_i32 = arith.constant 0 : i32
    %c0_i32_0 = arith.constant 0 : i32
    %c0_i32_1 = arith.constant 0 : i32
    return %c0_i32, %c0_i32_0 : i32, i32
  }
  func.func @transform_3(%arg0: i32) -> (i32, i32) {
    %c0_i32 = arith.constant 0 : i32
    %c0_i32_0 = arith.constant 0 : i32
    %c0_i32_1 = arith.constant 0 : i32
    return %c0_i32, %c0_i32_0 : i32, i32
  }
  func.func @transform_4(%arg0: i32) -> (i32, i32) {
    %c0_i32 = arith.constant 0 : i32
    %c0_i32_0 = arith.constant 0 : i32
    %c0_i32_1 = arith.constant 0 : i32
    return %c0_i32, %c0_i32_0 : i32, i32
  }
  func.func @transform_5(%arg0: i32) -> (i32, i32) {
    %c0_i32 = arith.constant 0 : i32
    %c0_i32_0 = arith.constant 0 : i32
    return %arg0, %c0_i32 : i32, i32
  }
}

module attributes {stable_mosaic.version = 11 : i64} {
  func.func @_fc_stack_kernel(%arg0: i32, %arg1: memref<2x1568xf32, #tpu.memory_space<vmem>>, %arg2: memref<1568x128xf32, #tpu.memory_space<vmem>>, %arg3: memref<1x128xf32, #tpu.memory_space<vmem>>, %arg4: memref<128x128xf32, #tpu.memory_space<vmem>>, %arg5: memref<1x128xf32, #tpu.memory_space<vmem>>, %arg6: memref<128x10xf32, #tpu.memory_space<vmem>>, %arg7: memref<1x10xf32, #tpu.memory_space<vmem>>, %arg8: memref<2x10xf32, #tpu.memory_space<vmem>>) attributes {dimension_semantics = [#tpu.dimension_semantics<parallel>], iteration_bounds = array<i64: 1>, scalar_prefetch = 0 : i64, scratch_operands = 0 : i64, tpu.core_type = #tpu.core_type<tc>, window_params = [{transform_indices = @transform_0, window_bounds = array<i64: 2, 1568>}, {pipeline_mode = #tpu.pipeline_mode<synchronous>, transform_indices = @transform_1, window_bounds = array<i64: 1568, 128>}, {pipeline_mode = #tpu.pipeline_mode<synchronous>, transform_indices = @transform_2, window_bounds = array<i64: 1, 128>}, {pipeline_mode = #tpu.pipeline_mode<synchronous>, transform_indices = @transform_3, window_bounds = array<i64: 128, 128>}, {pipeline_mode = #tpu.pipeline_mode<synchronous>, transform_indices = @transform_4, window_bounds = array<i64: 1, 128>}, {pipeline_mode = #tpu.pipeline_mode<synchronous>, transform_indices = @transform_5, window_bounds = array<i64: 128, 10>}, {pipeline_mode = #tpu.pipeline_mode<synchronous>, transform_indices = @transform_6, window_bounds = array<i64: 1, 10>}, {transform_indices = @transform_7, window_bounds = array<i64: 2, 10>}]} {
    %c0 = arith.constant 0 : index
    %c0_0 = arith.constant 0 : index
    %0 = vector.load %arg1[%c0, %c0_0] : memref<2x1568xf32, #tpu.memory_space<vmem>>, vector<2x1568xf32>
    %c0_1 = arith.constant 0 : index
    %c0_2 = arith.constant 0 : index
    %1 = vector.load %arg2[%c0_1, %c0_2] : memref<1568x128xf32, #tpu.memory_space<vmem>>, vector<1568x128xf32>
    %cst = arith.constant dense<0.000000e+00> : vector<2x128xf32>
    %2 = tpu.matmul %0, %1, %cst {dimension_numbers = #tpu.dot_dimension_numbers<[1], [0], [0], [1], [0, 0, 1, 1], [], []>} : vector<2x1568xf32>, vector<1568x128xf32>, vector<2x128xf32> -> vector<2x128xf32>
    %c0_3 = arith.constant 0 : index
    %c0_4 = arith.constant 0 : index
    %3 = vector.load %arg3[%c0_3, %c0_4] : memref<1x128xf32, #tpu.memory_space<vmem>>, vector<1x128xf32>
    %4 = vector.broadcast %3 : vector<1x128xf32> to vector<2x128xf32>
    %5 = arith.addf %2, %4 : vector<2x128xf32>
    %cst_5 = arith.constant 0.000000e+00 : f32
    %6 = vector.broadcast %cst_5 : f32 to vector<2x128xf32>
    %7 = arith.maximumf %5, %6 : vector<2x128xf32>
    %c0_6 = arith.constant 0 : index
    %c0_7 = arith.constant 0 : index
    %8 = vector.load %arg4[%c0_6, %c0_7] : memref<128x128xf32, #tpu.memory_space<vmem>>, vector<128x128xf32>
    %cst_8 = arith.constant dense<0.000000e+00> : vector<2x128xf32>
    %9 = tpu.matmul %7, %8, %cst_8 {dimension_numbers = #tpu.dot_dimension_numbers<[1], [0], [0], [1], [0, 0, 1, 1], [], []>} : vector<2x128xf32>, vector<128x128xf32>, vector<2x128xf32> -> vector<2x128xf32>
    %c0_9 = arith.constant 0 : index
    %c0_10 = arith.constant 0 : index
    %10 = vector.load %arg5[%c0_9, %c0_10] : memref<1x128xf32, #tpu.memory_space<vmem>>, vector<1x128xf32>
    %11 = vector.broadcast %10 : vector<1x128xf32> to vector<2x128xf32>
    %12 = arith.addf %9, %11 : vector<2x128xf32>
    %cst_11 = arith.constant 0.000000e+00 : f32
    %13 = vector.broadcast %cst_11 : f32 to vector<2x128xf32>
    %14 = arith.maximumf %12, %13 : vector<2x128xf32>
    %c0_12 = arith.constant 0 : index
    %c0_13 = arith.constant 0 : index
    %15 = vector.load %arg6[%c0_12, %c0_13] : memref<128x10xf32, #tpu.memory_space<vmem>>, vector<128x10xf32>
    %cst_14 = arith.constant dense<0.000000e+00> : vector<2x10xf32>
    %16 = tpu.matmul %14, %15, %cst_14 {dimension_numbers = #tpu.dot_dimension_numbers<[1], [0], [0], [1], [0, 0, 1, 1], [], []>} : vector<2x128xf32>, vector<128x10xf32>, vector<2x10xf32> -> vector<2x10xf32>
    %c0_15 = arith.constant 0 : index
    %c0_16 = arith.constant 0 : index
    %17 = vector.load %arg7[%c0_15, %c0_16] : memref<1x10xf32, #tpu.memory_space<vmem>>, vector<1x10xf32>
    %18 = vector.broadcast %17 : vector<1x10xf32> to vector<2x10xf32>
    %19 = arith.addf %16, %18 : vector<2x10xf32>
    %c0_17 = arith.constant 0 : index
    %c0_18 = arith.constant 0 : index
    %20 = vector.load %arg8[%c0_17, %c0_18] : memref<2x10xf32, #tpu.memory_space<vmem>>, vector<2x10xf32>
    tpu.vector_store %arg8[%c0_17, %c0_18], %19 {strides = array<i32>} : memref<2x10xf32, #tpu.memory_space<vmem>>, vector<2x10xf32>,
    return
  }
  func.func @transform_0(%arg0: i32) -> (i32, i32) {
    %c0_i32 = arith.constant 0 : i32
    %c0_i32_0 = arith.constant 0 : i32
    return %arg0, %c0_i32 : i32, i32
  }
  func.func @transform_1(%arg0: i32) -> (i32, i32) {
    %c0_i32 = arith.constant 0 : i32
    %c0_i32_0 = arith.constant 0 : i32
    %c0_i32_1 = arith.constant 0 : i32
    return %c0_i32, %c0_i32_0 : i32, i32
  }
  func.func @transform_2(%arg0: i32) -> (i32, i32) {
    %c0_i32 = arith.constant 0 : i32
    %c0_i32_0 = arith.constant 0 : i32
    %c0_i32_1 = arith.constant 0 : i32
    return %c0_i32, %c0_i32_0 : i32, i32
  }
  func.func @transform_3(%arg0: i32) -> (i32, i32) {
    %c0_i32 = arith.constant 0 : i32
    %c0_i32_0 = arith.constant 0 : i32
    %c0_i32_1 = arith.constant 0 : i32
    return %c0_i32, %c0_i32_0 : i32, i32
  }
  func.func @transform_4(%arg0: i32) -> (i32, i32) {
    %c0_i32 = arith.constant 0 : i32
    %c0_i32_0 = arith.constant 0 : i32
    %c0_i32_1 = arith.constant 0 : i32
    return %c0_i32, %c0_i32_0 : i32, i32
  }
  func.func @transform_5(%arg0: i32) -> (i32, i32) {
    %c0_i32 = arith.constant 0 : i32
    %c0_i32_0 = arith.constant 0 : i32
    %c0_i32_1 = arith.constant 0 : i32
    return %c0_i32, %c0_i32_0 : i32, i32
  }
  func.func @transform_6(%arg0: i32) -> (i32, i32) {
    %c0_i32 = arith.constant 0 : i32
    %c0_i32_0 = arith.constant 0 : i32
    %c0_i32_1 = arith.constant 0 : i32
    return %c0_i32, %c0_i32_0 : i32, i32
  }
  func.func @transform_7(%arg0: i32) -> (i32, i32) {
    %c0_i32 = arith.constant 0 : i32
    %c0_i32_0 = arith.constant 0 : i32
    return %arg0, %c0_i32 : i32, i32
  }
}

</mosaic_0001>

<llo_original>
// kernel: convnet_forward.3
$region0: #{convnet_forward.3}
  #allocation0 [shape = 'u32[]', space=smem, size = 0x4, offset = 0x4, fixed_abs, tag = 'smem constant byte address 0x4 - core index']
  #allocation1 [shape = 'u32[72,128]{1,0:T(1,128)}', space=vmem, size = 0x9000, scoped, tag = 'internal scratch']
  %s0 = inlined_call_operand.vmem [shape: f32[112,160], index: 0, kind: input, shape index: {}]
  %s1 = inlined_call_operand.vmem [shape: f32[112,160], index: 1, kind: input, shape index: {}]
  %s2 = inlined_call_operand.vmem [shape: f32[160,224], index: 2, kind: input, shape index: {}]
  %s3 = inlined_call_operand.vmem [shape: f32[160,224], index: 3, kind: input, shape index: {}]
  %s4 = inlined_call_operand.vmem [shape: f32[1,224], index: 4, kind: input, shape index: {}]
  %s5 = inlined_call_operand.vmem [shape: f32[112,224], index: 5, kind: output, shape index: {}]
  %s6 = sld [smem:[#allocation0]]
  $region30: #{convnet_forward.3} parent=0
    _
  %s8 = ssub.s32 1, %s6
  %s9 = scalar_select 0, %s8, %s6
  // Predicated region
  $region2: #{convnet_forward.3} parent=0 // pred_check
    _
  $region3: #{convnet_forward.3} parent=0 // pred_check_branch
    %11 = sbr.rel (0) target = $region5
  $region4: #{convnet_forward.3} parent=0 // pred_region
    _
  $region5: #{convnet_forward.3} parent=0 // pred_fallthru
    _
  // Predicated region
  $region6: #{convnet_forward.3} parent=0 // pred_check
    _
  $region7: #{convnet_forward.3} parent=0 // pred_check_branch
    %13 = sbr.rel (0) target = $region9
  $region8: #{convnet_forward.3} parent=0 // pred_region
    _
  $region9: #{convnet_forward.3} parent=0 // pred_fallthru
    _
  // Predicated region
  $region10: #{convnet_forward.3} parent=0 // pred_check
    _
  $region11: #{convnet_forward.3} parent=0 // pred_check_branch
    %15 = sbr.rel (0) target = $region13
  $region12: #{convnet_forward.3} parent=0 // pred_region
    _
  $region13: #{convnet_forward.3} parent=0 // pred_fallthru
    _
  // Predicated region
  $region14: #{convnet_forward.3} parent=0 // pred_check
    _
  $region15: #{convnet_forward.3} parent=0 // pred_check_branch
    %17 = sbr.rel (0) target = $region17
  $region16: #{convnet_forward.3} parent=0 // pred_region
    _
  $region17: #{convnet_forward.3} parent=0 // pred_fallthru
    _
  // Predicated region
  $region18: #{convnet_forward.3} parent=0 // pred_check
    _
  $region19: #{convnet_forward.3} parent=0 // pred_check_branch
    %19 = sbr.rel (0) target = $region21
  $region20: #{convnet_forward.3} parent=0 // pred_region
    _
  $region21: #{convnet_forward.3} parent=0 // pred_fallthru
    _
  %v20 = vld [vmem:[%s0] sm:$0xff]
  %v21 = vld [vmem:[%s0 + $0x8] sm:$0xff]
  %v22 = vld [vmem:[%s0 + $0x10] sm:$0xff]
  %v23 = vld [vmem:[%s0 + $0x18] sm:$0xff]
  %v24 = vld [vmem:[%s0 + $0x20] sm:$0xff]
  %v25 = vld [vmem:[%s0 + $0x28] sm:$0xff]
  %v26 = vld [vmem:[%s0 + $0x30] sm:$0xff]
  %v27 = vld [vmem:[%s0 + $0x38] sm:$0xff]
  %v28 = vld [vmem:[%s0 + $0x40] sm:$0xff]
  %v29 = vld [vmem:[%s0 + $0x48] sm:$0xff]
  %v30 = vld [vmem:[%s0 + $0x50] sm:$0xff]
  %v31 = vld [vmem:[%s0 + $0x58] sm:$0xff]
  %v32 = vld [vmem:[%s0 + $0x60] sm:$0xff]
  %v33 = vld [vmem:[%s0 + $0x68] sm:$0xff]
  %v34 = vld [vmem:[%s0 + $0x70] sm:$0xff]
  %v35 = vld [vmem:[%s0 + $0x78] sm:$0xff]
  %v36 = vld [vmem:[%s0 + $0x80] sm:$0xff]
  %v37 = vld [vmem:[%s0 + $0x88] sm:$0xff]
  %v38 = vld [vmem:[%s0 + $0x90] sm:$0xff]
  %v39 = vld [vmem:[%s0 + $0x98] sm:$0xff]
  %v40 = vld [vmem:[%s0 + $0xa0] sm:$0xff]
  %v41 = vld [vmem:[%s0 + $0xa8] sm:$0xff]
  %v42 = vld [vmem:[%s0 + $0xb0] sm:$0xff]
  %v43 = vld [vmem:[%s0 + $0xb8] sm:$0xff]
  %v44 = vld [vmem:[%s0 + $0xc0] sm:$0xff]
  %v45 = vld [vmem:[%s0 + $0xc8] sm:$0xff]
  %v46 = vld [vmem:[%s0 + $0xd0] sm:$0xff]
  %v47 = vld [vmem:[%s0 + $0xd8] sm:$0xff]
  %v48 = vld [vmem:[%s1] sm:$0xff]
  %v49 = vld [vmem:[%s1 + $0x8] sm:$0xff]
  %v50 = vld [vmem:[%s1 + $0x10] sm:$0xff]
  %v51 = vld [vmem:[%s1 + $0x18] sm:$0xff]
  %v52 = vld [vmem:[%s1 + $0x20] sm:$0xff]
  %v53 = vld [vmem:[%s1 + $0x28] sm:$0xff]
  %v54 = vld [vmem:[%s1 + $0x30] sm:$0xff]
  %v55 = vld [vmem:[%s1 + $0x38] sm:$0xff]
  %v56 = vld [vmem:[%s1 + $0x40] sm:$0xff]
  %v57 = vld [vmem:[%s1 + $0x48] sm:$0xff]
  %v58 = vld [vmem:[%s1 + $0x50] sm:$0xff]
  %v59 = vld [vmem:[%s1 + $0x58] sm:$0xff]
  %v60 = vld [vmem:[%s1 + $0x60] sm:$0xff]
  %v61 = vld [vmem:[%s1 + $0x68] sm:$0xff]
  %v62 = vld [vmem:[%s1 + $0x70] sm:$0xff]
  %v63 = vld [vmem:[%s1 + $0x78] sm:$0xff]
  %v64 = vld [vmem:[%s1 + $0x80] sm:$0xff]
  %v65 = vld [vmem:[%s1 + $0x88] sm:$0xff]
  %v66 = vld [vmem:[%s1 + $0x90] sm:$0xff]
  %v67 = vld [vmem:[%s1 + $0x98] sm:$0xff]
  %v68 = vld [vmem:[%s1 + $0xa0] sm:$0xff]
  %v69 = vld [vmem:[%s1 + $0xa8] sm:$0xff]
  %v70 = vld [vmem:[%s1 + $0xb0] sm:$0xff]
  %v71 = vld [vmem:[%s1 + $0xb8] sm:$0xff]
  %v72 = vld [vmem:[%s1 + $0xc0] sm:$0xff]
  %v73 = vld [vmem:[%s1 + $0xc8] sm:$0xff]
  %v74 = vld [vmem:[%s1 + $0xd0] sm:$0xff]
  %v75 = vld [vmem:[%s1 + $0xd8] sm:$0xff]
  %v76 = vld [vmem:[%s2] sm:$0xff]
  %v77 = vld [vmem:[%s2 + $0x8] sm:$0xff]
  %v78 = vld [vmem:[%s2 + $0x10] sm:$0xff]
  %v79 = vld [vmem:[%s2 + $0x18] sm:$0xff]
  %v80 = vld [vmem:[%s2 + $0x20] sm:$0xff]
  %v81 = vld [vmem:[%s2 + $0x28] sm:$0xff]
  %v82 = vld [vmem:[%s2 + $0x30] sm:$0xff]
  %v83 = vld [vmem:[%s2 + $0x38] sm:$0xff]
  %v84 = vld [vmem:[%s2 + $0x40] sm:$0xff]
  %v85 = vld [vmem:[%s2 + $0x48] sm:$0xff]
  %v86 = vld [vmem:[%s2 + $0x50] sm:$0xff]
  %v87 = vld [vmem:[%s2 + $0x58] sm:$0xff]
  %v88 = vld [vmem:[%s2 + $0x60] sm:$0xff]
  %v89 = vld [vmem:[%s2 + $0x68] sm:$0xff]
  %v90 = vld [vmem:[%s2 + $0x70] sm:$0xff]
  %v91 = vld [vmem:[%s2 + $0x78] sm:$0xff]
  %v92 = vld [vmem:[%s2 + $0x80] sm:$0xff]
  %v93 = vld [vmem:[%s2 + $0x88] sm:$0xff]
  %v94 = vld [vmem:[%s2 + $0x90] sm:$0xff]
  %v95 = vld [vmem:[%s2 + $0x98] sm:$0xff]
  %v96 = vld [vmem:[%s2 + $0xa0] sm:$0xff]
  %v97 = vld [vmem:[%s2 + $0xa8] sm:$0xff]
  %v98 = vld [vmem:[%s2 + $0xb0] sm:$0xff]
  %v99 = vld [vmem:[%s2 + $0xb8] sm:$0xff]
  %v100 = vld [vmem:[%s2 + $0xc0] sm:$0xff]
  %v101 = vld [vmem:[%s2 + $0xc8] sm:$0xff]
  %v102 = vld [vmem:[%s2 + $0xd0] sm:$0xff]
  %v103 = vld [vmem:[%s2 + $0xd8] sm:$0xff]
  %v104 = vld [vmem:[%s2 + $0xe0] sm:$0xff]
  %v105 = vld [vmem:[%s2 + $0xe8] sm:$0xff]
  %v106 = vld [vmem:[%s2 + $0xf0] sm:$0xff]
  %v107 = vld [vmem:[%s2 + $0xf8] sm:$0xff]
  %v108 = vld [vmem:[%s2 + $0x100] sm:$0xff]
  %v109 = vld [vmem:[%s2 + $0x108] sm:$0xff]
  %v110 = vld [vmem:[%s2 + $0x110] sm:$0xff]
  %v111 = vld [vmem:[%s2 + $0x118] sm:$0xff]
  %v112 = vld [vmem:[%s2 + $0x120] sm:$0xff]
  %v113 = vld [vmem:[%s2 + $0x128] sm:$0xff]
  %v114 = vld [vmem:[%s2 + $0x130] sm:$0xff]
  %v115 = vld [vmem:[%s2 + $0x138] sm:$0xff]
  %v116 = vld [vmem:[%s3] sm:$0xff]
  %v117 = vld [vmem:[%s3 + $0x8] sm:$0xff]
  %v118 = vld [vmem:[%s3 + $0x10] sm:$0xff]
  %v119 = vld [vmem:[%s3 + $0x18] sm:$0xff]
  %v120 = vld [vmem:[%s3 + $0x20] sm:$0xff]
  %v121 = vld [vmem:[%s3 + $0x28] sm:$0xff]
  %v122 = vld [vmem:[%s3 + $0x30] sm:$0xff]
  %v123 = vld [vmem:[%s3 + $0x38] sm:$0xff]
  %v124 = vld [vmem:[%s3 + $0x40] sm:$0xff]
  %v125 = vld [vmem:[%s3 + $0x48] sm:$0xff]
  %v126 = vld [vmem:[%s3 + $0x50] sm:$0xff]
  %v127 = vld [vmem:[%s3 + $0x58] sm:$0xff]
  %v128 = vld [vmem:[%s3 + $0x60] sm:$0xff]
  %v129 = vld [vmem:[%s3 + $0x68] sm:$0xff]
  %v130 = vld [vmem:[%s3 + $0x70] sm:$0xff]
  %v131 = vld [vmem:[%s3 + $0x78] sm:$0xff]
  %v132 = vld [vmem:[%s3 + $0x80] sm:$0xff]
  %v133 = vld [vmem:[%s3 + $0x88] sm:$0xff]
  %v134 = vld [vmem:[%s3 + $0x90] sm:$0xff]
  %v135 = vld [vmem:[%s3 + $0x98] sm:$0xff]
  %v136 = vld [vmem:[%s3 + $0xa0] sm:$0xff]
  %v137 = vld [vmem:[%s3 + $0xa8] sm:$0xff]
  %v138 = vld [vmem:[%s3 + $0xb0] sm:$0xff]
  %v139 = vld [vmem:[%s3 + $0xb8] sm:$0xff]
  %v140 = vld [vmem:[%s3 + $0xc0] sm:$0xff]
  %v141 = vld [vmem:[%s3 + $0xc8] sm:$0xff]
  %v142 = vld [vmem:[%s3 + $0xd0] sm:$0xff]
  %v143 = vld [vmem:[%s3 + $0xd8] sm:$0xff]
  %v144 = vld [vmem:[%s3 + $0xe0] sm:$0xff]
  %v145 = vld [vmem:[%s3 + $0xe8] sm:$0xff]
  %v146 = vld [vmem:[%s3 + $0xf0] sm:$0xff]
  %v147 = vld [vmem:[%s3 + $0xf8] sm:$0xff]
  %v148 = vld [vmem:[%s3 + $0x100] sm:$0xff]
  %v149 = vld [vmem:[%s3 + $0x108] sm:$0xff]
  %v150 = vld [vmem:[%s3 + $0x110] sm:$0xff]
  %v151 = vld [vmem:[%s3 + $0x118] sm:$0xff]
  %v152 = vld [vmem:[%s3 + $0x120] sm:$0xff]
  %v153 = vld [vmem:[%s3 + $0x128] sm:$0xff]
  %v154 = vld [vmem:[%s3 + $0x130] sm:$0xff]
  %v155 = vld [vmem:[%s3 + $0x138] sm:$0xff]
  %vm156 = vcmask 261120
  %v158 = vsel %vm156, %v21, 0
  %v161 = vsel %vm156, %v23, 0
  %v164 = vsel %vm156, %v25, 0
  %v167 = vsel %vm156, %v27, 0
  %v170 = vsel %vm156, %v29, 0
  %v173 = vsel %vm156, %v31, 0
  %v176 = vsel %vm156, %v33, 0
  %v179 = vsel %vm156, %v35, 0
  %v182 = vsel %vm156, %v37, 0
  %v185 = vsel %vm156, %v39, 0
  %v188 = vsel %vm156, %v41, 0
  %v191 = vsel %vm156, %v43, 0
  %v194 = vsel %vm156, %v45, 0
  %v197 = vsel %vm156, %v47, 0
  %199 = vmatpush.msra.mxu0 %v106
  %200 = vmatpush.msra.mxu0 %v104
  %201 = vmatpush.msra.mxu0 %v102
  %202 = vmatpush.msra.mxu0 %v100
  %203 = vmatpush.msra.mxu0 %v98
  %204 = vmatpush.msra.mxu0 %v96
  %205 = vmatpush.msra.mxu0 %v94
  %206 = vmatpush.msra.mxu0 %v92
  %207 = vmatpush.msra.mxu0 %v90
  %208 = vmatpush.msra.mxu0 %v88
  %209 = vmatpush.msra.mxu0 %v86
  %210 = vmatpush.msra.mxu0 %v84
  %211 = vmatpush.msra.mxu0 %v82
  %212 = vmatpush.msra.mxu0 %v80
  %213 = vmatpush.msra.mxu0 %v78
  %214 = vmatpush.msra.mxu0 %v76
  %215 = vmatmul.f32.gmra.mxu0 %v20
  %v216 = vpop.f32.mrf.mxu0
  %v217 = vadd.f32 0.0, %v216
  %218 = vmatmul.f32.gmra.mxu0 %v22
  %v219 = vpop.f32.mrf.mxu0
  %v220 = vadd.f32 0.0, %v219
  %221 = vmatmul.f32.gmra.mxu0 %v24
  %v222 = vpop.f32.mrf.mxu0
  %v223 = vadd.f32 0.0, %v222
  %224 = vmatmul.f32.gmra.mxu0 %v26
  %v225 = vpop.f32.mrf.mxu0
  %v226 = vadd.f32 0.0, %v225
  %227 = vmatmul.f32.gmra.mxu0 %v28
  %v228 = vpop.f32.mrf.mxu0
  %v229 = vadd.f32 0.0, %v228
  %230 = vmatmul.f32.gmra.mxu0 %v30
  %v231 = vpop.f32.mrf.mxu0
  %v232 = vadd.f32 0.0, %v231
  %233 = vmatmul.f32.gmra.mxu0 %v32
  %v234 = vpop.f32.mrf.mxu0
  %v235 = vadd.f32 0.0, %v234
  %236 = vmatmul.f32.gmra.mxu0 %v34
  %v237 = vpop.f32.mrf.mxu0
  %v238 = vadd.f32 0.0, %v237
  %239 = vmatmul.f32.gmra.mxu0 %v36
  %v240 = vpop.f32.mrf.mxu0
  %v241 = vadd.f32 0.0, %v240
  %242 = vmatmul.f32.gmra.mxu0 %v38
  %v243 = vpop.f32.mrf.mxu0
  %v244 = vadd.f32 0.0, %v243
  %245 = vmatmul.f32.gmra.mxu0 %v40
  %v246 = vpop.f32.mrf.mxu0
  %v247 = vadd.f32 0.0, %v246
  %248 = vmatmul.f32.gmra.mxu0 %v42
  %v249 = vpop.f32.mrf.mxu0
  %v250 = vadd.f32 0.0, %v249
  %251 = vmatmul.f32.gmra.mxu0 %v44
  %v252 = vpop.f32.mrf.mxu0
  %v253 = vadd.f32 0.0, %v252
  %254 = vmatmul.f32.gmra.mxu0 %v46
  %v255 = vpop.f32.mrf.mxu0
  %v256 = vadd.f32 0.0, %v255
  %257 = vdwg.mxu0
  %258 = vmatpush.msra.mxu0 0.0
  %259 = vmatpush.msra.mxu0 0.0
  %260 = vmatpush.msra.mxu0 0.0
  %261 = vmatpush.msra.mxu0 0.0
  %262 = vmatpush.msra.mxu0 0.0
  %263 = vmatpush.msra.mxu0 0.0
  %264 = vmatpush.msra.mxu0 0.0
  %265 = vmatpush.msra.mxu0 0.0
  %266 = vmatpush.msra.mxu0 0.0
  %267 = vmatpush.msra.mxu0 0.0
  %268 = vmatpush.msra.mxu0 0.0
  %269 = vmatpush.msra.mxu0 0.0
  %270 = vmatpush.msra.mxu0 %v114
  %271 = vmatpush.msra.mxu0 %v112
  %272 = vmatpush.msra.mxu0 %v110
  %273 = vmatpush.msra.mxu0 %v108
  %274 = vmatmul.f32.gmra.mxu0 %v158
  %v275 = vpop.f32.mrf.mxu0
  %v276 = vadd.f32 %v217, %v275
  %277 = vmatmul.f32.gmra.mxu0 %v161
  %v278 = vpop.f32.mrf.mxu0
  %v279 = vadd.f32 %v220, %v278
  %280 = vmatmul.f32.gmra.mxu0 %v164
  %v281 = vpop.f32.mrf.mxu0
  %v282 = vadd.f32 %v223, %v281
  %283 = vmatmul.f32.gmra.mxu0 %v167
  %v284 = vpop.f32.mrf.mxu0
  %v285 = vadd.f32 %v226, %v284
  %286 = vmatmul.f32.gmra.mxu0 %v170
  %v287 = vpop.f32.mrf.mxu0
  %v288 = vadd.f32 %v229, %v287
  %289 = vmatmul.f32.gmra.mxu0 %v173
  %v290 = vpop.f32.mrf.mxu0
  %v291 = vadd.f32 %v232, %v290
  %292 = vmatmul.f32.gmra.mxu0 %v176
  %v293 = vpop.f32.mrf.mxu0
  %v294 = vadd.f32 %v235, %v293
  %295 = vmatmul.f32.gmra.mxu0 %v179
  %v296 = vpop.f32.mrf.mxu0
  %v297 = vadd.f32 %v238, %v296
  %298 = vmatmul.f32.gmra.mxu0 %v182
  %v299 = vpop.f32.mrf.mxu0
  %v300 = vadd.f32 %v241, %v299
  %301 = vmatmul.f32.gmra.mxu0 %v185
  %v302 = vpop.f32.mrf.mxu0
  %v303 = vadd.f32 %v244, %v302
  %304 = vmatmul.f32.gmra.mxu0 %v188
  %v305 = vpop.f32.mrf.mxu0
  %v306 = vadd.f32 %v247, %v305
  %307 = vmatmul.f32.gmra.mxu0 %v191
  %v308 = vpop.f32.mrf.mxu0
  %v309 = vadd.f32 %v250, %v308
  %310 = vmatmul.f32.gmra.mxu0 %v194
  %v311 = vpop.f32.mrf.mxu0
  %v312 = vadd.f32 %v253, %v311
  %313 = vmatmul.f32.gmra.mxu0 %v197
  %v314 = vpop.f32.mrf.mxu0
  %v315 = vadd.f32 %v256, %v314
  %316 = vdwg.mxu0
  %317 = vmatpush.msra.mxu0 %v107
  %318 = vmatpush.msra.mxu0 %v105
  %319 = vmatpush.msra.mxu0 %v103
  %320 = vmatpush.msra.mxu0 %v101
  %321 = vmatpush.msra.mxu0 %v99
  %322 = vmatpush.msra.mxu0 %v97
  %323 = vmatpush.msra.mxu0 %v95
  %324 = vmatpush.msra.mxu0 %v93
  %325 = vmatpush.msra.mxu0 %v91
  %326 = vmatpush.msra.mxu0 %v89
  %327 = vmatpush.msra.mxu0 %v87
  %328 = vmatpush.msra.mxu0 %v85
  %329 = vmatpush.msra.mxu0 %v83
  %330 = vmatpush.msra.mxu0 %v81
  %331 = vmatpush.msra.mxu0 %v79
  %332 = vmatpush.msra.mxu0 %v77
  %333 = vmatmul.f32.gmra.mxu0 %v20
  %v334 = vpop.f32.mrf.mxu0
  %v335 = vadd.f32 0.0, %v334
  %336 = vmatmul.f32.gmra.mxu0 %v22
  %v337 = vpop.f32.mrf.mxu0
  %v338 = vadd.f32 0.0, %v337
  %339 = vmatmul.f32.gmra.mxu0 %v24
  %v340 = vpop.f32.mrf.mxu0
  %v341 = vadd.f32 0.0, %v340
  %342 = vmatmul.f32.gmra.mxu0 %v26
  %v343 = vpop.f32.mrf.mxu0
  %v344 = vadd.f32 0.0, %v343
  %345 = vmatmul.f32.gmra.mxu0 %v28
  %v346 = vpop.f32.mrf.mxu0
  %v347 = vadd.f32 0.0, %v346
  %348 = vmatmul.f32.gmra.mxu0 %v30
  %v349 = vpop.f32.mrf.mxu0
  %v350 = vadd.f32 0.0, %v349
  %351 = vmatmul.f32.gmra.mxu0 %v32
  %v352 = vpop.f32.mrf.mxu0
  %v353 = vadd.f32 0.0, %v352
  %354 = vmatmul.f32.gmra.mxu0 %v34
  %v355 = vpop.f32.mrf.mxu0
  %v356 = vadd.f32 0.0, %v355
  %357 = vmatmul.f32.gmra.mxu0 %v36
  %v358 = vpop.f32.mrf.mxu0
  %v359 = vadd.f32 0.0, %v358
  %360 = vmatmul.f32.gmra.mxu0 %v38
  %v361 = vpop.f32.mrf.mxu0
  %v362 = vadd.f32 0.0, %v361
  %363 = vmatmul.f32.gmra.mxu0 %v40
  %v364 = vpop.f32.mrf.mxu0
  %v365 = vadd.f32 0.0, %v364
  %366 = vmatmul.f32.gmra.mxu0 %v42
  %v367 = vpop.f32.mrf.mxu0
  %v368 = vadd.f32 0.0, %v367
  %369 = vmatmul.f32.gmra.mxu0 %v44
  %v370 = vpop.f32.mrf.mxu0
  %v371 = vadd.f32 0.0, %v370
  %372 = vmatmul.f32.gmra.mxu0 %v46
  %v373 = vpop.f32.mrf.mxu0
  %v374 = vadd.f32 0.0, %v373
  %375 = vdwg.mxu0
  %376 = vmatpush.msra.mxu0 0.0
  %377 = vmatpush.msra.mxu0 0.0
  %378 = vmatpush.msra.mxu0 0.0
  %379 = vmatpush.msra.mxu0 0.0
  %380 = vmatpush.msra.mxu0 0.0
  %381 = vmatpush.msra.mxu0 0.0
  %382 = vmatpush.msra.mxu0 0.0
  %383 = vmatpush.msra.mxu0 0.0
  %384 = vmatpush.msra.mxu0 0.0
  %385 = vmatpush.msra.mxu0 0.0
  %386 = vmatpush.msra.mxu0 0.0
  %387 = vmatpush.msra.mxu0 0.0
  %388 = vmatpush.msra.mxu0 %v115
  %389 = vmatpush.msra.mxu0 %v113
  %390 = vmatpush.msra.mxu0 %v111
  %391 = vmatpush.msra.mxu0 %v109
  %392 = vmatmul.f32.gmra.mxu0 %v158
  %v393 = vpop.f32.mrf.mxu0
  %v394 = vadd.f32 %v335, %v393
  %395 = vmatmul.f32.gmra.mxu0 %v161
  %v396 = vpop.f32.mrf.mxu0
  %v397 = vadd.f32 %v338, %v396
  %398 = vmatmul.f32.gmra.mxu0 %v164
  %v399 = vpop.f32.mrf.mxu0
  %v400 = vadd.f32 %v341, %v399
  %401 = vmatmul.f32.gmra.mxu0 %v167
  %v402 = vpop.f32.mrf.mxu0
  %v403 = vadd.f32 %v344, %v402
  %404 = vmatmul.f32.gmra.mxu0 %v170
  %v405 = vpop.f32.mrf.mxu0
  %v406 = vadd.f32 %v347, %v405
  %407 = vmatmul.f32.gmra.mxu0 %v173
  %v408 = vpop.f32.mrf.mxu0
  %v409 = vadd.f32 %v350, %v408
  %410 = vmatmul.f32.gmra.mxu0 %v176
  %v411 = vpop.f32.mrf.mxu0
  %v412 = vadd.f32 %v353, %v411
  %413 = vmatmul.f32.gmra.mxu0 %v179
  %v414 = vpop.f32.mrf.mxu0
  %v415 = vadd.f32 %v356, %v414
  %416 = vmatmul.f32.gmra.mxu0 %v182
  %v417 = vpop.f32.mrf.mxu0
  %v418 = vadd.f32 %v359, %v417
  %419 = vmatmul.f32.gmra.mxu0 %v185
  %v420 = vpop.f32.mrf.mxu0
  %v421 = vadd.f32 %v362, %v420
  %422 = vmatmul.f32.gmra.mxu0 %v188
  %v423 = vpop.f32.mrf.mxu0
  %v424 = vadd.f32 %v365, %v423
  %425 = vmatmul.f32.gmra.mxu0 %v191
  %v426 = vpop.f32.mrf.mxu0
  %v427 = vadd.f32 %v368, %v426
  %428 = vmatmul.f32.gmra.mxu0 %v194
  %v429 = vpop.f32.mrf.mxu0
  %v430 = vadd.f32 %v371, %v429
  %431 = vmatmul.f32.gmra.mxu0 %v197
  %v432 = vpop.f32.mrf.mxu0
  %v433 = vadd.f32 %v374, %v432
  %434 = vdwg.mxu0
  %435 = vmatpush.msra.mxu0 %v146
  %436 = vmatpush.msra.mxu0 %v144
  %437 = vmatpush.msra.mxu0 %v142
  %438 = vmatpush.msra.mxu0 %v140
  %439 = vmatpush.msra.mxu0 %v138
  %440 = vmatpush.msra.mxu0 %v136
  %441 = vmatpush.msra.mxu0 %v134
  %442 = vmatpush.msra.mxu0 %v132
  %443 = vmatpush.msra.mxu0 %v130
  %444 = vmatpush.msra.mxu0 %v128
  %445 = vmatpush.msra.mxu0 %v126
  %446 = vmatpush.msra.mxu0 %v124
  %447 = vmatpush.msra.mxu0 %v122
  %448 = vmatpush.msra.mxu0 %v120
  %449 = vmatpush.msra.mxu0 %v118
  %450 = vmatpush.msra.mxu0 %v116
  %451 = vmatmul.f32.gmra.mxu0 %v20
  %v452 = vpop.f32.mrf.mxu0
  %v453 = vadd.f32 0.0, %v452
  %454 = vmatmul.f32.gmra.mxu0 %v22
  %v455 = vpop.f32.mrf.mxu0
  %v456 = vadd.f32 0.0, %v455
  %457 = vmatmul.f32.gmra.mxu0 %v24
  %v458 = vpop.f32.mrf.mxu0
  %v459 = vadd.f32 0.0, %v458
  %460 = vmatmul.f32.gmra.mxu0 %v26
  %v461 = vpop.f32.mrf.mxu0
  %v462 = vadd.f32 0.0, %v461
  %463 = vmatmul.f32.gmra.mxu0 %v28
  %v464 = vpop.f32.mrf.mxu0
  %v465 = vadd.f32 0.0, %v464
  %466 = vmatmul.f32.gmra.mxu0 %v30
  %v467 = vpop.f32.mrf.mxu0
  %v468 = vadd.f32 0.0, %v467
  %469 = vmatmul.f32.gmra.mxu0 %v32
  %v470 = vpop.f32.mrf.mxu0
  %v471 = vadd.f32 0.0, %v470
  %472 = vmatmul.f32.gmra.mxu0 %v34
  %v473 = vpop.f32.mrf.mxu0
  %v474 = vadd.f32 0.0, %v473
  %475 = vmatmul.f32.gmra.mxu0 %v36
  %v476 = vpop.f32.mrf.mxu0
  %v477 = vadd.f32 0.0, %v476
  %478 = vmatmul.f32.gmra.mxu0 %v38
  %v479 = vpop.f32.mrf.mxu0
  %v480 = vadd.f32 0.0, %v479
  %481 = vmatmul.f32.gmra.mxu0 %v40
  %v482 = vpop.f32.mrf.mxu0
  %v483 = vadd.f32 0.0, %v482
  %484 = vmatmul.f32.gmra.mxu0 %v42
  %v485 = vpop.f32.mrf.mxu0
  %v486 = vadd.f32 0.0, %v485
  %487 = vmatmul.f32.gmra.mxu0 %v44
  %v488 = vpop.f32.mrf.mxu0
  %v489 = vadd.f32 0.0, %v488
  %490 = vmatmul.f32.gmra.mxu0 %v46
  %v491 = vpop.f32.mrf.mxu0
  %v492 = vadd.f32 0.0, %v491
  %493 = vdwg.mxu0
  %494 = vmatpush.msra.mxu0 0.0
  %495 = vmatpush.msra.mxu0 0.0
  %496 = vmatpush.msra.mxu0 0.0
  %497 = vmatpush.msra.mxu0 0.0
  %498 = vmatpush.msra.mxu0 0.0
  %499 = vmatpush.msra.mxu0 0.0
  %500 = vmatpush.msra.mxu0 0.0
  %501 = vmatpush.msra.mxu0 0.0
  %502 = vmatpush.msra.mxu0 0.0
  %503 = vmatpush.msra.mxu0 0.0
  %504 = vmatpush.msra.mxu0 0.0
  %505 = vmatpush.msra.mxu0 0.0
  %506 = vmatpush.msra.mxu0 %v154
  %507 = vmatpush.msra.mxu0 %v152
  %508 = vmatpush.msra.mxu0 %v150
  %509 = vmatpush.msra.mxu0 %v148
  %510 = vmatmul.f32.gmra.mxu0 %v158
  %v511 = vpop.f32.mrf.mxu0
  %v512 = vadd.f32 %v453, %v511
  %513 = vmatmul.f32.gmra.mxu0 %v161
  %v514 = vpop.f32.mrf.mxu0
  %v515 = vadd.f32 %v456, %v514
  %516 = vmatmul.f32.gmra.mxu0 %v164
  %v517 = vpop.f32.mrf.mxu0
  %v518 = vadd.f32 %v459, %v517
  %519 = vmatmul.f32.gmra.mxu0 %v167
  %v520 = vpop.f32.mrf.mxu0
  %v521 = vadd.f32 %v462, %v520
  %522 = vmatmul.f32.gmra.mxu0 %v170
  %v523 = vpop.f32.mrf.mxu0
  %v524 = vadd.f32 %v465, %v523
  %525 = vmatmul.f32.gmra.mxu0 %v173
  %v526 = vpop.f32.mrf.mxu0
  %v527 = vadd.f32 %v468, %v526
  %528 = vmatmul.f32.gmra.mxu0 %v176
  %v529 = vpop.f32.mrf.mxu0
  %v530 = vadd.f32 %v471, %v529
  %531 = vmatmul.f32.gmra.mxu0 %v179
  %v532 = vpop.f32.mrf.mxu0
  %v533 = vadd.f32 %v474, %v532
  %534 = vmatmul.f32.gmra.mxu0 %v182
  %v535 = vpop.f32.mrf.mxu0
  %v536 = vadd.f32 %v477, %v535
  %537 = vmatmul.f32.gmra.mxu0 %v185
  %v538 = vpop.f32.mrf.mxu0
  %v539 = vadd.f32 %v480, %v538
  %540 = vmatmul.f32.gmra.mxu0 %v188
  %v541 = vpop.f32.mrf.mxu0
  %v542 = vadd.f32 %v483, %v541
  %543 = vmatmul.f32.gmra.mxu0 %v191
  %v544 = vpop.f32.mrf.mxu0
  %v545 = vadd.f32 %v486, %v544
  %546 = vmatmul.f32.gmra.mxu0 %v194
  %v547 = vpop.f32.mrf.mxu0
  %v548 = vadd.f32 %v489, %v547
  %549 = vmatmul.f32.gmra.mxu0 %v197
  %v550 = vpop.f32.mrf.mxu0
  %v551 = vadd.f32 %v492, %v550
  %552 = vdwg.mxu0
  %553 = vmatpush.msra.mxu0 %v147
  %554 = vmatpush.msra.mxu0 %v145
  %555 = vmatpush.msra.mxu0 %v143
  %556 = vmatpush.msra.mxu0 %v141
  %557 = vmatpush.msra.mxu0 %v139
  %558 = vmatpush.msra.mxu0 %v137
  %559 = vmatpush.msra.mxu0 %v135
  %560 = vmatpush.msra.mxu0 %v133
  %561 = vmatpush.msra.mxu0 %v131
  %562 = vmatpush.msra.mxu0 %v129
  %563 = vmatpush.msra.mxu0 %v127
  %564 = vmatpush.msra.mxu0 %v125
  %565 = vmatpush.msra.mxu0 %v123
  %566 = vmatpush.msra.mxu0 %v121
  %567 = vmatpush.msra.mxu0 %v119
  %568 = vmatpush.msra.mxu0 %v117
  %569 = vmatmul.f32.gmra.mxu0 %v20
  %v570 = vpop.f32.mrf.mxu0
  %v571 = vadd.f32 0.0, %v570
  %572 = vmatmul.f32.gmra.mxu0 %v22
  %v573 = vpop.f32.mrf.mxu0
  %v574 = vadd.f32 0.0, %v573
  %575 = vmatmul.f32.gmra.mxu0 %v24
  %v576 = vpop.f32.mrf.mxu0
  %v577 = vadd.f32 0.0, %v576
  %578 = vmatmul.f32.gmra.mxu0 %v26
  %v579 = vpop.f32.mrf.mxu0
  %v580 = vadd.f32 0.0, %v579
  %581 = vmatmul.f32.gmra.mxu0 %v28
  %v582 = vpop.f32.mrf.mxu0
  %v583 = vadd.f32 0.0, %v582
  %584 = vmatmul.f32.gmra.mxu0 %v30
  %v585 = vpop.f32.mrf.mxu0
  %v586 = vadd.f32 0.0, %v585
  %587 = vmatmul.f32.gmra.mxu0 %v32
  %v588 = vpop.f32.mrf.mxu0
  %v589 = vadd.f32 0.0, %v588
  %590 = vmatmul.f32.gmra.mxu0 %v34
  %v591 = vpop.f32.mrf.mxu0
  %v592 = vadd.f32 0.0, %v591
  %593 = vmatmul.f32.gmra.mxu0 %v36
  %v594 = vpop.f32.mrf.mxu0
  %v595 = vadd.f32 0.0, %v594
  %596 = vmatmul.f32.gmra.mxu0 %v38
  %v597 = vpop.f32.mrf.mxu0
  %v598 = vadd.f32 0.0, %v597
  %599 = vmatmul.f32.gmra.mxu0 %v40
  %v600 = vpop.f32.mrf.mxu0
  %v601 = vadd.f32 0.0, %v600
  %602 = vmatmul.f32.gmra.mxu0 %v42
  %v603 = vpop.f32.mrf.mxu0
  %v604 = vadd.f32 0.0, %v603
  %605 = vmatmul.f32.gmra.mxu0 %v44
  %v606 = vpop.f32.mrf.mxu0
  %v607 = vadd.f32 0.0, %v606
  %608 = vmatmul.f32.gmra.mxu0 %v46
  %v609 = vpop.f32.mrf.mxu0
  %v610 = vadd.f32 0.0, %v609
  %611 = vdwg.mxu0
  %612 = vmatpush.msra.mxu0 0.0
  %613 = vmatpush.msra.mxu0 0.0
  %614 = vmatpush.msra.mxu0 0.0
  %615 = vmatpush.msra.mxu0 0.0
  %616 = vmatpush.msra.mxu0 0.0
  %617 = vmatpush.msra.mxu0 0.0
  %618 = vmatpush.msra.mxu0 0.0
  %619 = vmatpush.msra.mxu0 0.0
  %620 = vmatpush.msra.mxu0 0.0
  %621 = vmatpush.msra.mxu0 0.0
  %622 = vmatpush.msra.mxu0 0.0
  %623 = vmatpush.msra.mxu0 0.0
  %624 = vmatpush.msra.mxu0 %v155
  %625 = vmatpush.msra.mxu0 %v153
  %626 = vmatpush.msra.mxu0 %v151
  %627 = vmatpush.msra.mxu0 %v149
  %628 = vmatmul.f32.gmra.mxu0 %v158
  %v629 = vpop.f32.mrf.mxu0
  %v630 = vadd.f32 %v571, %v629
  %631 = vmatmul.f32.gmra.mxu0 %v161
  %v632 = vpop.f32.mrf.mxu0
  %v633 = vadd.f32 %v574, %v632
  %634 = vmatmul.f32.gmra.mxu0 %v164
  %v635 = vpop.f32.mrf.mxu0
  %v636 = vadd.f32 %v577, %v635
  %637 = vmatmul.f32.gmra.mxu0 %v167
  %v638 = vpop.f32.mrf.mxu0
  %v639 = vadd.f32 %v580, %v638
  %640 = vmatmul.f32.gmra.mxu0 %v170
  %v641 = vpop.f32.mrf.mxu0
  %v642 = vadd.f32 %v583, %v641
  %643 = vmatmul.f32.gmra.mxu0 %v173
  %v644 = vpop.f32.mrf.mxu0
  %v645 = vadd.f32 %v586, %v644
  %646 = vmatmul.f32.gmra.mxu0 %v176
  %v647 = vpop.f32.mrf.mxu0
  %v648 = vadd.f32 %v589, %v647
  %649 = vmatmul.f32.gmra.mxu0 %v179
  %v650 = vpop.f32.mrf.mxu0
  %v651 = vadd.f32 %v592, %v650
  %652 = vmatmul.f32.gmra.mxu0 %v182
  %v653 = vpop.f32.mrf.mxu0
  %v654 = vadd.f32 %v595, %v653
  %655 = vmatmul.f32.gmra.mxu0 %v185
  %v656 = vpop.f32.mrf.mxu0
  %v657 = vadd.f32 %v598, %v656
  %658 = vmatmul.f32.gmra.mxu0 %v188
  %v659 = vpop.f32.mrf.mxu0
  %v660 = vadd.f32 %v601, %v659
  %661 = vmatmul.f32.gmra.mxu0 %v191
  %v662 = vpop.f32.mrf.mxu0
  %v663 = vadd.f32 %v604, %v662
  %664 = vmatmul.f32.gmra.mxu0 %v194
  %v665 = vpop.f32.mrf.mxu0
  %v666 = vadd.f32 %v607, %v665
  %667 = vmatmul.f32.gmra.mxu0 %v197
  %v668 = vpop.f32.mrf.mxu0
  %v669 = vadd.f32 %v610, %v668
  %670 = vdwg.mxu0
  %v672 = vsel %vm156, %v49, 0
  %v675 = vsel %vm156, %v51, 0
  %v678 = vsel %vm156, %v53, 0
  %v681 = vsel %vm156, %v55, 0
  %v684 = vsel %vm156, %v57, 0
  %v687 = vsel %vm156, %v59, 0
  %v690 = vsel %vm156, %v61, 0
  %v693 = vsel %vm156, %v63, 0
  %v696 = vsel %vm156, %v65, 0
  %v699 = vsel %vm156, %v67, 0
  %v702 = vsel %vm156, %v69, 0
  %v705 = vsel %vm156, %v71, 0
  %v708 = vsel %vm156, %v73, 0
  %v711 = vsel %vm156, %v75, 0
  %713 = vmatpush.msra.mxu0 %v106
  %714 = vmatpush.msra.mxu0 %v104
  %715 = vmatpush.msra.mxu0 %v102
  %716 = vmatpush.msra.mxu0 %v100
  %717 = vmatpush.msra.mxu0 %v98
  %718 = vmatpush.msra.mxu0 %v96
  %719 = vmatpush.msra.mxu0 %v94
  %720 = vmatpush.msra.mxu0 %v92
  %721 = vmatpush.msra.mxu0 %v90
  %722 = vmatpush.msra.mxu0 %v88
  %723 = vmatpush.msra.mxu0 %v86
  %724 = vmatpush.msra.mxu0 %v84
  %725 = vmatpush.msra.mxu0 %v82
  %726 = vmatpush.msra.mxu0 %v80
  %727 = vmatpush.msra.mxu0 %v78
  %728 = vmatpush.msra.mxu0 %v76
  %729 = vmatmul.f32.gmra.mxu0 %v48
  %v730 = vpop.f32.mrf.mxu0
  %v731 = vadd.f32 0.0, %v730
  %732 = vmatmul.f32.gmra.mxu0 %v50
  %v733 = vpop.f32.mrf.mxu0
  %v734 = vadd.f32 0.0, %v733
  %735 = vmatmul.f32.gmra.mxu0 %v52
  %v736 = vpop.f32.mrf.mxu0
  %v737 = vadd.f32 0.0, %v736
  %738 = vmatmul.f32.gmra.mxu0 %v54
  %v739 = vpop.f32.mrf.mxu0
  %v740 = vadd.f32 0.0, %v739
  %741 = vmatmul.f32.gmra.mxu0 %v56
  %v742 = vpop.f32.mrf.mxu0
  %v743 = vadd.f32 0.0, %v742
  %744 = vmatmul.f32.gmra.mxu0 %v58
  %v745 = vpop.f32.mrf.mxu0
  %v746 = vadd.f32 0.0, %v745
  %747 = vmatmul.f32.gmra.mxu0 %v60
  %v748 = vpop.f32.mrf.mxu0
  %v749 = vadd.f32 0.0, %v748
  %750 = vmatmul.f32.gmra.mxu0 %v62
  %v751 = vpop.f32.mrf.mxu0
  %v752 = vadd.f32 0.0, %v751
  %753 = vmatmul.f32.gmra.mxu0 %v64
  %v754 = vpop.f32.mrf.mxu0
  %v755 = vadd.f32 0.0, %v754
  %756 = vmatmul.f32.gmra.mxu0 %v66
  %v757 = vpop.f32.mrf.mxu0
  %v758 = vadd.f32 0.0, %v757
  %759 = vmatmul.f32.gmra.mxu0 %v68
  %v760 = vpop.f32.mrf.mxu0
  %v761 = vadd.f32 0.0, %v760
  %762 = vmatmul.f32.gmra.mxu0 %v70
  %v763 = vpop.f32.mrf.mxu0
  %v764 = vadd.f32 0.0, %v763
  %765 = vmatmul.f32.gmra.mxu0 %v72
  %v766 = vpop.f32.mrf.mxu0
  %v767 = vadd.f32 0.0, %v766
  %768 = vmatmul.f32.gmra.mxu0 %v74
  %v769 = vpop.f32.mrf.mxu0
  %v770 = vadd.f32 0.0, %v769
  %771 = vdwg.mxu0
  %772 = vmatpush.msra.mxu0 0.0
  %773 = vmatpush.msra.mxu0 0.0
  %774 = vmatpush.msra.mxu0 0.0
  %775 = vmatpush.msra.mxu0 0.0
  %776 = vmatpush.msra.mxu0 0.0
  %777 = vmatpush.msra.mxu0 0.0
  %778 = vmatpush.msra.mxu0 0.0
  %779 = vmatpush.msra.mxu0 0.0
  %780 = vmatpush.msra.mxu0 0.0
  %781 = vmatpush.msra.mxu0 0.0
  %782 = vmatpush.msra.mxu0 0.0
  %783 = vmatpush.msra.mxu0 0.0
  %784 = vmatpush.msra.mxu0 %v114
  %785 = vmatpush.msra.mxu0 %v112
  %786 = vmatpush.msra.mxu0 %v110
  %787 = vmatpush.msra.mxu0 %v108
  %788 = vmatmul.f32.gmra.mxu0 %v672
  %v789 = vpop.f32.mrf.mxu0
  %v790 = vadd.f32 %v731, %v789
  %791 = vmatmul.f32.gmra.mxu0 %v675
  %v792 = vpop.f32.mrf.mxu0
  %v793 = vadd.f32 %v734, %v792
  %794 = vmatmul.f32.gmra.mxu0 %v678
  %v795 = vpop.f32.mrf.mxu0
  %v796 = vadd.f32 %v737, %v795
  %797 = vmatmul.f32.gmra.mxu0 %v681
  %v798 = vpop.f32.mrf.mxu0
  %v799 = vadd.f32 %v740, %v798
  %800 = vmatmul.f32.gmra.mxu0 %v684
  %v801 = vpop.f32.mrf.mxu0
  %v802 = vadd.f32 %v743, %v801
  %803 = vmatmul.f32.gmra.mxu0 %v687
  %v804 = vpop.f32.mrf.mxu0
  %v805 = vadd.f32 %v746, %v804
  %806 = vmatmul.f32.gmra.mxu0 %v690
  %v807 = vpop.f32.mrf.mxu0
  %v808 = vadd.f32 %v749, %v807
  %809 = vmatmul.f32.gmra.mxu0 %v693
  %v810 = vpop.f32.mrf.mxu0
  %v811 = vadd.f32 %v752, %v810
  %812 = vmatmul.f32.gmra.mxu0 %v696
  %v813 = vpop.f32.mrf.mxu0
  %v814 = vadd.f32 %v755, %v813
  %815 = vmatmul.f32.gmra.mxu0 %v699
  %v816 = vpop.f32.mrf.mxu0
  %v817 = vadd.f32 %v758, %v816
  %818 = vmatmul.f32.gmra.mxu0 %v702
  %v819 = vpop.f32.mrf.mxu0
  %v820 = vadd.f32 %v761, %v819
  %821 = vmatmul.f32.gmra.mxu0 %v705
  %v822 = vpop.f32.mrf.mxu0
  %v823 = vadd.f32 %v764, %v822
  %824 = vmatmul.f32.gmra.mxu0 %v708
  %v825 = vpop.f32.mrf.mxu0
  %v826 = vadd.f32 %v767, %v825
  %827 = vmatmul.f32.gmra.mxu0 %v711
  %v828 = vpop.f32.mrf.mxu0
  %v829 = vadd.f32 %v770, %v828
  %830 = vdwg.mxu0
  %831 = vmatpush.msra.mxu0 %v107
  %832 = vmatpush.msra.mxu0 %v105
  %833 = vmatpush.msra.mxu0 %v103
  %834 = vmatpush.msra.mxu0 %v101
  %835 = vmatpush.msra.mxu0 %v99
  %836 = vmatpush.msra.mxu0 %v97
  %837 = vmatpush.msra.mxu0 %v95
  %838 = vmatpush.msra.mxu0 %v93
  %839 = vmatpush.msra.mxu0 %v91
  %840 = vmatpush.msra.mxu0 %v89
  %841 = vmatpush.msra.mxu0 %v87
  %842 = vmatpush.msra.mxu0 %v85
  %843 = vmatpush.msra.mxu0 %v83
  %844 = vmatpush.msra.mxu0 %v81
  %845 = vmatpush.msra.mxu0 %v79
  %846 = vmatpush.msra.mxu0 %v77
  %847 = vmatmul.f32.gmra.mxu0 %v48
  %v848 = vpop.f32.mrf.mxu0
  %v849 = vadd.f32 0.0, %v848
  %850 = vmatmul.f32.gmra.mxu0 %v50
  %v851 = vpop.f32.mrf.mxu0
  %v852 = vadd.f32 0.0, %v851
  %853 = vmatmul.f32.gmra.mxu0 %v52
  %v854 = vpop.f32.mrf.mxu0
  %v855 = vadd.f32 0.0, %v854
  %856 = vmatmul.f32.gmra.mxu0 %v54
  %v857 = vpop.f32.mrf.mxu0
  %v858 = vadd.f32 0.0, %v857
  %859 = vmatmul.f32.gmra.mxu0 %v56
  %v860 = vpop.f32.mrf.mxu0
  %v861 = vadd.f32 0.0, %v860
  %862 = vmatmul.f32.gmra.mxu0 %v58
  %v863 = vpop.f32.mrf.mxu0
  %v864 = vadd.f32 0.0, %v863
  %865 = vmatmul.f32.gmra.mxu0 %v60
  %v866 = vpop.f32.mrf.mxu0
  %v867 = vadd.f32 0.0, %v866
  %868 = vmatmul.f32.gmra.mxu0 %v62
  %v869 = vpop.f32.mrf.mxu0
  %v870 = vadd.f32 0.0, %v869
  %871 = vmatmul.f32.gmra.mxu0 %v64
  %v872 = vpop.f32.mrf.mxu0
  %v873 = vadd.f32 0.0, %v872
  %874 = vmatmul.f32.gmra.mxu0 %v66
  %v875 = vpop.f32.mrf.mxu0
  %v876 = vadd.f32 0.0, %v875
  %877 = vmatmul.f32.gmra.mxu0 %v68
  %v878 = vpop.f32.mrf.mxu0
  %v879 = vadd.f32 0.0, %v878
  %880 = vmatmul.f32.gmra.mxu0 %v70
  %v881 = vpop.f32.mrf.mxu0
  %v882 = vadd.f32 0.0, %v881
  %883 = vmatmul.f32.gmra.mxu0 %v72
  %v884 = vpop.f32.mrf.mxu0
  %v885 = vadd.f32 0.0, %v884
  %886 = vmatmul.f32.gmra.mxu0 %v74
  %v887 = vpop.f32.mrf.mxu0
  %v888 = vadd.f32 0.0, %v887
  %889 = vdwg.mxu0
  %890 = vmatpush.msra.mxu0 0.0
  %891 = vmatpush.msra.mxu0 0.0
  %892 = vmatpush.msra.mxu0 0.0
  %893 = vmatpush.msra.mxu0 0.0
  %894 = vmatpush.msra.mxu0 0.0
  %895 = vmatpush.msra.mxu0 0.0
  %896 = vmatpush.msra.mxu0 0.0
  %897 = vmatpush.msra.mxu0 0.0
  %898 = vmatpush.msra.mxu0 0.0
  %899 = vmatpush.msra.mxu0 0.0
  %900 = vmatpush.msra.mxu0 0.0
  %901 = vmatpush.msra.mxu0 0.0
  %902 = vmatpush.msra.mxu0 %v115
  %903 = vmatpush.msra.mxu0 %v113
  %904 = vmatpush.msra.mxu0 %v111
  %905 = vmatpush.msra.mxu0 %v109
  %906 = vmatmul.f32.gmra.mxu0 %v672
  %v907 = vpop.f32.mrf.mxu0
  %v908 = vadd.f32 %v849, %v907
  %909 = vmatmul.f32.gmra.mxu0 %v675
  %v910 = vpop.f32.mrf.mxu0
  %v911 = vadd.f32 %v852, %v910
  %912 = vmatmul.f32.gmra.mxu0 %v678
  %v913 = vpop.f32.mrf.mxu0
  %v914 = vadd.f32 %v855, %v913
  %915 = vmatmul.f32.gmra.mxu0 %v681
  %v916 = vpop.f32.mrf.mxu0
  %v917 = vadd.f32 %v858, %v916
  %918 = vmatmul.f32.gmra.mxu0 %v684
  %v919 = vpop.f32.mrf.mxu0
  %v920 = vadd.f32 %v861, %v919
  %921 = vmatmul.f32.gmra.mxu0 %v687
  %v922 = vpop.f32.mrf.mxu0
  %v923 = vadd.f32 %v864, %v922
  %924 = vmatmul.f32.gmra.mxu0 %v690
  %v925 = vpop.f32.mrf.mxu0
  %v926 = vadd.f32 %v867, %v925
  %927 = vmatmul.f32.gmra.mxu0 %v693
  %v928 = vpop.f32.mrf.mxu0
  %v929 = vadd.f32 %v870, %v928
  %930 = vmatmul.f32.gmra.mxu0 %v696
  %v931 = vpop.f32.mrf.mxu0
  %v932 = vadd.f32 %v873, %v931
  %933 = vmatmul.f32.gmra.mxu0 %v699
  %v934 = vpop.f32.mrf.mxu0
  %v935 = vadd.f32 %v876, %v934
  %936 = vmatmul.f32.gmra.mxu0 %v702
  %v937 = vpop.f32.mrf.mxu0
  %v938 = vadd.f32 %v879, %v937
  %939 = vmatmul.f32.gmra.mxu0 %v705
  %v940 = vpop.f32.mrf.mxu0
  %v941 = vadd.f32 %v882, %v940
  %942 = vmatmul.f32.gmra.mxu0 %v708
  %v943 = vpop.f32.mrf.mxu0
  %v944 = vadd.f32 %v885, %v943
  %945 = vmatmul.f32.gmra.mxu0 %v711
  %v946 = vpop.f32.mrf.mxu0
  %v947 = vadd.f32 %v888, %v946
  %948 = vdwg.mxu0
  %949 = vmatpush.msra.mxu0 %v146
  %950 = vmatpush.msra.mxu0 %v144
  %951 = vmatpush.msra.mxu0 %v142
  %952 = vmatpush.msra.mxu0 %v140
  %953 = vmatpush.msra.mxu0 %v138
  %954 = vmatpush.msra.mxu0 %v136
  %955 = vmatpush.msra.mxu0 %v134
  %956 = vmatpush.msra.mxu0 %v132
  %957 = vmatpush.msra.mxu0 %v130
  %958 = vmatpush.msra.mxu0 %v128
  %959 = vmatpush.msra.mxu0 %v126
  %960 = vmatpush.msra.mxu0 %v124
  %961 = vmatpush.msra.mxu0 %v122
  %962 = vmatpush.msra.mxu0 %v120
  %963 = vmatpush.msra.mxu0 %v118
  %964 = vmatpush.msra.mxu0 %v116
  %965 = vmatmul.f32.gmra.mxu0 %v48
  %v966 = vpop.f32.mrf.mxu0
  %v967 = vadd.f32 0.0, %v966
  %968 = vmatmul.f32.gmra.mxu0 %v50
  %v969 = vpop.f32.mrf.mxu0
  %v970 = vadd.f32 0.0, %v969
  %971 = vmatmul.f32.gmra.mxu0 %v52
  %v972 = vpop.f32.mrf.mxu0
  %v973 = vadd.f32 0.0, %v972
  %974 = vmatmul.f32.gmra.mxu0 %v54
  %v975 = vpop.f32.mrf.mxu0
  %v976 = vadd.f32 0.0, %v975
  %977 = vmatmul.f32.gmra.mxu0 %v56
  %v978 = vpop.f32.mrf.mxu0
  %v979 = vadd.f32 0.0, %v978
  %980 = vmatmul.f32.gmra.mxu0 %v58
  %v981 = vpop.f32.mrf.mxu0
  %v982 = vadd.f32 0.0, %v981
  %983 = vmatmul.f32.gmra.mxu0 %v60
  %v984 = vpop.f32.mrf.mxu0
  %v985 = vadd.f32 0.0, %v984
  %986 = vmatmul.f32.gmra.mxu0 %v62
  %v987 = vpop.f32.mrf.mxu0
  %v988 = vadd.f32 0.0, %v987
  %989 = vmatmul.f32.gmra.mxu0 %v64
  %v990 = vpop.f32.mrf.mxu0
  %v991 = vadd.f32 0.0, %v990
  %992 = vmatmul.f32.gmra.mxu0 %v66
  %v993 = vpop.f32.mrf.mxu0
  %v994 = vadd.f32 0.0, %v993
  %995 = vmatmul.f32.gmra.mxu0 %v68
  %v996 = vpop.f32.mrf.mxu0
  %v997 = vadd.f32 0.0, %v996
  %998 = vmatmul.f32.gmra.mxu0 %v70
  %v999 = vpop.f32.mrf.mxu0
  %v1000 = vadd.f32 0.0, %v999
  %1001 = vmatmul.f32.gmra.mxu0 %v72
  %v1002 = vpop.f32.mrf.mxu0
  %v1003 = vadd.f32 0.0, %v1002
  %1004 = vmatmul.f32.gmra.mxu0 %v74
  %v1005 = vpop.f32.mrf.mxu0
  %v1006 = vadd.f32 0.0, %v1005
  %1007 = vdwg.mxu0
  %1008 = vmatpush.msra.mxu0 0.0
  %1009 = vmatpush.msra.mxu0 0.0
  %1010 = vmatpush.msra.mxu0 0.0
  %1011 = vmatpush.msra.mxu0 0.0
  %1012 = vmatpush.msra.mxu0 0.0
  %1013 = vmatpush.msra.mxu0 0.0
  %1014 = vmatpush.msra.mxu0 0.0
  %1015 = vmatpush.msra.mxu0 0.0
  %1016 = vmatpush.msra.mxu0 0.0
  %1017 = vmatpush.msra.mxu0 0.0
  %1018 = vmatpush.msra.mxu0 0.0
  %1019 = vmatpush.msra.mxu0 0.0
  %1020 = vmatpush.msra.mxu0 %v154
  %1021 = vmatpush.msra.mxu0 %v152
  %1022 = vmatpush.msra.mxu0 %v150
  %1023 = vmatpush.msra.mxu0 %v148
  %1024 = vmatmul.f32.gmra.mxu0 %v672
  %v1025 = vpop.f32.mrf.mxu0
  %v1026 = vadd.f32 %v967, %v1025
  %1027 = vmatmul.f32.gmra.mxu0 %v675
  %v1028 = vpop.f32.mrf.mxu0
  %v1029 = vadd.f32 %v970, %v1028
  %1030 = vmatmul.f32.gmra.mxu0 %v678
  %v1031 = vpop.f32.mrf.mxu0
  %v1032 = vadd.f32 %v973, %v1031
  %1033 = vmatmul.f32.gmra.mxu0 %v681
  %v1034 = vpop.f32.mrf.mxu0
  %v1035 = vadd.f32 %v976, %v1034
  %1036 = vmatmul.f32.gmra.mxu0 %v684
  %v1037 = vpop.f32.mrf.mxu0
  %v1038 = vadd.f32 %v979, %v1037
  %1039 = vmatmul.f32.gmra.mxu0 %v687
  %v1040 = vpop.f32.mrf.mxu0
  %v1041 = vadd.f32 %v982, %v1040
  %1042 = vmatmul.f32.gmra.mxu0 %v690
  %v1043 = vpop.f32.mrf.mxu0
  %v1044 = vadd.f32 %v985, %v1043
  %1045 = vmatmul.f32.gmra.mxu0 %v693
  %v1046 = vpop.f32.mrf.mxu0
  %v1047 = vadd.f32 %v988, %v1046
  %1048 = vmatmul.f32.gmra.mxu0 %v696
  %v1049 = vpop.f32.mrf.mxu0
  %v1050 = vadd.f32 %v991, %v1049
  %1051 = vmatmul.f32.gmra.mxu0 %v699
  %v1052 = vpop.f32.mrf.mxu0
  %v1053 = vadd.f32 %v994, %v1052
  %1054 = vmatmul.f32.gmra.mxu0 %v702
  %v1055 = vpop.f32.mrf.mxu0
  %v1056 = vadd.f32 %v997, %v1055
  %1057 = vmatmul.f32.gmra.mxu0 %v705
  %v1058 = vpop.f32.mrf.mxu0
  %v1059 = vadd.f32 %v1000, %v1058
  %1060 = vmatmul.f32.gmra.mxu0 %v708
  %v1061 = vpop.f32.mrf.mxu0
  %v1062 = vadd.f32 %v1003, %v1061
  %1063 = vmatmul.f32.gmra.mxu0 %v711
  %v1064 = vpop.f32.mrf.mxu0
  %v1065 = vadd.f32 %v1006, %v1064
  %1066 = vdwg.mxu0
  %1067 = vmatpush.msra.mxu0 %v147
  %1068 = vmatpush.msra.mxu0 %v145
  %1069 = vmatpush.msra.mxu0 %v143
  %1070 = vmatpush.msra.mxu0 %v141
  %1071 = vmatpush.msra.mxu0 %v139
  %1072 = vmatpush.msra.mxu0 %v137
  %1073 = vmatpush.msra.mxu0 %v135
  %1074 = vmatpush.msra.mxu0 %v133
  %1075 = vmatpush.msra.mxu0 %v131
  %1076 = vmatpush.msra.mxu0 %v129
  %1077 = vmatpush.msra.mxu0 %v127
  %1078 = vmatpush.msra.mxu0 %v125
  %1079 = vmatpush.msra.mxu0 %v123
  %1080 = vmatpush.msra.mxu0 %v121
  %1081 = vmatpush.msra.mxu0 %v119
  %1082 = vmatpush.msra.mxu0 %v117
  %1083 = vmatmul.f32.gmra.mxu0 %v48
  %v1084 = vpop.f32.mrf.mxu0
  %v1085 = vadd.f32 0.0, %v1084
  %1086 = vmatmul.f32.gmra.mxu0 %v50
  %v1087 = vpop.f32.mrf.mxu0
  %v1088 = vadd.f32 0.0, %v1087
  %1089 = vmatmul.f32.gmra.mxu0 %v52
  %v1090 = vpop.f32.mrf.mxu0
  %v1091 = vadd.f32 0.0, %v1090
  %1092 = vmatmul.f32.gmra.mxu0 %v54
  %v1093 = vpop.f32.mrf.mxu0
  %v1094 = vadd.f32 0.0, %v1093
  %1095 = vmatmul.f32.gmra.mxu0 %v56
  %v1096 = vpop.f32.mrf.mxu0
  %v1097 = vadd.f32 0.0, %v1096
  %1098 = vmatmul.f32.gmra.mxu0 %v58
  %v1099 = vpop.f32.mrf.mxu0
  %v1100 = vadd.f32 0.0, %v1099
  %1101 = vmatmul.f32.gmra.mxu0 %v60
  %v1102 = vpop.f32.mrf.mxu0
  %v1103 = vadd.f32 0.0, %v1102
  %1104 = vmatmul.f32.gmra.mxu0 %v62
  %v1105 = vpop.f32.mrf.mxu0
  %v1106 = vadd.f32 0.0, %v1105
  %1107 = vmatmul.f32.gmra.mxu0 %v64
  %v1108 = vpop.f32.mrf.mxu0
  %v1109 = vadd.f32 0.0, %v1108
  %1110 = vmatmul.f32.gmra.mxu0 %v66
  %v1111 = vpop.f32.mrf.mxu0
  %v1112 = vadd.f32 0.0, %v1111
  %1113 = vmatmul.f32.gmra.mxu0 %v68
  %v1114 = vpop.f32.mrf.mxu0
  %v1115 = vadd.f32 0.0, %v1114
  %1116 = vmatmul.f32.gmra.mxu0 %v70
  %v1117 = vpop.f32.mrf.mxu0
  %v1118 = vadd.f32 0.0, %v1117
  %1119 = vmatmul.f32.gmra.mxu0 %v72
  %v1120 = vpop.f32.mrf.mxu0
  %v1121 = vadd.f32 0.0, %v1120
  %1122 = vmatmul.f32.gmra.mxu0 %v74
  %v1123 = vpop.f32.mrf.mxu0
  %v1124 = vadd.f32 0.0, %v1123
  %1125 = vdwg.mxu0
  %1126 = vmatpush.msra.mxu0 0.0
  %1127 = vmatpush.msra.mxu0 0.0
  %1128 = vmatpush.msra.mxu0 0.0
  %1129 = vmatpush.msra.mxu0 0.0
  %1130 = vmatpush.msra.mxu0 0.0
  %1131 = vmatpush.msra.mxu0 0.0
  %1132 = vmatpush.msra.mxu0 0.0
  %1133 = vmatpush.msra.mxu0 0.0
  %1134 = vmatpush.msra.mxu0 0.0
  %1135 = vmatpush.msra.mxu0 0.0
  %1136 = vmatpush.msra.mxu0 0.0
  %1137 = vmatpush.msra.mxu0 0.0
  %1138 = vmatpush.msra.mxu0 %v155
  %1139 = vmatpush.msra.mxu0 %v153
  %1140 = vmatpush.msra.mxu0 %v151
  %1141 = vmatpush.msra.mxu0 %v149
  %1142 = vmatmul.f32.gmra.mxu0 %v672
  %v1143 = vpop.f32.mrf.mxu0
  %v1144 = vadd.f32 %v1085, %v1143
  %1145 = vmatmul.f32.gmra.mxu0 %v675
  %v1146 = vpop.f32.mrf.mxu0
  %v1147 = vadd.f32 %v1088, %v1146
  %1148 = vmatmul.f32.gmra.mxu0 %v678
  %v1149 = vpop.f32.mrf.mxu0
  %v1150 = vadd.f32 %v1091, %v1149
  %1151 = vmatmul.f32.gmra.mxu0 %v681
  %v1152 = vpop.f32.mrf.mxu0
  %v1153 = vadd.f32 %v1094, %v1152
  %1154 = vmatmul.f32.gmra.mxu0 %v684
  %v1155 = vpop.f32.mrf.mxu0
  %v1156 = vadd.f32 %v1097, %v1155
  %1157 = vmatmul.f32.gmra.mxu0 %v687
  %v1158 = vpop.f32.mrf.mxu0
  %v1159 = vadd.f32 %v1100, %v1158
  %1160 = vmatmul.f32.gmra.mxu0 %v690
  %v1161 = vpop.f32.mrf.mxu0
  %v1162 = vadd.f32 %v1103, %v1161
  %1163 = vmatmul.f32.gmra.mxu0 %v693
  %v1164 = vpop.f32.mrf.mxu0
  %v1165 = vadd.f32 %v1106, %v1164
  %1166 = vmatmul.f32.gmra.mxu0 %v696
  %v1167 = vpop.f32.mrf.mxu0
  %v1168 = vadd.f32 %v1109, %v1167
  %1169 = vmatmul.f32.gmra.mxu0 %v699
  %v1170 = vpop.f32.mrf.mxu0
  %v1171 = vadd.f32 %v1112, %v1170
  %1172 = vmatmul.f32.gmra.mxu0 %v702
  %v1173 = vpop.f32.mrf.mxu0
  %v1174 = vadd.f32 %v1115, %v1173
  %1175 = vmatmul.f32.gmra.mxu0 %v705
  %v1176 = vpop.f32.mrf.mxu0
  %v1177 = vadd.f32 %v1118, %v1176
  %1178 = vmatmul.f32.gmra.mxu0 %v708
  %v1179 = vpop.f32.mrf.mxu0
  %v1180 = vadd.f32 %v1121, %v1179
  %1181 = vmatmul.f32.gmra.mxu0 %v711
  %v1182 = vpop.f32.mrf.mxu0
  %v1183 = vadd.f32 %v1124, %v1182
  %1184 = vdwg.mxu0
  %v1185 = vmax.f32 %v276, %v512
  %v1186 = vmax.f32 %v394, %v630
  %v1187 = vmax.f32 %v279, %v515
  %v1188 = vmax.f32 %v397, %v633
  %v1189 = vmax.f32 %v282, %v518
  %v1190 = vmax.f32 %v400, %v636
  %v1191 = vmax.f32 %v285, %v521
  %v1192 = vmax.f32 %v403, %v639
  %v1193 = vmax.f32 %v288, %v524
  %v1194 = vmax.f32 %v406, %v642
  %v1195 = vmax.f32 %v291, %v527
  %v1196 = vmax.f32 %v409, %v645
  %v1197 = vmax.f32 %v294, %v530
  %v1198 = vmax.f32 %v412, %v648
  %v1199 = vmax.f32 %v297, %v533
  %v1200 = vmax.f32 %v415, %v651
  %v1201 = vmax.f32 %v300, %v536
  %v1202 = vmax.f32 %v418, %v654
  %v1203 = vmax.f32 %v303, %v539
  %v1204 = vmax.f32 %v421, %v657
  %v1205 = vmax.f32 %v306, %v542
  %v1206 = vmax.f32 %v424, %v660
  %v1207 = vmax.f32 %v309, %v545
  %v1208 = vmax.f32 %v427, %v663
  %v1209 = vmax.f32 %v312, %v548
  %v1210 = vmax.f32 %v430, %v666
  %v1211 = vmax.f32 %v315, %v551
  %v1212 = vmax.f32 %v433, %v669
  %v1213 = vmax.f32 %v790, %v1026
  %v1214 = vmax.f32 %v908, %v1144
  %v1215 = vmax.f32 %v793, %v1029
  %v1216 = vmax.f32 %v911, %v1147
  %v1217 = vmax.f32 %v796, %v1032
  %v1218 = vmax.f32 %v914, %v1150
  %v1219 = vmax.f32 %v799, %v1035
  %v1220 = vmax.f32 %v917, %v1153
  %v1221 = vmax.f32 %v802, %v1038
  %v1222 = vmax.f32 %v920, %v1156
  %v1223 = vmax.f32 %v805, %v1041
  %v1224 = vmax.f32 %v923, %v1159
  %v1225 = vmax.f32 %v808, %v1044
  %v1226 = vmax.f32 %v926, %v1162
  %v1227 = vmax.f32 %v811, %v1047
  %v1228 = vmax.f32 %v929, %v1165
  %v1229 = vmax.f32 %v814, %v1050
  %v1230 = vmax.f32 %v932, %v1168
  %v1231 = vmax.f32 %v817, %v1053
  %v1232 = vmax.f32 %v935, %v1171
  %v1233 = vmax.f32 %v820, %v1056
  %v1234 = vmax.f32 %v938, %v1174
  %v1235 = vmax.f32 %v823, %v1059
  %v1236 = vmax.f32 %v941, %v1177
  %v1237 = vmax.f32 %v826, %v1062
  %v1238 = vmax.f32 %v944, %v1180
  %v1239 = vmax.f32 %v829, %v1065
  %v1240 = vmax.f32 %v947, %v1183
  %v1241 = vmax.f32 %v1185, %v1213
  %v1242 = vmax.f32 %v1186, %v1214
  %v1243 = vmax.f32 %v1187, %v1215
  %v1244 = vmax.f32 %v1188, %v1216
  %v1245 = vmax.f32 %v1189, %v1217
  %v1246 = vmax.f32 %v1190, %v1218
  %v1247 = vmax.f32 %v1191, %v1219
  %v1248 = vmax.f32 %v1192, %v1220
  %v1249 = vmax.f32 %v1193, %v1221
  %v1250 = vmax.f32 %v1194, %v1222
  %v1251 = vmax.f32 %v1195, %v1223
  %v1252 = vmax.f32 %v1196, %v1224
  %v1253 = vmax.f32 %v1197, %v1225
  %v1254 = vmax.f32 %v1198, %v1226
  %v1255 = vmax.f32 %v1199, %v1227
  %v1256 = vmax.f32 %v1200, %v1228
  %v1257 = vmax.f32 %v1201, %v1229
  %v1258 = vmax.f32 %v1202, %v1230
  %v1259 = vmax.f32 %v1203, %v1231
  %v1260 = vmax.f32 %v1204, %v1232
  %v1261 = vmax.f32 %v1205, %v1233
  %v1262 = vmax.f32 %v1206, %v1234
  %v1263 = vmax.f32 %v1207, %v1235
  %v1264 = vmax.f32 %v1208, %v1236
  %v1265 = vmax.f32 %v1209, %v1237
  %v1266 = vmax.f32 %v1210, %v1238
  %v1267 = vmax.f32 %v1211, %v1239
  %v1268 = vmax.f32 %v1212, %v1240
  %v1269 = vld [vmem:[%s4] sm:$0x3]
  %v1271 = vperm.slane %v1269, 0
  %v1272 = vperm.slane %v1269, 1
  %v1275 = vadd.f32 %v1241, %v1271
  %v1276 = vadd.f32 %v1242, %v1272
  %v1277 = vadd.f32 %v1243, %v1271
  %v1278 = vadd.f32 %v1244, %v1272
  %v1279 = vadd.f32 %v1245, %v1271
  %v1280 = vadd.f32 %v1246, %v1272
  %v1281 = vadd.f32 %v1247, %v1271
  %v1282 = vadd.f32 %v1248, %v1272
  %v1283 = vadd.f32 %v1249, %v1271
  %v1284 = vadd.f32 %v1250, %v1272
  %v1285 = vadd.f32 %v1251, %v1271
  %v1286 = vadd.f32 %v1252, %v1272
  %v1287 = vadd.f32 %v1253, %v1271
  %v1288 = vadd.f32 %v1254, %v1272
  %v1289 = vadd.f32 %v1255, %v1271
  %v1290 = vadd.f32 %v1256, %v1272
  %v1291 = vadd.f32 %v1257, %v1271
  %v1292 = vadd.f32 %v1258, %v1272
  %v1293 = vadd.f32 %v1259, %v1271
  %v1294 = vadd.f32 %v1260, %v1272
  %v1295 = vadd.f32 %v1261, %v1271
  %v1296 = vadd.f32 %v1262, %v1272
  %v1297 = vadd.f32 %v1263, %v1271
  %v1298 = vadd.f32 %v1264, %v1272
  %v1299 = vadd.f32 %v1265, %v1271
  %v1300 = vadd.f32 %v1266, %v1272
  %v1301 = vadd.f32 %v1267, %v1271
  %v1302 = vadd.f32 %v1268, %v1272
  %v1303 = vmax.f32 %v1275, 0.0
  %v1304 = vmax.f32 %v1276, 0.0
  %v1305 = vmax.f32 %v1277, 0.0
  %v1306 = vmax.f32 %v1278, 0.0
  %v1307 = vmax.f32 %v1279, 0.0
  %v1308 = vmax.f32 %v1280, 0.0
  %v1309 = vmax.f32 %v1281, 0.0
  %v1310 = vmax.f32 %v1282, 0.0
  %v1311 = vmax.f32 %v1283, 0.0
  %v1312 = vmax.f32 %v1284, 0.0
  %v1313 = vmax.f32 %v1285, 0.0
  %v1314 = vmax.f32 %v1286, 0.0
  %v1315 = vmax.f32 %v1287, 0.0
  %v1316 = vmax.f32 %v1288, 0.0
  %v1317 = vmax.f32 %v1289, 0.0
  %v1318 = vmax.f32 %v1290, 0.0
  %v1319 = vmax.f32 %v1291, 0.0
  %v1320 = vmax.f32 %v1292, 0.0
  %v1321 = vmax.f32 %v1293, 0.0
  %v1322 = vmax.f32 %v1294, 0.0
  %v1323 = vmax.f32 %v1295, 0.0
  %v1324 = vmax.f32 %v1296, 0.0
  %v1325 = vmax.f32 %v1297, 0.0
  %v1326 = vmax.f32 %v1298, 0.0
  %v1327 = vmax.f32 %v1299, 0.0
  %v1328 = vmax.f32 %v1300, 0.0
  %v1329 = vmax.f32 %v1301, 0.0
  %v1330 = vmax.f32 %v1302, 0.0
  %1331 = vst [vmem:[%s5] sm:$0xff] %v1303
  %vm1332 = vcmask 785408
  %1333 = vst.msk [vmem:[%s5 + $0x8] sm:$0xff] %vm1332, %v1304
  %1334 = vst [vmem:[%s5 + $0x10] sm:$0xff] %v1305
  %1335 = vst.msk [vmem:[%s5 + $0x18] sm:$0xff] %vm1332, %v1306
  %1336 = vst [vmem:[%s5 + $0x20] sm:$0xff] %v1307
  %1337 = vst.msk [vmem:[%s5 + $0x28] sm:$0xff] %vm1332, %v1308
  %1338 = vst [vmem:[%s5 + $0x30] sm:$0xff] %v1309
  %1339 = vst.msk [vmem:[%s5 + $0x38] sm:$0xff] %vm1332, %v1310
  %1340 = vst [vmem:[%s5 + $0x40] sm:$0xff] %v1311
  %1341 = vst.msk [vmem:[%s5 + $0x48] sm:$0xff] %vm1332, %v1312
  %1342 = vst [vmem:[%s5 + $0x50] sm:$0xff] %v1313
  %1343 = vst.msk [vmem:[%s5 + $0x58] sm:$0xff] %vm1332, %v1314
  %1344 = vst [vmem:[%s5 + $0x60] sm:$0xff] %v1315
  %1345 = vst.msk [vmem:[%s5 + $0x68] sm:$0xff] %vm1332, %v1316
  %1346 = vst [vmem:[%s5 + $0x70] sm:$0xff] %v1317
  %1347 = vst.msk [vmem:[%s5 + $0x78] sm:$0xff] %vm1332, %v1318
  %1348 = vst [vmem:[%s5 + $0x80] sm:$0xff] %v1319
  %1349 = vst.msk [vmem:[%s5 + $0x88] sm:$0xff] %vm1332, %v1320
  %1350 = vst [vmem:[%s5 + $0x90] sm:$0xff] %v1321
  %1351 = vst.msk [vmem:[%s5 + $0x98] sm:$0xff] %vm1332, %v1322
  %1352 = vst [vmem:[%s5 + $0xa0] sm:$0xff] %v1323
  %1353 = vst.msk [vmem:[%s5 + $0xa8] sm:$0xff] %vm1332, %v1324
  %1354 = vst [vmem:[%s5 + $0xb0] sm:$0xff] %v1325
  %1355 = vst.msk [vmem:[%s5 + $0xb8] sm:$0xff] %vm1332, %v1326
  %1356 = vst [vmem:[%s5 + $0xc0] sm:$0xff] %v1327
  %1357 = vst.msk [vmem:[%s5 + $0xc8] sm:$0xff] %vm1332, %v1328
  %1358 = vst [vmem:[%s5 + $0xd0] sm:$0xff] %v1329
  %1359 = vst.msk [vmem:[%s5 + $0xd8] sm:$0xff] %vm1332, %v1330
  // Predicated region
  $region22: #{convnet_forward.3} parent=0 // pred_check
    _
  $region23: #{convnet_forward.3} parent=0 // pred_check_branch
    %1361 = sbr.rel (0) target = $region25
  $region24: #{convnet_forward.3} parent=0 // pred_region
    _
  $region25: #{convnet_forward.3} parent=0 // pred_fallthru
    _
  // Predicated region
  $region26: #{convnet_forward.3} parent=0 // pred_check
    _
  $region27: #{convnet_forward.3} parent=0 // pred_check_branch
    %1363 = sbr.rel (0) target = $region29
  $region28: #{convnet_forward.3} parent=0 // pred_region
    _
  $region29: #{convnet_forward.3} parent=0 // pred_fallthru
    _

// kernel: convnet_forward.5
$region0: #{convnet_forward.5}
  #allocation0 [shape = 'u32[]', space=smem, size = 0x4, offset = 0x4, fixed_abs, tag = 'smem constant byte address 0x4 - core index']
  #allocation1 [shape = 'u32[72,128]{1,0:T(1,128)}', space=vmem, size = 0x9000, scoped, tag = 'internal scratch']
  %s0 = inlined_call_operand.vmem [shape: f32[2,1568], index: 0, kind: input, shape index: {}]
  %s1 = inlined_call_operand.vmem [shape: f32[1568,128], index: 1, kind: input, shape index: {}]
  %s2 = inlined_call_operand.vmem [shape: f32[1,128], index: 2, kind: input, shape index: {}]
  %s3 = inlined_call_operand.vmem [shape: f32[128,128], index: 3, kind: input, shape index: {}]
  %s4 = inlined_call_operand.vmem [shape: f32[1,128], index: 4, kind: input, shape index: {}]
  %s5 = inlined_call_operand.vmem [shape: f32[128,10], index: 5, kind: input, shape index: {}]
  %s6 = inlined_call_operand.vmem [shape: f32[1,10], index: 6, kind: input, shape index: {}]
  %s7 = inlined_call_operand.hbm [shape: f32[2,10], index: 7, kind: output, shape index: {}]
  %s8 = sld [smem:[#allocation0]]
  $region38: #{convnet_forward.5} parent=0
    _
  %s10 = ssub.s32 1, %s8
  %s11 = scalar_select 0, %s10, %s8
  $region1: #{convnet_forward.5} parent=0
    #allocation2 [shape = 'u8[1024]{0}', space=vmem, size = 0x400, scoped, tag = 'output window, operand 0, single buffered']
    #allocation3 [shape = 's32[1]{0}', space=sflag, size = 0x4, scoped, tag = 'scoped memory for convnet_forward.5']
    %12 = vsyncpa [#allocation3], 0
    // Predicated region
    $region2: #{convnet_forward.5} parent=1 // pred_check
      _
    $region3: #{convnet_forward.5} parent=1 // pred_check_branch
      %14 = sbr.rel (0) target = $region5
    $region4: #{convnet_forward.5} parent=1 // pred_region
      _
    $region5: #{convnet_forward.5} parent=1 // pred_fallthru
      _
    // Predicated region
    $region6: #{convnet_forward.5} parent=1 // pred_check
      _
    $region7: #{convnet_forward.5} parent=1 // pred_check_branch
      %16 = sbr.rel (0) target = $region9
    $region8: #{convnet_forward.5} parent=1 // pred_region
      _
    $region9: #{convnet_forward.5} parent=1 // pred_fallthru
      _
    // Predicated region
    $region10: #{convnet_forward.5} parent=1 // pred_check
      _
    $region11: #{convnet_forward.5} parent=1 // pred_check_branch
      %18 = sbr.rel (0) target = $region13
    $region12: #{convnet_forward.5} parent=1 // pred_region
      _
    $region13: #{convnet_forward.5} parent=1 // pred_fallthru
      _
    // Predicated region
    $region14: #{convnet_forward.5} parent=1 // pred_check
      _
    $region15: #{convnet_forward.5} parent=1 // pred_check_branch
      %20 = sbr.rel (0) target = $region17
    $region16: #{convnet_forward.5} parent=1 // pred_region
      _
    $region17: #{convnet_forward.5} parent=1 // pred_fallthru
      _
    // Predicated region
    $region18: #{convnet_forward.5} parent=1 // pred_check
      _
    $region19: #{convnet_forward.5} parent=1 // pred_check_branch
      %22 = sbr.rel (0) target = $region21
    $region20: #{convnet_forward.5} parent=1 // pred_region
      _
    $region21: #{convnet_forward.5} parent=1 // pred_fallthru
      _
    // Predicated region
    $region22: #{convnet_forward.5} parent=1 // pred_check
      _
    $region23: #{convnet_forward.5} parent=1 // pred_check_branch
      %24 = sbr.rel (0) target = $region25
    $region24: #{convnet_forward.5} parent=1 // pred_region
      _
    $region25: #{convnet_forward.5} parent=1 // pred_fallthru
      _
    // Predicated region
    $region26: #{convnet_forward.5} parent=1 // pred_check
      _
    $region27: #{convnet_forward.5} parent=1 // pred_check_branch
      %26 = sbr.rel (0) target = $region29
    $region28: #{convnet_forward.5} parent=1 // pred_region
      _
    $region29: #{convnet_forward.5} parent=1 // pred_fallthru
      _
    %v27 = vld [vmem:[%s0] sm:$0xff]
    %v28 = vld [vmem:[%s0 + $0x8] sm:$0xff]
    %v29 = vld [vmem:[%s0 + $0x10] sm:$0xff]
    %v30 = vld [vmem:[%s0 + $0x18] sm:$0x3]
    %v31 = vld [vmem:[%s1] sm:$0xff]
    %v32 = vld [vmem:[%s1 + $0x8] sm:$0xff]
    %v33 = vld [vmem:[%s1 + $0x10] sm:$0xff]
    %v34 = vld [vmem:[%s1 + $0x18] sm:$0xff]
    %v35 = vld [vmem:[%s1 + $0x20] sm:$0xff]
    %v36 = vld [vmem:[%s1 + $0x28] sm:$0xff]
    %v37 = vld [vmem:[%s1 + $0x30] sm:$0xff]
    %v38 = vld [vmem:[%s1 + $0x38] sm:$0xff]
    %v39 = vld [vmem:[%s1 + $0x40] sm:$0xff]
    %v40 = vld [vmem:[%s1 + $0x48] sm:$0xff]
    %v41 = vld [vmem:[%s1 + $0x50] sm:$0xff]
    %v42 = vld [vmem:[%s1 + $0x58] sm:$0xff]
    %v43 = vld [vmem:[%s1 + $0x60] sm:$0xff]
    %v44 = vld [vmem:[%s1 + $0x68] sm:$0xff]
    %v45 = vld [vmem:[%s1 + $0x70] sm:$0xff]
    %v46 = vld [vmem:[%s1 + $0x78] sm:$0xff]
    %v47 = vld [vmem:[%s1 + $0x80] sm:$0xff]
    %v48 = vld [vmem:[%s1 + $0x88] sm:$0xff]
    %v49 = vld [vmem:[%s1 + $0x90] sm:$0xff]
    %v50 = vld [vmem:[%s1 + $0x98] sm:$0xff]
    %v51 = vld [vmem:[%s1 + $0xa0] sm:$0xff]
    %v52 = vld [vmem:[%s1 + $0xa8] sm:$0xff]
    %v53 = vld [vmem:[%s1 + $0xb0] sm:$0xff]
    %v54 = vld [vmem:[%s1 + $0xb8] sm:$0xff]
    %v55 = vld [vmem:[%s1 + $0xc0] sm:$0xff]
    %v56 = vld [vmem:[%s1 + $0xc8] sm:$0xff]
    %v57 = vld [vmem:[%s1 + $0xd0] sm:$0xff]
    %v58 = vld [vmem:[%s1 + $0xd8] sm:$0xff]
    %v59 = vld [vmem:[%s1 + $0xe0] sm:$0xff]
    %v60 = vld [vmem:[%s1 + $0xe8] sm:$0xff]
    %v61 = vld [vmem:[%s1 + $0xf0] sm:$0xff]
    %v62 = vld [vmem:[%s1 + $0xf8] sm:$0xff]
    %v63 = vld [vmem:[%s1 + $0x100] sm:$0xff]
    %v64 = vld [vmem:[%s1 + $0x108] sm:$0xff]
    %v65 = vld [vmem:[%s1 + $0x110] sm:$0xff]
    %v66 = vld [vmem:[%s1 + $0x118] sm:$0xff]
    %v67 = vld [vmem:[%s1 + $0x120] sm:$0xff]
    %v68 = vld [vmem:[%s1 + $0x128] sm:$0xff]
    %v69 = vld [vmem:[%s1 + $0x130] sm:$0xff]
    %v70 = vld [vmem:[%s1 + $0x138] sm:$0xff]
    %v71 = vld [vmem:[%s1 + $0x140] sm:$0xff]
    %v72 = vld [vmem:[%s1 + $0x148] sm:$0xff]
    %v73 = vld [vmem:[%s1 + $0x150] sm:$0xff]
    %v74 = vld [vmem:[%s1 + $0x158] sm:$0xff]
    %v75 = vld [vmem:[%s1 + $0x160] sm:$0xff]
    %v76 = vld [vmem:[%s1 + $0x168] sm:$0xff]
    %v77 = vld [vmem:[%s1 + $0x170] sm:$0xff]
    %v78 = vld [vmem:[%s1 + $0x178] sm:$0xff]
    %v79 = vld [vmem:[%s1 + $0x180] sm:$0xff]
    %v80 = vld [vmem:[%s1 + $0x188] sm:$0xff]
    %v81 = vld [vmem:[%s1 + $0x190] sm:$0xff]
    %v82 = vld [vmem:[%s1 + $0x198] sm:$0xff]
    %v83 = vld [vmem:[%s1 + $0x1a0] sm:$0xff]
    %v84 = vld [vmem:[%s1 + $0x1a8] sm:$0xff]
    %v85 = vld [vmem:[%s1 + $0x1b0] sm:$0xff]
    %v86 = vld [vmem:[%s1 + $0x1b8] sm:$0xff]
    %v87 = vld [vmem:[%s1 + $0x1c0] sm:$0xff]
    %v88 = vld [vmem:[%s1 + $0x1c8] sm:$0xff]
    %v89 = vld [vmem:[%s1 + $0x1d0] sm:$0xff]
    %v90 = vld [vmem:[%s1 + $0x1d8] sm:$0xff]
    %v91 = vld [vmem:[%s1 + $0x1e0] sm:$0xff]
    %v92 = vld [vmem:[%s1 + $0x1e8] sm:$0xff]
    %v93 = vld [vmem:[%s1 + $0x1f0] sm:$0xff]
    %v94 = vld [vmem:[%s1 + $0x1f8] sm:$0xff]
    %v95 = vld [vmem:[%s1 + $0x200] sm:$0xff]
    %v96 = vld [vmem:[%s1 + $0x208] sm:$0xff]
    %v97 = vld [vmem:[%s1 + $0x210] sm:$0xff]
    %v98 = vld [vmem:[%s1 + $0x218] sm:$0xff]
    %v99 = vld [vmem:[%s1 + $0x220] sm:$0xff]
    %v100 = vld [vmem:[%s1 + $0x228] sm:$0xff]
    %v101 = vld [vmem:[%s1 + $0x230] sm:$0xff]
    %v102 = vld [vmem:[%s1 + $0x238] sm:$0xff]
    %v103 = vld [vmem:[%s1 + $0x240] sm:$0xff]
    %v104 = vld [vmem:[%s1 + $0x248] sm:$0xff]
    %v105 = vld [vmem:[%s1 + $0x250] sm:$0xff]
    %v106 = vld [vmem:[%s1 + $0x258] sm:$0xff]
    %v107 = vld [vmem:[%s1 + $0x260] sm:$0xff]
    %v108 = vld [vmem:[%s1 + $0x268] sm:$0xff]
    %v109 = vld [vmem:[%s1 + $0x270] sm:$0xff]
    %v110 = vld [vmem:[%s1 + $0x278] sm:$0xff]
    %v111 = vld [vmem:[%s1 + $0x280] sm:$0xff]
    %v112 = vld [vmem:[%s1 + $0x288] sm:$0xff]
    %v113 = vld [vmem:[%s1 + $0x290] sm:$0xff]
    %v114 = vld [vmem:[%s1 + $0x298] sm:$0xff]
    %v115 = vld [vmem:[%s1 + $0x2a0] sm:$0xff]
    %v116 = vld [vmem:[%s1 + $0x2a8] sm:$0xff]
    %v117 = vld [vmem:[%s1 + $0x2b0] sm:$0xff]
    %v118 = vld [vmem:[%s1 + $0x2b8] sm:$0xff]
    %v119 = vld [vmem:[%s1 + $0x2c0] sm:$0xff]
    %v120 = vld [vmem:[%s1 + $0x2c8] sm:$0xff]
    %v121 = vld [vmem:[%s1 + $0x2d0] sm:$0xff]
    %v122 = vld [vmem:[%s1 + $0x2d8] sm:$0xff]
    %v123 = vld [vmem:[%s1 + $0x2e0] sm:$0xff]
    %v124 = vld [vmem:[%s1 + $0x2e8] sm:$0xff]
    %v125 = vld [vmem:[%s1 + $0x2f0] sm:$0xff]
    %v126 = vld [vmem:[%s1 + $0x2f8] sm:$0xff]
    %v127 = vld [vmem:[%s1 + $0x300] sm:$0xff]
    %v128 = vld [vmem:[%s1 + $0x308] sm:$0xff]
    %v129 = vld [vmem:[%s1 + $0x310] sm:$0xff]
    %v130 = vld [vmem:[%s1 + $0x318] sm:$0xff]
    %v131 = vld [vmem:[%s1 + $0x320] sm:$0xff]
    %v132 = vld [vmem:[%s1 + $0x328] sm:$0xff]
    %v133 = vld [vmem:[%s1 + $0x330] sm:$0xff]
    %v134 = vld [vmem:[%s1 + $0x338] sm:$0xff]
    %v135 = vld [vmem:[%s1 + $0x340] sm:$0xff]
    %v136 = vld [vmem:[%s1 + $0x348] sm:$0xff]
    %v137 = vld [vmem:[%s1 + $0x350] sm:$0xff]
    %v138 = vld [vmem:[%s1 + $0x358] sm:$0xff]
    %v139 = vld [vmem:[%s1 + $0x360] sm:$0xff]
    %v140 = vld [vmem:[%s1 + $0x368] sm:$0xff]
    %v141 = vld [vmem:[%s1 + $0x370] sm:$0xff]
    %v142 = vld [vmem:[%s1 + $0x378] sm:$0xff]
    %v143 = vld [vmem:[%s1 + $0x380] sm:$0xff]
    %v144 = vld [vmem:[%s1 + $0x388] sm:$0xff]
    %v145 = vld [vmem:[%s1 + $0x390] sm:$0xff]
    %v146 = vld [vmem:[%s1 + $0x398] sm:$0xff]
    %v147 = vld [vmem:[%s1 + $0x3a0] sm:$0xff]
    %v148 = vld [vmem:[%s1 + $0x3a8] sm:$0xff]
    %v149 = vld [vmem:[%s1 + $0x3b0] sm:$0xff]
    %v150 = vld [vmem:[%s1 + $0x3b8] sm:$0xff]
    %v151 = vld [vmem:[%s1 + $0x3c0] sm:$0xff]
    %v152 = vld [vmem:[%s1 + $0x3c8] sm:$0xff]
    %v153 = vld [vmem:[%s1 + $0x3d0] sm:$0xff]
    %v154 = vld [vmem:[%s1 + $0x3d8] sm:$0xff]
    %v155 = vld [vmem:[%s1 + $0x3e0] sm:$0xff]
    %v156 = vld [vmem:[%s1 + $0x3e8] sm:$0xff]
    %v157 = vld [vmem:[%s1 + $0x3f0] sm:$0xff]
    %v158 = vld [vmem:[%s1 + $0x3f8] sm:$0xff]
    %v159 = vld [vmem:[%s1 + $0x400] sm:$0xff]
    %v160 = vld [vmem:[%s1 + $0x408] sm:$0xff]
    %v161 = vld [vmem:[%s1 + $0x410] sm:$0xff]
    %v162 = vld [vmem:[%s1 + $0x418] sm:$0xff]
    %v163 = vld [vmem:[%s1 + $0x420] sm:$0xff]
    %v164 = vld [vmem:[%s1 + $0x428] sm:$0xff]
    %v165 = vld [vmem:[%s1 + $0x430] sm:$0xff]
    %v166 = vld [vmem:[%s1 + $0x438] sm:$0xff]
    %v167 = vld [vmem:[%s1 + $0x440] sm:$0xff]
    %v168 = vld [vmem:[%s1 + $0x448] sm:$0xff]
    %v169 = vld [vmem:[%s1 + $0x450] sm:$0xff]
    %v170 = vld [vmem:[%s1 + $0x458] sm:$0xff]
    %v171 = vld [vmem:[%s1 + $0x460] sm:$0xff]
    %v172 = vld [vmem:[%s1 + $0x468] sm:$0xff]
    %v173 = vld [vmem:[%s1 + $0x470] sm:$0xff]
    %v174 = vld [vmem:[%s1 + $0x478] sm:$0xff]
    %v175 = vld [vmem:[%s1 + $0x480] sm:$0xff]
    %v176 = vld [vmem:[%s1 + $0x488] sm:$0xff]
    %v177 = vld [vmem:[%s1 + $0x490] sm:$0xff]
    %v178 = vld [vmem:[%s1 + $0x498] sm:$0xff]
    %v179 = vld [vmem:[%s1 + $0x4a0] sm:$0xff]
    %v180 = vld [vmem:[%s1 + $0x4a8] sm:$0xff]
    %v181 = vld [vmem:[%s1 + $0x4b0] sm:$0xff]
    %v182 = vld [vmem:[%s1 + $0x4b8] sm:$0xff]
    %v183 = vld [vmem:[%s1 + $0x4c0] sm:$0xff]
    %v184 = vld [vmem:[%s1 + $0x4c8] sm:$0xff]
    %v185 = vld [vmem:[%s1 + $0x4d0] sm:$0xff]
    %v186 = vld [vmem:[%s1 + $0x4d8] sm:$0xff]
    %v187 = vld [vmem:[%s1 + $0x4e0] sm:$0xff]
    %v188 = vld [vmem:[%s1 + $0x4e8] sm:$0xff]
    %v189 = vld [vmem:[%s1 + $0x4f0] sm:$0xff]
    %v190 = vld [vmem:[%s1 + $0x4f8] sm:$0xff]
    %v191 = vld [vmem:[%s1 + $0x500] sm:$0xff]
    %v192 = vld [vmem:[%s1 + $0x508] sm:$0xff]
    %v193 = vld [vmem:[%s1 + $0x510] sm:$0xff]
    %v194 = vld [vmem:[%s1 + $0x518] sm:$0xff]
    %v195 = vld [vmem:[%s1 + $0x520] sm:$0xff]
    %v196 = vld [vmem:[%s1 + $0x528] sm:$0xff]
    %v197 = vld [vmem:[%s1 + $0x530] sm:$0xff]
    %v198 = vld [vmem:[%s1 + $0x538] sm:$0xff]
    %v199 = vld [vmem:[%s1 + $0x540] sm:$0xff]
    %v200 = vld [vmem:[%s1 + $0x548] sm:$0xff]
    %v201 = vld [vmem:[%s1 + $0x550] sm:$0xff]
    %v202 = vld [vmem:[%s1 + $0x558] sm:$0xff]
    %v203 = vld [vmem:[%s1 + $0x560] sm:$0xff]
    %v204 = vld [vmem:[%s1 + $0x568] sm:$0xff]
    %v205 = vld [vmem:[%s1 + $0x570] sm:$0xff]
    %v206 = vld [vmem:[%s1 + $0x578] sm:$0xff]
    %v207 = vld [vmem:[%s1 + $0x580] sm:$0xff]
    %v208 = vld [vmem:[%s1 + $0x588] sm:$0xff]
    %v209 = vld [vmem:[%s1 + $0x590] sm:$0xff]
    %v210 = vld [vmem:[%s1 + $0x598] sm:$0xff]
    %v211 = vld [vmem:[%s1 + $0x5a0] sm:$0xff]
    %v212 = vld [vmem:[%s1 + $0x5a8] sm:$0xff]
    %v213 = vld [vmem:[%s1 + $0x5b0] sm:$0xff]
    %v214 = vld [vmem:[%s1 + $0x5b8] sm:$0xff]
    %v215 = vld [vmem:[%s1 + $0x5c0] sm:$0xff]
    %v216 = vld [vmem:[%s1 + $0x5c8] sm:$0xff]
    %v217 = vld [vmem:[%s1 + $0x5d0] sm:$0xff]
    %v218 = vld [vmem:[%s1 + $0x5d8] sm:$0xff]
    %v219 = vld [vmem:[%s1 + $0x5e0] sm:$0xff]
    %v220 = vld [vmem:[%s1 + $0x5e8] sm:$0xff]
    %v221 = vld [vmem:[%s1 + $0x5f0] sm:$0xff]
    %v222 = vld [vmem:[%s1 + $0x5f8] sm:$0xff]
    %v223 = vld [vmem:[%s1 + $0x600] sm:$0xff]
    %v224 = vld [vmem:[%s1 + $0x608] sm:$0xff]
    %v225 = vld [vmem:[%s1 + $0x610] sm:$0xff]
    %v226 = vld [vmem:[%s1 + $0x618] sm:$0xff]
    %v227 = vld [vmem:[%s2] sm:$0x1]
    %v229 = vperm.slane %v227, 0
    %235 = vst [vmem:[#allocation1] ss:$4 sm:$0xff] %v27
    %s236 = scalar_lea.vmem [#allocation1], 32
    %237 = vst [vmem:[%s236] ss:$4 sm:$0xff] %v28
    %v238 = vld.sshfl [vmem:[#allocation1] sm:$0xff pattern:$0x73625140]
    %v239 = vld.sshfl [vmem:[#allocation1 + $0x8] sm:$0xff pattern:$0x73625140]
    %v240 = vld.sshfl [vmem:[#allocation1 + $0x10] sm:$0xff pattern:$0x73625140]
    %v241 = vld.sshfl [vmem:[#allocation1 + $0x18] sm:$0xff pattern:$0x73625140]
    %v242 = vld.sshfl [vmem:[#allocation1 + $0x20] sm:$0xff pattern:$0x73625140]
    %v243 = vld.sshfl [vmem:[#allocation1 + $0x28] sm:$0xff pattern:$0x73625140]
    %v244 = vld.sshfl [vmem:[#allocation1 + $0x30] sm:$0xff pattern:$0x73625140]
    %v245 = vld.sshfl [vmem:[#allocation1 + $0x38] sm:$0xff pattern:$0x73625140]
    %246 = vst [vmem:[#allocation1] ss:$4 sm:$0xff] %v29
    %247 = vst [vmem:[%s236] ss:$4 sm:$0xff] %v30
    %v248 = vld.sshfl [vmem:[#allocation1] sm:$0xff pattern:$0x73625140]
    %v249 = vld.sshfl [vmem:[#allocation1 + $0x8] sm:$0xff pattern:$0x73625140]
    %v250 = vld.sshfl [vmem:[#allocation1 + $0x10] sm:$0xff pattern:$0x73625140]
    %v251 = vld.sshfl [vmem:[#allocation1 + $0x18] sm:$0xff pattern:$0x73625140]
    %v252 = vld.sshfl [vmem:[#allocation1 + $0x20] sm:$0xff pattern:$0x73625140]
    %vm265 = vcmask 261120
    %v266 = vsel %vm265, %v252, 0
    %268 = vmatpush.msra.mxu0 %v46
    %269 = vmatpush.msra.mxu0 %v45
    %270 = vmatpush.msra.mxu0 %v44
    %271 = vmatpush.msra.mxu0 %v43
    %272 = vmatpush.msra.mxu0 %v42
    %273 = vmatpush.msra.mxu0 %v41
    %274 = vmatpush.msra.mxu0 %v40
    %275 = vmatpush.msra.mxu0 %v39
    %276 = vmatpush.msra.mxu0 %v38
    %277 = vmatpush.msra.mxu0 %v37
    %278 = vmatpush.msra.mxu0 %v36
    %279 = vmatpush.msra.mxu0 %v35
    %280 = vmatpush.msra.mxu0 %v34
    %281 = vmatpush.msra.mxu0 %v33
    %282 = vmatpush.msra.mxu0 %v32
    %283 = vmatpush.msra.mxu0 %v31
    %284 = vmatmul.f32.gmra.mxu0 %v238
    %v285 = vpop.f32.mrf.mxu0
    %v286 = vadd.f32 %v229, %v285
    %287 = vdwg.mxu0
    %288 = vmatpush.msra.mxu0 %v62
    %289 = vmatpush.msra.mxu0 %v61
    %290 = vmatpush.msra.mxu0 %v60
    %291 = vmatpush.msra.mxu0 %v59
    %292 = vmatpush.msra.mxu0 %v58
    %293 = vmatpush.msra.mxu0 %v57
    %294 = vmatpush.msra.mxu0 %v56
    %295 = vmatpush.msra.mxu0 %v55
    %296 = vmatpush.msra.mxu0 %v54
    %297 = vmatpush.msra.mxu0 %v53
    %298 = vmatpush.msra.mxu0 %v52
    %299 = vmatpush.msra.mxu0 %v51
    %300 = vmatpush.msra.mxu0 %v50
    %301 = vmatpush.msra.mxu0 %v49
    %302 = vmatpush.msra.mxu0 %v48
    %303 = vmatpush.msra.mxu0 %v47
    %304 = vmatmul.f32.gmra.mxu0 %v239
    %v305 = vpop.f32.mrf.mxu0
    %v306 = vadd.f32 %v286, %v305
    %307 = vdwg.mxu0
    %308 = vmatpush.msra.mxu0 %v78
    %309 = vmatpush.msra.mxu0 %v77
    %310 = vmatpush.msra.mxu0 %v76
    %311 = vmatpush.msra.mxu0 %v75
    %312 = vmatpush.msra.mxu0 %v74
    %313 = vmatpush.msra.mxu0 %v73
    %314 = vmatpush.msra.mxu0 %v72
    %315 = vmatpush.msra.mxu0 %v71
    %316 = vmatpush.msra.mxu0 %v70
    %317 = vmatpush.msra.mxu0 %v69
    %318 = vmatpush.msra.mxu0 %v68
    %319 = vmatpush.msra.mxu0 %v67
    %320 = vmatpush.msra.mxu0 %v66
    %321 = vmatpush.msra.mxu0 %v65
    %322 = vmatpush.msra.mxu0 %v64
    %323 = vmatpush.msra.mxu0 %v63
    %324 = vmatmul.f32.gmra.mxu0 %v240
    %v325 = vpop.f32.mrf.mxu0
    %v326 = vadd.f32 %v306, %v325
    %327 = vdwg.mxu0
    %328 = vmatpush.msra.mxu0 %v94
    %329 = vmatpush.msra.mxu0 %v93
    %330 = vmatpush.msra.mxu0 %v92
    %331 = vmatpush.msra.mxu0 %v91
    %332 = vmatpush.msra.mxu0 %v90
    %333 = vmatpush.msra.mxu0 %v89
    %334 = vmatpush.msra.mxu0 %v88
    %335 = vmatpush.msra.mxu0 %v87
    %336 = vmatpush.msra.mxu0 %v86
    %337 = vmatpush.msra.mxu0 %v85
    %338 = vmatpush.msra.mxu0 %v84
    %339 = vmatpush.msra.mxu0 %v83
    %340 = vmatpush.msra.mxu0 %v82
    %341 = vmatpush.msra.mxu0 %v81
    %342 = vmatpush.msra.mxu0 %v80
    %343 = vmatpush.msra.mxu0 %v79
    %344 = vmatmul.f32.gmra.mxu0 %v241
    %v345 = vpop.f32.mrf.mxu0
    %v346 = vadd.f32 %v326, %v345
    %347 = vdwg.mxu0
    %348 = vmatpush.msra.mxu0 %v110
    %349 = vmatpush.msra.mxu0 %v109
    %350 = vmatpush.msra.mxu0 %v108
    %351 = vmatpush.msra.mxu0 %v107
    %352 = vmatpush.msra.mxu0 %v106
    %353 = vmatpush.msra.mxu0 %v105
    %354 = vmatpush.msra.mxu0 %v104
    %355 = vmatpush.msra.mxu0 %v103
    %356 = vmatpush.msra.mxu0 %v102
    %357 = vmatpush.msra.mxu0 %v101
    %358 = vmatpush.msra.mxu0 %v100
    %359 = vmatpush.msra.mxu0 %v99
    %360 = vmatpush.msra.mxu0 %v98
    %361 = vmatpush.msra.mxu0 %v97
    %362 = vmatpush.msra.mxu0 %v96
    %363 = vmatpush.msra.mxu0 %v95
    %364 = vmatmul.f32.gmra.mxu0 %v242
    %v365 = vpop.f32.mrf.mxu0
    %v366 = vadd.f32 %v346, %v365
    %367 = vdwg.mxu0
    %368 = vmatpush.msra.mxu0 %v126
    %369 = vmatpush.msra.mxu0 %v125
    %370 = vmatpush.msra.mxu0 %v124
    %371 = vmatpush.msra.mxu0 %v123
    %372 = vmatpush.msra.mxu0 %v122
    %373 = vmatpush.msra.mxu0 %v121
    %374 = vmatpush.msra.mxu0 %v120
    %375 = vmatpush.msra.mxu0 %v119
    %376 = vmatpush.msra.mxu0 %v118
    %377 = vmatpush.msra.mxu0 %v117
    %378 = vmatpush.msra.mxu0 %v116
    %379 = vmatpush.msra.mxu0 %v115
    %380 = vmatpush.msra.mxu0 %v114
    %381 = vmatpush.msra.mxu0 %v113
    %382 = vmatpush.msra.mxu0 %v112
    %383 = vmatpush.msra.mxu0 %v111
    %384 = vmatmul.f32.gmra.mxu0 %v243
    %v385 = vpop.f32.mrf.mxu0
    %v386 = vadd.f32 %v366, %v385
    %387 = vdwg.mxu0
    %388 = vmatpush.msra.mxu0 %v142
    %389 = vmatpush.msra.mxu0 %v141
    %390 = vmatpush.msra.mxu0 %v140
    %391 = vmatpush.msra.mxu0 %v139
    %392 = vmatpush.msra.mxu0 %v138
    %393 = vmatpush.msra.mxu0 %v137
    %394 = vmatpush.msra.mxu0 %v136
    %395 = vmatpush.msra.mxu0 %v135
    %396 = vmatpush.msra.mxu0 %v134
    %397 = vmatpush.msra.mxu0 %v133
    %398 = vmatpush.msra.mxu0 %v132
    %399 = vmatpush.msra.mxu0 %v131
    %400 = vmatpush.msra.mxu0 %v130
    %401 = vmatpush.msra.mxu0 %v129
    %402 = vmatpush.msra.mxu0 %v128
    %403 = vmatpush.msra.mxu0 %v127
    %404 = vmatmul.f32.gmra.mxu0 %v244
    %v405 = vpop.f32.mrf.mxu0
    %v406 = vadd.f32 %v386, %v405
    %407 = vdwg.mxu0
    %408 = vmatpush.msra.mxu0 %v158
    %409 = vmatpush.msra.mxu0 %v157
    %410 = vmatpush.msra.mxu0 %v156
    %411 = vmatpush.msra.mxu0 %v155
    %412 = vmatpush.msra.mxu0 %v154
    %413 = vmatpush.msra.mxu0 %v153
    %414 = vmatpush.msra.mxu0 %v152
    %415 = vmatpush.msra.mxu0 %v151
    %416 = vmatpush.msra.mxu0 %v150
    %417 = vmatpush.msra.mxu0 %v149
    %418 = vmatpush.msra.mxu0 %v148
    %419 = vmatpush.msra.mxu0 %v147
    %420 = vmatpush.msra.mxu0 %v146
    %421 = vmatpush.msra.mxu0 %v145
    %422 = vmatpush.msra.mxu0 %v144
    %423 = vmatpush.msra.mxu0 %v143
    %424 = vmatmul.f32.gmra.mxu0 %v245
    %v425 = vpop.f32.mrf.mxu0
    %v426 = vadd.f32 %v406, %v425
    %427 = vdwg.mxu0
    %428 = vmatpush.msra.mxu0 %v174
    %429 = vmatpush.msra.mxu0 %v173
    %430 = vmatpush.msra.mxu0 %v172
    %431 = vmatpush.msra.mxu0 %v171
    %432 = vmatpush.msra.mxu0 %v170
    %433 = vmatpush.msra.mxu0 %v169
    %434 = vmatpush.msra.mxu0 %v168
    %435 = vmatpush.msra.mxu0 %v167
    %436 = vmatpush.msra.mxu0 %v166
    %437 = vmatpush.msra.mxu0 %v165
    %438 = vmatpush.msra.mxu0 %v164
    %439 = vmatpush.msra.mxu0 %v163
    %440 = vmatpush.msra.mxu0 %v162
    %441 = vmatpush.msra.mxu0 %v161
    %442 = vmatpush.msra.mxu0 %v160
    %443 = vmatpush.msra.mxu0 %v159
    %444 = vmatmul.f32.gmra.mxu0 %v248
    %v445 = vpop.f32.mrf.mxu0
    %v446 = vadd.f32 %v426, %v445
    %447 = vdwg.mxu0
    %448 = vmatpush.msra.mxu0 %v190
    %449 = vmatpush.msra.mxu0 %v189
    %450 = vmatpush.msra.mxu0 %v188
    %451 = vmatpush.msra.mxu0 %v187
    %452 = vmatpush.msra.mxu0 %v186
    %453 = vmatpush.msra.mxu0 %v185
    %454 = vmatpush.msra.mxu0 %v184
    %455 = vmatpush.msra.mxu0 %v183
    %456 = vmatpush.msra.mxu0 %v182
    %457 = vmatpush.msra.mxu0 %v181
    %458 = vmatpush.msra.mxu0 %v180
    %459 = vmatpush.msra.mxu0 %v179
    %460 = vmatpush.msra.mxu0 %v178
    %461 = vmatpush.msra.mxu0 %v177
    %462 = vmatpush.msra.mxu0 %v176
    %463 = vmatpush.msra.mxu0 %v175
    %464 = vmatmul.f32.gmra.mxu0 %v249
    %v465 = vpop.f32.mrf.mxu0
    %v466 = vadd.f32 %v446, %v465
    %467 = vdwg.mxu0
    %468 = vmatpush.msra.mxu0 %v206
    %469 = vmatpush.msra.mxu0 %v205
    %470 = vmatpush.msra.mxu0 %v204
    %471 = vmatpush.msra.mxu0 %v203
    %472 = vmatpush.msra.mxu0 %v202
    %473 = vmatpush.msra.mxu0 %v201
    %474 = vmatpush.msra.mxu0 %v200
    %475 = vmatpush.msra.mxu0 %v199
    %476 = vmatpush.msra.mxu0 %v198
    %477 = vmatpush.msra.mxu0 %v197
    %478 = vmatpush.msra.mxu0 %v196
    %479 = vmatpush.msra.mxu0 %v195
    %480 = vmatpush.msra.mxu0 %v194
    %481 = vmatpush.msra.mxu0 %v193
    %482 = vmatpush.msra.mxu0 %v192
    %483 = vmatpush.msra.mxu0 %v191
    %484 = vmatmul.f32.gmra.mxu0 %v250
    %v485 = vpop.f32.mrf.mxu0
    %v486 = vadd.f32 %v466, %v485
    %487 = vdwg.mxu0
    %488 = vmatpush.msra.mxu0 %v222
    %489 = vmatpush.msra.mxu0 %v221
    %490 = vmatpush.msra.mxu0 %v220
    %491 = vmatpush.msra.mxu0 %v219
    %492 = vmatpush.msra.mxu0 %v218
    %493 = vmatpush.msra.mxu0 %v217
    %494 = vmatpush.msra.mxu0 %v216
    %495 = vmatpush.msra.mxu0 %v215
    %496 = vmatpush.msra.mxu0 %v214
    %497 = vmatpush.msra.mxu0 %v213
    %498 = vmatpush.msra.mxu0 %v212
    %499 = vmatpush.msra.mxu0 %v211
    %500 = vmatpush.msra.mxu0 %v210
    %501 = vmatpush.msra.mxu0 %v209
    %502 = vmatpush.msra.mxu0 %v208
    %503 = vmatpush.msra.mxu0 %v207
    %504 = vmatmul.f32.gmra.mxu0 %v251
    %v505 = vpop.f32.mrf.mxu0
    %v506 = vadd.f32 %v486, %v505
    %507 = vdwg.mxu0
    %508 = vmatpush.msra.mxu0 0.0
    %509 = vmatpush.msra.mxu0 0.0
    %510 = vmatpush.msra.mxu0 0.0
    %511 = vmatpush.msra.mxu0 0.0
    %512 = vmatpush.msra.mxu0 0.0
    %513 = vmatpush.msra.mxu0 0.0
    %514 = vmatpush.msra.mxu0 0.0
    %515 = vmatpush.msra.mxu0 0.0
    %516 = vmatpush.msra.mxu0 0.0
    %517 = vmatpush.msra.mxu0 0.0
    %518 = vmatpush.msra.mxu0 0.0
    %519 = vmatpush.msra.mxu0 0.0
    %520 = vmatpush.msra.mxu0 %v226
    %521 = vmatpush.msra.mxu0 %v225
    %522 = vmatpush.msra.mxu0 %v224
    %523 = vmatpush.msra.mxu0 %v223
    %524 = vmatmul.f32.gmra.mxu0 %v266
    %v525 = vpop.f32.mrf.mxu0
    %v526 = vadd.f32 %v506, %v525
    %527 = vdwg.mxu0
    %v528 = vmax.f32 %v526, 0.0
    %v529 = vld [vmem:[%s3] sm:$0xff]
    %v530 = vld [vmem:[%s3 + $0x8] sm:$0xff]
    %v531 = vld [vmem:[%s3 + $0x10] sm:$0xff]
    %v532 = vld [vmem:[%s3 + $0x18] sm:$0xff]
    %v533 = vld [vmem:[%s3 + $0x20] sm:$0xff]
    %v534 = vld [vmem:[%s3 + $0x28] sm:$0xff]
    %v535 = vld [vmem:[%s3 + $0x30] sm:$0xff]
    %v536 = vld [vmem:[%s3 + $0x38] sm:$0xff]
    %v537 = vld [vmem:[%s3 + $0x40] sm:$0xff]
    %v538 = vld [vmem:[%s3 + $0x48] sm:$0xff]
    %v539 = vld [vmem:[%s3 + $0x50] sm:$0xff]
    %v540 = vld [vmem:[%s3 + $0x58] sm:$0xff]
    %v541 = vld [vmem:[%s3 + $0x60] sm:$0xff]
    %v542 = vld [vmem:[%s3 + $0x68] sm:$0xff]
    %v543 = vld [vmem:[%s3 + $0x70] sm:$0xff]
    %v544 = vld [vmem:[%s3 + $0x78] sm:$0xff]
    %v545 = vld [vmem:[%s4] sm:$0x1]
    %v547 = vperm.slane %v545, 0
    %549 = vmatpush.msra.mxu0 %v544
    %550 = vmatpush.msra.mxu0 %v543
    %551 = vmatpush.msra.mxu0 %v542
    %552 = vmatpush.msra.mxu0 %v541
    %553 = vmatpush.msra.mxu0 %v540
    %554 = vmatpush.msra.mxu0 %v539
    %555 = vmatpush.msra.mxu0 %v538
    %556 = vmatpush.msra.mxu0 %v537
    %557 = vmatpush.msra.mxu0 %v536
    %558 = vmatpush.msra.mxu0 %v535
    %559 = vmatpush.msra.mxu0 %v534
    %560 = vmatpush.msra.mxu0 %v533
    %561 = vmatpush.msra.mxu0 %v532
    %562 = vmatpush.msra.mxu0 %v531
    %563 = vmatpush.msra.mxu0 %v530
    %564 = vmatpush.msra.mxu0 %v529
    %565 = vmatmul.f32.gmra.mxu0 %v528
    %v566 = vpop.f32.mrf.mxu0
    %v567 = vadd.f32 %v547, %v566
    %568 = vdwg.mxu0
    %v569 = vmax.f32 %v567, 0.0
    %v570 = vld [vmem:[%s5] sm:$0xff]
    %v571 = vld [vmem:[%s5 + $0x8] sm:$0xff]
    %v572 = vld [vmem:[%s5 + $0x10] sm:$0xff]
    %v573 = vld [vmem:[%s5 + $0x18] sm:$0xff]
    %v574 = vld [vmem:[%s5 + $0x20] sm:$0xff]
    %v575 = vld [vmem:[%s5 + $0x28] sm:$0xff]
    %v576 = vld [vmem:[%s5 + $0x30] sm:$0xff]
    %v577 = vld [vmem:[%s5 + $0x38] sm:$0xff]
    %v578 = vld [vmem:[%s5 + $0x40] sm:$0xff]
    %v579 = vld [vmem:[%s5 + $0x48] sm:$0xff]
    %v580 = vld [vmem:[%s5 + $0x50] sm:$0xff]
    %v581 = vld [vmem:[%s5 + $0x58] sm:$0xff]
    %v582 = vld [vmem:[%s5 + $0x60] sm:$0xff]
    %v583 = vld [vmem:[%s5 + $0x68] sm:$0xff]
    %v584 = vld [vmem:[%s5 + $0x70] sm:$0xff]
    %v585 = vld [vmem:[%s5 + $0x78] sm:$0xff]
    %v586 = vld [vmem:[%s6] sm:$0x1]
    %v588 = vperm.slane %v586, 0
    %590 = vmatpush.msra.mxu0 %v585
    %591 = vmatpush.msra.mxu0 %v584
    %592 = vmatpush.msra.mxu0 %v583
    %593 = vmatpush.msra.mxu0 %v582
    %594 = vmatpush.msra.mxu0 %v581
    %595 = vmatpush.msra.mxu0 %v580
    %596 = vmatpush.msra.mxu0 %v579
    %597 = vmatpush.msra.mxu0 %v578
    %598 = vmatpush.msra.mxu0 %v577
    %599 = vmatpush.msra.mxu0 %v576
    %600 = vmatpush.msra.mxu0 %v575
    %601 = vmatpush.msra.mxu0 %v574
    %602 = vmatpush.msra.mxu0 %v573
    %603 = vmatpush.msra.mxu0 %v572
    %604 = vmatpush.msra.mxu0 %v571
    %605 = vmatpush.msra.mxu0 %v570
    %606 = vmatmul.f32.gmra.mxu0 %v569
    %v607 = vpop.f32.mrf.mxu0
    %v608 = vadd.f32 %v588, %v607
    %609 = vdwg.mxu0
    %vm610 = vcmask 74752
    %611 = vst.msk [vmem:[#allocation2] sm:$0x3] %vm610, %v608
    // Predicated region
    $region30: #{convnet_forward.5} parent=1 // pred_check
      _
    $region31: #{convnet_forward.5} parent=1 // pred_check_branch
      %613 = sbr.rel (0) target = $region33
    $region32: #{convnet_forward.5} parent=1 // pred_region
      %615 = vsyncadd [#allocation3], 0
      %s617 = sshll.u32 [#allocation2], 4
      %s618 = int_to_ptr.vmem [resolvable:$true] %s617
      %s619 = sshll.u32 %s7, 4
      %s620 = int_to_ptr.hbm [resolvable:$true] %s619
      %622 = dma.vmem_to_hbm [thread:$0]  %s618, 32, %s620, [#allocation3]
    $region33: #{convnet_forward.5} parent=1 // pred_fallthru
      _
    // Predicated region
    $region34: #{convnet_forward.5} parent=1 // pred_check
      _
    $region35: #{convnet_forward.5} parent=1 // pred_check_branch
      %624 = sbr.rel (0) target = $region37
    $region36: #{convnet_forward.5} parent=1 // pred_region
      %626 = dma.done [#allocation3], 32
    $region37: #{convnet_forward.5} parent=1 // pred_fallthru
      _
    %627 = vsyncpa [#allocation3], 1

// kernel: convnet_forward.4
$region0: #{convnet_forward.4}
  #allocation0 [shape = 'u32[]', space=smem, size = 0x4, offset = 0x4, fixed_abs, tag = 'smem constant byte address 0x4 - core index']
  #allocation1 [shape = 'u32[72,128]{1,0:T(1,128)}', space=vmem, size = 0x9000, scoped, tag = 'internal scratch']
  %s0 = inlined_call_operand.vmem [shape: f32[56,1440], index: 0, kind: input, shape index: {}]
  %s1 = inlined_call_operand.vmem [shape: f32[56,1440], index: 1, kind: input, shape index: {}]
  %s2 = inlined_call_operand.vmem [shape: f32[1440,224], index: 2, kind: input, shape index: {}]
  %s3 = inlined_call_operand.vmem [shape: f32[1440,224], index: 3, kind: input, shape index: {}]
  %s4 = inlined_call_operand.vmem [shape: f32[1,224], index: 4, kind: input, shape index: {}]
  %s5 = inlined_call_operand.vmem [shape: f32[56,224], index: 5, kind: output, shape index: {}]
  %s6 = sld [smem:[#allocation0]]
  $region30: #{convnet_forward.4} parent=0
    _
  %s8 = ssub.s32 1, %s6
  %s9 = scalar_select 0, %s8, %s6
  // Predicated region
  $region2: #{convnet_forward.4} parent=0 // pred_check
    _
  $region3: #{convnet_forward.4} parent=0 // pred_check_branch
    %11 = sbr.rel (0) target = $region5
  $region4: #{convnet_forward.4} parent=0 // pred_region
    _
  $region5: #{convnet_forward.4} parent=0 // pred_fallthru
    _
  // Predicated region
  $region6: #{convnet_forward.4} parent=0 // pred_check
    _
  $region7: #{convnet_forward.4} parent=0 // pred_check_branch
    %13 = sbr.rel (0) target = $region9
  $region8: #{convnet_forward.4} parent=0 // pred_region
    _
  $region9: #{convnet_forward.4} parent=0 // pred_fallthru
    _
  // Predicated region
  $region10: #{convnet_forward.4} parent=0 // pred_check
    _
  $region11: #{convnet_forward.4} parent=0 // pred_check_branch
    %15 = sbr.rel (0) target = $region13
  $region12: #{convnet_forward.4} parent=0 // pred_region
    _
  $region13: #{convnet_forward.4} parent=0 // pred_fallthru
    _
  // Predicated region
  $region14: #{convnet_forward.4} parent=0 // pred_check
    _
  $region15: #{convnet_forward.4} parent=0 // pred_check_branch
    %17 = sbr.rel (0) target = $region17
  $region16: #{convnet_forward.4} parent=0 // pred_region
    _
  $region17: #{convnet_forward.4} parent=0 // pred_fallthru
    _
  // Predicated region
  $region18: #{convnet_forward.4} parent=0 // pred_check
    _
  $region19: #{convnet_forward.4} parent=0 // pred_check_branch
    %19 = sbr.rel (0) target = $region21
  $region20: #{convnet_forward.4} parent=0 // pred_region
    _
  $region21: #{convnet_forward.4} parent=0 // pred_fallthru
    _
  %v20 = vld [vmem:[%s0] sm:$0xff]
  %v21 = vld [vmem:[%s0 + $0x8] sm:$0xff]
  %v22 = vld [vmem:[%s0 + $0x10] sm:$0xff]
  %v23 = vld [vmem:[%s0 + $0x18] sm:$0xff]
  %v24 = vld [vmem:[%s0 + $0x20] sm:$0xff]
  %v25 = vld [vmem:[%s0 + $0x28] sm:$0xff]
  %v26 = vld [vmem:[%s0 + $0x30] sm:$0xff]
  %v27 = vld [vmem:[%s0 + $0x38] sm:$0xff]
  %v28 = vld [vmem:[%s0 + $0x40] sm:$0xff]
  %v29 = vld [vmem:[%s0 + $0x48] sm:$0xff]
  %v30 = vld [vmem:[%s0 + $0x50] sm:$0xff]
  %v31 = vld [vmem:[%s0 + $0x58] sm:$0xff]
  %v32 = vld [vmem:[%s0 + $0x60] sm:$0xff]
  %v33 = vld [vmem:[%s0 + $0x68] sm:$0xff]
  %v34 = vld [vmem:[%s0 + $0x70] sm:$0xff]
  %v35 = vld [vmem:[%s0 + $0x78] sm:$0xff]
  %v36 = vld [vmem:[%s0 + $0x80] sm:$0xff]
  %v37 = vld [vmem:[%s0 + $0x88] sm:$0xff]
  %v38 = vld [vmem:[%s0 + $0x90] sm:$0xff]
  %v39 = vld [vmem:[%s0 + $0x98] sm:$0xff]
  %v40 = vld [vmem:[%s0 + $0xa0] sm:$0xff]
  %v41 = vld [vmem:[%s0 + $0xa8] sm:$0xff]
  %v42 = vld [vmem:[%s0 + $0xb0] sm:$0xff]
  %v43 = vld [vmem:[%s0 + $0xb8] sm:$0xff]
  %v44 = vld [vmem:[%s0 + $0xc0] sm:$0xff]
  %v45 = vld [vmem:[%s0 + $0xc8] sm:$0xff]
  %v46 = vld [vmem:[%s0 + $0xd0] sm:$0xff]
  %v47 = vld [vmem:[%s0 + $0xd8] sm:$0xff]
  %v48 = vld [vmem:[%s0 + $0xe0] sm:$0xff]
  %v49 = vld [vmem:[%s0 + $0xe8] sm:$0xff]
  %v50 = vld [vmem:[%s0 + $0xf0] sm:$0xff]
  %v51 = vld [vmem:[%s0 + $0xf8] sm:$0xff]
  %v52 = vld [vmem:[%s0 + $0x100] sm:$0xff]
  %v53 = vld [vmem:[%s0 + $0x108] sm:$0xff]
  %v54 = vld [vmem:[%s0 + $0x110] sm:$0xff]
  %v55 = vld [vmem:[%s0 + $0x118] sm:$0xff]
  %v56 = vld [vmem:[%s0 + $0x120] sm:$0xff]
  %v57 = vld [vmem:[%s0 + $0x128] sm:$0xff]
  %v58 = vld [vmem:[%s0 + $0x130] sm:$0xff]
  %v59 = vld [vmem:[%s0 + $0x138] sm:$0xff]
  %v60 = vld [vmem:[%s0 + $0x140] sm:$0xff]
  %v61 = vld [vmem:[%s0 + $0x148] sm:$0xff]
  %v62 = vld [vmem:[%s0 + $0x150] sm:$0xff]
  %v63 = vld [vmem:[%s0 + $0x158] sm:$0xff]
  %v64 = vld [vmem:[%s0 + $0x160] sm:$0xff]
  %v65 = vld [vmem:[%s0 + $0x168] sm:$0xff]
  %v66 = vld [vmem:[%s0 + $0x170] sm:$0xff]
  %v67 = vld [vmem:[%s0 + $0x178] sm:$0xff]
  %v68 = vld [vmem:[%s0 + $0x180] sm:$0xff]
  %v69 = vld [vmem:[%s0 + $0x188] sm:$0xff]
  %v70 = vld [vmem:[%s0 + $0x190] sm:$0xff]
  %v71 = vld [vmem:[%s0 + $0x198] sm:$0xff]
  %v72 = vld [vmem:[%s0 + $0x1a0] sm:$0xff]
  %v73 = vld [vmem:[%s0 + $0x1a8] sm:$0xff]
  %v74 = vld [vmem:[%s0 + $0x1b0] sm:$0xff]
  %v75 = vld [vmem:[%s0 + $0x1b8] sm:$0xff]
  %v76 = vld [vmem:[%s0 + $0x1c0] sm:$0xff]
  %v77 = vld [vmem:[%s0 + $0x1c8] sm:$0xff]
  %v78 = vld [vmem:[%s0 + $0x1d0] sm:$0xff]
  %v79 = vld [vmem:[%s0 + $0x1d8] sm:$0xff]
  %v80 = vld [vmem:[%s0 + $0x1e0] sm:$0xff]
  %v81 = vld [vmem:[%s0 + $0x1e8] sm:$0xff]
  %v82 = vld [vmem:[%s0 + $0x1f0] sm:$0xff]
  %v83 = vld [vmem:[%s0 + $0x1f8] sm:$0xff]
  %v84 = vld [vmem:[%s0 + $0x200] sm:$0xff]
  %v85 = vld [vmem:[%s0 + $0x208] sm:$0xff]
  %v86 = vld [vmem:[%s0 + $0x210] sm:$0xff]
  %v87 = vld [vmem:[%s0 + $0x218] sm:$0xff]
  %v88 = vld [vmem:[%s0 + $0x220] sm:$0xff]
  %v89 = vld [vmem:[%s0 + $0x228] sm:$0xff]
  %v90 = vld [vmem:[%s0 + $0x230] sm:$0xff]
  %v91 = vld [vmem:[%s0 + $0x238] sm:$0xff]
  %v92 = vld [vmem:[%s0 + $0x240] sm:$0xff]
  %v93 = vld [vmem:[%s0 + $0x248] sm:$0xff]
  %v94 = vld [vmem:[%s0 + $0x250] sm:$0xff]
  %v95 = vld [vmem:[%s0 + $0x258] sm:$0xff]
  %v96 = vld [vmem:[%s0 + $0x260] sm:$0xff]
  %v97 = vld [vmem:[%s0 + $0x268] sm:$0xff]
  %v98 = vld [vmem:[%s0 + $0x270] sm:$0xff]
  %v99 = vld [vmem:[%s0 + $0x278] sm:$0xff]
  %v100 = vld [vmem:[%s0 + $0x280] sm:$0xff]
  %v101 = vld [vmem:[%s0 + $0x288] sm:$0xff]
  %v102 = vld [vmem:[%s0 + $0x290] sm:$0xff]
  %v103 = vld [vmem:[%s0 + $0x298] sm:$0xff]
  %v104 = vld [vmem:[%s1] sm:$0xff]
  %v105 = vld [vmem:[%s1 + $0x8] sm:$0xff]
  %v106 = vld [vmem:[%s1 + $0x10] sm:$0xff]
  %v107 = vld [vmem:[%s1 + $0x18] sm:$0xff]
  %v108 = vld [vmem:[%s1 + $0x20] sm:$0xff]
  %v109 = vld [vmem:[%s1 + $0x28] sm:$0xff]
  %v110 = vld [vmem:[%s1 + $0x30] sm:$0xff]
  %v111 = vld [vmem:[%s1 + $0x38] sm:$0xff]
  %v112 = vld [vmem:[%s1 + $0x40] sm:$0xff]
  %v113 = vld [vmem:[%s1 + $0x48] sm:$0xff]
  %v114 = vld [vmem:[%s1 + $0x50] sm:$0xff]
  %v115 = vld [vmem:[%s1 + $0x58] sm:$0xff]
  %v116 = vld [vmem:[%s1 + $0x60] sm:$0xff]
  %v117 = vld [vmem:[%s1 + $0x68] sm:$0xff]
  %v118 = vld [vmem:[%s1 + $0x70] sm:$0xff]
  %v119 = vld [vmem:[%s1 + $0x78] sm:$0xff]
  %v120 = vld [vmem:[%s1 + $0x80] sm:$0xff]
  %v121 = vld [vmem:[%s1 + $0x88] sm:$0xff]
  %v122 = vld [vmem:[%s1 + $0x90] sm:$0xff]
  %v123 = vld [vmem:[%s1 + $0x98] sm:$0xff]
  %v124 = vld [vmem:[%s1 + $0xa0] sm:$0xff]
  %v125 = vld [vmem:[%s1 + $0xa8] sm:$0xff]
  %v126 = vld [vmem:[%s1 + $0xb0] sm:$0xff]
  %v127 = vld [vmem:[%s1 + $0xb8] sm:$0xff]
  %v128 = vld [vmem:[%s1 + $0xc0] sm:$0xff]
  %v129 = vld [vmem:[%s1 + $0xc8] sm:$0xff]
  %v130 = vld [vmem:[%s1 + $0xd0] sm:$0xff]
  %v131 = vld [vmem:[%s1 + $0xd8] sm:$0xff]
  %v132 = vld [vmem:[%s1 + $0xe0] sm:$0xff]
  %v133 = vld [vmem:[%s1 + $0xe8] sm:$0xff]
  %v134 = vld [vmem:[%s1 + $0xf0] sm:$0xff]
  %v135 = vld [vmem:[%s1 + $0xf8] sm:$0xff]
  %v136 = vld [vmem:[%s1 + $0x100] sm:$0xff]
  %v137 = vld [vmem:[%s1 + $0x108] sm:$0xff]
  %v138 = vld [vmem:[%s1 + $0x110] sm:$0xff]
  %v139 = vld [vmem:[%s1 + $0x118] sm:$0xff]
  %v140 = vld [vmem:[%s1 + $0x120] sm:$0xff]
  %v141 = vld [vmem:[%s1 + $0x128] sm:$0xff]
  %v142 = vld [vmem:[%s1 + $0x130] sm:$0xff]
  %v143 = vld [vmem:[%s1 + $0x138] sm:$0xff]
  %v144 = vld [vmem:[%s1 + $0x140] sm:$0xff]
  %v145 = vld [vmem:[%s1 + $0x148] sm:$0xff]
  %v146 = vld [vmem:[%s1 + $0x150] sm:$0xff]
  %v147 = vld [vmem:[%s1 + $0x158] sm:$0xff]
  %v148 = vld [vmem:[%s1 + $0x160] sm:$0xff]
  %v149 = vld [vmem:[%s1 + $0x168] sm:$0xff]
  %v150 = vld [vmem:[%s1 + $0x170] sm:$0xff]
  %v151 = vld [vmem:[%s1 + $0x178] sm:$0xff]
  %v152 = vld [vmem:[%s1 + $0x180] sm:$0xff]
  %v153 = vld [vmem:[%s1 + $0x188] sm:$0xff]
  %v154 = vld [vmem:[%s1 + $0x190] sm:$0xff]
  %v155 = vld [vmem:[%s1 + $0x198] sm:$0xff]
  %v156 = vld [vmem:[%s1 + $0x1a0] sm:$0xff]
  %v157 = vld [vmem:[%s1 + $0x1a8] sm:$0xff]
  %v158 = vld [vmem:[%s1 + $0x1b0] sm:$0xff]
  %v159 = vld [vmem:[%s1 + $0x1b8] sm:$0xff]
  %v160 = vld [vmem:[%s1 + $0x1c0] sm:$0xff]
  %v161 = vld [vmem:[%s1 + $0x1c8] sm:$0xff]
  %v162 = vld [vmem:[%s1 + $0x1d0] sm:$0xff]
  %v163 = vld [vmem:[%s1 + $0x1d8] sm:$0xff]
  %v164 = vld [vmem:[%s1 + $0x1e0] sm:$0xff]
  %v165 = vld [vmem:[%s1 + $0x1e8] sm:$0xff]
  %v166 = vld [vmem:[%s1 + $0x1f0] sm:$0xff]
  %v167 = vld [vmem:[%s1 + $0x1f8] sm:$0xff]
  %v168 = vld [vmem:[%s1 + $0x200] sm:$0xff]
  %v169 = vld [vmem:[%s1 + $0x208] sm:$0xff]
  %v170 = vld [vmem:[%s1 + $0x210] sm:$0xff]
  %v171 = vld [vmem:[%s1 + $0x218] sm:$0xff]
  %v172 = vld [vmem:[%s1 + $0x220] sm:$0xff]
  %v173 = vld [vmem:[%s1 + $0x228] sm:$0xff]
  %v174 = vld [vmem:[%s1 + $0x230] sm:$0xff]
  %v175 = vld [vmem:[%s1 + $0x238] sm:$0xff]
  %v176 = vld [vmem:[%s1 + $0x240] sm:$0xff]
  %v177 = vld [vmem:[%s1 + $0x248] sm:$0xff]
  %v178 = vld [vmem:[%s1 + $0x250] sm:$0xff]
  %v179 = vld [vmem:[%s1 + $0x258] sm:$0xff]
  %v180 = vld [vmem:[%s1 + $0x260] sm:$0xff]
  %v181 = vld [vmem:[%s1 + $0x268] sm:$0xff]
  %v182 = vld [vmem:[%s1 + $0x270] sm:$0xff]
  %v183 = vld [vmem:[%s1 + $0x278] sm:$0xff]
  %v184 = vld [vmem:[%s1 + $0x280] sm:$0xff]
  %v185 = vld [vmem:[%s1 + $0x288] sm:$0xff]
  %v186 = vld [vmem:[%s1 + $0x290] sm:$0xff]
  %v187 = vld [vmem:[%s1 + $0x298] sm:$0xff]
  %v188 = vld [vmem:[%s2] sm:$0xff]
  %v189 = vld [vmem:[%s2 + $0x8] sm:$0xff]
  %v190 = vld [vmem:[%s2 + $0x10] sm:$0xff]
  %v191 = vld [vmem:[%s2 + $0x18] sm:$0xff]
  %v192 = vld [vmem:[%s2 + $0x20] sm:$0xff]
  %v193 = vld [vmem:[%s2 + $0x28] sm:$0xff]
  %v194 = vld [vmem:[%s2 + $0x30] sm:$0xff]
  %v195 = vld [vmem:[%s2 + $0x38] sm:$0xff]
  %v196 = vld [vmem:[%s2 + $0x40] sm:$0xff]
  %v197 = vld [vmem:[%s2 + $0x48] sm:$0xff]
  %v198 = vld [vmem:[%s2 + $0x50] sm:$0xff]
  %v199 = vld [vmem:[%s2 + $0x58] sm:$0xff]
  %v200 = vld [vmem:[%s2 + $0x60] sm:$0xff]
  %v201 = vld [vmem:[%s2 + $0x68] sm:$0xff]
  %v202 = vld [vmem:[%s2 + $0x70] sm:$0xff]
  %v203 = vld [vmem:[%s2 + $0x78] sm:$0xff]
  %v204 = vld [vmem:[%s2 + $0x80] sm:$0xff]
  %v205 = vld [vmem:[%s2 + $0x88] sm:$0xff]
  %v206 = vld [vmem:[%s2 + $0x90] sm:$0xff]
  %v207 = vld [vmem:[%s2 + $0x98] sm:$0xff]
  %v208 = vld [vmem:[%s2 + $0xa0] sm:$0xff]
  %v209 = vld [vmem:[%s2 + $0xa8] sm:$0xff]
  %v210 = vld [vmem:[%s2 + $0xb0] sm:$0xff]
  %v211 = vld [vmem:[%s2 + $0xb8] sm:$0xff]
  %v212 = vld [vmem:[%s2 + $0xc0] sm:$0xff]
  %v213 = vld [vmem:[%s2 + $0xc8] sm:$0xff]
  %v214 = vld [vmem:[%s2 + $0xd0] sm:$0xff]
  %v215 = vld [vmem:[%s2 + $0xd8] sm:$0xff]
  %v216 = vld [vmem:[%s2 + $0xe0] sm:$0xff]
  %v217 = vld [vmem:[%s2 + $0xe8] sm:$0xff]
  %v218 = vld [vmem:[%s2 + $0xf0] sm:$0xff]
  %v219 = vld [vmem:[%s2 + $0xf8] sm:$0xff]
  %v220 = vld [vmem:[%s2 + $0x100] sm:$0xff]
  %v221 = vld [vmem:[%s2 + $0x108] sm:$0xff]
  %v222 = vld [vmem:[%s2 + $0x110] sm:$0xff]
  %v223 = vld [vmem:[%s2 + $0x118] sm:$0xff]
  %v224 = vld [vmem:[%s2 + $0x120] sm:$0xff]
  %v225 = vld [vmem:[%s2 + $0x128] sm:$0xff]
  %v226 = vld [vmem:[%s2 + $0x130] sm:$0xff]
  %v227 = vld [vmem:[%s2 + $0x138] sm:$0xff]
  %v228 = vld [vmem:[%s2 + $0x140] sm:$0xff]
  %v229 = vld [vmem:[%s2 + $0x148] sm:$0xff]
  %v230 = vld [vmem:[%s2 + $0x150] sm:$0xff]
  %v231 = vld [vmem:[%s2 + $0x158] sm:$0xff]
  %v232 = vld [vmem:[%s2 + $0x160] sm:$0xff]
  %v233 = vld [vmem:[%s2 + $0x168] sm:$0xff]
  %v234 = vld [vmem:[%s2 + $0x170] sm:$0xff]
  %v235 = vld [vmem:[%s2 + $0x178] sm:$0xff]
  %v236 = vld [vmem:[%s2 + $0x180] sm:$0xff]
  %v237 = vld [vmem:[%s2 + $0x188] sm:$0xff]
  %v238 = vld [vmem:[%s2 + $0x190] sm:$0xff]
  %v239 = vld [vmem:[%s2 + $0x198] sm:$0xff]
  %v240 = vld [vmem:[%s2 + $0x1a0] sm:$0xff]
  %v241 = vld [vmem:[%s2 + $0x1a8] sm:$0xff]
  %v242 = vld [vmem:[%s2 + $0x1b0] sm:$0xff]
  %v243 = vld [vmem:[%s2 + $0x1b8] sm:$0xff]
  %v244 = vld [vmem:[%s2 + $0x1c0] sm:$0xff]
  %v245 = vld [vmem:[%s2 + $0x1c8] sm:$0xff]
  %v246 = vld [vmem:[%s2 + $0x1d0] sm:$0xff]
  %v247 = vld [vmem:[%s2 + $0x1d8] sm:$0xff]
  %v248 = vld [vmem:[%s2 + $0x1e0] sm:$0xff]
  %v249 = vld [vmem:[%s2 + $0x1e8] sm:$0xff]
  %v250 = vld [vmem:[%s2 + $0x1f0] sm:$0xff]
  %v251 = vld [vmem:[%s2 + $0x1f8] sm:$0xff]
  %v252 = vld [vmem:[%s2 + $0x200] sm:$0xff]
  %v253 = vld [vmem:[%s2 + $0x208] sm:$0xff]
  %v254 = vld [vmem:[%s2 + $0x210] sm:$0xff]
  %v255 = vld [vmem:[%s2 + $0x218] sm:$0xff]
  %v256 = vld [vmem:[%s2 + $0x220] sm:$0xff]
  %v257 = vld [vmem:[%s2 + $0x228] sm:$0xff]
  %v258 = vld [vmem:[%s2 + $0x230] sm:$0xff]
  %v259 = vld [vmem:[%s2 + $0x238] sm:$0xff]
  %v260 = vld [vmem:[%s2 + $0x240] sm:$0xff]
  %v261 = vld [vmem:[%s2 + $0x248] sm:$0xff]
  %v262 = vld [vmem:[%s2 + $0x250] sm:$0xff]
  %v263 = vld [vmem:[%s2 + $0x258] sm:$0xff]
  %v264 = vld [vmem:[%s2 + $0x260] sm:$0xff]
  %v265 = vld [vmem:[%s2 + $0x268] sm:$0xff]
  %v266 = vld [vmem:[%s2 + $0x270] sm:$0xff]
  %v267 = vld [vmem:[%s2 + $0x278] sm:$0xff]
  %v268 = vld [vmem:[%s2 + $0x280] sm:$0xff]
  %v269 = vld [vmem:[%s2 + $0x288] sm:$0xff]
  %v270 = vld [vmem:[%s2 + $0x290] sm:$0xff]
  %v271 = vld [vmem:[%s2 + $0x298] sm:$0xff]
  %v272 = vld [vmem:[%s2 + $0x2a0] sm:$0xff]
  %v273 = vld [vmem:[%s2 + $0x2a8] sm:$0xff]
  %v274 = vld [vmem:[%s2 + $0x2b0] sm:$0xff]
  %v275 = vld [vmem:[%s2 + $0x2b8] sm:$0xff]
  %v276 = vld [vmem:[%s2 + $0x2c0] sm:$0xff]
  %v277 = vld [vmem:[%s2 + $0x2c8] sm:$0xff]
  %v278 = vld [vmem:[%s2 + $0x2d0] sm:$0xff]
  %v279 = vld [vmem:[%s2 + $0x2d8] sm:$0xff]
  %v280 = vld [vmem:[%s2 + $0x2e0] sm:$0xff]
  %v281 = vld [vmem:[%s2 + $0x2e8] sm:$0xff]
  %v282 = vld [vmem:[%s2 + $0x2f0] sm:$0xff]
  %v283 = vld [vmem:[%s2 + $0x2f8] sm:$0xff]
  %v284 = vld [vmem:[%s2 + $0x300] sm:$0xff]
  %v285 = vld [vmem:[%s2 + $0x308] sm:$0xff]
  %v286 = vld [vmem:[%s2 + $0x310] sm:$0xff]
  %v287 = vld [vmem:[%s2 + $0x318] sm:$0xff]
  %v288 = vld [vmem:[%s2 + $0x320] sm:$0xff]
  %v289 = vld [vmem:[%s2 + $0x328] sm:$0xff]
  %v290 = vld [vmem:[%s2 + $0x330] sm:$0xff]
  %v291 = vld [vmem:[%s2 + $0x338] sm:$0xff]
  %v292 = vld [vmem:[%s2 + $0x340] sm:$0xff]
  %v293 = vld [vmem:[%s2 + $0x348] sm:$0xff]
  %v294 = vld [vmem:[%s2 + $0x350] sm:$0xff]
  %v295 = vld [vmem:[%s2 + $0x358] sm:$0xff]
  %v296 = vld [vmem:[%s2 + $0x360] sm:$0xff]
  %v297 = vld [vmem:[%s2 + $0x368] sm:$0xff]
  %v298 = vld [vmem:[%s2 + $0x370] sm:$0xff]
  %v299 = vld [vmem:[%s2 + $0x378] sm:$0xff]
  %v300 = vld [vmem:[%s2 + $0x380] sm:$0xff]
  %v301 = vld [vmem:[%s2 + $0x388] sm:$0xff]
  %v302 = vld [vmem:[%s2 + $0x390] sm:$0xff]
  %v303 = vld [vmem:[%s2 + $0x398] sm:$0xff]
  %v304 = vld [vmem:[%s2 + $0x3a0] sm:$0xff]
  %v305 = vld [vmem:[%s2 + $0x3a8] sm:$0xff]
  %v306 = vld [vmem:[%s2 + $0x3b0] sm:$0xff]
  %v307 = vld [vmem:[%s2 + $0x3b8] sm:$0xff]
  %v308 = vld [vmem:[%s2 + $0x3c0] sm:$0xff]
  %v309 = vld [vmem:[%s2 + $0x3c8] sm:$0xff]
  %v310 = vld [vmem:[%s2 + $0x3d0] sm:$0xff]
  %v311 = vld [vmem:[%s2 + $0x3d8] sm:$0xff]
  %v312 = vld [vmem:[%s2 + $0x3e0] sm:$0xff]
  %v313 = vld [vmem:[%s2 + $0x3e8] sm:$0xff]
  %v314 = vld [vmem:[%s2 + $0x3f0] sm:$0xff]
  %v315 = vld [vmem:[%s2 + $0x3f8] sm:$0xff]
  %v316 = vld [vmem:[%s2 + $0x400] sm:$0xff]
  %v317 = vld [vmem:[%s2 + $0x408] sm:$0xff]
  %v318 = vld [vmem:[%s2 + $0x410] sm:$0xff]
  %v319 = vld [vmem:[%s2 + $0x418] sm:$0xff]
  %v320 = vld [vmem:[%s2 + $0x420] sm:$0xff]
  %v321 = vld [vmem:[%s2 + $0x428] sm:$0xff]
  %v322 = vld [vmem:[%s2 + $0x430] sm:$0xff]
  %v323 = vld [vmem:[%s2 + $0x438] sm:$0xff]
  %v324 = vld [vmem:[%s2 + $0x440] sm:$0xff]
  %v325 = vld [vmem:[%s2 + $0x448] sm:$0xff]
  %v326 = vld [vmem:[%s2 + $0x450] sm:$0xff]
  %v327 = vld [vmem:[%s2 + $0x458] sm:$0xff]
  %v328 = vld [vmem:[%s2 + $0x460] sm:$0xff]
  %v329 = vld [vmem:[%s2 + $0x468] sm:$0xff]
  %v330 = vld [vmem:[%s2 + $0x470] sm:$0xff]
  %v331 = vld [vmem:[%s2 + $0x478] sm:$0xff]
  %v332 = vld [vmem:[%s2 + $0x480] sm:$0xff]
  %v333 = vld [vmem:[%s2 + $0x488] sm:$0xff]
  %v334 = vld [vmem:[%s2 + $0x490] sm:$0xff]
  %v335 = vld [vmem:[%s2 + $0x498] sm:$0xff]
  %v336 = vld [vmem:[%s2 + $0x4a0] sm:$0xff]
  %v337 = vld [vmem:[%s2 + $0x4a8] sm:$0xff]
  %v338 = vld [vmem:[%s2 + $0x4b0] sm:$0xff]
  %v339 = vld [vmem:[%s2 + $0x4b8] sm:$0xff]
  %v340 = vld [vmem:[%s2 + $0x4c0] sm:$0xff]
  %v341 = vld [vmem:[%s2 + $0x4c8] sm:$0xff]
  %v342 = vld [vmem:[%s2 + $0x4d0] sm:$0xff]
  %v343 = vld [vmem:[%s2 + $0x4d8] sm:$0xff]
  %v344 = vld [vmem:[%s2 + $0x4e0] sm:$0xff]
  %v345 = vld [vmem:[%s2 + $0x4e8] sm:$0xff]
  %v346 = vld [vmem:[%s2 + $0x4f0] sm:$0xff]
  %v347 = vld [vmem:[%s2 + $0x4f8] sm:$0xff]
  %v348 = vld [vmem:[%s2 + $0x500] sm:$0xff]
  %v349 = vld [vmem:[%s2 + $0x508] sm:$0xff]
  %v350 = vld [vmem:[%s2 + $0x510] sm:$0xff]
  %v351 = vld [vmem:[%s2 + $0x518] sm:$0xff]
  %v352 = vld [vmem:[%s2 + $0x520] sm:$0xff]
  %v353 = vld [vmem:[%s2 + $0x528] sm:$0xff]
  %v354 = vld [vmem:[%s2 + $0x530] sm:$0xff]
  %v355 = vld [vmem:[%s2 + $0x538] sm:$0xff]
  %v356 = vld [vmem:[%s2 + $0x540] sm:$0xff]
  %v357 = vld [vmem:[%s2 + $0x548] sm:$0xff]
  %v358 = vld [vmem:[%s2 + $0x550] sm:$0xff]
  %v359 = vld [vmem:[%s2 + $0x558] sm:$0xff]
  %v360 = vld [vmem:[%s2 + $0x560] sm:$0xff]
  %v361 = vld [vmem:[%s2 + $0x568] sm:$0xff]
  %v362 = vld [vmem:[%s2 + $0x570] sm:$0xff]
  %v363 = vld [vmem:[%s2 + $0x578] sm:$0xff]
  %v364 = vld [vmem:[%s2 + $0x580] sm:$0xff]
  %v365 = vld [vmem:[%s2 + $0x588] sm:$0xff]
  %v366 = vld [vmem:[%s2 + $0x590] sm:$0xff]
  %v367 = vld [vmem:[%s2 + $0x598] sm:$0xff]
  %v368 = vld [vmem:[%s2 + $0x5a0] sm:$0xff]
  %v369 = vld [vmem:[%s2 + $0x5a8] sm:$0xff]
  %v370 = vld [vmem:[%s2 + $0x5b0] sm:$0xff]
  %v371 = vld [vmem:[%s2 + $0x5b8] sm:$0xff]
  %v372 = vld [vmem:[%s2 + $0x5c0] sm:$0xff]
  %v373 = vld [vmem:[%s2 + $0x5c8] sm:$0xff]
  %v374 = vld [vmem:[%s2 + $0x5d0] sm:$0xff]
  %v375 = vld [vmem:[%s2 + $0x5d8] sm:$0xff]
  %v376 = vld [vmem:[%s2 + $0x5e0] sm:$0xff]
  %v377 = vld [vmem:[%s2 + $0x5e8] sm:$0xff]
  %v378 = vld [vmem:[%s2 + $0x5f0] sm:$0xff]
  %v379 = vld [vmem:[%s2 + $0x5f8] sm:$0xff]
  %v380 = vld [vmem:[%s2 + $0x600] sm:$0xff]
  %v381 = vld [vmem:[%s2 + $0x608] sm:$0xff]
  %v382 = vld [vmem:[%s2 + $0x610] sm:$0xff]
  %v383 = vld [vmem:[%s2 + $0x618] sm:$0xff]
  %v384 = vld [vmem:[%s2 + $0x620] sm:$0xff]
  %v385 = vld [vmem:[%s2 + $0x628] sm:$0xff]
  %v386 = vld [vmem:[%s2 + $0x630] sm:$0xff]
  %v387 = vld [vmem:[%s2 + $0x638] sm:$0xff]
  %v388 = vld [vmem:[%s2 + $0x640] sm:$0xff]
  %v389 = vld [vmem:[%s2 + $0x648] sm:$0xff]
  %v390 = vld [vmem:[%s2 + $0x650] sm:$0xff]
  %v391 = vld [vmem:[%s2 + $0x658] sm:$0xff]
  %v392 = vld [vmem:[%s2 + $0x660] sm:$0xff]
  %v393 = vld [vmem:[%s2 + $0x668] sm:$0xff]
  %v394 = vld [vmem:[%s2 + $0x670] sm:$0xff]
  %v395 = vld [vmem:[%s2 + $0x678] sm:$0xff]
  %v396 = vld [vmem:[%s2 + $0x680] sm:$0xff]
  %v397 = vld [vmem:[%s2 + $0x688] sm:$0xff]
  %v398 = vld [vmem:[%s2 + $0x690] sm:$0xff]
  %v399 = vld [vmem:[%s2 + $0x698] sm:$0xff]
  %v400 = vld [vmem:[%s2 + $0x6a0] sm:$0xff]
  %v401 = vld [vmem:[%s2 + $0x6a8] sm:$0xff]
  %v402 = vld [vmem:[%s2 + $0x6b0] sm:$0xff]
  %v403 = vld [vmem:[%s2 + $0x6b8] sm:$0xff]
  %v404 = vld [vmem:[%s2 + $0x6c0] sm:$0xff]
  %v405 = vld [vmem:[%s2 + $0x6c8] sm:$0xff]
  %v406 = vld [vmem:[%s2 + $0x6d0] sm:$0xff]
  %v407 = vld [vmem:[%s2 + $0x6d8] sm:$0xff]
  %v408 = vld [vmem:[%s2 + $0x6e0] sm:$0xff]
  %v409 = vld [vmem:[%s2 + $0x6e8] sm:$0xff]
  %v410 = vld [vmem:[%s2 + $0x6f0] sm:$0xff]
  %v411 = vld [vmem:[%s2 + $0x6f8] sm:$0xff]
  %v412 = vld [vmem:[%s2 + $0x700] sm:$0xff]
  %v413 = vld [vmem:[%s2 + $0x708] sm:$0xff]
  %v414 = vld [vmem:[%s2 + $0x710] sm:$0xff]
  %v415 = vld [vmem:[%s2 + $0x718] sm:$0xff]
  %v416 = vld [vmem:[%s2 + $0x720] sm:$0xff]
  %v417 = vld [vmem:[%s2 + $0x728] sm:$0xff]
  %v418 = vld [vmem:[%s2 + $0x730] sm:$0xff]
  %v419 = vld [vmem:[%s2 + $0x738] sm:$0xff]
  %v420 = vld [vmem:[%s2 + $0x740] sm:$0xff]
  %v421 = vld [vmem:[%s2 + $0x748] sm:$0xff]
  %v422 = vld [vmem:[%s2 + $0x750] sm:$0xff]
  %v423 = vld [vmem:[%s2 + $0x758] sm:$0xff]
  %v424 = vld [vmem:[%s2 + $0x760] sm:$0xff]
  %v425 = vld [vmem:[%s2 + $0x768] sm:$0xff]
  %v426 = vld [vmem:[%s2 + $0x770] sm:$0xff]
  %v427 = vld [vmem:[%s2 + $0x778] sm:$0xff]
  %v428 = vld [vmem:[%s2 + $0x780] sm:$0xff]
  %v429 = vld [vmem:[%s2 + $0x788] sm:$0xff]
  %v430 = vld [vmem:[%s2 + $0x790] sm:$0xff]
  %v431 = vld [vmem:[%s2 + $0x798] sm:$0xff]
  %v432 = vld [vmem:[%s2 + $0x7a0] sm:$0xff]
  %v433 = vld [vmem:[%s2 + $0x7a8] sm:$0xff]
  %v434 = vld [vmem:[%s2 + $0x7b0] sm:$0xff]
  %v435 = vld [vmem:[%s2 + $0x7b8] sm:$0xff]
  %v436 = vld [vmem:[%s2 + $0x7c0] sm:$0xff]
  %v437 = vld [vmem:[%s2 + $0x7c8] sm:$0xff]
  %v438 = vld [vmem:[%s2 + $0x7d0] sm:$0xff]
  %v439 = vld [vmem:[%s2 + $0x7d8] sm:$0xff]
  %v440 = vld [vmem:[%s2 + $0x7e0] sm:$0xff]
  %v441 = vld [vmem:[%s2 + $0x7e8] sm:$0xff]
  %v442 = vld [vmem:[%s2 + $0x7f0] sm:$0xff]
  %v443 = vld [vmem:[%s2 + $0x7f8] sm:$0xff]
  %v444 = vld [vmem:[%s2 + $0x800] sm:$0xff]
  %v445 = vld [vmem:[%s2 + $0x808] sm:$0xff]
  %v446 = vld [vmem:[%s2 + $0x810] sm:$0xff]
  %v447 = vld [vmem:[%s2 + $0x818] sm:$0xff]
  %v448 = vld [vmem:[%s2 + $0x820] sm:$0xff]
  %v449 = vld [vmem:[%s2 + $0x828] sm:$0xff]
  %v450 = vld [vmem:[%s2 + $0x830] sm:$0xff]
  %v451 = vld [vmem:[%s2 + $0x838] sm:$0xff]
  %v452 = vld [vmem:[%s2 + $0x840] sm:$0xff]
  %v453 = vld [vmem:[%s2 + $0x848] sm:$0xff]
  %v454 = vld [vmem:[%s2 + $0x850] sm:$0xff]
  %v455 = vld [vmem:[%s2 + $0x858] sm:$0xff]
  %v456 = vld [vmem:[%s2 + $0x860] sm:$0xff]
  %v457 = vld [vmem:[%s2 + $0x868] sm:$0xff]
  %v458 = vld [vmem:[%s2 + $0x870] sm:$0xff]
  %v459 = vld [vmem:[%s2 + $0x878] sm:$0xff]
  %v460 = vld [vmem:[%s2 + $0x880] sm:$0xff]
  %v461 = vld [vmem:[%s2 + $0x888] sm:$0xff]
  %v462 = vld [vmem:[%s2 + $0x890] sm:$0xff]
  %v463 = vld [vmem:[%s2 + $0x898] sm:$0xff]
  %v464 = vld [vmem:[%s2 + $0x8a0] sm:$0xff]
  %v465 = vld [vmem:[%s2 + $0x8a8] sm:$0xff]
  %v466 = vld [vmem:[%s2 + $0x8b0] sm:$0xff]
  %v467 = vld [vmem:[%s2 + $0x8b8] sm:$0xff]
  %v468 = vld [vmem:[%s2 + $0x8c0] sm:$0xff]
  %v469 = vld [vmem:[%s2 + $0x8c8] sm:$0xff]
  %v470 = vld [vmem:[%s2 + $0x8d0] sm:$0xff]
  %v471 = vld [vmem:[%s2 + $0x8d8] sm:$0xff]
  %v472 = vld [vmem:[%s2 + $0x8e0] sm:$0xff]
  %v473 = vld [vmem:[%s2 + $0x8e8] sm:$0xff]
  %v474 = vld [vmem:[%s2 + $0x8f0] sm:$0xff]
  %v475 = vld [vmem:[%s2 + $0x8f8] sm:$0xff]
  %v476 = vld [vmem:[%s2 + $0x900] sm:$0xff]
  %v477 = vld [vmem:[%s2 + $0x908] sm:$0xff]
  %v478 = vld [vmem:[%s2 + $0x910] sm:$0xff]
  %v479 = vld [vmem:[%s2 + $0x918] sm:$0xff]
  %v480 = vld [vmem:[%s2 + $0x920] sm:$0xff]
  %v481 = vld [vmem:[%s2 + $0x928] sm:$0xff]
  %v482 = vld [vmem:[%s2 + $0x930] sm:$0xff]
  %v483 = vld [vmem:[%s2 + $0x938] sm:$0xff]
  %v484 = vld [vmem:[%s2 + $0x940] sm:$0xff]
  %v485 = vld [vmem:[%s2 + $0x948] sm:$0xff]
  %v486 = vld [vmem:[%s2 + $0x950] sm:$0xff]
  %v487 = vld [vmem:[%s2 + $0x958] sm:$0xff]
  %v488 = vld [vmem:[%s2 + $0x960] sm:$0xff]
  %v489 = vld [vmem:[%s2 + $0x968] sm:$0xff]
  %v490 = vld [vmem:[%s2 + $0x970] sm:$0xff]
  %v491 = vld [vmem:[%s2 + $0x978] sm:$0xff]
  %v492 = vld [vmem:[%s2 + $0x980] sm:$0xff]
  %v493 = vld [vmem:[%s2 + $0x988] sm:$0xff]
  %v494 = vld [vmem:[%s2 + $0x990] sm:$0xff]
  %v495 = vld [vmem:[%s2 + $0x998] sm:$0xff]
  %v496 = vld [vmem:[%s2 + $0x9a0] sm:$0xff]
  %v497 = vld [vmem:[%s2 + $0x9a8] sm:$0xff]
  %v498 = vld [vmem:[%s2 + $0x9b0] sm:$0xff]
  %v499 = vld [vmem:[%s2 + $0x9b8] sm:$0xff]
  %v500 = vld [vmem:[%s2 + $0x9c0] sm:$0xff]
  %v501 = vld [vmem:[%s2 + $0x9c8] sm:$0xff]
  %v502 = vld [vmem:[%s2 + $0x9d0] sm:$0xff]
  %v503 = vld [vmem:[%s2 + $0x9d8] sm:$0xff]
  %v504 = vld [vmem:[%s2 + $0x9e0] sm:$0xff]
  %v505 = vld [vmem:[%s2 + $0x9e8] sm:$0xff]
  %v506 = vld [vmem:[%s2 + $0x9f0] sm:$0xff]
  %v507 = vld [vmem:[%s2 + $0x9f8] sm:$0xff]
  %v508 = vld [vmem:[%s2 + $0xa00] sm:$0xff]
  %v509 = vld [vmem:[%s2 + $0xa08] sm:$0xff]
  %v510 = vld [vmem:[%s2 + $0xa10] sm:$0xff]
  %v511 = vld [vmem:[%s2 + $0xa18] sm:$0xff]
  %v512 = vld [vmem:[%s2 + $0xa20] sm:$0xff]
  %v513 = vld [vmem:[%s2 + $0xa28] sm:$0xff]
  %v514 = vld [vmem:[%s2 + $0xa30] sm:$0xff]
  %v515 = vld [vmem:[%s2 + $0xa38] sm:$0xff]
  %v516 = vld [vmem:[%s2 + $0xa40] sm:$0xff]
  %v517 = vld [vmem:[%s2 + $0xa48] sm:$0xff]
  %v518 = vld [vmem:[%s2 + $0xa50] sm:$0xff]
  %v519 = vld [vmem:[%s2 + $0xa58] sm:$0xff]
  %v520 = vld [vmem:[%s2 + $0xa60] sm:$0xff]
  %v521 = vld [vmem:[%s2 + $0xa68] sm:$0xff]
  %v522 = vld [vmem:[%s2 + $0xa70] sm:$0xff]
  %v523 = vld [vmem:[%s2 + $0xa78] sm:$0xff]
  %v524 = vld [vmem:[%s2 + $0xa80] sm:$0xff]
  %v525 = vld [vmem:[%s2 + $0xa88] sm:$0xff]
  %v526 = vld [vmem:[%s2 + $0xa90] sm:$0xff]
  %v527 = vld [vmem:[%s2 + $0xa98] sm:$0xff]
  %v528 = vld [vmem:[%s2 + $0xaa0] sm:$0xff]
  %v529 = vld [vmem:[%s2 + $0xaa8] sm:$0xff]
  %v530 = vld [vmem:[%s2 + $0xab0] sm:$0xff]
  %v531 = vld [vmem:[%s2 + $0xab8] sm:$0xff]
  %v532 = vld [vmem:[%s2 + $0xac0] sm:$0xff]
  %v533 = vld [vmem:[%s2 + $0xac8] sm:$0xff]
  %v534 = vld [vmem:[%s2 + $0xad0] sm:$0xff]
  %v535 = vld [vmem:[%s2 + $0xad8] sm:$0xff]
  %v536 = vld [vmem:[%s2 + $0xae0] sm:$0xff]
  %v537 = vld [vmem:[%s2 + $0xae8] sm:$0xff]
  %v538 = vld [vmem:[%s2 + $0xaf0] sm:$0xff]
  %v539 = vld [vmem:[%s2 + $0xaf8] sm:$0xff]
  %v540 = vld [vmem:[%s2 + $0xb00] sm:$0xff]
  %v541 = vld [vmem:[%s2 + $0xb08] sm:$0xff]
  %v542 = vld [vmem:[%s2 + $0xb10] sm:$0xff]
  %v543 = vld [vmem:[%s2 + $0xb18] sm:$0xff]
  %v544 = vld [vmem:[%s2 + $0xb20] sm:$0xff]
  %v545 = vld [vmem:[%s2 + $0xb28] sm:$0xff]
  %v546 = vld [vmem:[%s2 + $0xb30] sm:$0xff]
  %v547 = vld [vmem:[%s2 + $0xb38] sm:$0xff]
  %v548 = vld [vmem:[%s3] sm:$0xff]
  %v549 = vld [vmem:[%s3 + $0x8] sm:$0xff]
  %v550 = vld [vmem:[%s3 + $0x10] sm:$0xff]
  %v551 = vld [vmem:[%s3 + $0x18] sm:$0xff]
  %v552 = vld [vmem:[%s3 + $0x20] sm:$0xff]
  %v553 = vld [vmem:[%s3 + $0x28] sm:$0xff]
  %v554 = vld [vmem:[%s3 + $0x30] sm:$0xff]
  %v555 = vld [vmem:[%s3 + $0x38] sm:$0xff]
  %v556 = vld [vmem:[%s3 + $0x40] sm:$0xff]
  %v557 = vld [vmem:[%s3 + $0x48] sm:$0xff]
  %v558 = vld [vmem:[%s3 + $0x50] sm:$0xff]
  %v559 = vld [vmem:[%s3 + $0x58] sm:$0xff]
  %v560 = vld [vmem:[%s3 + $0x60] sm:$0xff]
  %v561 = vld [vmem:[%s3 + $0x68] sm:$0xff]
  %v562 = vld [vmem:[%s3 + $0x70] sm:$0xff]
  %v563 = vld [vmem:[%s3 + $0x78] sm:$0xff]
  %v564 = vld [vmem:[%s3 + $0x80] sm:$0xff]
  %v565 = vld [vmem:[%s3 + $0x88] sm:$0xff]
  %v566 = vld [vmem:[%s3 + $0x90] sm:$0xff]
  %v567 = vld [vmem:[%s3 + $0x98] sm:$0xff]
  %v568 = vld [vmem:[%s3 + $0xa0] sm:$0xff]
  %v569 = vld [vmem:[%s3 + $0xa8] sm:$0xff]
  %v570 = vld [vmem:[%s3 + $0xb0] sm:$0xff]
  %v571 = vld [vmem:[%s3 + $0xb8] sm:$0xff]
  %v572 = vld [vmem:[%s3 + $0xc0] sm:$0xff]
  %v573 = vld [vmem:[%s3 + $0xc8] sm:$0xff]
  %v574 = vld [vmem:[%s3 + $0xd0] sm:$0xff]
  %v575 = vld [vmem:[%s3 + $0xd8] sm:$0xff]
  %v576 = vld [vmem:[%s3 + $0xe0] sm:$0xff]
  %v577 = vld [vmem:[%s3 + $0xe8] sm:$0xff]
  %v578 = vld [vmem:[%s3 + $0xf0] sm:$0xff]
  %v579 = vld [vmem:[%s3 + $0xf8] sm:$0xff]
  %v580 = vld [vmem:[%s3 + $0x100] sm:$0xff]
  %v581 = vld [vmem:[%s3 + $0x108] sm:$0xff]
  %v582 = vld [vmem:[%s3 + $0x110] sm:$0xff]
  %v583 = vld [vmem:[%s3 + $0x118] sm:$0xff]
  %v584 = vld [vmem:[%s3 + $0x120] sm:$0xff]
  %v585 = vld [vmem:[%s3 + $0x128] sm:$0xff]
  %v586 = vld [vmem:[%s3 + $0x130] sm:$0xff]
  %v587 = vld [vmem:[%s3 + $0x138] sm:$0xff]
  %v588 = vld [vmem:[%s3 + $0x140] sm:$0xff]
  %v589 = vld [vmem:[%s3 + $0x148] sm:$0xff]
  %v590 = vld [vmem:[%s3 + $0x150] sm:$0xff]
  %v591 = vld [vmem:[%s3 + $0x158] sm:$0xff]
  %v592 = vld [vmem:[%s3 + $0x160] sm:$0xff]
  %v593 = vld [vmem:[%s3 + $0x168] sm:$0xff]
  %v594 = vld [vmem:[%s3 + $0x170] sm:$0xff]
  %v595 = vld [vmem:[%s3 + $0x178] sm:$0xff]
  %v596 = vld [vmem:[%s3 + $0x180] sm:$0xff]
  %v597 = vld [vmem:[%s3 + $0x188] sm:$0xff]
  %v598 = vld [vmem:[%s3 + $0x190] sm:$0xff]
  %v599 = vld [vmem:[%s3 + $0x198] sm:$0xff]
  %v600 = vld [vmem:[%s3 + $0x1a0] sm:$0xff]
  %v601 = vld [vmem:[%s3 + $0x1a8] sm:$0xff]
  %v602 = vld [vmem:[%s3 + $0x1b0] sm:$0xff]
  %v603 = vld [vmem:[%s3 + $0x1b8] sm:$0xff]
  %v604 = vld [vmem:[%s3 + $0x1c0] sm:$0xff]
  %v605 = vld [vmem:[%s3 + $0x1c8] sm:$0xff]
  %v606 = vld [vmem:[%s3 + $0x1d0] sm:$0xff]
  %v607 = vld [vmem:[%s3 + $0x1d8] sm:$0xff]
  %v608 = vld [vmem:[%s3 + $0x1e0] sm:$0xff]
  %v609 = vld [vmem:[%s3 + $0x1e8] sm:$0xff]
  %v610 = vld [vmem:[%s3 + $0x1f0] sm:$0xff]
  %v611 = vld [vmem:[%s3 + $0x1f8] sm:$0xff]
  %v612 = vld [vmem:[%s3 + $0x200] sm:$0xff]
  %v613 = vld [vmem:[%s3 + $0x208] sm:$0xff]
  %v614 = vld [vmem:[%s3 + $0x210] sm:$0xff]
  %v615 = vld [vmem:[%s3 + $0x218] sm:$0xff]
  %v616 = vld [vmem:[%s3 + $0x220] sm:$0xff]
  %v617 = vld [vmem:[%s3 + $0x228] sm:$0xff]
  %v618 = vld [vmem:[%s3 + $0x230] sm:$0xff]
  %v619 = vld [vmem:[%s3 + $0x238] sm:$0xff]
  %v620 = vld [vmem:[%s3 + $0x240] sm:$0xff]
  %v621 = vld [vmem:[%s3 + $0x248] sm:$0xff]
  %v622 = vld [vmem:[%s3 + $0x250] sm:$0xff]
  %v623 = vld [vmem:[%s3 + $0x258] sm:$0xff]
  %v624 = vld [vmem:[%s3 + $0x260] sm:$0xff]
  %v625 = vld [vmem:[%s3 + $0x268] sm:$0xff]
  %v626 = vld [vmem:[%s3 + $0x270] sm:$0xff]
  %v627 = vld [vmem:[%s3 + $0x278] sm:$0xff]
  %v628 = vld [vmem:[%s3 + $0x280] sm:$0xff]
  %v629 = vld [vmem:[%s3 + $0x288] sm:$0xff]
  %v630 = vld [vmem:[%s3 + $0x290] sm:$0xff]
  %v631 = vld [vmem:[%s3 + $0x298] sm:$0xff]
  %v632 = vld [vmem:[%s3 + $0x2a0] sm:$0xff]
  %v633 = vld [vmem:[%s3 + $0x2a8] sm:$0xff]
  %v634 = vld [vmem:[%s3 + $0x2b0] sm:$0xff]
  %v635 = vld [vmem:[%s3 + $0x2b8] sm:$0xff]
  %v636 = vld [vmem:[%s3 + $0x2c0] sm:$0xff]
  %v637 = vld [vmem:[%s3 + $0x2c8] sm:$0xff]
  %v638 = vld [vmem:[%s3 + $0x2d0] sm:$0xff]
  %v639 = vld [vmem:[%s3 + $0x2d8] sm:$0xff]
  %v640 = vld [vmem:[%s3 + $0x2e0] sm:$0xff]
  %v641 = vld [vmem:[%s3 + $0x2e8] sm:$0xff]
  %v642 = vld [vmem:[%s3 + $0x2f0] sm:$0xff]
  %v643 = vld [vmem:[%s3 + $0x2f8] sm:$0xff]
  %v644 = vld [vmem:[%s3 + $0x300] sm:$0xff]
  %v645 = vld [vmem:[%s3 + $0x308] sm:$0xff]
  %v646 = vld [vmem:[%s3 + $0x310] sm:$0xff]
  %v647 = vld [vmem:[%s3 + $0x318] sm:$0xff]
  %v648 = vld [vmem:[%s3 + $0x320] sm:$0xff]
  %v649 = vld [vmem:[%s3 + $0x328] sm:$0xff]
  %v650 = vld [vmem:[%s3 + $0x330] sm:$0xff]
  %v651 = vld [vmem:[%s3 + $0x338] sm:$0xff]
  %v652 = vld [vmem:[%s3 + $0x340] sm:$0xff]
  %v653 = vld [vmem:[%s3 + $0x348] sm:$0xff]
  %v654 = vld [vmem:[%s3 + $0x350] sm:$0xff]
  %v655 = vld [vmem:[%s3 + $0x358] sm:$0xff]
  %v656 = vld [vmem:[%s3 + $0x360] sm:$0xff]
  %v657 = vld [vmem:[%s3 + $0x368] sm:$0xff]
  %v658 = vld [vmem:[%s3 + $0x370] sm:$0xff]
  %v659 = vld [vmem:[%s3 + $0x378] sm:$0xff]
  %v660 = vld [vmem:[%s3 + $0x380] sm:$0xff]
  %v661 = vld [vmem:[%s3 + $0x388] sm:$0xff]
  %v662 = vld [vmem:[%s3 + $0x390] sm:$0xff]
  %v663 = vld [vmem:[%s3 + $0x398] sm:$0xff]
  %v664 = vld [vmem:[%s3 + $0x3a0] sm:$0xff]
  %v665 = vld [vmem:[%s3 + $0x3a8] sm:$0xff]
  %v666 = vld [vmem:[%s3 + $0x3b0] sm:$0xff]
  %v667 = vld [vmem:[%s3 + $0x3b8] sm:$0xff]
  %v668 = vld [vmem:[%s3 + $0x3c0] sm:$0xff]
  %v669 = vld [vmem:[%s3 + $0x3c8] sm:$0xff]
  %v670 = vld [vmem:[%s3 + $0x3d0] sm:$0xff]
  %v671 = vld [vmem:[%s3 + $0x3d8] sm:$0xff]
  %v672 = vld [vmem:[%s3 + $0x3e0] sm:$0xff]
  %v673 = vld [vmem:[%s3 + $0x3e8] sm:$0xff]
  %v674 = vld [vmem:[%s3 + $0x3f0] sm:$0xff]
  %v675 = vld [vmem:[%s3 + $0x3f8] sm:$0xff]
  %v676 = vld [vmem:[%s3 + $0x400] sm:$0xff]
  %v677 = vld [vmem:[%s3 + $0x408] sm:$0xff]
  %v678 = vld [vmem:[%s3 + $0x410] sm:$0xff]
  %v679 = vld [vmem:[%s3 + $0x418] sm:$0xff]
  %v680 = vld [vmem:[%s3 + $0x420] sm:$0xff]
  %v681 = vld [vmem:[%s3 + $0x428] sm:$0xff]
  %v682 = vld [vmem:[%s3 + $0x430] sm:$0xff]
  %v683 = vld [vmem:[%s3 + $0x438] sm:$0xff]
  %v684 = vld [vmem:[%s3 + $0x440] sm:$0xff]
  %v685 = vld [vmem:[%s3 + $0x448] sm:$0xff]
  %v686 = vld [vmem:[%s3 + $0x450] sm:$0xff]
  %v687 = vld [vmem:[%s3 + $0x458] sm:$0xff]
  %v688 = vld [vmem:[%s3 + $0x460] sm:$0xff]
  %v689 = vld [vmem:[%s3 + $0x468] sm:$0xff]
  %v690 = vld [vmem:[%s3 + $0x470] sm:$0xff]
  %v691 = vld [vmem:[%s3 + $0x478] sm:$0xff]
  %v692 = vld [vmem:[%s3 + $0x480] sm:$0xff]
  %v693 = vld [vmem:[%s3 + $0x488] sm:$0xff]
  %v694 = vld [vmem:[%s3 + $0x490] sm:$0xff]
  %v695 = vld [vmem:[%s3 + $0x498] sm:$0xff]
  %v696 = vld [vmem:[%s3 + $0x4a0] sm:$0xff]
  %v697 = vld [vmem:[%s3 + $0x4a8] sm:$0xff]
  %v698 = vld [vmem:[%s3 + $0x4b0] sm:$0xff]
  %v699 = vld [vmem:[%s3 + $0x4b8] sm:$0xff]
  %v700 = vld [vmem:[%s3 + $0x4c0] sm:$0xff]
  %v701 = vld [vmem:[%s3 + $0x4c8] sm:$0xff]
  %v702 = vld [vmem:[%s3 + $0x4d0] sm:$0xff]
  %v703 = vld [vmem:[%s3 + $0x4d8] sm:$0xff]
  %v704 = vld [vmem:[%s3 + $0x4e0] sm:$0xff]
  %v705 = vld [vmem:[%s3 + $0x4e8] sm:$0xff]
  %v706 = vld [vmem:[%s3 + $0x4f0] sm:$0xff]
  %v707 = vld [vmem:[%s3 + $0x4f8] sm:$0xff]
  %v708 = vld [vmem:[%s3 + $0x500] sm:$0xff]
  %v709 = vld [vmem:[%s3 + $0x508] sm:$0xff]
  %v710 = vld [vmem:[%s3 + $0x510] sm:$0xff]
  %v711 = vld [vmem:[%s3 + $0x518] sm:$0xff]
  %v712 = vld [vmem:[%s3 + $0x520] sm:$0xff]
  %v713 = vld [vmem:[%s3 + $0x528] sm:$0xff]
  %v714 = vld [vmem:[%s3 + $0x530] sm:$0xff]
  %v715 = vld [vmem:[%s3 + $0x538] sm:$0xff]
  %v716 = vld [vmem:[%s3 + $0x540] sm:$0xff]
  %v717 = vld [vmem:[%s3 + $0x548] sm:$0xff]
  %v718 = vld [vmem:[%s3 + $0x550] sm:$0xff]
  %v719 = vld [vmem:[%s3 + $0x558] sm:$0xff]
  %v720 = vld [vmem:[%s3 + $0x560] sm:$0xff]
  %v721 = vld [vmem:[%s3 + $0x568] sm:$0xff]
  %v722 = vld [vmem:[%s3 + $0x570] sm:$0xff]
  %v723 = vld [vmem:[%s3 + $0x578] sm:$0xff]
  %v724 = vld [vmem:[%s3 + $0x580] sm:$0xff]
  %v725 = vld [vmem:[%s3 + $0x588] sm:$0xff]
  %v726 = vld [vmem:[%s3 + $0x590] sm:$0xff]
  %v727 = vld [vmem:[%s3 + $0x598] sm:$0xff]
  %v728 = vld [vmem:[%s3 + $0x5a0] sm:$0xff]
  %v729 = vld [vmem:[%s3 + $0x5a8] sm:$0xff]
  %v730 = vld [vmem:[%s3 + $0x5b0] sm:$0xff]
  %v731 = vld [vmem:[%s3 + $0x5b8] sm:$0xff]
  %v732 = vld [vmem:[%s3 + $0x5c0] sm:$0xff]
  %v733 = vld [vmem:[%s3 + $0x5c8] sm:$0xff]
  %v734 = vld [vmem:[%s3 + $0x5d0] sm:$0xff]
  %v735 = vld [vmem:[%s3 + $0x5d8] sm:$0xff]
  %v736 = vld [vmem:[%s3 + $0x5e0] sm:$0xff]
  %v737 = vld [vmem:[%s3 + $0x5e8] sm:$0xff]
  %v738 = vld [vmem:[%s3 + $0x5f0] sm:$0xff]
  %v739 = vld [vmem:[%s3 + $0x5f8] sm:$0xff]
  %v740 = vld [vmem:[%s3 + $0x600] sm:$0xff]
  %v741 = vld [vmem:[%s3 + $0x608] sm:$0xff]
  %v742 = vld [vmem:[%s3 + $0x610] sm:$0xff]
  %v743 = vld [vmem:[%s3 + $0x618] sm:$0xff]
  %v744 = vld [vmem:[%s3 + $0x620] sm:$0xff]
  %v745 = vld [vmem:[%s3 + $0x628] sm:$0xff]
  %v746 = vld [vmem:[%s3 + $0x630] sm:$0xff]
  %v747 = vld [vmem:[%s3 + $0x638] sm:$0xff]
  %v748 = vld [vmem:[%s3 + $0x640] sm:$0xff]
  %v749 = vld [vmem:[%s3 + $0x648] sm:$0xff]
  %v750 = vld [vmem:[%s3 + $0x650] sm:$0xff]
  %v751 = vld [vmem:[%s3 + $0x658] sm:$0xff]
  %v752 = vld [vmem:[%s3 + $0x660] sm:$0xff]
  %v753 = vld [vmem:[%s3 + $0x668] sm:$0xff]
  %v754 = vld [vmem:[%s3 + $0x670] sm:$0xff]
  %v755 = vld [vmem:[%s3 + $0x678] sm:$0xff]
  %v756 = vld [vmem:[%s3 + $0x680] sm:$0xff]
  %v757 = vld [vmem:[%s3 + $0x688] sm:$0xff]
  %v758 = vld [vmem:[%s3 + $0x690] sm:$0xff]
  %v759 = vld [vmem:[%s3 + $0x698] sm:$0xff]
  %v760 = vld [vmem:[%s3 + $0x6a0] sm:$0xff]
  %v761 = vld [vmem:[%s3 + $0x6a8] sm:$0xff]
  %v762 = vld [vmem:[%s3 + $0x6b0] sm:$0xff]
  %v763 = vld [vmem:[%s3 + $0x6b8] sm:$0xff]
  %v764 = vld [vmem:[%s3 + $0x6c0] sm:$0xff]
  %v765 = vld [vmem:[%s3 + $0x6c8] sm:$0xff]
  %v766 = vld [vmem:[%s3 + $0x6d0] sm:$0xff]
  %v767 = vld [vmem:[%s3 + $0x6d8] sm:$0xff]
  %v768 = vld [vmem:[%s3 + $0x6e0] sm:$0xff]
  %v769 = vld [vmem:[%s3 + $0x6e8] sm:$0xff]
  %v770 = vld [vmem:[%s3 + $0x6f0] sm:$0xff]
  %v771 = vld [vmem:[%s3 + $0x6f8] sm:$0xff]
  %v772 = vld [vmem:[%s3 + $0x700] sm:$0xff]
  %v773 = vld [vmem:[%s3 + $0x708] sm:$0xff]
  %v774 = vld [vmem:[%s3 + $0x710] sm:$0xff]
  %v775 = vld [vmem:[%s3 + $0x718] sm:$0xff]
  %v776 = vld [vmem:[%s3 + $0x720] sm:$0xff]
  %v777 = vld [vmem:[%s3 + $0x728] sm:$0xff]
  %v778 = vld [vmem:[%s3 + $0x730] sm:$0xff]
  %v779 = vld [vmem:[%s3 + $0x738] sm:$0xff]
  %v780 = vld [vmem:[%s3 + $0x740] sm:$0xff]
  %v781 = vld [vmem:[%s3 + $0x748] sm:$0xff]
  %v782 = vld [vmem:[%s3 + $0x750] sm:$0xff]
  %v783 = vld [vmem:[%s3 + $0x758] sm:$0xff]
  %v784 = vld [vmem:[%s3 + $0x760] sm:$0xff]
  %v785 = vld [vmem:[%s3 + $0x768] sm:$0xff]
  %v786 = vld [vmem:[%s3 + $0x770] sm:$0xff]
  %v787 = vld [vmem:[%s3 + $0x778] sm:$0xff]
  %v788 = vld [vmem:[%s3 + $0x780] sm:$0xff]
  %v789 = vld [vmem:[%s3 + $0x788] sm:$0xff]
  %v790 = vld [vmem:[%s3 + $0x790] sm:$0xff]
  %v791 = vld [vmem:[%s3 + $0x798] sm:$0xff]
  %v792 = vld [vmem:[%s3 + $0x7a0] sm:$0xff]
  %v793 = vld [vmem:[%s3 + $0x7a8] sm:$0xff]
  %v794 = vld [vmem:[%s3 + $0x7b0] sm:$0xff]
  %v795 = vld [vmem:[%s3 + $0x7b8] sm:$0xff]
  %v796 = vld [vmem:[%s3 + $0x7c0] sm:$0xff]
  %v797 = vld [vmem:[%s3 + $0x7c8] sm:$0xff]
  %v798 = vld [vmem:[%s3 + $0x7d0] sm:$0xff]
  %v799 = vld [vmem:[%s3 + $0x7d8] sm:$0xff]
  %v800 = vld [vmem:[%s3 + $0x7e0] sm:$0xff]
  %v801 = vld [vmem:[%s3 + $0x7e8] sm:$0xff]
  %v802 = vld [vmem:[%s3 + $0x7f0] sm:$0xff]
  %v803 = vld [vmem:[%s3 + $0x7f8] sm:$0xff]
  %v804 = vld [vmem:[%s3 + $0x800] sm:$0xff]
  %v805 = vld [vmem:[%s3 + $0x808] sm:$0xff]
  %v806 = vld [vmem:[%s3 + $0x810] sm:$0xff]
  %v807 = vld [vmem:[%s3 + $0x818] sm:$0xff]
  %v808 = vld [vmem:[%s3 + $0x820] sm:$0xff]
  %v809 = vld [vmem:[%s3 + $0x828] sm:$0xff]
  %v810 = vld [vmem:[%s3 + $0x830] sm:$0xff]
  %v811 = vld [vmem:[%s3 + $0x838] sm:$0xff]
  %v812 = vld [vmem:[%s3 + $0x840] sm:$0xff]
  %v813 = vld [vmem:[%s3 + $0x848] sm:$0xff]
  %v814 = vld [vmem:[%s3 + $0x850] sm:$0xff]
  %v815 = vld [vmem:[%s3 + $0x858] sm:$0xff]
  %v816 = vld [vmem:[%s3 + $0x860] sm:$0xff]
  %v817 = vld [vmem:[%s3 + $0x868] sm:$0xff]
  %v818 = vld [vmem:[%s3 + $0x870] sm:$0xff]
  %v819 = vld [vmem:[%s3 + $0x878] sm:$0xff]
  %v820 = vld [vmem:[%s3 + $0x880] sm:$0xff]
  %v821 = vld [vmem:[%s3 + $0x888] sm:$0xff]
  %v822 = vld [vmem:[%s3 + $0x890] sm:$0xff]
  %v823 = vld [vmem:[%s3 + $0x898] sm:$0xff]
  %v824 = vld [vmem:[%s3 + $0x8a0] sm:$0xff]
  %v825 = vld [vmem:[%s3 + $0x8a8] sm:$0xff]
  %v826 = vld [vmem:[%s3 + $0x8b0] sm:$0xff]
  %v827 = vld [vmem:[%s3 + $0x8b8] sm:$0xff]
  %v828 = vld [vmem:[%s3 + $0x8c0] sm:$0xff]
  %v829 = vld [vmem:[%s3 + $0x8c8] sm:$0xff]
  %v830 = vld [vmem:[%s3 + $0x8d0] sm:$0xff]
  %v831 = vld [vmem:[%s3 + $0x8d8] sm:$0xff]
  %v832 = vld [vmem:[%s3 + $0x8e0] sm:$0xff]
  %v833 = vld [vmem:[%s3 + $0x8e8] sm:$0xff]
  %v834 = vld [vmem:[%s3 + $0x8f0] sm:$0xff]
  %v835 = vld [vmem:[%s3 + $0x8f8] sm:$0xff]
  %v836 = vld [vmem:[%s3 + $0x900] sm:$0xff]
  %v837 = vld [vmem:[%s3 + $0x908] sm:$0xff]
  %v838 = vld [vmem:[%s3 + $0x910] sm:$0xff]
  %v839 = vld [vmem:[%s3 + $0x918] sm:$0xff]
  %v840 = vld [vmem:[%s3 + $0x920] sm:$0xff]
  %v841 = vld [vmem:[%s3 + $0x928] sm:$0xff]
  %v842 = vld [vmem:[%s3 + $0x930] sm:$0xff]
  %v843 = vld [vmem:[%s3 + $0x938] sm:$0xff]
  %v844 = vld [vmem:[%s3 + $0x940] sm:$0xff]
  %v845 = vld [vmem:[%s3 + $0x948] sm:$0xff]
  %v846 = vld [vmem:[%s3 + $0x950] sm:$0xff]
  %v847 = vld [vmem:[%s3 + $0x958] sm:$0xff]
  %v848 = vld [vmem:[%s3 + $0x960] sm:$0xff]
  %v849 = vld [vmem:[%s3 + $0x968] sm:$0xff]
  %v850 = vld [vmem:[%s3 + $0x970] sm:$0xff]
  %v851 = vld [vmem:[%s3 + $0x978] sm:$0xff]
  %v852 = vld [vmem:[%s3 + $0x980] sm:$0xff]
  %v853 = vld [vmem:[%s3 + $0x988] sm:$0xff]
  %v854 = vld [vmem:[%s3 + $0x990] sm:$0xff]
  %v855 = vld [vmem:[%s3 + $0x998] sm:$0xff]
  %v856 = vld [vmem:[%s3 + $0x9a0] sm:$0xff]
  %v857 = vld [vmem:[%s3 + $0x9a8] sm:$0xff]
  %v858 = vld [vmem:[%s3 + $0x9b0] sm:$0xff]
  %v859 = vld [vmem:[%s3 + $0x9b8] sm:$0xff]
  %v860 = vld [vmem:[%s3 + $0x9c0] sm:$0xff]
  %v861 = vld [vmem:[%s3 + $0x9c8] sm:$0xff]
  %v862 = vld [vmem:[%s3 + $0x9d0] sm:$0xff]
  %v863 = vld [vmem:[%s3 + $0x9d8] sm:$0xff]
  %v864 = vld [vmem:[%s3 + $0x9e0] sm:$0xff]
  %v865 = vld [vmem:[%s3 + $0x9e8] sm:$0xff]
  %v866 = vld [vmem:[%s3 + $0x9f0] sm:$0xff]
  %v867 = vld [vmem:[%s3 + $0x9f8] sm:$0xff]
  %v868 = vld [vmem:[%s3 + $0xa00] sm:$0xff]
  %v869 = vld [vmem:[%s3 + $0xa08] sm:$0xff]
  %v870 = vld [vmem:[%s3 + $0xa10] sm:$0xff]
  %v871 = vld [vmem:[%s3 + $0xa18] sm:$0xff]
  %v872 = vld [vmem:[%s3 + $0xa20] sm:$0xff]
  %v873 = vld [vmem:[%s3 + $0xa28] sm:$0xff]
  %v874 = vld [vmem:[%s3 + $0xa30] sm:$0xff]
  %v875 = vld [vmem:[%s3 + $0xa38] sm:$0xff]
  %v876 = vld [vmem:[%s3 + $0xa40] sm:$0xff]
  %v877 = vld [vmem:[%s3 + $0xa48] sm:$0xff]
  %v878 = vld [vmem:[%s3 + $0xa50] sm:$0xff]
  %v879 = vld [vmem:[%s3 + $0xa58] sm:$0xff]
  %v880 = vld [vmem:[%s3 + $0xa60] sm:$0xff]
  %v881 = vld [vmem:[%s3 + $0xa68] sm:$0xff]
  %v882 = vld [vmem:[%s3 + $0xa70] sm:$0xff]
  %v883 = vld [vmem:[%s3 + $0xa78] sm:$0xff]
  %v884 = vld [vmem:[%s3 + $0xa80] sm:$0xff]
  %v885 = vld [vmem:[%s3 + $0xa88] sm:$0xff]
  %v886 = vld [vmem:[%s3 + $0xa90] sm:$0xff]
  %v887 = vld [vmem:[%s3 + $0xa98] sm:$0xff]
  %v888 = vld [vmem:[%s3 + $0xaa0] sm:$0xff]
  %v889 = vld [vmem:[%s3 + $0xaa8] sm:$0xff]
  %v890 = vld [vmem:[%s3 + $0xab0] sm:$0xff]
  %v891 = vld [vmem:[%s3 + $0xab8] sm:$0xff]
  %v892 = vld [vmem:[%s3 + $0xac0] sm:$0xff]
  %v893 = vld [vmem:[%s3 + $0xac8] sm:$0xff]
  %v894 = vld [vmem:[%s3 + $0xad0] sm:$0xff]
  %v895 = vld [vmem:[%s3 + $0xad8] sm:$0xff]
  %v896 = vld [vmem:[%s3 + $0xae0] sm:$0xff]
  %v897 = vld [vmem:[%s3 + $0xae8] sm:$0xff]
  %v898 = vld [vmem:[%s3 + $0xaf0] sm:$0xff]
  %v899 = vld [vmem:[%s3 + $0xaf8] sm:$0xff]
  %v900 = vld [vmem:[%s3 + $0xb00] sm:$0xff]
  %v901 = vld [vmem:[%s3 + $0xb08] sm:$0xff]
  %v902 = vld [vmem:[%s3 + $0xb10] sm:$0xff]
  %v903 = vld [vmem:[%s3 + $0xb18] sm:$0xff]
  %v904 = vld [vmem:[%s3 + $0xb20] sm:$0xff]
  %v905 = vld [vmem:[%s3 + $0xb28] sm:$0xff]
  %v906 = vld [vmem:[%s3 + $0xb30] sm:$0xff]
  %v907 = vld [vmem:[%s3 + $0xb38] sm:$0xff]
  %vm908 = vcmask 261120
  %v910 = vsel %vm908, %v31, 0
  %v913 = vsel %vm908, %v43, 0
  %v916 = vsel %vm908, %v55, 0
  %v919 = vsel %vm908, %v67, 0
  %v922 = vsel %vm908, %v79, 0
  %v925 = vsel %vm908, %v91, 0
  %v928 = vsel %vm908, %v103, 0
  %930 = vmatpush.msra.mxu0 %v218
  %931 = vmatpush.msra.mxu0 %v216
  %932 = vmatpush.msra.mxu0 %v214
  %933 = vmatpush.msra.mxu0 %v212
  %934 = vmatpush.msra.mxu0 %v210
  %935 = vmatpush.msra.mxu0 %v208
  %936 = vmatpush.msra.mxu0 %v206
  %937 = vmatpush.msra.mxu0 %v204
  %938 = vmatpush.msra.mxu0 %v202
  %939 = vmatpush.msra.mxu0 %v200
  %940 = vmatpush.msra.mxu0 %v198
  %941 = vmatpush.msra.mxu0 %v196
  %942 = vmatpush.msra.mxu0 %v194
  %943 = vmatpush.msra.mxu0 %v192
  %944 = vmatpush.msra.mxu0 %v190
  %945 = vmatpush.msra.mxu0 %v188
  %946 = vmatmul.f32.gmra.mxu0 %v20
  %v947 = vpop.f32.mrf.mxu0
  %v948 = vadd.f32 0.0, %v947
  %949 = vmatmul.f32.gmra.mxu0 %v32
  %v950 = vpop.f32.mrf.mxu0
  %v951 = vadd.f32 0.0, %v950
  %952 = vmatmul.f32.gmra.mxu0 %v44
  %v953 = vpop.f32.mrf.mxu0
  %v954 = vadd.f32 0.0, %v953
  %955 = vmatmul.f32.gmra.mxu0 %v56
  %v956 = vpop.f32.mrf.mxu0
  %v957 = vadd.f32 0.0, %v956
  %958 = vmatmul.f32.gmra.mxu0 %v68
  %v959 = vpop.f32.mrf.mxu0
  %v960 = vadd.f32 0.0, %v959
  %961 = vmatmul.f32.gmra.mxu0 %v80
  %v962 = vpop.f32.mrf.mxu0
  %v963 = vadd.f32 0.0, %v962
  %964 = vmatmul.f32.gmra.mxu0 %v92
  %v965 = vpop.f32.mrf.mxu0
  %v966 = vadd.f32 0.0, %v965
  %967 = vdwg.mxu0
  %968 = vmatpush.msra.mxu0 %v250
  %969 = vmatpush.msra.mxu0 %v248
  %970 = vmatpush.msra.mxu0 %v246
  %971 = vmatpush.msra.mxu0 %v244
  %972 = vmatpush.msra.mxu0 %v242
  %973 = vmatpush.msra.mxu0 %v240
  %974 = vmatpush.msra.mxu0 %v238
  %975 = vmatpush.msra.mxu0 %v236
  %976 = vmatpush.msra.mxu0 %v234
  %977 = vmatpush.msra.mxu0 %v232
  %978 = vmatpush.msra.mxu0 %v230
  %979 = vmatpush.msra.mxu0 %v228
  %980 = vmatpush.msra.mxu0 %v226
  %981 = vmatpush.msra.mxu0 %v224
  %982 = vmatpush.msra.mxu0 %v222
  %983 = vmatpush.msra.mxu0 %v220
  %984 = vmatmul.f32.gmra.mxu0 %v21
  %v985 = vpop.f32.mrf.mxu0
  %v986 = vadd.f32 %v948, %v985
  %987 = vmatmul.f32.gmra.mxu0 %v33
  %v988 = vpop.f32.mrf.mxu0
  %v989 = vadd.f32 %v951, %v988
  %990 = vmatmul.f32.gmra.mxu0 %v45
  %v991 = vpop.f32.mrf.mxu0
  %v992 = vadd.f32 %v954, %v991
  %993 = vmatmul.f32.gmra.mxu0 %v57
  %v994 = vpop.f32.mrf.mxu0
  %v995 = vadd.f32 %v957, %v994
  %996 = vmatmul.f32.gmra.mxu0 %v69
  %v997 = vpop.f32.mrf.mxu0
  %v998 = vadd.f32 %v960, %v997
  %999 = vmatmul.f32.gmra.mxu0 %v81
  %v1000 = vpop.f32.mrf.mxu0
  %v1001 = vadd.f32 %v963, %v1000
  %1002 = vmatmul.f32.gmra.mxu0 %v93
  %v1003 = vpop.f32.mrf.mxu0
  %v1004 = vadd.f32 %v966, %v1003
  %1005 = vdwg.mxu0
  %1006 = vmatpush.msra.mxu0 %v282
  %1007 = vmatpush.msra.mxu0 %v280
  %1008 = vmatpush.msra.mxu0 %v278
  %1009 = vmatpush.msra.mxu0 %v276
  %1010 = vmatpush.msra.mxu0 %v274
  %1011 = vmatpush.msra.mxu0 %v272
  %1012 = vmatpush.msra.mxu0 %v270
  %1013 = vmatpush.msra.mxu0 %v268
  %1014 = vmatpush.msra.mxu0 %v266
  %1015 = vmatpush.msra.mxu0 %v264
  %1016 = vmatpush.msra.mxu0 %v262
  %1017 = vmatpush.msra.mxu0 %v260
  %1018 = vmatpush.msra.mxu0 %v258
  %1019 = vmatpush.msra.mxu0 %v256
  %1020 = vmatpush.msra.mxu0 %v254
  %1021 = vmatpush.msra.mxu0 %v252
  %1022 = vmatmul.f32.gmra.mxu0 %v22
  %v1023 = vpop.f32.mrf.mxu0
  %v1024 = vadd.f32 %v986, %v1023
  %1025 = vmatmul.f32.gmra.mxu0 %v34
  %v1026 = vpop.f32.mrf.mxu0
  %v1027 = vadd.f32 %v989, %v1026
  %1028 = vmatmul.f32.gmra.mxu0 %v46
  %v1029 = vpop.f32.mrf.mxu0
  %v1030 = vadd.f32 %v992, %v1029
  %1031 = vmatmul.f32.gmra.mxu0 %v58
  %v1032 = vpop.f32.mrf.mxu0
  %v1033 = vadd.f32 %v995, %v1032
  %1034 = vmatmul.f32.gmra.mxu0 %v70
  %v1035 = vpop.f32.mrf.mxu0
  %v1036 = vadd.f32 %v998, %v1035
  %1037 = vmatmul.f32.gmra.mxu0 %v82
  %v1038 = vpop.f32.mrf.mxu0
  %v1039 = vadd.f32 %v1001, %v1038
  %1040 = vmatmul.f32.gmra.mxu0 %v94
  %v1041 = vpop.f32.mrf.mxu0
  %v1042 = vadd.f32 %v1004, %v1041
  %1043 = vdwg.mxu0
  %1044 = vmatpush.msra.mxu0 %v314
  %1045 = vmatpush.msra.mxu0 %v312
  %1046 = vmatpush.msra.mxu0 %v310
  %1047 = vmatpush.msra.mxu0 %v308
  %1048 = vmatpush.msra.mxu0 %v306
  %1049 = vmatpush.msra.mxu0 %v304
  %1050 = vmatpush.msra.mxu0 %v302
  %1051 = vmatpush.msra.mxu0 %v300
  %1052 = vmatpush.msra.mxu0 %v298
  %1053 = vmatpush.msra.mxu0 %v296
  %1054 = vmatpush.msra.mxu0 %v294
  %1055 = vmatpush.msra.mxu0 %v292
  %1056 = vmatpush.msra.mxu0 %v290
  %1057 = vmatpush.msra.mxu0 %v288
  %1058 = vmatpush.msra.mxu0 %v286
  %1059 = vmatpush.msra.mxu0 %v284
  %1060 = vmatmul.f32.gmra.mxu0 %v23
  %v1061 = vpop.f32.mrf.mxu0
  %v1062 = vadd.f32 %v1024, %v1061
  %1063 = vmatmul.f32.gmra.mxu0 %v35
  %v1064 = vpop.f32.mrf.mxu0
  %v1065 = vadd.f32 %v1027, %v1064
  %1066 = vmatmul.f32.gmra.mxu0 %v47
  %v1067 = vpop.f32.mrf.mxu0
  %v1068 = vadd.f32 %v1030, %v1067
  %1069 = vmatmul.f32.gmra.mxu0 %v59
  %v1070 = vpop.f32.mrf.mxu0
  %v1071 = vadd.f32 %v1033, %v1070
  %1072 = vmatmul.f32.gmra.mxu0 %v71
  %v1073 = vpop.f32.mrf.mxu0
  %v1074 = vadd.f32 %v1036, %v1073
  %1075 = vmatmul.f32.gmra.mxu0 %v83
  %v1076 = vpop.f32.mrf.mxu0
  %v1077 = vadd.f32 %v1039, %v1076
  %1078 = vmatmul.f32.gmra.mxu0 %v95
  %v1079 = vpop.f32.mrf.mxu0
  %v1080 = vadd.f32 %v1042, %v1079
  %1081 = vdwg.mxu0
  %1082 = vmatpush.msra.mxu0 %v346
  %1083 = vmatpush.msra.mxu0 %v344
  %1084 = vmatpush.msra.mxu0 %v342
  %1085 = vmatpush.msra.mxu0 %v340
  %1086 = vmatpush.msra.mxu0 %v338
  %1087 = vmatpush.msra.mxu0 %v336
  %1088 = vmatpush.msra.mxu0 %v334
  %1089 = vmatpush.msra.mxu0 %v332
  %1090 = vmatpush.msra.mxu0 %v330
  %1091 = vmatpush.msra.mxu0 %v328
  %1092 = vmatpush.msra.mxu0 %v326
  %1093 = vmatpush.msra.mxu0 %v324
  %1094 = vmatpush.msra.mxu0 %v322
  %1095 = vmatpush.msra.mxu0 %v320
  %1096 = vmatpush.msra.mxu0 %v318
  %1097 = vmatpush.msra.mxu0 %v316
  %1098 = vmatmul.f32.gmra.mxu0 %v24
  %v1099 = vpop.f32.mrf.mxu0
  %v1100 = vadd.f32 %v1062, %v1099
  %1101 = vmatmul.f32.gmra.mxu0 %v36
  %v1102 = vpop.f32.mrf.mxu0
  %v1103 = vadd.f32 %v1065, %v1102
  %1104 = vmatmul.f32.gmra.mxu0 %v48
  %v1105 = vpop.f32.mrf.mxu0
  %v1106 = vadd.f32 %v1068, %v1105
  %1107 = vmatmul.f32.gmra.mxu0 %v60
  %v1108 = vpop.f32.mrf.mxu0
  %v1109 = vadd.f32 %v1071, %v1108
  %1110 = vmatmul.f32.gmra.mxu0 %v72
  %v1111 = vpop.f32.mrf.mxu0
  %v1112 = vadd.f32 %v1074, %v1111
  %1113 = vmatmul.f32.gmra.mxu0 %v84
  %v1114 = vpop.f32.mrf.mxu0
  %v1115 = vadd.f32 %v1077, %v1114
  %1116 = vmatmul.f32.gmra.mxu0 %v96
  %v1117 = vpop.f32.mrf.mxu0
  %v1118 = vadd.f32 %v1080, %v1117
  %1119 = vdwg.mxu0
  %1120 = vmatpush.msra.mxu0 %v378
  %1121 = vmatpush.msra.mxu0 %v376
  %1122 = vmatpush.msra.mxu0 %v374
  %1123 = vmatpush.msra.mxu0 %v372
  %1124 = vmatpush.msra.mxu0 %v370
  %1125 = vmatpush.msra.mxu0 %v368
  %1126 = vmatpush.msra.mxu0 %v366
  %1127 = vmatpush.msra.mxu0 %v364
  %1128 = vmatpush.msra.mxu0 %v362
  %1129 = vmatpush.msra.mxu0 %v360
  %1130 = vmatpush.msra.mxu0 %v358
  %1131 = vmatpush.msra.mxu0 %v356
  %1132 = vmatpush.msra.mxu0 %v354
  %1133 = vmatpush.msra.mxu0 %v352
  %1134 = vmatpush.msra.mxu0 %v350
  %1135 = vmatpush.msra.mxu0 %v348
  %1136 = vmatmul.f32.gmra.mxu0 %v25
  %v1137 = vpop.f32.mrf.mxu0
  %v1138 = vadd.f32 %v1100, %v1137
  %1139 = vmatmul.f32.gmra.mxu0 %v37
  %v1140 = vpop.f32.mrf.mxu0
  %v1141 = vadd.f32 %v1103, %v1140
  %1142 = vmatmul.f32.gmra.mxu0 %v49
  %v1143 = vpop.f32.mrf.mxu0
  %v1144 = vadd.f32 %v1106, %v1143
  %1145 = vmatmul.f32.gmra.mxu0 %v61
  %v1146 = vpop.f32.mrf.mxu0
  %v1147 = vadd.f32 %v1109, %v1146
  %1148 = vmatmul.f32.gmra.mxu0 %v73
  %v1149 = vpop.f32.mrf.mxu0
  %v1150 = vadd.f32 %v1112, %v1149
  %1151 = vmatmul.f32.gmra.mxu0 %v85
  %v1152 = vpop.f32.mrf.mxu0
  %v1153 = vadd.f32 %v1115, %v1152
  %1154 = vmatmul.f32.gmra.mxu0 %v97
  %v1155 = vpop.f32.mrf.mxu0
  %v1156 = vadd.f32 %v1118, %v1155
  %1157 = vdwg.mxu0
  %1158 = vmatpush.msra.mxu0 %v410
  %1159 = vmatpush.msra.mxu0 %v408
  %1160 = vmatpush.msra.mxu0 %v406
  %1161 = vmatpush.msra.mxu0 %v404
  %1162 = vmatpush.msra.mxu0 %v402
  %1163 = vmatpush.msra.mxu0 %v400
  %1164 = vmatpush.msra.mxu0 %v398
  %1165 = vmatpush.msra.mxu0 %v396
  %1166 = vmatpush.msra.mxu0 %v394
  %1167 = vmatpush.msra.mxu0 %v392
  %1168 = vmatpush.msra.mxu0 %v390
  %1169 = vmatpush.msra.mxu0 %v388
  %1170 = vmatpush.msra.mxu0 %v386
  %1171 = vmatpush.msra.mxu0 %v384
  %1172 = vmatpush.msra.mxu0 %v382
  %1173 = vmatpush.msra.mxu0 %v380
  %1174 = vmatmul.f32.gmra.mxu0 %v26
  %v1175 = vpop.f32.mrf.mxu0
  %v1176 = vadd.f32 %v1138, %v1175
  %1177 = vmatmul.f32.gmra.mxu0 %v38
  %v1178 = vpop.f32.mrf.mxu0
  %v1179 = vadd.f32 %v1141, %v1178
  %1180 = vmatmul.f32.gmra.mxu0 %v50
  %v1181 = vpop.f32.mrf.mxu0
  %v1182 = vadd.f32 %v1144, %v1181
  %1183 = vmatmul.f32.gmra.mxu0 %v62
  %v1184 = vpop.f32.mrf.mxu0
  %v1185 = vadd.f32 %v1147, %v1184
  %1186 = vmatmul.f32.gmra.mxu0 %v74
  %v1187 = vpop.f32.mrf.mxu0
  %v1188 = vadd.f32 %v1150, %v1187
  %1189 = vmatmul.f32.gmra.mxu0 %v86
  %v1190 = vpop.f32.mrf.mxu0
  %v1191 = vadd.f32 %v1153, %v1190
  %1192 = vmatmul.f32.gmra.mxu0 %v98
  %v1193 = vpop.f32.mrf.mxu0
  %v1194 = vadd.f32 %v1156, %v1193
  %1195 = vdwg.mxu0
  %1196 = vmatpush.msra.mxu0 %v442
  %1197 = vmatpush.msra.mxu0 %v440
  %1198 = vmatpush.msra.mxu0 %v438
  %1199 = vmatpush.msra.mxu0 %v436
  %1200 = vmatpush.msra.mxu0 %v434
  %1201 = vmatpush.msra.mxu0 %v432
  %1202 = vmatpush.msra.mxu0 %v430
  %1203 = vmatpush.msra.mxu0 %v428
  %1204 = vmatpush.msra.mxu0 %v426
  %1205 = vmatpush.msra.mxu0 %v424
  %1206 = vmatpush.msra.mxu0 %v422
  %1207 = vmatpush.msra.mxu0 %v420
  %1208 = vmatpush.msra.mxu0 %v418
  %1209 = vmatpush.msra.mxu0 %v416
  %1210 = vmatpush.msra.mxu0 %v414
  %1211 = vmatpush.msra.mxu0 %v412
  %1212 = vmatmul.f32.gmra.mxu0 %v27
  %v1213 = vpop.f32.mrf.mxu0
  %v1214 = vadd.f32 %v1176, %v1213
  %1215 = vmatmul.f32.gmra.mxu0 %v39
  %v1216 = vpop.f32.mrf.mxu0
  %v1217 = vadd.f32 %v1179, %v1216
  %1218 = vmatmul.f32.gmra.mxu0 %v51
  %v1219 = vpop.f32.mrf.mxu0
  %v1220 = vadd.f32 %v1182, %v1219
  %1221 = vmatmul.f32.gmra.mxu0 %v63
  %v1222 = vpop.f32.mrf.mxu0
  %v1223 = vadd.f32 %v1185, %v1222
  %1224 = vmatmul.f32.gmra.mxu0 %v75
  %v1225 = vpop.f32.mrf.mxu0
  %v1226 = vadd.f32 %v1188, %v1225
  %1227 = vmatmul.f32.gmra.mxu0 %v87
  %v1228 = vpop.f32.mrf.mxu0
  %v1229 = vadd.f32 %v1191, %v1228
  %1230 = vmatmul.f32.gmra.mxu0 %v99
  %v1231 = vpop.f32.mrf.mxu0
  %v1232 = vadd.f32 %v1194, %v1231
  %1233 = vdwg.mxu0
  %1234 = vmatpush.msra.mxu0 %v474
  %1235 = vmatpush.msra.mxu0 %v472
  %1236 = vmatpush.msra.mxu0 %v470
  %1237 = vmatpush.msra.mxu0 %v468
  %1238 = vmatpush.msra.mxu0 %v466
  %1239 = vmatpush.msra.mxu0 %v464
  %1240 = vmatpush.msra.mxu0 %v462
  %1241 = vmatpush.msra.mxu0 %v460
  %1242 = vmatpush.msra.mxu0 %v458
  %1243 = vmatpush.msra.mxu0 %v456
  %1244 = vmatpush.msra.mxu0 %v454
  %1245 = vmatpush.msra.mxu0 %v452
  %1246 = vmatpush.msra.mxu0 %v450
  %1247 = vmatpush.msra.mxu0 %v448
  %1248 = vmatpush.msra.mxu0 %v446
  %1249 = vmatpush.msra.mxu0 %v444
  %1250 = vmatmul.f32.gmra.mxu0 %v28
  %v1251 = vpop.f32.mrf.mxu0
  %v1252 = vadd.f32 %v1214, %v1251
  %1253 = vmatmul.f32.gmra.mxu0 %v40
  %v1254 = vpop.f32.mrf.mxu0
  %v1255 = vadd.f32 %v1217, %v1254
  %1256 = vmatmul.f32.gmra.mxu0 %v52
  %v1257 = vpop.f32.mrf.mxu0
  %v1258 = vadd.f32 %v1220, %v1257
  %1259 = vmatmul.f32.gmra.mxu0 %v64
  %v1260 = vpop.f32.mrf.mxu0
  %v1261 = vadd.f32 %v1223, %v1260
  %1262 = vmatmul.f32.gmra.mxu0 %v76
  %v1263 = vpop.f32.mrf.mxu0
  %v1264 = vadd.f32 %v1226, %v1263
  %1265 = vmatmul.f32.gmra.mxu0 %v88
  %v1266 = vpop.f32.mrf.mxu0
  %v1267 = vadd.f32 %v1229, %v1266
  %1268 = vmatmul.f32.gmra.mxu0 %v100
  %v1269 = vpop.f32.mrf.mxu0
  %v1270 = vadd.f32 %v1232, %v1269
  %1271 = vdwg.mxu0
  %1272 = vmatpush.msra.mxu0 %v506
  %1273 = vmatpush.msra.mxu0 %v504
  %1274 = vmatpush.msra.mxu0 %v502
  %1275 = vmatpush.msra.mxu0 %v500
  %1276 = vmatpush.msra.mxu0 %v498
  %1277 = vmatpush.msra.mxu0 %v496
  %1278 = vmatpush.msra.mxu0 %v494
  %1279 = vmatpush.msra.mxu0 %v492
  %1280 = vmatpush.msra.mxu0 %v490
  %1281 = vmatpush.msra.mxu0 %v488
  %1282 = vmatpush.msra.mxu0 %v486
  %1283 = vmatpush.msra.mxu0 %v484
  %1284 = vmatpush.msra.mxu0 %v482
  %1285 = vmatpush.msra.mxu0 %v480
  %1286 = vmatpush.msra.mxu0 %v478
  %1287 = vmatpush.msra.mxu0 %v476
  %1288 = vmatmul.f32.gmra.mxu0 %v29
  %v1289 = vpop.f32.mrf.mxu0
  %v1290 = vadd.f32 %v1252, %v1289
  %1291 = vmatmul.f32.gmra.mxu0 %v41
  %v1292 = vpop.f32.mrf.mxu0
  %v1293 = vadd.f32 %v1255, %v1292
  %1294 = vmatmul.f32.gmra.mxu0 %v53
  %v1295 = vpop.f32.mrf.mxu0
  %v1296 = vadd.f32 %v1258, %v1295
  %1297 = vmatmul.f32.gmra.mxu0 %v65
  %v1298 = vpop.f32.mrf.mxu0
  %v1299 = vadd.f32 %v1261, %v1298
  %1300 = vmatmul.f32.gmra.mxu0 %v77
  %v1301 = vpop.f32.mrf.mxu0
  %v1302 = vadd.f32 %v1264, %v1301
  %1303 = vmatmul.f32.gmra.mxu0 %v89
  %v1304 = vpop.f32.mrf.mxu0
  %v1305 = vadd.f32 %v1267, %v1304
  %1306 = vmatmul.f32.gmra.mxu0 %v101
  %v1307 = vpop.f32.mrf.mxu0
  %v1308 = vadd.f32 %v1270, %v1307
  %1309 = vdwg.mxu0
  %1310 = vmatpush.msra.mxu0 %v538
  %1311 = vmatpush.msra.mxu0 %v536
  %1312 = vmatpush.msra.mxu0 %v534
  %1313 = vmatpush.msra.mxu0 %v532
  %1314 = vmatpush.msra.mxu0 %v530
  %1315 = vmatpush.msra.mxu0 %v528
  %1316 = vmatpush.msra.mxu0 %v526
  %1317 = vmatpush.msra.mxu0 %v524
  %1318 = vmatpush.msra.mxu0 %v522
  %1319 = vmatpush.msra.mxu0 %v520
  %1320 = vmatpush.msra.mxu0 %v518
  %1321 = vmatpush.msra.mxu0 %v516
  %1322 = vmatpush.msra.mxu0 %v514
  %1323 = vmatpush.msra.mxu0 %v512
  %1324 = vmatpush.msra.mxu0 %v510
  %1325 = vmatpush.msra.mxu0 %v508
  %1326 = vmatmul.f32.gmra.mxu0 %v30
  %v1327 = vpop.f32.mrf.mxu0
  %v1328 = vadd.f32 %v1290, %v1327
  %1329 = vmatmul.f32.gmra.mxu0 %v42
  %v1330 = vpop.f32.mrf.mxu0
  %v1331 = vadd.f32 %v1293, %v1330
  %1332 = vmatmul.f32.gmra.mxu0 %v54
  %v1333 = vpop.f32.mrf.mxu0
  %v1334 = vadd.f32 %v1296, %v1333
  %1335 = vmatmul.f32.gmra.mxu0 %v66
  %v1336 = vpop.f32.mrf.mxu0
  %v1337 = vadd.f32 %v1299, %v1336
  %1338 = vmatmul.f32.gmra.mxu0 %v78
  %v1339 = vpop.f32.mrf.mxu0
  %v1340 = vadd.f32 %v1302, %v1339
  %1341 = vmatmul.f32.gmra.mxu0 %v90
  %v1342 = vpop.f32.mrf.mxu0
  %v1343 = vadd.f32 %v1305, %v1342
  %1344 = vmatmul.f32.gmra.mxu0 %v102
  %v1345 = vpop.f32.mrf.mxu0
  %v1346 = vadd.f32 %v1308, %v1345
  %1347 = vdwg.mxu0
  %1348 = vmatpush.msra.mxu0 0.0
  %1349 = vmatpush.msra.mxu0 0.0
  %1350 = vmatpush.msra.mxu0 0.0
  %1351 = vmatpush.msra.mxu0 0.0
  %1352 = vmatpush.msra.mxu0 0.0
  %1353 = vmatpush.msra.mxu0 0.0
  %1354 = vmatpush.msra.mxu0 0.0
  %1355 = vmatpush.msra.mxu0 0.0
  %1356 = vmatpush.msra.mxu0 0.0
  %1357 = vmatpush.msra.mxu0 0.0
  %1358 = vmatpush.msra.mxu0 0.0
  %1359 = vmatpush.msra.mxu0 0.0
  %1360 = vmatpush.msra.mxu0 %v546
  %1361 = vmatpush.msra.mxu0 %v544
  %1362 = vmatpush.msra.mxu0 %v542
  %1363 = vmatpush.msra.mxu0 %v540
  %1364 = vmatmul.f32.gmra.mxu0 %v910
  %v1365 = vpop.f32.mrf.mxu0
  %v1366 = vadd.f32 %v1328, %v1365
  %1367 = vmatmul.f32.gmra.mxu0 %v913
  %v1368 = vpop.f32.mrf.mxu0
  %v1369 = vadd.f32 %v1331, %v1368
  %1370 = vmatmul.f32.gmra.mxu0 %v916
  %v1371 = vpop.f32.mrf.mxu0
  %v1372 = vadd.f32 %v1334, %v1371
  %1373 = vmatmul.f32.gmra.mxu0 %v919
  %v1374 = vpop.f32.mrf.mxu0
  %v1375 = vadd.f32 %v1337, %v1374
  %1376 = vmatmul.f32.gmra.mxu0 %v922
  %v1377 = vpop.f32.mrf.mxu0
  %v1378 = vadd.f32 %v1340, %v1377
  %1379 = vmatmul.f32.gmra.mxu0 %v925
  %v1380 = vpop.f32.mrf.mxu0
  %v1381 = vadd.f32 %v1343, %v1380
  %1382 = vmatmul.f32.gmra.mxu0 %v928
  %v1383 = vpop.f32.mrf.mxu0
  %v1384 = vadd.f32 %v1346, %v1383
  %1385 = vdwg.mxu0
  %1386 = vmatpush.msra.mxu0 %v219
  %1387 = vmatpush.msra.mxu0 %v217
  %1388 = vmatpush.msra.mxu0 %v215
  %1389 = vmatpush.msra.mxu0 %v213
  %1390 = vmatpush.msra.mxu0 %v211
  %1391 = vmatpush.msra.mxu0 %v209
  %1392 = vmatpush.msra.mxu0 %v207
  %1393 = vmatpush.msra.mxu0 %v205
  %1394 = vmatpush.msra.mxu0 %v203
  %1395 = vmatpush.msra.mxu0 %v201
  %1396 = vmatpush.msra.mxu0 %v199
  %1397 = vmatpush.msra.mxu0 %v197
  %1398 = vmatpush.msra.mxu0 %v195
  %1399 = vmatpush.msra.mxu0 %v193
  %1400 = vmatpush.msra.mxu0 %v191
  %1401 = vmatpush.msra.mxu0 %v189
  %1402 = vmatmul.f32.gmra.mxu0 %v20
  %v1403 = vpop.f32.mrf.mxu0
  %v1404 = vadd.f32 0.0, %v1403
  %1405 = vmatmul.f32.gmra.mxu0 %v32
  %v1406 = vpop.f32.mrf.mxu0
  %v1407 = vadd.f32 0.0, %v1406
  %1408 = vmatmul.f32.gmra.mxu0 %v44
  %v1409 = vpop.f32.mrf.mxu0
  %v1410 = vadd.f32 0.0, %v1409
  %1411 = vmatmul.f32.gmra.mxu0 %v56
  %v1412 = vpop.f32.mrf.mxu0
  %v1413 = vadd.f32 0.0, %v1412
  %1414 = vmatmul.f32.gmra.mxu0 %v68
  %v1415 = vpop.f32.mrf.mxu0
  %v1416 = vadd.f32 0.0, %v1415
  %1417 = vmatmul.f32.gmra.mxu0 %v80
  %v1418 = vpop.f32.mrf.mxu0
  %v1419 = vadd.f32 0.0, %v1418
  %1420 = vmatmul.f32.gmra.mxu0 %v92
  %v1421 = vpop.f32.mrf.mxu0
  %v1422 = vadd.f32 0.0, %v1421
  %1423 = vdwg.mxu0
  %1424 = vmatpush.msra.mxu0 %v251
  %1425 = vmatpush.msra.mxu0 %v249
  %1426 = vmatpush.msra.mxu0 %v247
  %1427 = vmatpush.msra.mxu0 %v245
  %1428 = vmatpush.msra.mxu0 %v243
  %1429 = vmatpush.msra.mxu0 %v241
  %1430 = vmatpush.msra.mxu0 %v239
  %1431 = vmatpush.msra.mxu0 %v237
  %1432 = vmatpush.msra.mxu0 %v235
  %1433 = vmatpush.msra.mxu0 %v233
  %1434 = vmatpush.msra.mxu0 %v231
  %1435 = vmatpush.msra.mxu0 %v229
  %1436 = vmatpush.msra.mxu0 %v227
  %1437 = vmatpush.msra.mxu0 %v225
  %1438 = vmatpush.msra.mxu0 %v223
  %1439 = vmatpush.msra.mxu0 %v221
  %1440 = vmatmul.f32.gmra.mxu0 %v21
  %v1441 = vpop.f32.mrf.mxu0
  %v1442 = vadd.f32 %v1404, %v1441
  %1443 = vmatmul.f32.gmra.mxu0 %v33
  %v1444 = vpop.f32.mrf.mxu0
  %v1445 = vadd.f32 %v1407, %v1444
  %1446 = vmatmul.f32.gmra.mxu0 %v45
  %v1447 = vpop.f32.mrf.mxu0
  %v1448 = vadd.f32 %v1410, %v1447
  %1449 = vmatmul.f32.gmra.mxu0 %v57
  %v1450 = vpop.f32.mrf.mxu0
  %v1451 = vadd.f32 %v1413, %v1450
  %1452 = vmatmul.f32.gmra.mxu0 %v69
  %v1453 = vpop.f32.mrf.mxu0
  %v1454 = vadd.f32 %v1416, %v1453
  %1455 = vmatmul.f32.gmra.mxu0 %v81
  %v1456 = vpop.f32.mrf.mxu0
  %v1457 = vadd.f32 %v1419, %v1456
  %1458 = vmatmul.f32.gmra.mxu0 %v93
  %v1459 = vpop.f32.mrf.mxu0
  %v1460 = vadd.f32 %v1422, %v1459
  %1461 = vdwg.mxu0
  %1462 = vmatpush.msra.mxu0 %v283
  %1463 = vmatpush.msra.mxu0 %v281
  %1464 = vmatpush.msra.mxu0 %v279
  %1465 = vmatpush.msra.mxu0 %v277
  %1466 = vmatpush.msra.mxu0 %v275
  %1467 = vmatpush.msra.mxu0 %v273
  %1468 = vmatpush.msra.mxu0 %v271
  %1469 = vmatpush.msra.mxu0 %v269
  %1470 = vmatpush.msra.mxu0 %v267
  %1471 = vmatpush.msra.mxu0 %v265
  %1472 = vmatpush.msra.mxu0 %v263
  %1473 = vmatpush.msra.mxu0 %v261
  %1474 = vmatpush.msra.mxu0 %v259
  %1475 = vmatpush.msra.mxu0 %v257
  %1476 = vmatpush.msra.mxu0 %v255
  %1477 = vmatpush.msra.mxu0 %v253
  %1478 = vmatmul.f32.gmra.mxu0 %v22
  %v1479 = vpop.f32.mrf.mxu0
  %v1480 = vadd.f32 %v1442, %v1479
  %1481 = vmatmul.f32.gmra.mxu0 %v34
  %v1482 = vpop.f32.mrf.mxu0
  %v1483 = vadd.f32 %v1445, %v1482
  %1484 = vmatmul.f32.gmra.mxu0 %v46
  %v1485 = vpop.f32.mrf.mxu0
  %v1486 = vadd.f32 %v1448, %v1485
  %1487 = vmatmul.f32.gmra.mxu0 %v58
  %v1488 = vpop.f32.mrf.mxu0
  %v1489 = vadd.f32 %v1451, %v1488
  %1490 = vmatmul.f32.gmra.mxu0 %v70
  %v1491 = vpop.f32.mrf.mxu0
  %v1492 = vadd.f32 %v1454, %v1491
  %1493 = vmatmul.f32.gmra.mxu0 %v82
  %v1494 = vpop.f32.mrf.mxu0
  %v1495 = vadd.f32 %v1457, %v1494
  %1496 = vmatmul.f32.gmra.mxu0 %v94
  %v1497 = vpop.f32.mrf.mxu0
  %v1498 = vadd.f32 %v1460, %v1497
  %1499 = vdwg.mxu0
  %1500 = vmatpush.msra.mxu0 %v315
  %1501 = vmatpush.msra.mxu0 %v313
  %1502 = vmatpush.msra.mxu0 %v311
  %1503 = vmatpush.msra.mxu0 %v309
  %1504 = vmatpush.msra.mxu0 %v307
  %1505 = vmatpush.msra.mxu0 %v305
  %1506 = vmatpush.msra.mxu0 %v303
  %1507 = vmatpush.msra.mxu0 %v301
  %1508 = vmatpush.msra.mxu0 %v299
  %1509 = vmatpush.msra.mxu0 %v297
  %1510 = vmatpush.msra.mxu0 %v295
  %1511 = vmatpush.msra.mxu0 %v293
  %1512 = vmatpush.msra.mxu0 %v291
  %1513 = vmatpush.msra.mxu0 %v289
  %1514 = vmatpush.msra.mxu0 %v287
  %1515 = vmatpush.msra.mxu0 %v285
  %1516 = vmatmul.f32.gmra.mxu0 %v23
  %v1517 = vpop.f32.mrf.mxu0
  %v1518 = vadd.f32 %v1480, %v1517
  %1519 = vmatmul.f32.gmra.mxu0 %v35
  %v1520 = vpop.f32.mrf.mxu0
  %v1521 = vadd.f32 %v1483, %v1520
  %1522 = vmatmul.f32.gmra.mxu0 %v47
  %v1523 = vpop.f32.mrf.mxu0
  %v1524 = vadd.f32 %v1486, %v1523
  %1525 = vmatmul.f32.gmra.mxu0 %v59
  %v1526 = vpop.f32.mrf.mxu0
  %v1527 = vadd.f32 %v1489, %v1526
  %1528 = vmatmul.f32.gmra.mxu0 %v71
  %v1529 = vpop.f32.mrf.mxu0
  %v1530 = vadd.f32 %v1492, %v1529
  %1531 = vmatmul.f32.gmra.mxu0 %v83
  %v1532 = vpop.f32.mrf.mxu0
  %v1533 = vadd.f32 %v1495, %v1532
  %1534 = vmatmul.f32.gmra.mxu0 %v95
  %v1535 = vpop.f32.mrf.mxu0
  %v1536 = vadd.f32 %v1498, %v1535
  %1537 = vdwg.mxu0
  %1538 = vmatpush.msra.mxu0 %v347
  %1539 = vmatpush.msra.mxu0 %v345
  %1540 = vmatpush.msra.mxu0 %v343
  %1541 = vmatpush.msra.mxu0 %v341
  %1542 = vmatpush.msra.mxu0 %v339
  %1543 = vmatpush.msra.mxu0 %v337
  %1544 = vmatpush.msra.mxu0 %v335
  %1545 = vmatpush.msra.mxu0 %v333
  %1546 = vmatpush.msra.mxu0 %v331
  %1547 = vmatpush.msra.mxu0 %v329
  %1548 = vmatpush.msra.mxu0 %v327
  %1549 = vmatpush.msra.mxu0 %v325
  %1550 = vmatpush.msra.mxu0 %v323
  %1551 = vmatpush.msra.mxu0 %v321
  %1552 = vmatpush.msra.mxu0 %v319
  %1553 = vmatpush.msra.mxu0 %v317
  %1554 = vmatmul.f32.gmra.mxu0 %v24
  %v1555 = vpop.f32.mrf.mxu0
  %v1556 = vadd.f32 %v1518, %v1555
  %1557 = vmatmul.f32.gmra.mxu0 %v36
  %v1558 = vpop.f32.mrf.mxu0
  %v1559 = vadd.f32 %v1521, %v1558
  %1560 = vmatmul.f32.gmra.mxu0 %v48
  %v1561 = vpop.f32.mrf.mxu0
  %v1562 = vadd.f32 %v1524, %v1561
  %1563 = vmatmul.f32.gmra.mxu0 %v60
  %v1564 = vpop.f32.mrf.mxu0
  %v1565 = vadd.f32 %v1527, %v1564
  %1566 = vmatmul.f32.gmra.mxu0 %v72
  %v1567 = vpop.f32.mrf.mxu0
  %v1568 = vadd.f32 %v1530, %v1567
  %1569 = vmatmul.f32.gmra.mxu0 %v84
  %v1570 = vpop.f32.mrf.mxu0
  %v1571 = vadd.f32 %v1533, %v1570
  %1572 = vmatmul.f32.gmra.mxu0 %v96
  %v1573 = vpop.f32.mrf.mxu0
  %v1574 = vadd.f32 %v1536, %v1573
  %1575 = vdwg.mxu0
  %1576 = vmatpush.msra.mxu0 %v379
  %1577 = vmatpush.msra.mxu0 %v377
  %1578 = vmatpush.msra.mxu0 %v375
  %1579 = vmatpush.msra.mxu0 %v373
  %1580 = vmatpush.msra.mxu0 %v371
  %1581 = vmatpush.msra.mxu0 %v369
  %1582 = vmatpush.msra.mxu0 %v367
  %1583 = vmatpush.msra.mxu0 %v365
  %1584 = vmatpush.msra.mxu0 %v363
  %1585 = vmatpush.msra.mxu0 %v361
  %1586 = vmatpush.msra.mxu0 %v359
  %1587 = vmatpush.msra.mxu0 %v357
  %1588 = vmatpush.msra.mxu0 %v355
  %1589 = vmatpush.msra.mxu0 %v353
  %1590 = vmatpush.msra.mxu0 %v351
  %1591 = vmatpush.msra.mxu0 %v349
  %1592 = vmatmul.f32.gmra.mxu0 %v25
  %v1593 = vpop.f32.mrf.mxu0
  %v1594 = vadd.f32 %v1556, %v1593
  %1595 = vmatmul.f32.gmra.mxu0 %v37
  %v1596 = vpop.f32.mrf.mxu0
  %v1597 = vadd.f32 %v1559, %v1596
  %1598 = vmatmul.f32.gmra.mxu0 %v49
  %v1599 = vpop.f32.mrf.mxu0
  %v1600 = vadd.f32 %v1562, %v1599
  %1601 = vmatmul.f32.gmra.mxu0 %v61
  %v1602 = vpop.f32.mrf.mxu0
  %v1603 = vadd.f32 %v1565, %v1602
  %1604 = vmatmul.f32.gmra.mxu0 %v73
  %v1605 = vpop.f32.mrf.mxu0
  %v1606 = vadd.f32 %v1568, %v1605
  %1607 = vmatmul.f32.gmra.mxu0 %v85
  %v1608 = vpop.f32.mrf.mxu0
  %v1609 = vadd.f32 %v1571, %v1608
  %1610 = vmatmul.f32.gmra.mxu0 %v97
  %v1611 = vpop.f32.mrf.mxu0
  %v1612 = vadd.f32 %v1574, %v1611
  %1613 = vdwg.mxu0
  %1614 = vmatpush.msra.mxu0 %v411
  %1615 = vmatpush.msra.mxu0 %v409
  %1616 = vmatpush.msra.mxu0 %v407
  %1617 = vmatpush.msra.mxu0 %v405
  %1618 = vmatpush.msra.mxu0 %v403
  %1619 = vmatpush.msra.mxu0 %v401
  %1620 = vmatpush.msra.mxu0 %v399
  %1621 = vmatpush.msra.mxu0 %v397
  %1622 = vmatpush.msra.mxu0 %v395
  %1623 = vmatpush.msra.mxu0 %v393
  %1624 = vmatpush.msra.mxu0 %v391
  %1625 = vmatpush.msra.mxu0 %v389
  %1626 = vmatpush.msra.mxu0 %v387
  %1627 = vmatpush.msra.mxu0 %v385
  %1628 = vmatpush.msra.mxu0 %v383
  %1629 = vmatpush.msra.mxu0 %v381
  %1630 = vmatmul.f32.gmra.mxu0 %v26
  %v1631 = vpop.f32.mrf.mxu0
  %v1632 = vadd.f32 %v1594, %v1631
  %1633 = vmatmul.f32.gmra.mxu0 %v38
  %v1634 = vpop.f32.mrf.mxu0
  %v1635 = vadd.f32 %v1597, %v1634
  %1636 = vmatmul.f32.gmra.mxu0 %v50
  %v1637 = vpop.f32.mrf.mxu0
  %v1638 = vadd.f32 %v1600, %v1637
  %1639 = vmatmul.f32.gmra.mxu0 %v62
  %v1640 = vpop.f32.mrf.mxu0
  %v1641 = vadd.f32 %v1603, %v1640
  %1642 = vmatmul.f32.gmra.mxu0 %v74
  %v1643 = vpop.f32.mrf.mxu0
  %v1644 = vadd.f32 %v1606, %v1643
  %1645 = vmatmul.f32.gmra.mxu0 %v86
  %v1646 = vpop.f32.mrf.mxu0
  %v1647 = vadd.f32 %v1609, %v1646
  %1648 = vmatmul.f32.gmra.mxu0 %v98
  %v1649 = vpop.f32.mrf.mxu0
  %v1650 = vadd.f32 %v1612, %v1649
  %1651 = vdwg.mxu0
  %1652 = vmatpush.msra.mxu0 %v443
  %1653 = vmatpush.msra.mxu0 %v441
  %1654 = vmatpush.msra.mxu0 %v439
  %1655 = vmatpush.msra.mxu0 %v437
  %1656 = vmatpush.msra.mxu0 %v435
  %1657 = vmatpush.msra.mxu0 %v433
  %1658 = vmatpush.msra.mxu0 %v431
  %1659 = vmatpush.msra.mxu0 %v429
  %1660 = vmatpush.msra.mxu0 %v427
  %1661 = vmatpush.msra.mxu0 %v425
  %1662 = vmatpush.msra.mxu0 %v423
  %1663 = vmatpush.msra.mxu0 %v421
  %1664 = vmatpush.msra.mxu0 %v419
  %1665 = vmatpush.msra.mxu0 %v417
  %1666 = vmatpush.msra.mxu0 %v415
  %1667 = vmatpush.msra.mxu0 %v413
  %1668 = vmatmul.f32.gmra.mxu0 %v27
  %v1669 = vpop.f32.mrf.mxu0
  %v1670 = vadd.f32 %v1632, %v1669
  %1671 = vmatmul.f32.gmra.mxu0 %v39
  %v1672 = vpop.f32.mrf.mxu0
  %v1673 = vadd.f32 %v1635, %v1672
  %1674 = vmatmul.f32.gmra.mxu0 %v51
  %v1675 = vpop.f32.mrf.mxu0
  %v1676 = vadd.f32 %v1638, %v1675
  %1677 = vmatmul.f32.gmra.mxu0 %v63
  %v1678 = vpop.f32.mrf.mxu0
  %v1679 = vadd.f32 %v1641, %v1678
  %1680 = vmatmul.f32.gmra.mxu0 %v75
  %v1681 = vpop.f32.mrf.mxu0
  %v1682 = vadd.f32 %v1644, %v1681
  %1683 = vmatmul.f32.gmra.mxu0 %v87
  %v1684 = vpop.f32.mrf.mxu0
  %v1685 = vadd.f32 %v1647, %v1684
  %1686 = vmatmul.f32.gmra.mxu0 %v99
  %v1687 = vpop.f32.mrf.mxu0
  %v1688 = vadd.f32 %v1650, %v1687
  %1689 = vdwg.mxu0
  %1690 = vmatpush.msra.mxu0 %v475
  %1691 = vmatpush.msra.mxu0 %v473
  %1692 = vmatpush.msra.mxu0 %v471
  %1693 = vmatpush.msra.mxu0 %v469
  %1694 = vmatpush.msra.mxu0 %v467
  %1695 = vmatpush.msra.mxu0 %v465
  %1696 = vmatpush.msra.mxu0 %v463
  %1697 = vmatpush.msra.mxu0 %v461
  %1698 = vmatpush.msra.mxu0 %v459
  %1699 = vmatpush.msra.mxu0 %v457
  %1700 = vmatpush.msra.mxu0 %v455
  %1701 = vmatpush.msra.mxu0 %v453
  %1702 = vmatpush.msra.mxu0 %v451
  %1703 = vmatpush.msra.mxu0 %v449
  %1704 = vmatpush.msra.mxu0 %v447
  %1705 = vmatpush.msra.mxu0 %v445
  %1706 = vmatmul.f32.gmra.mxu0 %v28
  %v1707 = vpop.f32.mrf.mxu0
  %v1708 = vadd.f32 %v1670, %v1707
  %1709 = vmatmul.f32.gmra.mxu0 %v40
  %v1710 = vpop.f32.mrf.mxu0
  %v1711 = vadd.f32 %v1673, %v1710
  %1712 = vmatmul.f32.gmra.mxu0 %v52
  %v1713 = vpop.f32.mrf.mxu0
  %v1714 = vadd.f32 %v1676, %v1713
  %1715 = vmatmul.f32.gmra.mxu0 %v64
  %v1716 = vpop.f32.mrf.mxu0
  %v1717 = vadd.f32 %v1679, %v1716
  %1718 = vmatmul.f32.gmra.mxu0 %v76
  %v1719 = vpop.f32.mrf.mxu0
  %v1720 = vadd.f32 %v1682, %v1719
  %1721 = vmatmul.f32.gmra.mxu0 %v88
  %v1722 = vpop.f32.mrf.mxu0
  %v1723 = vadd.f32 %v1685, %v1722
  %1724 = vmatmul.f32.gmra.mxu0 %v100
  %v1725 = vpop.f32.mrf.mxu0
  %v1726 = vadd.f32 %v1688, %v1725
  %1727 = vdwg.mxu0
  %1728 = vmatpush.msra.mxu0 %v507
  %1729 = vmatpush.msra.mxu0 %v505
  %1730 = vmatpush.msra.mxu0 %v503
  %1731 = vmatpush.msra.mxu0 %v501
  %1732 = vmatpush.msra.mxu0 %v499
  %1733 = vmatpush.msra.mxu0 %v497
  %1734 = vmatpush.msra.mxu0 %v495
  %1735 = vmatpush.msra.mxu0 %v493
  %1736 = vmatpush.msra.mxu0 %v491
  %1737 = vmatpush.msra.mxu0 %v489
  %1738 = vmatpush.msra.mxu0 %v487
  %1739 = vmatpush.msra.mxu0 %v485
  %1740 = vmatpush.msra.mxu0 %v483
  %1741 = vmatpush.msra.mxu0 %v481
  %1742 = vmatpush.msra.mxu0 %v479
  %1743 = vmatpush.msra.mxu0 %v477
  %1744 = vmatmul.f32.gmra.mxu0 %v29
  %v1745 = vpop.f32.mrf.mxu0
  %v1746 = vadd.f32 %v1708, %v1745
  %1747 = vmatmul.f32.gmra.mxu0 %v41
  %v1748 = vpop.f32.mrf.mxu0
  %v1749 = vadd.f32 %v1711, %v1748
  %1750 = vmatmul.f32.gmra.mxu0 %v53
  %v1751 = vpop.f32.mrf.mxu0
  %v1752 = vadd.f32 %v1714, %v1751
  %1753 = vmatmul.f32.gmra.mxu0 %v65
  %v1754 = vpop.f32.mrf.mxu0
  %v1755 = vadd.f32 %v1717, %v1754
  %1756 = vmatmul.f32.gmra.mxu0 %v77
  %v1757 = vpop.f32.mrf.mxu0
  %v1758 = vadd.f32 %v1720, %v1757
  %1759 = vmatmul.f32.gmra.mxu0 %v89
  %v1760 = vpop.f32.mrf.mxu0
  %v1761 = vadd.f32 %v1723, %v1760
  %1762 = vmatmul.f32.gmra.mxu0 %v101
  %v1763 = vpop.f32.mrf.mxu0
  %v1764 = vadd.f32 %v1726, %v1763
  %1765 = vdwg.mxu0
  %1766 = vmatpush.msra.mxu0 %v539
  %1767 = vmatpush.msra.mxu0 %v537
  %1768 = vmatpush.msra.mxu0 %v535
  %1769 = vmatpush.msra.mxu0 %v533
  %1770 = vmatpush.msra.mxu0 %v531
  %1771 = vmatpush.msra.mxu0 %v529
  %1772 = vmatpush.msra.mxu0 %v527
  %1773 = vmatpush.msra.mxu0 %v525
  %1774 = vmatpush.msra.mxu0 %v523
  %1775 = vmatpush.msra.mxu0 %v521
  %1776 = vmatpush.msra.mxu0 %v519
  %1777 = vmatpush.msra.mxu0 %v517
  %1778 = vmatpush.msra.mxu0 %v515
  %1779 = vmatpush.msra.mxu0 %v513
  %1780 = vmatpush.msra.mxu0 %v511
  %1781 = vmatpush.msra.mxu0 %v509
  %1782 = vmatmul.f32.gmra.mxu0 %v30
  %v1783 = vpop.f32.mrf.mxu0
  %v1784 = vadd.f32 %v1746, %v1783
  %1785 = vmatmul.f32.gmra.mxu0 %v42
  %v1786 = vpop.f32.mrf.mxu0
  %v1787 = vadd.f32 %v1749, %v1786
  %1788 = vmatmul.f32.gmra.mxu0 %v54
  %v1789 = vpop.f32.mrf.mxu0
  %v1790 = vadd.f32 %v1752, %v1789
  %1791 = vmatmul.f32.gmra.mxu0 %v66
  %v1792 = vpop.f32.mrf.mxu0
  %v1793 = vadd.f32 %v1755, %v1792
  %1794 = vmatmul.f32.gmra.mxu0 %v78
  %v1795 = vpop.f32.mrf.mxu0
  %v1796 = vadd.f32 %v1758, %v1795
  %1797 = vmatmul.f32.gmra.mxu0 %v90
  %v1798 = vpop.f32.mrf.mxu0
  %v1799 = vadd.f32 %v1761, %v1798
  %1800 = vmatmul.f32.gmra.mxu0 %v102
  %v1801 = vpop.f32.mrf.mxu0
  %v1802 = vadd.f32 %v1764, %v1801
  %1803 = vdwg.mxu0
  %1804 = vmatpush.msra.mxu0 0.0
  %1805 = vmatpush.msra.mxu0 0.0
  %1806 = vmatpush.msra.mxu0 0.0
  %1807 = vmatpush.msra.mxu0 0.0
  %1808 = vmatpush.msra.mxu0 0.0
  %1809 = vmatpush.msra.mxu0 0.0
  %1810 = vmatpush.msra.mxu0 0.0
  %1811 = vmatpush.msra.mxu0 0.0
  %1812 = vmatpush.msra.mxu0 0.0
  %1813 = vmatpush.msra.mxu0 0.0
  %1814 = vmatpush.msra.mxu0 0.0
  %1815 = vmatpush.msra.mxu0 0.0
  %1816 = vmatpush.msra.mxu0 %v547
  %1817 = vmatpush.msra.mxu0 %v545
  %1818 = vmatpush.msra.mxu0 %v543
  %1819 = vmatpush.msra.mxu0 %v541
  %1820 = vmatmul.f32.gmra.mxu0 %v910
  %v1821 = vpop.f32.mrf.mxu0
  %v1822 = vadd.f32 %v1784, %v1821
  %1823 = vmatmul.f32.gmra.mxu0 %v913
  %v1824 = vpop.f32.mrf.mxu0
  %v1825 = vadd.f32 %v1787, %v1824
  %1826 = vmatmul.f32.gmra.mxu0 %v916
  %v1827 = vpop.f32.mrf.mxu0
  %v1828 = vadd.f32 %v1790, %v1827
  %1829 = vmatmul.f32.gmra.mxu0 %v919
  %v1830 = vpop.f32.mrf.mxu0
  %v1831 = vadd.f32 %v1793, %v1830
  %1832 = vmatmul.f32.gmra.mxu0 %v922
  %v1833 = vpop.f32.mrf.mxu0
  %v1834 = vadd.f32 %v1796, %v1833
  %1835 = vmatmul.f32.gmra.mxu0 %v925
  %v1836 = vpop.f32.mrf.mxu0
  %v1837 = vadd.f32 %v1799, %v1836
  %1838 = vmatmul.f32.gmra.mxu0 %v928
  %v1839 = vpop.f32.mrf.mxu0
  %v1840 = vadd.f32 %v1802, %v1839
  %1841 = vdwg.mxu0
  %1842 = vmatpush.msra.mxu0 %v578
  %1843 = vmatpush.msra.mxu0 %v576
  %1844 = vmatpush.msra.mxu0 %v574
  %1845 = vmatpush.msra.mxu0 %v572
  %1846 = vmatpush.msra.mxu0 %v570
  %1847 = vmatpush.msra.mxu0 %v568
  %1848 = vmatpush.msra.mxu0 %v566
  %1849 = vmatpush.msra.mxu0 %v564
  %1850 = vmatpush.msra.mxu0 %v562
  %1851 = vmatpush.msra.mxu0 %v560
  %1852 = vmatpush.msra.mxu0 %v558
  %1853 = vmatpush.msra.mxu0 %v556
  %1854 = vmatpush.msra.mxu0 %v554
  %1855 = vmatpush.msra.mxu0 %v552
  %1856 = vmatpush.msra.mxu0 %v550
  %1857 = vmatpush.msra.mxu0 %v548
  %1858 = vmatmul.f32.gmra.mxu0 %v20
  %v1859 = vpop.f32.mrf.mxu0
  %v1860 = vadd.f32 0.0, %v1859
  %1861 = vmatmul.f32.gmra.mxu0 %v32
  %v1862 = vpop.f32.mrf.mxu0
  %v1863 = vadd.f32 0.0, %v1862
  %1864 = vmatmul.f32.gmra.mxu0 %v44
  %v1865 = vpop.f32.mrf.mxu0
  %v1866 = vadd.f32 0.0, %v1865
  %1867 = vmatmul.f32.gmra.mxu0 %v56
  %v1868 = vpop.f32.mrf.mxu0
  %v1869 = vadd.f32 0.0, %v1868
  %1870 = vmatmul.f32.gmra.mxu0 %v68
  %v1871 = vpop.f32.mrf.mxu0
  %v1872 = vadd.f32 0.0, %v1871
  %1873 = vmatmul.f32.gmra.mxu0 %v80
  %v1874 = vpop.f32.mrf.mxu0
  %v1875 = vadd.f32 0.0, %v1874
  %1876 = vmatmul.f32.gmra.mxu0 %v92
  %v1877 = vpop.f32.mrf.mxu0
  %v1878 = vadd.f32 0.0, %v1877
  %1879 = vdwg.mxu0
  %1880 = vmatpush.msra.mxu0 %v610
  %1881 = vmatpush.msra.mxu0 %v608
  %1882 = vmatpush.msra.mxu0 %v606
  %1883 = vmatpush.msra.mxu0 %v604
  %1884 = vmatpush.msra.mxu0 %v602
  %1885 = vmatpush.msra.mxu0 %v600
  %1886 = vmatpush.msra.mxu0 %v598
  %1887 = vmatpush.msra.mxu0 %v596
  %1888 = vmatpush.msra.mxu0 %v594
  %1889 = vmatpush.msra.mxu0 %v592
  %1890 = vmatpush.msra.mxu0 %v590
  %1891 = vmatpush.msra.mxu0 %v588
  %1892 = vmatpush.msra.mxu0 %v586
  %1893 = vmatpush.msra.mxu0 %v584
  %1894 = vmatpush.msra.mxu0 %v582
  %1895 = vmatpush.msra.mxu0 %v580
  %1896 = vmatmul.f32.gmra.mxu0 %v21
  %v1897 = vpop.f32.mrf.mxu0
  %v1898 = vadd.f32 %v1860, %v1897
  %1899 = vmatmul.f32.gmra.mxu0 %v33
  %v1900 = vpop.f32.mrf.mxu0
  %v1901 = vadd.f32 %v1863, %v1900
  %1902 = vmatmul.f32.gmra.mxu0 %v45
  %v1903 = vpop.f32.mrf.mxu0
  %v1904 = vadd.f32 %v1866, %v1903
  %1905 = vmatmul.f32.gmra.mxu0 %v57
  %v1906 = vpop.f32.mrf.mxu0
  %v1907 = vadd.f32 %v1869, %v1906
  %1908 = vmatmul.f32.gmra.mxu0 %v69
  %v1909 = vpop.f32.mrf.mxu0
  %v1910 = vadd.f32 %v1872, %v1909
  %1911 = vmatmul.f32.gmra.mxu0 %v81
  %v1912 = vpop.f32.mrf.mxu0
  %v1913 = vadd.f32 %v1875, %v1912
  %1914 = vmatmul.f32.gmra.mxu0 %v93
  %v1915 = vpop.f32.mrf.mxu0
  %v1916 = vadd.f32 %v1878, %v1915
  %1917 = vdwg.mxu0
  %1918 = vmatpush.msra.mxu0 %v642
  %1919 = vmatpush.msra.mxu0 %v640
  %1920 = vmatpush.msra.mxu0 %v638
  %1921 = vmatpush.msra.mxu0 %v636
  %1922 = vmatpush.msra.mxu0 %v634
  %1923 = vmatpush.msra.mxu0 %v632
  %1924 = vmatpush.msra.mxu0 %v630
  %1925 = vmatpush.msra.mxu0 %v628
  %1926 = vmatpush.msra.mxu0 %v626
  %1927 = vmatpush.msra.mxu0 %v624
  %1928 = vmatpush.msra.mxu0 %v622
  %1929 = vmatpush.msra.mxu0 %v620
  %1930 = vmatpush.msra.mxu0 %v618
  %1931 = vmatpush.msra.mxu0 %v616
  %1932 = vmatpush.msra.mxu0 %v614
  %1933 = vmatpush.msra.mxu0 %v612
  %1934 = vmatmul.f32.gmra.mxu0 %v22
  %v1935 = vpop.f32.mrf.mxu0
  %v1936 = vadd.f32 %v1898, %v1935
  %1937 = vmatmul.f32.gmra.mxu0 %v34
  %v1938 = vpop.f32.mrf.mxu0
  %v1939 = vadd.f32 %v1901, %v1938
  %1940 = vmatmul.f32.gmra.mxu0 %v46
  %v1941 = vpop.f32.mrf.mxu0
  %v1942 = vadd.f32 %v1904, %v1941
  %1943 = vmatmul.f32.gmra.mxu0 %v58
  %v1944 = vpop.f32.mrf.mxu0
  %v1945 = vadd.f32 %v1907, %v1944
  %1946 = vmatmul.f32.gmra.mxu0 %v70
  %v1947 = vpop.f32.mrf.mxu0
  %v1948 = vadd.f32 %v1910, %v1947
  %1949 = vmatmul.f32.gmra.mxu0 %v82
  %v1950 = vpop.f32.mrf.mxu0
  %v1951 = vadd.f32 %v1913, %v1950
  %1952 = vmatmul.f32.gmra.mxu0 %v94
  %v1953 = vpop.f32.mrf.mxu0
  %v1954 = vadd.f32 %v1916, %v1953
  %1955 = vdwg.mxu0
  %1956 = vmatpush.msra.mxu0 %v674
  %1957 = vmatpush.msra.mxu0 %v672
  %1958 = vmatpush.msra.mxu0 %v670
  %1959 = vmatpush.msra.mxu0 %v668
  %1960 = vmatpush.msra.mxu0 %v666
  %1961 = vmatpush.msra.mxu0 %v664
  %1962 = vmatpush.msra.mxu0 %v662
  %1963 = vmatpush.msra.mxu0 %v660
  %1964 = vmatpush.msra.mxu0 %v658
  %1965 = vmatpush.msra.mxu0 %v656
  %1966 = vmatpush.msra.mxu0 %v654
  %1967 = vmatpush.msra.mxu0 %v652
  %1968 = vmatpush.msra.mxu0 %v650
  %1969 = vmatpush.msra.mxu0 %v648
  %1970 = vmatpush.msra.mxu0 %v646
  %1971 = vmatpush.msra.mxu0 %v644
  %1972 = vmatmul.f32.gmra.mxu0 %v23
  %v1973 = vpop.f32.mrf.mxu0
  %v1974 = vadd.f32 %v1936, %v1973
  %1975 = vmatmul.f32.gmra.mxu0 %v35
  %v1976 = vpop.f32.mrf.mxu0
  %v1977 = vadd.f32 %v1939, %v1976
  %1978 = vmatmul.f32.gmra.mxu0 %v47
  %v1979 = vpop.f32.mrf.mxu0
  %v1980 = vadd.f32 %v1942, %v1979
  %1981 = vmatmul.f32.gmra.mxu0 %v59
  %v1982 = vpop.f32.mrf.mxu0
  %v1983 = vadd.f32 %v1945, %v1982
  %1984 = vmatmul.f32.gmra.mxu0 %v71
  %v1985 = vpop.f32.mrf.mxu0
  %v1986 = vadd.f32 %v1948, %v1985
  %1987 = vmatmul.f32.gmra.mxu0 %v83
  %v1988 = vpop.f32.mrf.mxu0
  %v1989 = vadd.f32 %v1951, %v1988
  %1990 = vmatmul.f32.gmra.mxu0 %v95
  %v1991 = vpop.f32.mrf.mxu0
  %v1992 = vadd.f32 %v1954, %v1991
  %1993 = vdwg.mxu0
  %1994 = vmatpush.msra.mxu0 %v706
  %1995 = vmatpush.msra.mxu0 %v704
  %1996 = vmatpush.msra.mxu0 %v702
  %1997 = vmatpush.msra.mxu0 %v700
  %1998 = vmatpush.msra.mxu0 %v698
  %1999 = vmatpush.msra.mxu0 %v696
  %2000 = vmatpush.msra.mxu0 %v694
  %2001 = vmatpush.msra.mxu0 %v692
  %2002 = vmatpush.msra.mxu0 %v690
  %2003 = vmatpush.msra.mxu0 %v688
  %2004 = vmatpush.msra.mxu0 %v686
  %2005 = vmatpush.msra.mxu0 %v684
  %2006 = vmatpush.msra.mxu0 %v682
  %2007 = vmatpush.msra.mxu0 %v680
  %2008 = vmatpush.msra.mxu0 %v678
  %2009 = vmatpush.msra.mxu0 %v676
  %2010 = vmatmul.f32.gmra.mxu0 %v24
  %v2011 = vpop.f32.mrf.mxu0
  %v2012 = vadd.f32 %v1974, %v2011
  %2013 = vmatmul.f32.gmra.mxu0 %v36
  %v2014 = vpop.f32.mrf.mxu0
  %v2015 = vadd.f32 %v1977, %v2014
  %2016 = vmatmul.f32.gmra.mxu0 %v48
  %v2017 = vpop.f32.mrf.mxu0
  %v2018 = vadd.f32 %v1980, %v2017
  %2019 = vmatmul.f32.gmra.mxu0 %v60
  %v2020 = vpop.f32.mrf.mxu0
  %v2021 = vadd.f32 %v1983, %v2020
  %2022 = vmatmul.f32.gmra.mxu0 %v72
  %v2023 = vpop.f32.mrf.mxu0
  %v2024 = vadd.f32 %v1986, %v2023
  %2025 = vmatmul.f32.gmra.mxu0 %v84
  %v2026 = vpop.f32.mrf.mxu0
  %v2027 = vadd.f32 %v1989, %v2026
  %2028 = vmatmul.f32.gmra.mxu0 %v96
  %v2029 = vpop.f32.mrf.mxu0
  %v2030 = vadd.f32 %v1992, %v2029
  %2031 = vdwg.mxu0
  %2032 = vmatpush.msra.mxu0 %v738
  %2033 = vmatpush.msra.mxu0 %v736
  %2034 = vmatpush.msra.mxu0 %v734
  %2035 = vmatpush.msra.mxu0 %v732
  %2036 = vmatpush.msra.mxu0 %v730
  %2037 = vmatpush.msra.mxu0 %v728
  %2038 = vmatpush.msra.mxu0 %v726
  %2039 = vmatpush.msra.mxu0 %v724
  %2040 = vmatpush.msra.mxu0 %v722
  %2041 = vmatpush.msra.mxu0 %v720
  %2042 = vmatpush.msra.mxu0 %v718
  %2043 = vmatpush.msra.mxu0 %v716
  %2044 = vmatpush.msra.mxu0 %v714
  %2045 = vmatpush.msra.mxu0 %v712
  %2046 = vmatpush.msra.mxu0 %v710
  %2047 = vmatpush.msra.mxu0 %v708
  %2048 = vmatmul.f32.gmra.mxu0 %v25
  %v2049 = vpop.f32.mrf.mxu0
  %v2050 = vadd.f32 %v2012, %v2049
  %2051 = vmatmul.f32.gmra.mxu0 %v37
  %v2052 = vpop.f32.mrf.mxu0
  %v2053 = vadd.f32 %v2015, %v2052
  %2054 = vmatmul.f32.gmra.mxu0 %v49
  %v2055 = vpop.f32.mrf.mxu0
  %v2056 = vadd.f32 %v2018, %v2055
  %2057 = vmatmul.f32.gmra.mxu0 %v61
  %v2058 = vpop.f32.mrf.mxu0
  %v2059 = vadd.f32 %v2021, %v2058
  %2060 = vmatmul.f32.gmra.mxu0 %v73
  %v2061 = vpop.f32.mrf.mxu0
  %v2062 = vadd.f32 %v2024, %v2061
  %2063 = vmatmul.f32.gmra.mxu0 %v85
  %v2064 = vpop.f32.mrf.mxu0
  %v2065 = vadd.f32 %v2027, %v2064
  %2066 = vmatmul.f32.gmra.mxu0 %v97
  %v2067 = vpop.f32.mrf.mxu0
  %v2068 = vadd.f32 %v2030, %v2067
  %2069 = vdwg.mxu0
  %2070 = vmatpush.msra.mxu0 %v770
  %2071 = vmatpush.msra.mxu0 %v768
  %2072 = vmatpush.msra.mxu0 %v766
  %2073 = vmatpush.msra.mxu0 %v764
  %2074 = vmatpush.msra.mxu0 %v762
  %2075 = vmatpush.msra.mxu0 %v760
  %2076 = vmatpush.msra.mxu0 %v758
  %2077 = vmatpush.msra.mxu0 %v756
  %2078 = vmatpush.msra.mxu0 %v754
  %2079 = vmatpush.msra.mxu0 %v752
  %2080 = vmatpush.msra.mxu0 %v750
  %2081 = vmatpush.msra.mxu0 %v748
  %2082 = vmatpush.msra.mxu0 %v746
  %2083 = vmatpush.msra.mxu0 %v744
  %2084 = vmatpush.msra.mxu0 %v742
  %2085 = vmatpush.msra.mxu0 %v740
  %2086 = vmatmul.f32.gmra.mxu0 %v26
  %v2087 = vpop.f32.mrf.mxu0
  %v2088 = vadd.f32 %v2050, %v2087
  %2089 = vmatmul.f32.gmra.mxu0 %v38
  %v2090 = vpop.f32.mrf.mxu0
  %v2091 = vadd.f32 %v2053, %v2090
  %2092 = vmatmul.f32.gmra.mxu0 %v50
  %v2093 = vpop.f32.mrf.mxu0
  %v2094 = vadd.f32 %v2056, %v2093
  %2095 = vmatmul.f32.gmra.mxu0 %v62
  %v2096 = vpop.f32.mrf.mxu0
  %v2097 = vadd.f32 %v2059, %v2096
  %2098 = vmatmul.f32.gmra.mxu0 %v74
  %v2099 = vpop.f32.mrf.mxu0
  %v2100 = vadd.f32 %v2062, %v2099
  %2101 = vmatmul.f32.gmra.mxu0 %v86
  %v2102 = vpop.f32.mrf.mxu0
  %v2103 = vadd.f32 %v2065, %v2102
  %2104 = vmatmul.f32.gmra.mxu0 %v98
  %v2105 = vpop.f32.mrf.mxu0
  %v2106 = vadd.f32 %v2068, %v2105
  %2107 = vdwg.mxu0
  %2108 = vmatpush.msra.mxu0 %v802
  %2109 = vmatpush.msra.mxu0 %v800
  %2110 = vmatpush.msra.mxu0 %v798
  %2111 = vmatpush.msra.mxu0 %v796
  %2112 = vmatpush.msra.mxu0 %v794
  %2113 = vmatpush.msra.mxu0 %v792
  %2114 = vmatpush.msra.mxu0 %v790
  %2115 = vmatpush.msra.mxu0 %v788
  %2116 = vmatpush.msra.mxu0 %v786
  %2117 = vmatpush.msra.mxu0 %v784
  %2118 = vmatpush.msra.mxu0 %v782
  %2119 = vmatpush.msra.mxu0 %v780
  %2120 = vmatpush.msra.mxu0 %v778
  %2121 = vmatpush.msra.mxu0 %v776
  %2122 = vmatpush.msra.mxu0 %v774
  %2123 = vmatpush.msra.mxu0 %v772
  %2124 = vmatmul.f32.gmra.mxu0 %v27
  %v2125 = vpop.f32.mrf.mxu0
  %v2126 = vadd.f32 %v2088, %v2125
  %2127 = vmatmul.f32.gmra.mxu0 %v39
  %v2128 = vpop.f32.mrf.mxu0
  %v2129 = vadd.f32 %v2091, %v2128
  %2130 = vmatmul.f32.gmra.mxu0 %v51
  %v2131 = vpop.f32.mrf.mxu0
  %v2132 = vadd.f32 %v2094, %v2131
  %2133 = vmatmul.f32.gmra.mxu0 %v63
  %v2134 = vpop.f32.mrf.mxu0
  %v2135 = vadd.f32 %v2097, %v2134
  %2136 = vmatmul.f32.gmra.mxu0 %v75
  %v2137 = vpop.f32.mrf.mxu0
  %v2138 = vadd.f32 %v2100, %v2137
  %2139 = vmatmul.f32.gmra.mxu0 %v87
  %v2140 = vpop.f32.mrf.mxu0
  %v2141 = vadd.f32 %v2103, %v2140
  %2142 = vmatmul.f32.gmra.mxu0 %v99
  %v2143 = vpop.f32.mrf.mxu0
  %v2144 = vadd.f32 %v2106, %v2143
  %2145 = vdwg.mxu0
  %2146 = vmatpush.msra.mxu0 %v834
  %2147 = vmatpush.msra.mxu0 %v832
  %2148 = vmatpush.msra.mxu0 %v830
  %2149 = vmatpush.msra.mxu0 %v828
  %2150 = vmatpush.msra.mxu0 %v826
  %2151 = vmatpush.msra.mxu0 %v824
  %2152 = vmatpush.msra.mxu0 %v822
  %2153 = vmatpush.msra.mxu0 %v820
  %2154 = vmatpush.msra.mxu0 %v818
  %2155 = vmatpush.msra.mxu0 %v816
  %2156 = vmatpush.msra.mxu0 %v814
  %2157 = vmatpush.msra.mxu0 %v812
  %2158 = vmatpush.msra.mxu0 %v810
  %2159 = vmatpush.msra.mxu0 %v808
  %2160 = vmatpush.msra.mxu0 %v806
  %2161 = vmatpush.msra.mxu0 %v804
  %2162 = vmatmul.f32.gmra.mxu0 %v28
  %v2163 = vpop.f32.mrf.mxu0
  %v2164 = vadd.f32 %v2126, %v2163
  %2165 = vmatmul.f32.gmra.mxu0 %v40
  %v2166 = vpop.f32.mrf.mxu0
  %v2167 = vadd.f32 %v2129, %v2166
  %2168 = vmatmul.f32.gmra.mxu0 %v52
  %v2169 = vpop.f32.mrf.mxu0
  %v2170 = vadd.f32 %v2132, %v2169
  %2171 = vmatmul.f32.gmra.mxu0 %v64
  %v2172 = vpop.f32.mrf.mxu0
  %v2173 = vadd.f32 %v2135, %v2172
  %2174 = vmatmul.f32.gmra.mxu0 %v76
  %v2175 = vpop.f32.mrf.mxu0
  %v2176 = vadd.f32 %v2138, %v2175
  %2177 = vmatmul.f32.gmra.mxu0 %v88
  %v2178 = vpop.f32.mrf.mxu0
  %v2179 = vadd.f32 %v2141, %v2178
  %2180 = vmatmul.f32.gmra.mxu0 %v100
  %v2181 = vpop.f32.mrf.mxu0
  %v2182 = vadd.f32 %v2144, %v2181
  %2183 = vdwg.mxu0
  %2184 = vmatpush.msra.mxu0 %v866
  %2185 = vmatpush.msra.mxu0 %v864
  %2186 = vmatpush.msra.mxu0 %v862
  %2187 = vmatpush.msra.mxu0 %v860
  %2188 = vmatpush.msra.mxu0 %v858
  %2189 = vmatpush.msra.mxu0 %v856
  %2190 = vmatpush.msra.mxu0 %v854
  %2191 = vmatpush.msra.mxu0 %v852
  %2192 = vmatpush.msra.mxu0 %v850
  %2193 = vmatpush.msra.mxu0 %v848
  %2194 = vmatpush.msra.mxu0 %v846
  %2195 = vmatpush.msra.mxu0 %v844
  %2196 = vmatpush.msra.mxu0 %v842
  %2197 = vmatpush.msra.mxu0 %v840
  %2198 = vmatpush.msra.mxu0 %v838
  %2199 = vmatpush.msra.mxu0 %v836
  %2200 = vmatmul.f32.gmra.mxu0 %v29
  %v2201 = vpop.f32.mrf.mxu0
  %v2202 = vadd.f32 %v2164, %v2201
  %2203 = vmatmul.f32.gmra.mxu0 %v41
  %v2204 = vpop.f32.mrf.mxu0
  %v2205 = vadd.f32 %v2167, %v2204
  %2206 = vmatmul.f32.gmra.mxu0 %v53
  %v2207 = vpop.f32.mrf.mxu0
  %v2208 = vadd.f32 %v2170, %v2207
  %2209 = vmatmul.f32.gmra.mxu0 %v65
  %v2210 = vpop.f32.mrf.mxu0
  %v2211 = vadd.f32 %v2173, %v2210
  %2212 = vmatmul.f32.gmra.mxu0 %v77
  %v2213 = vpop.f32.mrf.mxu0
  %v2214 = vadd.f32 %v2176, %v2213
  %2215 = vmatmul.f32.gmra.mxu0 %v89
  %v2216 = vpop.f32.mrf.mxu0
  %v2217 = vadd.f32 %v2179, %v2216
  %2218 = vmatmul.f32.gmra.mxu0 %v101
  %v2219 = vpop.f32.mrf.mxu0
  %v2220 = vadd.f32 %v2182, %v2219
  %2221 = vdwg.mxu0
  %2222 = vmatpush.msra.mxu0 %v898
  %2223 = vmatpush.msra.mxu0 %v896
  %2224 = vmatpush.msra.mxu0 %v894
  %2225 = vmatpush.msra.mxu0 %v892
  %2226 = vmatpush.msra.mxu0 %v890
  %2227 = vmatpush.msra.mxu0 %v888
  %2228 = vmatpush.msra.mxu0 %v886
  %2229 = vmatpush.msra.mxu0 %v884
  %2230 = vmatpush.msra.mxu0 %v882
  %2231 = vmatpush.msra.mxu0 %v880
  %2232 = vmatpush.msra.mxu0 %v878
  %2233 = vmatpush.msra.mxu0 %v876
  %2234 = vmatpush.msra.mxu0 %v874
  %2235 = vmatpush.msra.mxu0 %v872
  %2236 = vmatpush.msra.mxu0 %v870
  %2237 = vmatpush.msra.mxu0 %v868
  %2238 = vmatmul.f32.gmra.mxu0 %v30
  %v2239 = vpop.f32.mrf.mxu0
  %v2240 = vadd.f32 %v2202, %v2239
  %2241 = vmatmul.f32.gmra.mxu0 %v42
  %v2242 = vpop.f32.mrf.mxu0
  %v2243 = vadd.f32 %v2205, %v2242
  %2244 = vmatmul.f32.gmra.mxu0 %v54
  %v2245 = vpop.f32.mrf.mxu0
  %v2246 = vadd.f32 %v2208, %v2245
  %2247 = vmatmul.f32.gmra.mxu0 %v66
  %v2248 = vpop.f32.mrf.mxu0
  %v2249 = vadd.f32 %v2211, %v2248
  %2250 = vmatmul.f32.gmra.mxu0 %v78
  %v2251 = vpop.f32.mrf.mxu0
  %v2252 = vadd.f32 %v2214, %v2251
  %2253 = vmatmul.f32.gmra.mxu0 %v90
  %v2254 = vpop.f32.mrf.mxu0
  %v2255 = vadd.f32 %v2217, %v2254
  %2256 = vmatmul.f32.gmra.mxu0 %v102
  %v2257 = vpop.f32.mrf.mxu0
  %v2258 = vadd.f32 %v2220, %v2257
  %2259 = vdwg.mxu0
  %2260 = vmatpush.msra.mxu0 0.0
  %2261 = vmatpush.msra.mxu0 0.0
  %2262 = vmatpush.msra.mxu0 0.0
  %2263 = vmatpush.msra.mxu0 0.0
  %2264 = vmatpush.msra.mxu0 0.0
  %2265 = vmatpush.msra.mxu0 0.0
  %2266 = vmatpush.msra.mxu0 0.0
  %2267 = vmatpush.msra.mxu0 0.0
  %2268 = vmatpush.msra.mxu0 0.0
  %2269 = vmatpush.msra.mxu0 0.0
  %2270 = vmatpush.msra.mxu0 0.0
  %2271 = vmatpush.msra.mxu0 0.0
  %2272 = vmatpush.msra.mxu0 %v906
  %2273 = vmatpush.msra.mxu0 %v904
  %2274 = vmatpush.msra.mxu0 %v902
  %2275 = vmatpush.msra.mxu0 %v900
  %2276 = vmatmul.f32.gmra.mxu0 %v910
  %v2277 = vpop.f32.mrf.mxu0
  %v2278 = vadd.f32 %v2240, %v2277
  %2279 = vmatmul.f32.gmra.mxu0 %v913
  %v2280 = vpop.f32.mrf.mxu0
  %v2281 = vadd.f32 %v2243, %v2280
  %2282 = vmatmul.f32.gmra.mxu0 %v916
  %v2283 = vpop.f32.mrf.mxu0
  %v2284 = vadd.f32 %v2246, %v2283
  %2285 = vmatmul.f32.gmra.mxu0 %v919
  %v2286 = vpop.f32.mrf.mxu0
  %v2287 = vadd.f32 %v2249, %v2286
  %2288 = vmatmul.f32.gmra.mxu0 %v922
  %v2289 = vpop.f32.mrf.mxu0
  %v2290 = vadd.f32 %v2252, %v2289
  %2291 = vmatmul.f32.gmra.mxu0 %v925
  %v2292 = vpop.f32.mrf.mxu0
  %v2293 = vadd.f32 %v2255, %v2292
  %2294 = vmatmul.f32.gmra.mxu0 %v928
  %v2295 = vpop.f32.mrf.mxu0
  %v2296 = vadd.f32 %v2258, %v2295
  %2297 = vdwg.mxu0
  %2298 = vmatpush.msra.mxu0 %v579
  %2299 = vmatpush.msra.mxu0 %v577
  %2300 = vmatpush.msra.mxu0 %v575
  %2301 = vmatpush.msra.mxu0 %v573
  %2302 = vmatpush.msra.mxu0 %v571
  %2303 = vmatpush.msra.mxu0 %v569
  %2304 = vmatpush.msra.mxu0 %v567
  %2305 = vmatpush.msra.mxu0 %v565
  %2306 = vmatpush.msra.mxu0 %v563
  %2307 = vmatpush.msra.mxu0 %v561
  %2308 = vmatpush.msra.mxu0 %v559
  %2309 = vmatpush.msra.mxu0 %v557
  %2310 = vmatpush.msra.mxu0 %v555
  %2311 = vmatpush.msra.mxu0 %v553
  %2312 = vmatpush.msra.mxu0 %v551
  %2313 = vmatpush.msra.mxu0 %v549
  %2314 = vmatmul.f32.gmra.mxu0 %v20
  %v2315 = vpop.f32.mrf.mxu0
  %v2316 = vadd.f32 0.0, %v2315
  %2317 = vmatmul.f32.gmra.mxu0 %v32
  %v2318 = vpop.f32.mrf.mxu0
  %v2319 = vadd.f32 0.0, %v2318
  %2320 = vmatmul.f32.gmra.mxu0 %v44
  %v2321 = vpop.f32.mrf.mxu0
  %v2322 = vadd.f32 0.0, %v2321
  %2323 = vmatmul.f32.gmra.mxu0 %v56
  %v2324 = vpop.f32.mrf.mxu0
  %v2325 = vadd.f32 0.0, %v2324
  %2326 = vmatmul.f32.gmra.mxu0 %v68
  %v2327 = vpop.f32.mrf.mxu0
  %v2328 = vadd.f32 0.0, %v2327
  %2329 = vmatmul.f32.gmra.mxu0 %v80
  %v2330 = vpop.f32.mrf.mxu0
  %v2331 = vadd.f32 0.0, %v2330
  %2332 = vmatmul.f32.gmra.mxu0 %v92
  %v2333 = vpop.f32.mrf.mxu0
  %v2334 = vadd.f32 0.0, %v2333
  %2335 = vdwg.mxu0
  %2336 = vmatpush.msra.mxu0 %v611
  %2337 = vmatpush.msra.mxu0 %v609
  %2338 = vmatpush.msra.mxu0 %v607
  %2339 = vmatpush.msra.mxu0 %v605
  %2340 = vmatpush.msra.mxu0 %v603
  %2341 = vmatpush.msra.mxu0 %v601
  %2342 = vmatpush.msra.mxu0 %v599
  %2343 = vmatpush.msra.mxu0 %v597
  %2344 = vmatpush.msra.mxu0 %v595
  %2345 = vmatpush.msra.mxu0 %v593
  %2346 = vmatpush.msra.mxu0 %v591
  %2347 = vmatpush.msra.mxu0 %v589
  %2348 = vmatpush.msra.mxu0 %v587
  %2349 = vmatpush.msra.mxu0 %v585
  %2350 = vmatpush.msra.mxu0 %v583
  %2351 = vmatpush.msra.mxu0 %v581
  %2352 = vmatmul.f32.gmra.mxu0 %v21
  %v2353 = vpop.f32.mrf.mxu0
  %v2354 = vadd.f32 %v2316, %v2353
  %2355 = vmatmul.f32.gmra.mxu0 %v33
  %v2356 = vpop.f32.mrf.mxu0
  %v2357 = vadd.f32 %v2319, %v2356
  %2358 = vmatmul.f32.gmra.mxu0 %v45
  %v2359 = vpop.f32.mrf.mxu0
  %v2360 = vadd.f32 %v2322, %v2359
  %2361 = vmatmul.f32.gmra.mxu0 %v57
  %v2362 = vpop.f32.mrf.mxu0
  %v2363 = vadd.f32 %v2325, %v2362
  %2364 = vmatmul.f32.gmra.mxu0 %v69
  %v2365 = vpop.f32.mrf.mxu0
  %v2366 = vadd.f32 %v2328, %v2365
  %2367 = vmatmul.f32.gmra.mxu0 %v81
  %v2368 = vpop.f32.mrf.mxu0
  %v2369 = vadd.f32 %v2331, %v2368
  %2370 = vmatmul.f32.gmra.mxu0 %v93
  %v2371 = vpop.f32.mrf.mxu0
  %v2372 = vadd.f32 %v2334, %v2371
  %2373 = vdwg.mxu0
  %2374 = vmatpush.msra.mxu0 %v643
  %2375 = vmatpush.msra.mxu0 %v641
  %2376 = vmatpush.msra.mxu0 %v639
  %2377 = vmatpush.msra.mxu0 %v637
  %2378 = vmatpush.msra.mxu0 %v635
  %2379 = vmatpush.msra.mxu0 %v633
  %2380 = vmatpush.msra.mxu0 %v631
  %2381 = vmatpush.msra.mxu0 %v629
  %2382 = vmatpush.msra.mxu0 %v627
  %2383 = vmatpush.msra.mxu0 %v625
  %2384 = vmatpush.msra.mxu0 %v623
  %2385 = vmatpush.msra.mxu0 %v621
  %2386 = vmatpush.msra.mxu0 %v619
  %2387 = vmatpush.msra.mxu0 %v617
  %2388 = vmatpush.msra.mxu0 %v615
  %2389 = vmatpush.msra.mxu0 %v613
  %2390 = vmatmul.f32.gmra.mxu0 %v22
  %v2391 = vpop.f32.mrf.mxu0
  %v2392 = vadd.f32 %v2354, %v2391
  %2393 = vmatmul.f32.gmra.mxu0 %v34
  %v2394 = vpop.f32.mrf.mxu0
  %v2395 = vadd.f32 %v2357, %v2394
  %2396 = vmatmul.f32.gmra.mxu0 %v46
  %v2397 = vpop.f32.mrf.mxu0
  %v2398 = vadd.f32 %v2360, %v2397
  %2399 = vmatmul.f32.gmra.mxu0 %v58
  %v2400 = vpop.f32.mrf.mxu0
  %v2401 = vadd.f32 %v2363, %v2400
  %2402 = vmatmul.f32.gmra.mxu0 %v70
  %v2403 = vpop.f32.mrf.mxu0
  %v2404 = vadd.f32 %v2366, %v2403
  %2405 = vmatmul.f32.gmra.mxu0 %v82
  %v2406 = vpop.f32.mrf.mxu0
  %v2407 = vadd.f32 %v2369, %v2406
  %2408 = vmatmul.f32.gmra.mxu0 %v94
  %v2409 = vpop.f32.mrf.mxu0
  %v2410 = vadd.f32 %v2372, %v2409
  %2411 = vdwg.mxu0
  %2412 = vmatpush.msra.mxu0 %v675
  %2413 = vmatpush.msra.mxu0 %v673
  %2414 = vmatpush.msra.mxu0 %v671
  %2415 = vmatpush.msra.mxu0 %v669
  %2416 = vmatpush.msra.mxu0 %v667
  %2417 = vmatpush.msra.mxu0 %v665
  %2418 = vmatpush.msra.mxu0 %v663
  %2419 = vmatpush.msra.mxu0 %v661
  %2420 = vmatpush.msra.mxu0 %v659
  %2421 = vmatpush.msra.mxu0 %v657
  %2422 = vmatpush.msra.mxu0 %v655
  %2423 = vmatpush.msra.mxu0 %v653
  %2424 = vmatpush.msra.mxu0 %v651
  %2425 = vmatpush.msra.mxu0 %v649
  %2426 = vmatpush.msra.mxu0 %v647
  %2427 = vmatpush.msra.mxu0 %v645
  %2428 = vmatmul.f32.gmra.mxu0 %v23
  %v2429 = vpop.f32.mrf.mxu0
  %v2430 = vadd.f32 %v2392, %v2429
  %2431 = vmatmul.f32.gmra.mxu0 %v35
  %v2432 = vpop.f32.mrf.mxu0
  %v2433 = vadd.f32 %v2395, %v2432
  %2434 = vmatmul.f32.gmra.mxu0 %v47
  %v2435 = vpop.f32.mrf.mxu0
  %v2436 = vadd.f32 %v2398, %v2435
  %2437 = vmatmul.f32.gmra.mxu0 %v59
  %v2438 = vpop.f32.mrf.mxu0
  %v2439 = vadd.f32 %v2401, %v2438
  %2440 = vmatmul.f32.gmra.mxu0 %v71
  %v2441 = vpop.f32.mrf.mxu0
  %v2442 = vadd.f32 %v2404, %v2441
  %2443 = vmatmul.f32.gmra.mxu0 %v83
  %v2444 = vpop.f32.mrf.mxu0
  %v2445 = vadd.f32 %v2407, %v2444
  %2446 = vmatmul.f32.gmra.mxu0 %v95
  %v2447 = vpop.f32.mrf.mxu0
  %v2448 = vadd.f32 %v2410, %v2447
  %2449 = vdwg.mxu0
  %2450 = vmatpush.msra.mxu0 %v707
  %2451 = vmatpush.msra.mxu0 %v705
  %2452 = vmatpush.msra.mxu0 %v703
  %2453 = vmatpush.msra.mxu0 %v701
  %2454 = vmatpush.msra.mxu0 %v699
  %2455 = vmatpush.msra.mxu0 %v697
  %2456 = vmatpush.msra.mxu0 %v695
  %2457 = vmatpush.msra.mxu0 %v693
  %2458 = vmatpush.msra.mxu0 %v691
  %2459 = vmatpush.msra.mxu0 %v689
  %2460 = vmatpush.msra.mxu0 %v687
  %2461 = vmatpush.msra.mxu0 %v685
  %2462 = vmatpush.msra.mxu0 %v683
  %2463 = vmatpush.msra.mxu0 %v681
  %2464 = vmatpush.msra.mxu0 %v679
  %2465 = vmatpush.msra.mxu0 %v677
  %2466 = vmatmul.f32.gmra.mxu0 %v24
  %v2467 = vpop.f32.mrf.mxu0
  %v2468 = vadd.f32 %v2430, %v2467
  %2469 = vmatmul.f32.gmra.mxu0 %v36
  %v2470 = vpop.f32.mrf.mxu0
  %v2471 = vadd.f32 %v2433, %v2470
  %2472 = vmatmul.f32.gmra.mxu0 %v48
  %v2473 = vpop.f32.mrf.mxu0
  %v2474 = vadd.f32 %v2436, %v2473
  %2475 = vmatmul.f32.gmra.mxu0 %v60
  %v2476 = vpop.f32.mrf.mxu0
  %v2477 = vadd.f32 %v2439, %v2476
  %2478 = vmatmul.f32.gmra.mxu0 %v72
  %v2479 = vpop.f32.mrf.mxu0
  %v2480 = vadd.f32 %v2442, %v2479
  %2481 = vmatmul.f32.gmra.mxu0 %v84
  %v2482 = vpop.f32.mrf.mxu0
  %v2483 = vadd.f32 %v2445, %v2482
  %2484 = vmatmul.f32.gmra.mxu0 %v96
  %v2485 = vpop.f32.mrf.mxu0
  %v2486 = vadd.f32 %v2448, %v2485
  %2487 = vdwg.mxu0
  %2488 = vmatpush.msra.mxu0 %v739
  %2489 = vmatpush.msra.mxu0 %v737
  %2490 = vmatpush.msra.mxu0 %v735
  %2491 = vmatpush.msra.mxu0 %v733
  %2492 = vmatpush.msra.mxu0 %v731
  %2493 = vmatpush.msra.mxu0 %v729
  %2494 = vmatpush.msra.mxu0 %v727
  %2495 = vmatpush.msra.mxu0 %v725
  %2496 = vmatpush.msra.mxu0 %v723
  %2497 = vmatpush.msra.mxu0 %v721
  %2498 = vmatpush.msra.mxu0 %v719
  %2499 = vmatpush.msra.mxu0 %v717
  %2500 = vmatpush.msra.mxu0 %v715
  %2501 = vmatpush.msra.mxu0 %v713
  %2502 = vmatpush.msra.mxu0 %v711
  %2503 = vmatpush.msra.mxu0 %v709
  %2504 = vmatmul.f32.gmra.mxu0 %v25
  %v2505 = vpop.f32.mrf.mxu0
  %v2506 = vadd.f32 %v2468, %v2505
  %2507 = vmatmul.f32.gmra.mxu0 %v37
  %v2508 = vpop.f32.mrf.mxu0
  %v2509 = vadd.f32 %v2471, %v2508
  %2510 = vmatmul.f32.gmra.mxu0 %v49
  %v2511 = vpop.f32.mrf.mxu0
  %v2512 = vadd.f32 %v2474, %v2511
  %2513 = vmatmul.f32.gmra.mxu0 %v61
  %v2514 = vpop.f32.mrf.mxu0
  %v2515 = vadd.f32 %v2477, %v2514
  %2516 = vmatmul.f32.gmra.mxu0 %v73
  %v2517 = vpop.f32.mrf.mxu0
  %v2518 = vadd.f32 %v2480, %v2517
  %2519 = vmatmul.f32.gmra.mxu0 %v85
  %v2520 = vpop.f32.mrf.mxu0
  %v2521 = vadd.f32 %v2483, %v2520
  %2522 = vmatmul.f32.gmra.mxu0 %v97
  %v2523 = vpop.f32.mrf.mxu0
  %v2524 = vadd.f32 %v2486, %v2523
  %2525 = vdwg.mxu0
  %2526 = vmatpush.msra.mxu0 %v771
  %2527 = vmatpush.msra.mxu0 %v769
  %2528 = vmatpush.msra.mxu0 %v767
  %2529 = vmatpush.msra.mxu0 %v765
  %2530 = vmatpush.msra.mxu0 %v763
  %2531 = vmatpush.msra.mxu0 %v761
  %2532 = vmatpush.msra.mxu0 %v759
  %2533 = vmatpush.msra.mxu0 %v757
  %2534 = vmatpush.msra.mxu0 %v755
  %2535 = vmatpush.msra.mxu0 %v753
  %2536 = vmatpush.msra.mxu0 %v751
  %2537 = vmatpush.msra.mxu0 %v749
  %2538 = vmatpush.msra.mxu0 %v747
  %2539 = vmatpush.msra.mxu0 %v745
  %2540 = vmatpush.msra.mxu0 %v743
  %2541 = vmatpush.msra.mxu0 %v741
  %2542 = vmatmul.f32.gmra.mxu0 %v26
  %v2543 = vpop.f32.mrf.mxu0
  %v2544 = vadd.f32 %v2506, %v2543
  %2545 = vmatmul.f32.gmra.mxu0 %v38
  %v2546 = vpop.f32.mrf.mxu0
  %v2547 = vadd.f32 %v2509, %v2546
  %2548 = vmatmul.f32.gmra.mxu0 %v50
  %v2549 = vpop.f32.mrf.mxu0
  %v2550 = vadd.f32 %v2512, %v2549
  %2551 = vmatmul.f32.gmra.mxu0 %v62
  %v2552 = vpop.f32.mrf.mxu0
  %v2553 = vadd.f32 %v2515, %v2552
  %2554 = vmatmul.f32.gmra.mxu0 %v74
  %v2555 = vpop.f32.mrf.mxu0
  %v2556 = vadd.f32 %v2518, %v2555
  %2557 = vmatmul.f32.gmra.mxu0 %v86
  %v2558 = vpop.f32.mrf.mxu0
  %v2559 = vadd.f32 %v2521, %v2558
  %2560 = vmatmul.f32.gmra.mxu0 %v98
  %v2561 = vpop.f32.mrf.mxu0
  %v2562 = vadd.f32 %v2524, %v2561
  %2563 = vdwg.mxu0
  %2564 = vmatpush.msra.mxu0 %v803
  %2565 = vmatpush.msra.mxu0 %v801
  %2566 = vmatpush.msra.mxu0 %v799
  %2567 = vmatpush.msra.mxu0 %v797
  %2568 = vmatpush.msra.mxu0 %v795
  %2569 = vmatpush.msra.mxu0 %v793
  %2570 = vmatpush.msra.mxu0 %v791
  %2571 = vmatpush.msra.mxu0 %v789
  %2572 = vmatpush.msra.mxu0 %v787
  %2573 = vmatpush.msra.mxu0 %v785
  %2574 = vmatpush.msra.mxu0 %v783
  %2575 = vmatpush.msra.mxu0 %v781
  %2576 = vmatpush.msra.mxu0 %v779
  %2577 = vmatpush.msra.mxu0 %v777
  %2578 = vmatpush.msra.mxu0 %v775
  %2579 = vmatpush.msra.mxu0 %v773
  %2580 = vmatmul.f32.gmra.mxu0 %v27
  %v2581 = vpop.f32.mrf.mxu0
  %v2582 = vadd.f32 %v2544, %v2581
  %2583 = vmatmul.f32.gmra.mxu0 %v39
  %v2584 = vpop.f32.mrf.mxu0
  %v2585 = vadd.f32 %v2547, %v2584
  %2586 = vmatmul.f32.gmra.mxu0 %v51
  %v2587 = vpop.f32.mrf.mxu0
  %v2588 = vadd.f32 %v2550, %v2587
  %2589 = vmatmul.f32.gmra.mxu0 %v63
  %v2590 = vpop.f32.mrf.mxu0
  %v2591 = vadd.f32 %v2553, %v2590
  %2592 = vmatmul.f32.gmra.mxu0 %v75
  %v2593 = vpop.f32.mrf.mxu0
  %v2594 = vadd.f32 %v2556, %v2593
  %2595 = vmatmul.f32.gmra.mxu0 %v87
  %v2596 = vpop.f32.mrf.mxu0
  %v2597 = vadd.f32 %v2559, %v2596
  %2598 = vmatmul.f32.gmra.mxu0 %v99
  %v2599 = vpop.f32.mrf.mxu0
  %v2600 = vadd.f32 %v2562, %v2599
  %2601 = vdwg.mxu0
  %2602 = vmatpush.msra.mxu0 %v835
  %2603 = vmatpush.msra.mxu0 %v833
  %2604 = vmatpush.msra.mxu0 %v831
  %2605 = vmatpush.msra.mxu0 %v829
  %2606 = vmatpush.msra.mxu0 %v827
  %2607 = vmatpush.msra.mxu0 %v825
  %2608 = vmatpush.msra.mxu0 %v823
  %2609 = vmatpush.msra.mxu0 %v821
  %2610 = vmatpush.msra.mxu0 %v819
  %2611 = vmatpush.msra.mxu0 %v817
  %2612 = vmatpush.msra.mxu0 %v815
  %2613 = vmatpush.msra.mxu0 %v813
  %2614 = vmatpush.msra.mxu0 %v811
  %2615 = vmatpush.msra.mxu0 %v809
  %2616 = vmatpush.msra.mxu0 %v807
  %2617 = vmatpush.msra.mxu0 %v805
  %2618 = vmatmul.f32.gmra.mxu0 %v28
  %v2619 = vpop.f32.mrf.mxu0
  %v2620 = vadd.f32 %v2582, %v2619
  %2621 = vmatmul.f32.gmra.mxu0 %v40
  %v2622 = vpop.f32.mrf.mxu0
  %v2623 = vadd.f32 %v2585, %v2622
  %2624 = vmatmul.f32.gmra.mxu0 %v52
  %v2625 = vpop.f32.mrf.mxu0
  %v2626 = vadd.f32 %v2588, %v2625
  %2627 = vmatmul.f32.gmra.mxu0 %v64
  %v2628 = vpop.f32.mrf.mxu0
  %v2629 = vadd.f32 %v2591, %v2628
  %2630 = vmatmul.f32.gmra.mxu0 %v76
  %v2631 = vpop.f32.mrf.mxu0
  %v2632 = vadd.f32 %v2594, %v2631
  %2633 = vmatmul.f32.gmra.mxu0 %v88
  %v2634 = vpop.f32.mrf.mxu0
  %v2635 = vadd.f32 %v2597, %v2634
  %2636 = vmatmul.f32.gmra.mxu0 %v100
  %v2637 = vpop.f32.mrf.mxu0
  %v2638 = vadd.f32 %v2600, %v2637
  %2639 = vdwg.mxu0
  %2640 = vmatpush.msra.mxu0 %v867
  %2641 = vmatpush.msra.mxu0 %v865
  %2642 = vmatpush.msra.mxu0 %v863
  %2643 = vmatpush.msra.mxu0 %v861
  %2644 = vmatpush.msra.mxu0 %v859
  %2645 = vmatpush.msra.mxu0 %v857
  %2646 = vmatpush.msra.mxu0 %v855
  %2647 = vmatpush.msra.mxu0 %v853
  %2648 = vmatpush.msra.mxu0 %v851
  %2649 = vmatpush.msra.mxu0 %v849
  %2650 = vmatpush.msra.mxu0 %v847
  %2651 = vmatpush.msra.mxu0 %v845
  %2652 = vmatpush.msra.mxu0 %v843
  %2653 = vmatpush.msra.mxu0 %v841
  %2654 = vmatpush.msra.mxu0 %v839
  %2655 = vmatpush.msra.mxu0 %v837
  %2656 = vmatmul.f32.gmra.mxu0 %v29
  %v2657 = vpop.f32.mrf.mxu0
  %v2658 = vadd.f32 %v2620, %v2657
  %2659 = vmatmul.f32.gmra.mxu0 %v41
  %v2660 = vpop.f32.mrf.mxu0
  %v2661 = vadd.f32 %v2623, %v2660
  %2662 = vmatmul.f32.gmra.mxu0 %v53
  %v2663 = vpop.f32.mrf.mxu0
  %v2664 = vadd.f32 %v2626, %v2663
  %2665 = vmatmul.f32.gmra.mxu0 %v65
  %v2666 = vpop.f32.mrf.mxu0
  %v2667 = vadd.f32 %v2629, %v2666
  %2668 = vmatmul.f32.gmra.mxu0 %v77
  %v2669 = vpop.f32.mrf.mxu0
  %v2670 = vadd.f32 %v2632, %v2669
  %2671 = vmatmul.f32.gmra.mxu0 %v89
  %v2672 = vpop.f32.mrf.mxu0
  %v2673 = vadd.f32 %v2635, %v2672
  %2674 = vmatmul.f32.gmra.mxu0 %v101
  %v2675 = vpop.f32.mrf.mxu0
  %v2676 = vadd.f32 %v2638, %v2675
  %2677 = vdwg.mxu0
  %2678 = vmatpush.msra.mxu0 %v899
  %2679 = vmatpush.msra.mxu0 %v897
  %2680 = vmatpush.msra.mxu0 %v895
  %2681 = vmatpush.msra.mxu0 %v893
  %2682 = vmatpush.msra.mxu0 %v891
  %2683 = vmatpush.msra.mxu0 %v889
  %2684 = vmatpush.msra.mxu0 %v887
  %2685 = vmatpush.msra.mxu0 %v885
  %2686 = vmatpush.msra.mxu0 %v883
  %2687 = vmatpush.msra.mxu0 %v881
  %2688 = vmatpush.msra.mxu0 %v879
  %2689 = vmatpush.msra.mxu0 %v877
  %2690 = vmatpush.msra.mxu0 %v875
  %2691 = vmatpush.msra.mxu0 %v873
  %2692 = vmatpush.msra.mxu0 %v871
  %2693 = vmatpush.msra.mxu0 %v869
  %2694 = vmatmul.f32.gmra.mxu0 %v30
  %v2695 = vpop.f32.mrf.mxu0
  %v2696 = vadd.f32 %v2658, %v2695
  %2697 = vmatmul.f32.gmra.mxu0 %v42
  %v2698 = vpop.f32.mrf.mxu0
  %v2699 = vadd.f32 %v2661, %v2698
  %2700 = vmatmul.f32.gmra.mxu0 %v54
  %v2701 = vpop.f32.mrf.mxu0
  %v2702 = vadd.f32 %v2664, %v2701
  %2703 = vmatmul.f32.gmra.mxu0 %v66
  %v2704 = vpop.f32.mrf.mxu0
  %v2705 = vadd.f32 %v2667, %v2704
  %2706 = vmatmul.f32.gmra.mxu0 %v78
  %v2707 = vpop.f32.mrf.mxu0
  %v2708 = vadd.f32 %v2670, %v2707
  %2709 = vmatmul.f32.gmra.mxu0 %v90
  %v2710 = vpop.f32.mrf.mxu0
  %v2711 = vadd.f32 %v2673, %v2710
  %2712 = vmatmul.f32.gmra.mxu0 %v102
  %v2713 = vpop.f32.mrf.mxu0
  %v2714 = vadd.f32 %v2676, %v2713
  %2715 = vdwg.mxu0
  %2716 = vmatpush.msra.mxu0 0.0
  %2717 = vmatpush.msra.mxu0 0.0
  %2718 = vmatpush.msra.mxu0 0.0
  %2719 = vmatpush.msra.mxu0 0.0
  %2720 = vmatpush.msra.mxu0 0.0
  %2721 = vmatpush.msra.mxu0 0.0
  %2722 = vmatpush.msra.mxu0 0.0
  %2723 = vmatpush.msra.mxu0 0.0
  %2724 = vmatpush.msra.mxu0 0.0
  %2725 = vmatpush.msra.mxu0 0.0
  %2726 = vmatpush.msra.mxu0 0.0
  %2727 = vmatpush.msra.mxu0 0.0
  %2728 = vmatpush.msra.mxu0 %v907
  %2729 = vmatpush.msra.mxu0 %v905
  %2730 = vmatpush.msra.mxu0 %v903
  %2731 = vmatpush.msra.mxu0 %v901
  %2732 = vmatmul.f32.gmra.mxu0 %v910
  %v2733 = vpop.f32.mrf.mxu0
  %v2734 = vadd.f32 %v2696, %v2733
  %2735 = vmatmul.f32.gmra.mxu0 %v913
  %v2736 = vpop.f32.mrf.mxu0
  %v2737 = vadd.f32 %v2699, %v2736
  %2738 = vmatmul.f32.gmra.mxu0 %v916
  %v2739 = vpop.f32.mrf.mxu0
  %v2740 = vadd.f32 %v2702, %v2739
  %2741 = vmatmul.f32.gmra.mxu0 %v919
  %v2742 = vpop.f32.mrf.mxu0
  %v2743 = vadd.f32 %v2705, %v2742
  %2744 = vmatmul.f32.gmra.mxu0 %v922
  %v2745 = vpop.f32.mrf.mxu0
  %v2746 = vadd.f32 %v2708, %v2745
  %2747 = vmatmul.f32.gmra.mxu0 %v925
  %v2748 = vpop.f32.mrf.mxu0
  %v2749 = vadd.f32 %v2711, %v2748
  %2750 = vmatmul.f32.gmra.mxu0 %v928
  %v2751 = vpop.f32.mrf.mxu0
  %v2752 = vadd.f32 %v2714, %v2751
  %2753 = vdwg.mxu0
  %v2755 = vsel %vm908, %v115, 0
  %v2758 = vsel %vm908, %v127, 0
  %v2761 = vsel %vm908, %v139, 0
  %v2764 = vsel %vm908, %v151, 0
  %v2767 = vsel %vm908, %v163, 0
  %v2770 = vsel %vm908, %v175, 0
  %v2773 = vsel %vm908, %v187, 0
  %2775 = vmatpush.msra.mxu0 %v218
  %2776 = vmatpush.msra.mxu0 %v216
  %2777 = vmatpush.msra.mxu0 %v214
  %2778 = vmatpush.msra.mxu0 %v212
  %2779 = vmatpush.msra.mxu0 %v210
  %2780 = vmatpush.msra.mxu0 %v208
  %2781 = vmatpush.msra.mxu0 %v206
  %2782 = vmatpush.msra.mxu0 %v204
  %2783 = vmatpush.msra.mxu0 %v202
  %2784 = vmatpush.msra.mxu0 %v200
  %2785 = vmatpush.msra.mxu0 %v198
  %2786 = vmatpush.msra.mxu0 %v196
  %2787 = vmatpush.msra.mxu0 %v194
  %2788 = vmatpush.msra.mxu0 %v192
  %2789 = vmatpush.msra.mxu0 %v190
  %2790 = vmatpush.msra.mxu0 %v188
  %2791 = vmatmul.f32.gmra.mxu0 %v104
  %v2792 = vpop.f32.mrf.mxu0
  %v2793 = vadd.f32 0.0, %v2792
  %2794 = vmatmul.f32.gmra.mxu0 %v116
  %v2795 = vpop.f32.mrf.mxu0
  %v2796 = vadd.f32 0.0, %v2795
  %2797 = vmatmul.f32.gmra.mxu0 %v128
  %v2798 = vpop.f32.mrf.mxu0
  %v2799 = vadd.f32 0.0, %v2798
  %2800 = vmatmul.f32.gmra.mxu0 %v140
  %v2801 = vpop.f32.mrf.mxu0
  %v2802 = vadd.f32 0.0, %v2801
  %2803 = vmatmul.f32.gmra.mxu0 %v152
  %v2804 = vpop.f32.mrf.mxu0
  %v2805 = vadd.f32 0.0, %v2804
  %2806 = vmatmul.f32.gmra.mxu0 %v164
  %v2807 = vpop.f32.mrf.mxu0
  %v2808 = vadd.f32 0.0, %v2807
  %2809 = vmatmul.f32.gmra.mxu0 %v176
  %v2810 = vpop.f32.mrf.mxu0
  %v2811 = vadd.f32 0.0, %v2810
  %2812 = vdwg.mxu0
  %2813 = vmatpush.msra.mxu0 %v250
  %2814 = vmatpush.msra.mxu0 %v248
  %2815 = vmatpush.msra.mxu0 %v246
  %2816 = vmatpush.msra.mxu0 %v244
  %2817 = vmatpush.msra.mxu0 %v242
  %2818 = vmatpush.msra.mxu0 %v240
  %2819 = vmatpush.msra.mxu0 %v238
  %2820 = vmatpush.msra.mxu0 %v236
  %2821 = vmatpush.msra.mxu0 %v234
  %2822 = vmatpush.msra.mxu0 %v232
  %2823 = vmatpush.msra.mxu0 %v230
  %2824 = vmatpush.msra.mxu0 %v228
  %2825 = vmatpush.msra.mxu0 %v226
  %2826 = vmatpush.msra.mxu0 %v224
  %2827 = vmatpush.msra.mxu0 %v222
  %2828 = vmatpush.msra.mxu0 %v220
  %2829 = vmatmul.f32.gmra.mxu0 %v105
  %v2830 = vpop.f32.mrf.mxu0
  %v2831 = vadd.f32 %v2793, %v2830
  %2832 = vmatmul.f32.gmra.mxu0 %v117
  %v2833 = vpop.f32.mrf.mxu0
  %v2834 = vadd.f32 %v2796, %v2833
  %2835 = vmatmul.f32.gmra.mxu0 %v129
  %v2836 = vpop.f32.mrf.mxu0
  %v2837 = vadd.f32 %v2799, %v2836
  %2838 = vmatmul.f32.gmra.mxu0 %v141
  %v2839 = vpop.f32.mrf.mxu0
  %v2840 = vadd.f32 %v2802, %v2839
  %2841 = vmatmul.f32.gmra.mxu0 %v153
  %v2842 = vpop.f32.mrf.mxu0
  %v2843 = vadd.f32 %v2805, %v2842
  %2844 = vmatmul.f32.gmra.mxu0 %v165
  %v2845 = vpop.f32.mrf.mxu0
  %v2846 = vadd.f32 %v2808, %v2845
  %2847 = vmatmul.f32.gmra.mxu0 %v177
  %v2848 = vpop.f32.mrf.mxu0
  %v2849 = vadd.f32 %v2811, %v2848
  %2850 = vdwg.mxu0
  %2851 = vmatpush.msra.mxu0 %v282
  %2852 = vmatpush.msra.mxu0 %v280
  %2853 = vmatpush.msra.mxu0 %v278
  %2854 = vmatpush.msra.mxu0 %v276
  %2855 = vmatpush.msra.mxu0 %v274
  %2856 = vmatpush.msra.mxu0 %v272
  %2857 = vmatpush.msra.mxu0 %v270
  %2858 = vmatpush.msra.mxu0 %v268
  %2859 = vmatpush.msra.mxu0 %v266
  %2860 = vmatpush.msra.mxu0 %v264
  %2861 = vmatpush.msra.mxu0 %v262
  %2862 = vmatpush.msra.mxu0 %v260
  %2863 = vmatpush.msra.mxu0 %v258
  %2864 = vmatpush.msra.mxu0 %v256
  %2865 = vmatpush.msra.mxu0 %v254
  %2866 = vmatpush.msra.mxu0 %v252
  %2867 = vmatmul.f32.gmra.mxu0 %v106
  %v2868 = vpop.f32.mrf.mxu0
  %v2869 = vadd.f32 %v2831, %v2868
  %2870 = vmatmul.f32.gmra.mxu0 %v118
  %v2871 = vpop.f32.mrf.mxu0
  %v2872 = vadd.f32 %v2834, %v2871
  %2873 = vmatmul.f32.gmra.mxu0 %v130
  %v2874 = vpop.f32.mrf.mxu0
  %v2875 = vadd.f32 %v2837, %v2874
  %2876 = vmatmul.f32.gmra.mxu0 %v142
  %v2877 = vpop.f32.mrf.mxu0
  %v2878 = vadd.f32 %v2840, %v2877
  %2879 = vmatmul.f32.gmra.mxu0 %v154
  %v2880 = vpop.f32.mrf.mxu0
  %v2881 = vadd.f32 %v2843, %v2880
  %2882 = vmatmul.f32.gmra.mxu0 %v166
  %v2883 = vpop.f32.mrf.mxu0
  %v2884 = vadd.f32 %v2846, %v2883
  %2885 = vmatmul.f32.gmra.mxu0 %v178
  %v2886 = vpop.f32.mrf.mxu0
  %v2887 = vadd.f32 %v2849, %v2886
  %2888 = vdwg.mxu0
  %2889 = vmatpush.msra.mxu0 %v314
  %2890 = vmatpush.msra.mxu0 %v312
  %2891 = vmatpush.msra.mxu0 %v310
  %2892 = vmatpush.msra.mxu0 %v308
  %2893 = vmatpush.msra.mxu0 %v306
  %2894 = vmatpush.msra.mxu0 %v304
  %2895 = vmatpush.msra.mxu0 %v302
  %2896 = vmatpush.msra.mxu0 %v300
  %2897 = vmatpush.msra.mxu0 %v298
  %2898 = vmatpush.msra.mxu0 %v296
  %2899 = vmatpush.msra.mxu0 %v294
  %2900 = vmatpush.msra.mxu0 %v292
  %2901 = vmatpush.msra.mxu0 %v290
  %2902 = vmatpush.msra.mxu0 %v288
  %2903 = vmatpush.msra.mxu0 %v286
  %2904 = vmatpush.msra.mxu0 %v284
  %2905 = vmatmul.f32.gmra.mxu0 %v107
  %v2906 = vpop.f32.mrf.mxu0
  %v2907 = vadd.f32 %v2869, %v2906
  %2908 = vmatmul.f32.gmra.mxu0 %v119
  %v2909 = vpop.f32.mrf.mxu0
  %v2910 = vadd.f32 %v2872, %v2909
  %2911 = vmatmul.f32.gmra.mxu0 %v131
  %v2912 = vpop.f32.mrf.mxu0
  %v2913 = vadd.f32 %v2875, %v2912
  %2914 = vmatmul.f32.gmra.mxu0 %v143
  %v2915 = vpop.f32.mrf.mxu0
  %v2916 = vadd.f32 %v2878, %v2915
  %2917 = vmatmul.f32.gmra.mxu0 %v155
  %v2918 = vpop.f32.mrf.mxu0
  %v2919 = vadd.f32 %v2881, %v2918
  %2920 = vmatmul.f32.gmra.mxu0 %v167
  %v2921 = vpop.f32.mrf.mxu0
  %v2922 = vadd.f32 %v2884, %v2921
  %2923 = vmatmul.f32.gmra.mxu0 %v179
  %v2924 = vpop.f32.mrf.mxu0
  %v2925 = vadd.f32 %v2887, %v2924
  %2926 = vdwg.mxu0
  %2927 = vmatpush.msra.mxu0 %v346
  %2928 = vmatpush.msra.mxu0 %v344
  %2929 = vmatpush.msra.mxu0 %v342
  %2930 = vmatpush.msra.mxu0 %v340
  %2931 = vmatpush.msra.mxu0 %v338
  %2932 = vmatpush.msra.mxu0 %v336
  %2933 = vmatpush.msra.mxu0 %v334
  %2934 = vmatpush.msra.mxu0 %v332
  %2935 = vmatpush.msra.mxu0 %v330
  %2936 = vmatpush.msra.mxu0 %v328
  %2937 = vmatpush.msra.mxu0 %v326
  %2938 = vmatpush.msra.mxu0 %v324
  %2939 = vmatpush.msra.mxu0 %v322
  %2940 = vmatpush.msra.mxu0 %v320
  %2941 = vmatpush.msra.mxu0 %v318
  %2942 = vmatpush.msra.mxu0 %v316
  %2943 = vmatmul.f32.gmra.mxu0 %v108
  %v2944 = vpop.f32.mrf.mxu0
  %v2945 = vadd.f32 %v2907, %v2944
  %2946 = vmatmul.f32.gmra.mxu0 %v120
  %v2947 = vpop.f32.mrf.mxu0
  %v2948 = vadd.f32 %v2910, %v2947
  %2949 = vmatmul.f32.gmra.mxu0 %v132
  %v2950 = vpop.f32.mrf.mxu0
  %v2951 = vadd.f32 %v2913, %v2950
  %2952 = vmatmul.f32.gmra.mxu0 %v144
  %v2953 = vpop.f32.mrf.mxu0
  %v2954 = vadd.f32 %v2916, %v2953
  %2955 = vmatmul.f32.gmra.mxu0 %v156
  %v2956 = vpop.f32.mrf.mxu0
  %v2957 = vadd.f32 %v2919, %v2956
  %2958 = vmatmul.f32.gmra.mxu0 %v168
  %v2959 = vpop.f32.mrf.mxu0
  %v2960 = vadd.f32 %v2922, %v2959
  %2961 = vmatmul.f32.gmra.mxu0 %v180
  %v2962 = vpop.f32.mrf.mxu0
  %v2963 = vadd.f32 %v2925, %v2962
  %2964 = vdwg.mxu0
  %2965 = vmatpush.msra.mxu0 %v378
  %2966 = vmatpush.msra.mxu0 %v376
  %2967 = vmatpush.msra.mxu0 %v374
  %2968 = vmatpush.msra.mxu0 %v372
  %2969 = vmatpush.msra.mxu0 %v370
  %2970 = vmatpush.msra.mxu0 %v368
  %2971 = vmatpush.msra.mxu0 %v366
  %2972 = vmatpush.msra.mxu0 %v364
  %2973 = vmatpush.msra.mxu0 %v362
  %2974 = vmatpush.msra.mxu0 %v360
  %2975 = vmatpush.msra.mxu0 %v358
  %2976 = vmatpush.msra.mxu0 %v356
  %2977 = vmatpush.msra.mxu0 %v354
  %2978 = vmatpush.msra.mxu0 %v352
  %2979 = vmatpush.msra.mxu0 %v350
  %2980 = vmatpush.msra.mxu0 %v348
  %2981 = vmatmul.f32.gmra.mxu0 %v109
  %v2982 = vpop.f32.mrf.mxu0
  %v2983 = vadd.f32 %v2945, %v2982
  %2984 = vmatmul.f32.gmra.mxu0 %v121
  %v2985 = vpop.f32.mrf.mxu0
  %v2986 = vadd.f32 %v2948, %v2985
  %2987 = vmatmul.f32.gmra.mxu0 %v133
  %v2988 = vpop.f32.mrf.mxu0
  %v2989 = vadd.f32 %v2951, %v2988
  %2990 = vmatmul.f32.gmra.mxu0 %v145
  %v2991 = vpop.f32.mrf.mxu0
  %v2992 = vadd.f32 %v2954, %v2991
  %2993 = vmatmul.f32.gmra.mxu0 %v157
  %v2994 = vpop.f32.mrf.mxu0
  %v2995 = vadd.f32 %v2957, %v2994
  %2996 = vmatmul.f32.gmra.mxu0 %v169
  %v2997 = vpop.f32.mrf.mxu0
  %v2998 = vadd.f32 %v2960, %v2997
  %2999 = vmatmul.f32.gmra.mxu0 %v181
  %v3000 = vpop.f32.mrf.mxu0
  %v3001 = vadd.f32 %v2963, %v3000
  %3002 = vdwg.mxu0
  %3003 = vmatpush.msra.mxu0 %v410
  %3004 = vmatpush.msra.mxu0 %v408
  %3005 = vmatpush.msra.mxu0 %v406
  %3006 = vmatpush.msra.mxu0 %v404
  %3007 = vmatpush.msra.mxu0 %v402
  %3008 = vmatpush.msra.mxu0 %v400
  %3009 = vmatpush.msra.mxu0 %v398
  %3010 = vmatpush.msra.mxu0 %v396
  %3011 = vmatpush.msra.mxu0 %v394
  %3012 = vmatpush.msra.mxu0 %v392
  %3013 = vmatpush.msra.mxu0 %v390
  %3014 = vmatpush.msra.mxu0 %v388
  %3015 = vmatpush.msra.mxu0 %v386
  %3016 = vmatpush.msra.mxu0 %v384
  %3017 = vmatpush.msra.mxu0 %v382
  %3018 = vmatpush.msra.mxu0 %v380
  %3019 = vmatmul.f32.gmra.mxu0 %v110
  %v3020 = vpop.f32.mrf.mxu0
  %v3021 = vadd.f32 %v2983, %v3020
  %3022 = vmatmul.f32.gmra.mxu0 %v122
  %v3023 = vpop.f32.mrf.mxu0
  %v3024 = vadd.f32 %v2986, %v3023
  %3025 = vmatmul.f32.gmra.mxu0 %v134
  %v3026 = vpop.f32.mrf.mxu0
  %v3027 = vadd.f32 %v2989, %v3026
  %3028 = vmatmul.f32.gmra.mxu0 %v146
  %v3029 = vpop.f32.mrf.mxu0
  %v3030 = vadd.f32 %v2992, %v3029
  %3031 = vmatmul.f32.gmra.mxu0 %v158
  %v3032 = vpop.f32.mrf.mxu0
  %v3033 = vadd.f32 %v2995, %v3032
  %3034 = vmatmul.f32.gmra.mxu0 %v170
  %v3035 = vpop.f32.mrf.mxu0
  %v3036 = vadd.f32 %v2998, %v3035
  %3037 = vmatmul.f32.gmra.mxu0 %v182
  %v3038 = vpop.f32.mrf.mxu0
  %v3039 = vadd.f32 %v3001, %v3038
  %3040 = vdwg.mxu0
  %3041 = vmatpush.msra.mxu0 %v442
  %3042 = vmatpush.msra.mxu0 %v440
  %3043 = vmatpush.msra.mxu0 %v438
  %3044 = vmatpush.msra.mxu0 %v436
  %3045 = vmatpush.msra.mxu0 %v434
  %3046 = vmatpush.msra.mxu0 %v432
  %3047 = vmatpush.msra.mxu0 %v430
  %3048 = vmatpush.msra.mxu0 %v428
  %3049 = vmatpush.msra.mxu0 %v426
  %3050 = vmatpush.msra.mxu0 %v424
  %3051 = vmatpush.msra.mxu0 %v422
  %3052 = vmatpush.msra.mxu0 %v420
  %3053 = vmatpush.msra.mxu0 %v418
  %3054 = vmatpush.msra.mxu0 %v416
  %3055 = vmatpush.msra.mxu0 %v414
  %3056 = vmatpush.msra.mxu0 %v412
  %3057 = vmatmul.f32.gmra.mxu0 %v111
  %v3058 = vpop.f32.mrf.mxu0
  %v3059 = vadd.f32 %v3021, %v3058
  %3060 = vmatmul.f32.gmra.mxu0 %v123
  %v3061 = vpop.f32.mrf.mxu0
  %v3062 = vadd.f32 %v3024, %v3061
  %3063 = vmatmul.f32.gmra.mxu0 %v135
  %v3064 = vpop.f32.mrf.mxu0
  %v3065 = vadd.f32 %v3027, %v3064
  %3066 = vmatmul.f32.gmra.mxu0 %v147
  %v3067 = vpop.f32.mrf.mxu0
  %v3068 = vadd.f32 %v3030, %v3067
  %3069 = vmatmul.f32.gmra.mxu0 %v159
  %v3070 = vpop.f32.mrf.mxu0
  %v3071 = vadd.f32 %v3033, %v3070
  %3072 = vmatmul.f32.gmra.mxu0 %v171
  %v3073 = vpop.f32.mrf.mxu0
  %v3074 = vadd.f32 %v3036, %v3073
  %3075 = vmatmul.f32.gmra.mxu0 %v183
  %v3076 = vpop.f32.mrf.mxu0
  %v3077 = vadd.f32 %v3039, %v3076
  %3078 = vdwg.mxu0
  %3079 = vmatpush.msra.mxu0 %v474
  %3080 = vmatpush.msra.mxu0 %v472
  %3081 = vmatpush.msra.mxu0 %v470
  %3082 = vmatpush.msra.mxu0 %v468
  %3083 = vmatpush.msra.mxu0 %v466
  %3084 = vmatpush.msra.mxu0 %v464
  %3085 = vmatpush.msra.mxu0 %v462
  %3086 = vmatpush.msra.mxu0 %v460
  %3087 = vmatpush.msra.mxu0 %v458
  %3088 = vmatpush.msra.mxu0 %v456
  %3089 = vmatpush.msra.mxu0 %v454
  %3090 = vmatpush.msra.mxu0 %v452
  %3091 = vmatpush.msra.mxu0 %v450
  %3092 = vmatpush.msra.mxu0 %v448
  %3093 = vmatpush.msra.mxu0 %v446
  %3094 = vmatpush.msra.mxu0 %v444
  %3095 = vmatmul.f32.gmra.mxu0 %v112
  %v3096 = vpop.f32.mrf.mxu0
  %v3097 = vadd.f32 %v3059, %v3096
  %3098 = vmatmul.f32.gmra.mxu0 %v124
  %v3099 = vpop.f32.mrf.mxu0
  %v3100 = vadd.f32 %v3062, %v3099
  %3101 = vmatmul.f32.gmra.mxu0 %v136
  %v3102 = vpop.f32.mrf.mxu0
  %v3103 = vadd.f32 %v3065, %v3102
  %3104 = vmatmul.f32.gmra.mxu0 %v148
  %v3105 = vpop.f32.mrf.mxu0
  %v3106 = vadd.f32 %v3068, %v3105
  %3107 = vmatmul.f32.gmra.mxu0 %v160
  %v3108 = vpop.f32.mrf.mxu0
  %v3109 = vadd.f32 %v3071, %v3108
  %3110 = vmatmul.f32.gmra.mxu0 %v172
  %v3111 = vpop.f32.mrf.mxu0
  %v3112 = vadd.f32 %v3074, %v3111
  %3113 = vmatmul.f32.gmra.mxu0 %v184
  %v3114 = vpop.f32.mrf.mxu0
  %v3115 = vadd.f32 %v3077, %v3114
  %3116 = vdwg.mxu0
  %3117 = vmatpush.msra.mxu0 %v506
  %3118 = vmatpush.msra.mxu0 %v504
  %3119 = vmatpush.msra.mxu0 %v502
  %3120 = vmatpush.msra.mxu0 %v500
  %3121 = vmatpush.msra.mxu0 %v498
  %3122 = vmatpush.msra.mxu0 %v496
  %3123 = vmatpush.msra.mxu0 %v494
  %3124 = vmatpush.msra.mxu0 %v492
  %3125 = vmatpush.msra.mxu0 %v490
  %3126 = vmatpush.msra.mxu0 %v488
  %3127 = vmatpush.msra.mxu0 %v486
  %3128 = vmatpush.msra.mxu0 %v484
  %3129 = vmatpush.msra.mxu0 %v482
  %3130 = vmatpush.msra.mxu0 %v480
  %3131 = vmatpush.msra.mxu0 %v478
  %3132 = vmatpush.msra.mxu0 %v476
  %3133 = vmatmul.f32.gmra.mxu0 %v113
  %v3134 = vpop.f32.mrf.mxu0
  %v3135 = vadd.f32 %v3097, %v3134
  %3136 = vmatmul.f32.gmra.mxu0 %v125
  %v3137 = vpop.f32.mrf.mxu0
  %v3138 = vadd.f32 %v3100, %v3137
  %3139 = vmatmul.f32.gmra.mxu0 %v137
  %v3140 = vpop.f32.mrf.mxu0
  %v3141 = vadd.f32 %v3103, %v3140
  %3142 = vmatmul.f32.gmra.mxu0 %v149
  %v3143 = vpop.f32.mrf.mxu0
  %v3144 = vadd.f32 %v3106, %v3143
  %3145 = vmatmul.f32.gmra.mxu0 %v161
  %v3146 = vpop.f32.mrf.mxu0
  %v3147 = vadd.f32 %v3109, %v3146
  %3148 = vmatmul.f32.gmra.mxu0 %v173
  %v3149 = vpop.f32.mrf.mxu0
  %v3150 = vadd.f32 %v3112, %v3149
  %3151 = vmatmul.f32.gmra.mxu0 %v185
  %v3152 = vpop.f32.mrf.mxu0
  %v3153 = vadd.f32 %v3115, %v3152
  %3154 = vdwg.mxu0
  %3155 = vmatpush.msra.mxu0 %v538
  %3156 = vmatpush.msra.mxu0 %v536
  %3157 = vmatpush.msra.mxu0 %v534
  %3158 = vmatpush.msra.mxu0 %v532
  %3159 = vmatpush.msra.mxu0 %v530
  %3160 = vmatpush.msra.mxu0 %v528
  %3161 = vmatpush.msra.mxu0 %v526
  %3162 = vmatpush.msra.mxu0 %v524
  %3163 = vmatpush.msra.mxu0 %v522
  %3164 = vmatpush.msra.mxu0 %v520
  %3165 = vmatpush.msra.mxu0 %v518
  %3166 = vmatpush.msra.mxu0 %v516
  %3167 = vmatpush.msra.mxu0 %v514
  %3168 = vmatpush.msra.mxu0 %v512
  %3169 = vmatpush.msra.mxu0 %v510
  %3170 = vmatpush.msra.mxu0 %v508
  %3171 = vmatmul.f32.gmra.mxu0 %v114
  %v3172 = vpop.f32.mrf.mxu0
  %v3173 = vadd.f32 %v3135, %v3172
  %3174 = vmatmul.f32.gmra.mxu0 %v126
  %v3175 = vpop.f32.mrf.mxu0
  %v3176 = vadd.f32 %v3138, %v3175
  %3177 = vmatmul.f32.gmra.mxu0 %v138
  %v3178 = vpop.f32.mrf.mxu0
  %v3179 = vadd.f32 %v3141, %v3178
  %3180 = vmatmul.f32.gmra.mxu0 %v150
  %v3181 = vpop.f32.mrf.mxu0
  %v3182 = vadd.f32 %v3144, %v3181
  %3183 = vmatmul.f32.gmra.mxu0 %v162
  %v3184 = vpop.f32.mrf.mxu0
  %v3185 = vadd.f32 %v3147, %v3184
  %3186 = vmatmul.f32.gmra.mxu0 %v174
  %v3187 = vpop.f32.mrf.mxu0
  %v3188 = vadd.f32 %v3150, %v3187
  %3189 = vmatmul.f32.gmra.mxu0 %v186
  %v3190 = vpop.f32.mrf.mxu0
  %v3191 = vadd.f32 %v3153, %v3190
  %3192 = vdwg.mxu0
  %3193 = vmatpush.msra.mxu0 0.0
  %3194 = vmatpush.msra.mxu0 0.0
  %3195 = vmatpush.msra.mxu0 0.0
  %3196 = vmatpush.msra.mxu0 0.0
  %3197 = vmatpush.msra.mxu0 0.0
  %3198 = vmatpush.msra.mxu0 0.0
  %3199 = vmatpush.msra.mxu0 0.0
  %3200 = vmatpush.msra.mxu0 0.0
  %3201 = vmatpush.msra.mxu0 0.0
  %3202 = vmatpush.msra.mxu0 0.0
  %3203 = vmatpush.msra.mxu0 0.0
  %3204 = vmatpush.msra.mxu0 0.0
  %3205 = vmatpush.msra.mxu0 %v546
  %3206 = vmatpush.msra.mxu0 %v544
  %3207 = vmatpush.msra.mxu0 %v542
  %3208 = vmatpush.msra.mxu0 %v540
  %3209 = vmatmul.f32.gmra.mxu0 %v2755
  %v3210 = vpop.f32.mrf.mxu0
  %v3211 = vadd.f32 %v3173, %v3210
  %3212 = vmatmul.f32.gmra.mxu0 %v2758
  %v3213 = vpop.f32.mrf.mxu0
  %v3214 = vadd.f32 %v3176, %v3213
  %3215 = vmatmul.f32.gmra.mxu0 %v2761
  %v3216 = vpop.f32.mrf.mxu0
  %v3217 = vadd.f32 %v3179, %v3216
  %3218 = vmatmul.f32.gmra.mxu0 %v2764
  %v3219 = vpop.f32.mrf.mxu0
  %v3220 = vadd.f32 %v3182, %v3219
  %3221 = vmatmul.f32.gmra.mxu0 %v2767
  %v3222 = vpop.f32.mrf.mxu0
  %v3223 = vadd.f32 %v3185, %v3222
  %3224 = vmatmul.f32.gmra.mxu0 %v2770
  %v3225 = vpop.f32.mrf.mxu0
  %v3226 = vadd.f32 %v3188, %v3225
  %3227 = vmatmul.f32.gmra.mxu0 %v2773
  %v3228 = vpop.f32.mrf.mxu0
  %v3229 = vadd.f32 %v3191, %v3228
  %3230 = vdwg.mxu0
  %3231 = vmatpush.msra.mxu0 %v219
  %3232 = vmatpush.msra.mxu0 %v217
  %3233 = vmatpush.msra.mxu0 %v215
  %3234 = vmatpush.msra.mxu0 %v213
  %3235 = vmatpush.msra.mxu0 %v211
  %3236 = vmatpush.msra.mxu0 %v209
  %3237 = vmatpush.msra.mxu0 %v207
  %3238 = vmatpush.msra.mxu0 %v205
  %3239 = vmatpush.msra.mxu0 %v203
  %3240 = vmatpush.msra.mxu0 %v201
  %3241 = vmatpush.msra.mxu0 %v199
  %3242 = vmatpush.msra.mxu0 %v197
  %3243 = vmatpush.msra.mxu0 %v195
  %3244 = vmatpush.msra.mxu0 %v193
  %3245 = vmatpush.msra.mxu0 %v191
  %3246 = vmatpush.msra.mxu0 %v189
  %3247 = vmatmul.f32.gmra.mxu0 %v104
  %v3248 = vpop.f32.mrf.mxu0
  %v3249 = vadd.f32 0.0, %v3248
  %3250 = vmatmul.f32.gmra.mxu0 %v116
  %v3251 = vpop.f32.mrf.mxu0
  %v3252 = vadd.f32 0.0, %v3251
  %3253 = vmatmul.f32.gmra.mxu0 %v128
  %v3254 = vpop.f32.mrf.mxu0
  %v3255 = vadd.f32 0.0, %v3254
  %3256 = vmatmul.f32.gmra.mxu0 %v140
  %v3257 = vpop.f32.mrf.mxu0
  %v3258 = vadd.f32 0.0, %v3257
  %3259 = vmatmul.f32.gmra.mxu0 %v152
  %v3260 = vpop.f32.mrf.mxu0
  %v3261 = vadd.f32 0.0, %v3260
  %3262 = vmatmul.f32.gmra.mxu0 %v164
  %v3263 = vpop.f32.mrf.mxu0
  %v3264 = vadd.f32 0.0, %v3263
  %3265 = vmatmul.f32.gmra.mxu0 %v176
  %v3266 = vpop.f32.mrf.mxu0
  %v3267 = vadd.f32 0.0, %v3266
  %3268 = vdwg.mxu0
  %3269 = vmatpush.msra.mxu0 %v251
  %3270 = vmatpush.msra.mxu0 %v249
  %3271 = vmatpush.msra.mxu0 %v247
  %3272 = vmatpush.msra.mxu0 %v245
  %3273 = vmatpush.msra.mxu0 %v243
  %3274 = vmatpush.msra.mxu0 %v241
  %3275 = vmatpush.msra.mxu0 %v239
  %3276 = vmatpush.msra.mxu0 %v237
  %3277 = vmatpush.msra.mxu0 %v235
  %3278 = vmatpush.msra.mxu0 %v233
  %3279 = vmatpush.msra.mxu0 %v231
  %3280 = vmatpush.msra.mxu0 %v229
  %3281 = vmatpush.msra.mxu0 %v227
  %3282 = vmatpush.msra.mxu0 %v225
  %3283 = vmatpush.msra.mxu0 %v223
  %3284 = vmatpush.msra.mxu0 %v221
  %3285 = vmatmul.f32.gmra.mxu0 %v105
  %v3286 = vpop.f32.mrf.mxu0
  %v3287 = vadd.f32 %v3249, %v3286
  %3288 = vmatmul.f32.gmra.mxu0 %v117
  %v3289 = vpop.f32.mrf.mxu0
  %v3290 = vadd.f32 %v3252, %v3289
  %3291 = vmatmul.f32.gmra.mxu0 %v129
  %v3292 = vpop.f32.mrf.mxu0
  %v3293 = vadd.f32 %v3255, %v3292
  %3294 = vmatmul.f32.gmra.mxu0 %v141
  %v3295 = vpop.f32.mrf.mxu0
  %v3296 = vadd.f32 %v3258, %v3295
  %3297 = vmatmul.f32.gmra.mxu0 %v153
  %v3298 = vpop.f32.mrf.mxu0
  %v3299 = vadd.f32 %v3261, %v3298
  %3300 = vmatmul.f32.gmra.mxu0 %v165
  %v3301 = vpop.f32.mrf.mxu0
  %v3302 = vadd.f32 %v3264, %v3301
  %3303 = vmatmul.f32.gmra.mxu0 %v177
  %v3304 = vpop.f32.mrf.mxu0
  %v3305 = vadd.f32 %v3267, %v3304
  %3306 = vdwg.mxu0
  %3307 = vmatpush.msra.mxu0 %v283
  %3308 = vmatpush.msra.mxu0 %v281
  %3309 = vmatpush.msra.mxu0 %v279
  %3310 = vmatpush.msra.mxu0 %v277
  %3311 = vmatpush.msra.mxu0 %v275
  %3312 = vmatpush.msra.mxu0 %v273
  %3313 = vmatpush.msra.mxu0 %v271
  %3314 = vmatpush.msra.mxu0 %v269
  %3315 = vmatpush.msra.mxu0 %v267
  %3316 = vmatpush.msra.mxu0 %v265
  %3317 = vmatpush.msra.mxu0 %v263
  %3318 = vmatpush.msra.mxu0 %v261
  %3319 = vmatpush.msra.mxu0 %v259
  %3320 = vmatpush.msra.mxu0 %v257
  %3321 = vmatpush.msra.mxu0 %v255
  %3322 = vmatpush.msra.mxu0 %v253
  %3323 = vmatmul.f32.gmra.mxu0 %v106
  %v3324 = vpop.f32.mrf.mxu0
  %v3325 = vadd.f32 %v3287, %v3324
  %3326 = vmatmul.f32.gmra.mxu0 %v118
  %v3327 = vpop.f32.mrf.mxu0
  %v3328 = vadd.f32 %v3290, %v3327
  %3329 = vmatmul.f32.gmra.mxu0 %v130
  %v3330 = vpop.f32.mrf.mxu0
  %v3331 = vadd.f32 %v3293, %v3330
  %3332 = vmatmul.f32.gmra.mxu0 %v142
  %v3333 = vpop.f32.mrf.mxu0
  %v3334 = vadd.f32 %v3296, %v3333
  %3335 = vmatmul.f32.gmra.mxu0 %v154
  %v3336 = vpop.f32.mrf.mxu0
  %v3337 = vadd.f32 %v3299, %v3336
  %3338 = vmatmul.f32.gmra.mxu0 %v166
  %v3339 = vpop.f32.mrf.mxu0
  %v3340 = vadd.f32 %v3302, %v3339
  %3341 = vmatmul.f32.gmra.mxu0 %v178
  %v3342 = vpop.f32.mrf.mxu0
  %v3343 = vadd.f32 %v3305, %v3342
  %3344 = vdwg.mxu0
  %3345 = vmatpush.msra.mxu0 %v315
  %3346 = vmatpush.msra.mxu0 %v313
  %3347 = vmatpush.msra.mxu0 %v311
  %3348 = vmatpush.msra.mxu0 %v309
  %3349 = vmatpush.msra.mxu0 %v307
  %3350 = vmatpush.msra.mxu0 %v305
  %3351 = vmatpush.msra.mxu0 %v303
  %3352 = vmatpush.msra.mxu0 %v301
  %3353 = vmatpush.msra.mxu0 %v299
  %3354 = vmatpush.msra.mxu0 %v297
  %3355 = vmatpush.msra.mxu0 %v295
  %3356 = vmatpush.msra.mxu0 %v293
  %3357 = vmatpush.msra.mxu0 %v291
  %3358 = vmatpush.msra.mxu0 %v289
  %3359 = vmatpush.msra.mxu0 %v287
  %3360 = vmatpush.msra.mxu0 %v285
  %3361 = vmatmul.f32.gmra.mxu0 %v107
  %v3362 = vpop.f32.mrf.mxu0
  %v3363 = vadd.f32 %v3325, %v3362
  %3364 = vmatmul.f32.gmra.mxu0 %v119
  %v3365 = vpop.f32.mrf.mxu0
  %v3366 = vadd.f32 %v3328, %v3365
  %3367 = vmatmul.f32.gmra.mxu0 %v131
  %v3368 = vpop.f32.mrf.mxu0
  %v3369 = vadd.f32 %v3331, %v3368
  %3370 = vmatmul.f32.gmra.mxu0 %v143
  %v3371 = vpop.f32.mrf.mxu0
  %v3372 = vadd.f32 %v3334, %v3371
  %3373 = vmatmul.f32.gmra.mxu0 %v155
  %v3374 = vpop.f32.mrf.mxu0
  %v3375 = vadd.f32 %v3337, %v3374
  %3376 = vmatmul.f32.gmra.mxu0 %v167
  %v3377 = vpop.f32.mrf.mxu0
  %v3378 = vadd.f32 %v3340, %v3377
  %3379 = vmatmul.f32.gmra.mxu0 %v179
  %v3380 = vpop.f32.mrf.mxu0
  %v3381 = vadd.f32 %v3343, %v3380
  %3382 = vdwg.mxu0
  %3383 = vmatpush.msra.mxu0 %v347
  %3384 = vmatpush.msra.mxu0 %v345
  %3385 = vmatpush.msra.mxu0 %v343
  %3386 = vmatpush.msra.mxu0 %v341
  %3387 = vmatpush.msra.mxu0 %v339
  %3388 = vmatpush.msra.mxu0 %v337
  %3389 = vmatpush.msra.mxu0 %v335
  %3390 = vmatpush.msra.mxu0 %v333
  %3391 = vmatpush.msra.mxu0 %v331
  %3392 = vmatpush.msra.mxu0 %v329
  %3393 = vmatpush.msra.mxu0 %v327
  %3394 = vmatpush.msra.mxu0 %v325
  %3395 = vmatpush.msra.mxu0 %v323
  %3396 = vmatpush.msra.mxu0 %v321
  %3397 = vmatpush.msra.mxu0 %v319
  %3398 = vmatpush.msra.mxu0 %v317
  %3399 = vmatmul.f32.gmra.mxu0 %v108
  %v3400 = vpop.f32.mrf.mxu0
  %v3401 = vadd.f32 %v3363, %v3400
  %3402 = vmatmul.f32.gmra.mxu0 %v120
  %v3403 = vpop.f32.mrf.mxu0
  %v3404 = vadd.f32 %v3366, %v3403
  %3405 = vmatmul.f32.gmra.mxu0 %v132
  %v3406 = vpop.f32.mrf.mxu0
  %v3407 = vadd.f32 %v3369, %v3406
  %3408 = vmatmul.f32.gmra.mxu0 %v144
  %v3409 = vpop.f32.mrf.mxu0
  %v3410 = vadd.f32 %v3372, %v3409
  %3411 = vmatmul.f32.gmra.mxu0 %v156
  %v3412 = vpop.f32.mrf.mxu0
  %v3413 = vadd.f32 %v3375, %v3412
  %3414 = vmatmul.f32.gmra.mxu0 %v168
  %v3415 = vpop.f32.mrf.mxu0
  %v3416 = vadd.f32 %v3378, %v3415
  %3417 = vmatmul.f32.gmra.mxu0 %v180
  %v3418 = vpop.f32.mrf.mxu0
  %v3419 = vadd.f32 %v3381, %v3418
  %3420 = vdwg.mxu0
  %3421 = vmatpush.msra.mxu0 %v379
  %3422 = vmatpush.msra.mxu0 %v377
  %3423 = vmatpush.msra.mxu0 %v375
  %3424 = vmatpush.msra.mxu0 %v373
  %3425 = vmatpush.msra.mxu0 %v371
  %3426 = vmatpush.msra.mxu0 %v369
  %3427 = vmatpush.msra.mxu0 %v367
  %3428 = vmatpush.msra.mxu0 %v365
  %3429 = vmatpush.msra.mxu0 %v363
  %3430 = vmatpush.msra.mxu0 %v361
  %3431 = vmatpush.msra.mxu0 %v359
  %3432 = vmatpush.msra.mxu0 %v357
  %3433 = vmatpush.msra.mxu0 %v355
  %3434 = vmatpush.msra.mxu0 %v353
  %3435 = vmatpush.msra.mxu0 %v351
  %3436 = vmatpush.msra.mxu0 %v349
  %3437 = vmatmul.f32.gmra.mxu0 %v109
  %v3438 = vpop.f32.mrf.mxu0
  %v3439 = vadd.f32 %v3401, %v3438
  %3440 = vmatmul.f32.gmra.mxu0 %v121
  %v3441 = vpop.f32.mrf.mxu0
  %v3442 = vadd.f32 %v3404, %v3441
  %3443 = vmatmul.f32.gmra.mxu0 %v133
  %v3444 = vpop.f32.mrf.mxu0
  %v3445 = vadd.f32 %v3407, %v3444
  %3446 = vmatmul.f32.gmra.mxu0 %v145
  %v3447 = vpop.f32.mrf.mxu0
  %v3448 = vadd.f32 %v3410, %v3447
  %3449 = vmatmul.f32.gmra.mxu0 %v157
  %v3450 = vpop.f32.mrf.mxu0
  %v3451 = vadd.f32 %v3413, %v3450
  %3452 = vmatmul.f32.gmra.mxu0 %v169
  %v3453 = vpop.f32.mrf.mxu0
  %v3454 = vadd.f32 %v3416, %v3453
  %3455 = vmatmul.f32.gmra.mxu0 %v181
  %v3456 = vpop.f32.mrf.mxu0
  %v3457 = vadd.f32 %v3419, %v3456
  %3458 = vdwg.mxu0
  %3459 = vmatpush.msra.mxu0 %v411
  %3460 = vmatpush.msra.mxu0 %v409
  %3461 = vmatpush.msra.mxu0 %v407
  %3462 = vmatpush.msra.mxu0 %v405
  %3463 = vmatpush.msra.mxu0 %v403
  %3464 = vmatpush.msra.mxu0 %v401
  %3465 = vmatpush.msra.mxu0 %v399
  %3466 = vmatpush.msra.mxu0 %v397
  %3467 = vmatpush.msra.mxu0 %v395
  %3468 = vmatpush.msra.mxu0 %v393
  %3469 = vmatpush.msra.mxu0 %v391
  %3470 = vmatpush.msra.mxu0 %v389
  %3471 = vmatpush.msra.mxu0 %v387
  %3472 = vmatpush.msra.mxu0 %v385
  %3473 = vmatpush.msra.mxu0 %v383
  %3474 = vmatpush.msra.mxu0 %v381
  %3475 = vmatmul.f32.gmra.mxu0 %v110
  %v3476 = vpop.f32.mrf.mxu0
  %v3477 = vadd.f32 %v3439, %v3476
  %3478 = vmatmul.f32.gmra.mxu0 %v122
  %v3479 = vpop.f32.mrf.mxu0
  %v3480 = vadd.f32 %v3442, %v3479
  %3481 = vmatmul.f32.gmra.mxu0 %v134
  %v3482 = vpop.f32.mrf.mxu0
  %v3483 = vadd.f32 %v3445, %v3482
  %3484 = vmatmul.f32.gmra.mxu0 %v146
  %v3485 = vpop.f32.mrf.mxu0
  %v3486 = vadd.f32 %v3448, %v3485
  %3487 = vmatmul.f32.gmra.mxu0 %v158
  %v3488 = vpop.f32.mrf.mxu0
  %v3489 = vadd.f32 %v3451, %v3488
  %3490 = vmatmul.f32.gmra.mxu0 %v170
  %v3491 = vpop.f32.mrf.mxu0
  %v3492 = vadd.f32 %v3454, %v3491
  %3493 = vmatmul.f32.gmra.mxu0 %v182
  %v3494 = vpop.f32.mrf.mxu0
  %v3495 = vadd.f32 %v3457, %v3494
  %3496 = vdwg.mxu0
  %3497 = vmatpush.msra.mxu0 %v443
  %3498 = vmatpush.msra.mxu0 %v441
  %3499 = vmatpush.msra.mxu0 %v439
  %3500 = vmatpush.msra.mxu0 %v437
  %3501 = vmatpush.msra.mxu0 %v435
  %3502 = vmatpush.msra.mxu0 %v433
  %3503 = vmatpush.msra.mxu0 %v431
  %3504 = vmatpush.msra.mxu0 %v429
  %3505 = vmatpush.msra.mxu0 %v427
  %3506 = vmatpush.msra.mxu0 %v425
  %3507 = vmatpush.msra.mxu0 %v423
  %3508 = vmatpush.msra.mxu0 %v421
  %3509 = vmatpush.msra.mxu0 %v419
  %3510 = vmatpush.msra.mxu0 %v417
  %3511 = vmatpush.msra.mxu0 %v415
  %3512 = vmatpush.msra.mxu0 %v413
  %3513 = vmatmul.f32.gmra.mxu0 %v111
  %v3514 = vpop.f32.mrf.mxu0
  %v3515 = vadd.f32 %v3477, %v3514
  %3516 = vmatmul.f32.gmra.mxu0 %v123
  %v3517 = vpop.f32.mrf.mxu0
  %v3518 = vadd.f32 %v3480, %v3517
  %3519 = vmatmul.f32.gmra.mxu0 %v135
  %v3520 = vpop.f32.mrf.mxu0
  %v3521 = vadd.f32 %v3483, %v3520
  %3522 = vmatmul.f32.gmra.mxu0 %v147
  %v3523 = vpop.f32.mrf.mxu0
  %v3524 = vadd.f32 %v3486, %v3523
  %3525 = vmatmul.f32.gmra.mxu0 %v159
  %v3526 = vpop.f32.mrf.mxu0
  %v3527 = vadd.f32 %v3489, %v3526
  %3528 = vmatmul.f32.gmra.mxu0 %v171
  %v3529 = vpop.f32.mrf.mxu0
  %v3530 = vadd.f32 %v3492, %v3529
  %3531 = vmatmul.f32.gmra.mxu0 %v183
  %v3532 = vpop.f32.mrf.mxu0
  %v3533 = vadd.f32 %v3495, %v3532
  %3534 = vdwg.mxu0
  %3535 = vmatpush.msra.mxu0 %v475
  %3536 = vmatpush.msra.mxu0 %v473
  %3537 = vmatpush.msra.mxu0 %v471
  %3538 = vmatpush.msra.mxu0 %v469
  %3539 = vmatpush.msra.mxu0 %v467
  %3540 = vmatpush.msra.mxu0 %v465
  %3541 = vmatpush.msra.mxu0 %v463
  %3542 = vmatpush.msra.mxu0 %v461
  %3543 = vmatpush.msra.mxu0 %v459
  %3544 = vmatpush.msra.mxu0 %v457
  %3545 = vmatpush.msra.mxu0 %v455
  %3546 = vmatpush.msra.mxu0 %v453
  %3547 = vmatpush.msra.mxu0 %v451
  %3548 = vmatpush.msra.mxu0 %v449
  %3549 = vmatpush.msra.mxu0 %v447
  %3550 = vmatpush.msra.mxu0 %v445
  %3551 = vmatmul.f32.gmra.mxu0 %v112
  %v3552 = vpop.f32.mrf.mxu0
  %v3553 = vadd.f32 %v3515, %v3552
  %3554 = vmatmul.f32.gmra.mxu0 %v124
  %v3555 = vpop.f32.mrf.mxu0
  %v3556 = vadd.f32 %v3518, %v3555
  %3557 = vmatmul.f32.gmra.mxu0 %v136
  %v3558 = vpop.f32.mrf.mxu0
  %v3559 = vadd.f32 %v3521, %v3558
  %3560 = vmatmul.f32.gmra.mxu0 %v148
  %v3561 = vpop.f32.mrf.mxu0
  %v3562 = vadd.f32 %v3524, %v3561
  %3563 = vmatmul.f32.gmra.mxu0 %v160
  %v3564 = vpop.f32.mrf.mxu0
  %v3565 = vadd.f32 %v3527, %v3564
  %3566 = vmatmul.f32.gmra.mxu0 %v172
  %v3567 = vpop.f32.mrf.mxu0
  %v3568 = vadd.f32 %v3530, %v3567
  %3569 = vmatmul.f32.gmra.mxu0 %v184
  %v3570 = vpop.f32.mrf.mxu0
  %v3571 = vadd.f32 %v3533, %v3570
  %3572 = vdwg.mxu0
  %3573 = vmatpush.msra.mxu0 %v507
  %3574 = vmatpush.msra.mxu0 %v505
  %3575 = vmatpush.msra.mxu0 %v503
  %3576 = vmatpush.msra.mxu0 %v501
  %3577 = vmatpush.msra.mxu0 %v499
  %3578 = vmatpush.msra.mxu0 %v497
  %3579 = vmatpush.msra.mxu0 %v495
  %3580 = vmatpush.msra.mxu0 %v493
  %3581 = vmatpush.msra.mxu0 %v491
  %3582 = vmatpush.msra.mxu0 %v489
  %3583 = vmatpush.msra.mxu0 %v487
  %3584 = vmatpush.msra.mxu0 %v485
  %3585 = vmatpush.msra.mxu0 %v483
  %3586 = vmatpush.msra.mxu0 %v481
  %3587 = vmatpush.msra.mxu0 %v479
  %3588 = vmatpush.msra.mxu0 %v477
  %3589 = vmatmul.f32.gmra.mxu0 %v113
  %v3590 = vpop.f32.mrf.mxu0
  %v3591 = vadd.f32 %v3553, %v3590
  %3592 = vmatmul.f32.gmra.mxu0 %v125
  %v3593 = vpop.f32.mrf.mxu0
  %v3594 = vadd.f32 %v3556, %v3593
  %3595 = vmatmul.f32.gmra.mxu0 %v137
  %v3596 = vpop.f32.mrf.mxu0
  %v3597 = vadd.f32 %v3559, %v3596
  %3598 = vmatmul.f32.gmra.mxu0 %v149
  %v3599 = vpop.f32.mrf.mxu0
  %v3600 = vadd.f32 %v3562, %v3599
  %3601 = vmatmul.f32.gmra.mxu0 %v161
  %v3602 = vpop.f32.mrf.mxu0
  %v3603 = vadd.f32 %v3565, %v3602
  %3604 = vmatmul.f32.gmra.mxu0 %v173
  %v3605 = vpop.f32.mrf.mxu0
  %v3606 = vadd.f32 %v3568, %v3605
  %3607 = vmatmul.f32.gmra.mxu0 %v185
  %v3608 = vpop.f32.mrf.mxu0
  %v3609 = vadd.f32 %v3571, %v3608
  %3610 = vdwg.mxu0
  %3611 = vmatpush.msra.mxu0 %v539
  %3612 = vmatpush.msra.mxu0 %v537
  %3613 = vmatpush.msra.mxu0 %v535
  %3614 = vmatpush.msra.mxu0 %v533
  %3615 = vmatpush.msra.mxu0 %v531
  %3616 = vmatpush.msra.mxu0 %v529
  %3617 = vmatpush.msra.mxu0 %v527
  %3618 = vmatpush.msra.mxu0 %v525
  %3619 = vmatpush.msra.mxu0 %v523
  %3620 = vmatpush.msra.mxu0 %v521
  %3621 = vmatpush.msra.mxu0 %v519
  %3622 = vmatpush.msra.mxu0 %v517
  %3623 = vmatpush.msra.mxu0 %v515
  %3624 = vmatpush.msra.mxu0 %v513
  %3625 = vmatpush.msra.mxu0 %v511
  %3626 = vmatpush.msra.mxu0 %v509
  %3627 = vmatmul.f32.gmra.mxu0 %v114
  %v3628 = vpop.f32.mrf.mxu0
  %v3629 = vadd.f32 %v3591, %v3628
  %3630 = vmatmul.f32.gmra.mxu0 %v126
  %v3631 = vpop.f32.mrf.mxu0
  %v3632 = vadd.f32 %v3594, %v3631
  %3633 = vmatmul.f32.gmra.mxu0 %v138
  %v3634 = vpop.f32.mrf.mxu0
  %v3635 = vadd.f32 %v3597, %v3634
  %3636 = vmatmul.f32.gmra.mxu0 %v150
  %v3637 = vpop.f32.mrf.mxu0
  %v3638 = vadd.f32 %v3600, %v3637
  %3639 = vmatmul.f32.gmra.mxu0 %v162
  %v3640 = vpop.f32.mrf.mxu0
  %v3641 = vadd.f32 %v3603, %v3640
  %3642 = vmatmul.f32.gmra.mxu0 %v174
  %v3643 = vpop.f32.mrf.mxu0
  %v3644 = vadd.f32 %v3606, %v3643
  %3645 = vmatmul.f32.gmra.mxu0 %v186
  %v3646 = vpop.f32.mrf.mxu0
  %v3647 = vadd.f32 %v3609, %v3646
  %3648 = vdwg.mxu0
  %3649 = vmatpush.msra.mxu0 0.0
  %3650 = vmatpush.msra.mxu0 0.0
  %3651 = vmatpush.msra.mxu0 0.0
  %3652 = vmatpush.msra.mxu0 0.0
  %3653 = vmatpush.msra.mxu0 0.0
  %3654 = vmatpush.msra.mxu0 0.0
  %3655 = vmatpush.msra.mxu0 0.0
  %3656 = vmatpush.msra.mxu0 0.0
  %3657 = vmatpush.msra.mxu0 0.0
  %3658 = vmatpush.msra.mxu0 0.0
  %3659 = vmatpush.msra.mxu0 0.0
  %3660 = vmatpush.msra.mxu0 0.0
  %3661 = vmatpush.msra.mxu0 %v547
  %3662 = vmatpush.msra.mxu0 %v545
  %3663 = vmatpush.msra.mxu0 %v543
  %3664 = vmatpush.msra.mxu0 %v541
  %3665 = vmatmul.f32.gmra.mxu0 %v2755
  %v3666 = vpop.f32.mrf.mxu0
  %v3667 = vadd.f32 %v3629, %v3666
  %3668 = vmatmul.f32.gmra.mxu0 %v2758
  %v3669 = vpop.f32.mrf.mxu0
  %v3670 = vadd.f32 %v3632, %v3669
  %3671 = vmatmul.f32.gmra.mxu0 %v2761
  %v3672 = vpop.f32.mrf.mxu0
  %v3673 = vadd.f32 %v3635, %v3672
  %3674 = vmatmul.f32.gmra.mxu0 %v2764
  %v3675 = vpop.f32.mrf.mxu0
  %v3676 = vadd.f32 %v3638, %v3675
  %3677 = vmatmul.f32.gmra.mxu0 %v2767
  %v3678 = vpop.f32.mrf.mxu0
  %v3679 = vadd.f32 %v3641, %v3678
  %3680 = vmatmul.f32.gmra.mxu0 %v2770
  %v3681 = vpop.f32.mrf.mxu0
  %v3682 = vadd.f32 %v3644, %v3681
  %3683 = vmatmul.f32.gmra.mxu0 %v2773
  %v3684 = vpop.f32.mrf.mxu0
  %v3685 = vadd.f32 %v3647, %v3684
  %3686 = vdwg.mxu0
  %3687 = vmatpush.msra.mxu0 %v578
  %3688 = vmatpush.msra.mxu0 %v576
  %3689 = vmatpush.msra.mxu0 %v574
  %3690 = vmatpush.msra.mxu0 %v572
  %3691 = vmatpush.msra.mxu0 %v570
  %3692 = vmatpush.msra.mxu0 %v568
  %3693 = vmatpush.msra.mxu0 %v566
  %3694 = vmatpush.msra.mxu0 %v564
  %3695 = vmatpush.msra.mxu0 %v562
  %3696 = vmatpush.msra.mxu0 %v560
  %3697 = vmatpush.msra.mxu0 %v558
  %3698 = vmatpush.msra.mxu0 %v556
  %3699 = vmatpush.msra.mxu0 %v554
  %3700 = vmatpush.msra.mxu0 %v552
  %3701 = vmatpush.msra.mxu0 %v550
  %3702 = vmatpush.msra.mxu0 %v548
  %3703 = vmatmul.f32.gmra.mxu0 %v104
  %v3704 = vpop.f32.mrf.mxu0
  %v3705 = vadd.f32 0.0, %v3704
  %3706 = vmatmul.f32.gmra.mxu0 %v116
  %v3707 = vpop.f32.mrf.mxu0
  %v3708 = vadd.f32 0.0, %v3707
  %3709 = vmatmul.f32.gmra.mxu0 %v128
  %v3710 = vpop.f32.mrf.mxu0
  %v3711 = vadd.f32 0.0, %v3710
  %3712 = vmatmul.f32.gmra.mxu0 %v140
  %v3713 = vpop.f32.mrf.mxu0
  %v3714 = vadd.f32 0.0, %v3713
  %3715 = vmatmul.f32.gmra.mxu0 %v152
  %v3716 = vpop.f32.mrf.mxu0
  %v3717 = vadd.f32 0.0, %v3716
  %3718 = vmatmul.f32.gmra.mxu0 %v164
  %v3719 = vpop.f32.mrf.mxu0
  %v3720 = vadd.f32 0.0, %v3719
  %3721 = vmatmul.f32.gmra.mxu0 %v176
  %v3722 = vpop.f32.mrf.mxu0
  %v3723 = vadd.f32 0.0, %v3722
  %3724 = vdwg.mxu0
  %3725 = vmatpush.msra.mxu0 %v610
  %3726 = vmatpush.msra.mxu0 %v608
  %3727 = vmatpush.msra.mxu0 %v606
  %3728 = vmatpush.msra.mxu0 %v604
  %3729 = vmatpush.msra.mxu0 %v602
  %3730 = vmatpush.msra.mxu0 %v600
  %3731 = vmatpush.msra.mxu0 %v598
  %3732 = vmatpush.msra.mxu0 %v596
  %3733 = vmatpush.msra.mxu0 %v594
  %3734 = vmatpush.msra.mxu0 %v592
  %3735 = vmatpush.msra.mxu0 %v590
  %3736 = vmatpush.msra.mxu0 %v588
  %3737 = vmatpush.msra.mxu0 %v586
  %3738 = vmatpush.msra.mxu0 %v584
  %3739 = vmatpush.msra.mxu0 %v582
  %3740 = vmatpush.msra.mxu0 %v580
  %3741 = vmatmul.f32.gmra.mxu0 %v105
  %v3742 = vpop.f32.mrf.mxu0
  %v3743 = vadd.f32 %v3705, %v3742
  %3744 = vmatmul.f32.gmra.mxu0 %v117
  %v3745 = vpop.f32.mrf.mxu0
  %v3746 = vadd.f32 %v3708, %v3745
  %3747 = vmatmul.f32.gmra.mxu0 %v129
  %v3748 = vpop.f32.mrf.mxu0
  %v3749 = vadd.f32 %v3711, %v3748
  %3750 = vmatmul.f32.gmra.mxu0 %v141
  %v3751 = vpop.f32.mrf.mxu0
  %v3752 = vadd.f32 %v3714, %v3751
  %3753 = vmatmul.f32.gmra.mxu0 %v153
  %v3754 = vpop.f32.mrf.mxu0
  %v3755 = vadd.f32 %v3717, %v3754
  %3756 = vmatmul.f32.gmra.mxu0 %v165
  %v3757 = vpop.f32.mrf.mxu0
  %v3758 = vadd.f32 %v3720, %v3757
  %3759 = vmatmul.f32.gmra.mxu0 %v177
  %v3760 = vpop.f32.mrf.mxu0
  %v3761 = vadd.f32 %v3723, %v3760
  %3762 = vdwg.mxu0
  %3763 = vmatpush.msra.mxu0 %v642
  %3764 = vmatpush.msra.mxu0 %v640
  %3765 = vmatpush.msra.mxu0 %v638
  %3766 = vmatpush.msra.mxu0 %v636
  %3767 = vmatpush.msra.mxu0 %v634
  %3768 = vmatpush.msra.mxu0 %v632
  %3769 = vmatpush.msra.mxu0 %v630
  %3770 = vmatpush.msra.mxu0 %v628
  %3771 = vmatpush.msra.mxu0 %v626
  %3772 = vmatpush.msra.mxu0 %v624
  %3773 = vmatpush.msra.mxu0 %v622
  %3774 = vmatpush.msra.mxu0 %v620
  %3775 = vmatpush.msra.mxu0 %v618
  %3776 = vmatpush.msra.mxu0 %v616
  %3777 = vmatpush.msra.mxu0 %v614
  %3778 = vmatpush.msra.mxu0 %v612
  %3779 = vmatmul.f32.gmra.mxu0 %v106
  %v3780 = vpop.f32.mrf.mxu0
  %v3781 = vadd.f32 %v3743, %v3780
  %3782 = vmatmul.f32.gmra.mxu0 %v118
  %v3783 = vpop.f32.mrf.mxu0
  %v3784 = vadd.f32 %v3746, %v3783
  %3785 = vmatmul.f32.gmra.mxu0 %v130
  %v3786 = vpop.f32.mrf.mxu0
  %v3787 = vadd.f32 %v3749, %v3786
  %3788 = vmatmul.f32.gmra.mxu0 %v142
  %v3789 = vpop.f32.mrf.mxu0
  %v3790 = vadd.f32 %v3752, %v3789
  %3791 = vmatmul.f32.gmra.mxu0 %v154
  %v3792 = vpop.f32.mrf.mxu0
  %v3793 = vadd.f32 %v3755, %v3792
  %3794 = vmatmul.f32.gmra.mxu0 %v166
  %v3795 = vpop.f32.mrf.mxu0
  %v3796 = vadd.f32 %v3758, %v3795
  %3797 = vmatmul.f32.gmra.mxu0 %v178
  %v3798 = vpop.f32.mrf.mxu0
  %v3799 = vadd.f32 %v3761, %v3798
  %3800 = vdwg.mxu0
  %3801 = vmatpush.msra.mxu0 %v674
  %3802 = vmatpush.msra.mxu0 %v672
  %3803 = vmatpush.msra.mxu0 %v670
  %3804 = vmatpush.msra.mxu0 %v668
  %3805 = vmatpush.msra.mxu0 %v666
  %3806 = vmatpush.msra.mxu0 %v664
  %3807 = vmatpush.msra.mxu0 %v662
  %3808 = vmatpush.msra.mxu0 %v660
  %3809 = vmatpush.msra.mxu0 %v658
  %3810 = vmatpush.msra.mxu0 %v656
  %3811 = vmatpush.msra.mxu0 %v654
  %3812 = vmatpush.msra.mxu0 %v652
  %3813 = vmatpush.msra.mxu0 %v650
  %3814 = vmatpush.msra.mxu0 %v648
  %3815 = vmatpush.msra.mxu0 %v646
  %3816 = vmatpush.msra.mxu0 %v644
  %3817 = vmatmul.f32.gmra.mxu0 %v107
  %v3818 = vpop.f32.mrf.mxu0
  %v3819 = vadd.f32 %v3781, %v3818
  %3820 = vmatmul.f32.gmra.mxu0 %v119
  %v3821 = vpop.f32.mrf.mxu0
  %v3822 = vadd.f32 %v3784, %v3821
  %3823 = vmatmul.f32.gmra.mxu0 %v131
  %v3824 = vpop.f32.mrf.mxu0
  %v3825 = vadd.f32 %v3787, %v3824
  %3826 = vmatmul.f32.gmra.mxu0 %v143
  %v3827 = vpop.f32.mrf.mxu0
  %v3828 = vadd.f32 %v3790, %v3827
  %3829 = vmatmul.f32.gmra.mxu0 %v155
  %v3830 = vpop.f32.mrf.mxu0
  %v3831 = vadd.f32 %v3793, %v3830
  %3832 = vmatmul.f32.gmra.mxu0 %v167
  %v3833 = vpop.f32.mrf.mxu0
  %v3834 = vadd.f32 %v3796, %v3833
  %3835 = vmatmul.f32.gmra.mxu0 %v179
  %v3836 = vpop.f32.mrf.mxu0
  %v3837 = vadd.f32 %v3799, %v3836
  %3838 = vdwg.mxu0
  %3839 = vmatpush.msra.mxu0 %v706
  %3840 = vmatpush.msra.mxu0 %v704
  %3841 = vmatpush.msra.mxu0 %v702
  %3842 = vmatpush.msra.mxu0 %v700
  %3843 = vmatpush.msra.mxu0 %v698
  %3844 = vmatpush.msra.mxu0 %v696
  %3845 = vmatpush.msra.mxu0 %v694
  %3846 = vmatpush.msra.mxu0 %v692
  %3847 = vmatpush.msra.mxu0 %v690
  %3848 = vmatpush.msra.mxu0 %v688
  %3849 = vmatpush.msra.mxu0 %v686
  %3850 = vmatpush.msra.mxu0 %v684
  %3851 = vmatpush.msra.mxu0 %v682
  %3852 = vmatpush.msra.mxu0 %v680
  %3853 = vmatpush.msra.mxu0 %v678
  %3854 = vmatpush.msra.mxu0 %v676
  %3855 = vmatmul.f32.gmra.mxu0 %v108
  %v3856 = vpop.f32.mrf.mxu0
  %v3857 = vadd.f32 %v3819, %v3856
  %3858 = vmatmul.f32.gmra.mxu0 %v120
  %v3859 = vpop.f32.mrf.mxu0
  %v3860 = vadd.f32 %v3822, %v3859
  %3861 = vmatmul.f32.gmra.mxu0 %v132
  %v3862 = vpop.f32.mrf.mxu0
  %v3863 = vadd.f32 %v3825, %v3862
  %3864 = vmatmul.f32.gmra.mxu0 %v144
  %v3865 = vpop.f32.mrf.mxu0
  %v3866 = vadd.f32 %v3828, %v3865
  %3867 = vmatmul.f32.gmra.mxu0 %v156
  %v3868 = vpop.f32.mrf.mxu0
  %v3869 = vadd.f32 %v3831, %v3868
  %3870 = vmatmul.f32.gmra.mxu0 %v168
  %v3871 = vpop.f32.mrf.mxu0
  %v3872 = vadd.f32 %v3834, %v3871
  %3873 = vmatmul.f32.gmra.mxu0 %v180
  %v3874 = vpop.f32.mrf.mxu0
  %v3875 = vadd.f32 %v3837, %v3874
  %3876 = vdwg.mxu0
  %3877 = vmatpush.msra.mxu0 %v738
  %3878 = vmatpush.msra.mxu0 %v736
  %3879 = vmatpush.msra.mxu0 %v734
  %3880 = vmatpush.msra.mxu0 %v732
  %3881 = vmatpush.msra.mxu0 %v730
  %3882 = vmatpush.msra.mxu0 %v728
  %3883 = vmatpush.msra.mxu0 %v726
  %3884 = vmatpush.msra.mxu0 %v724
  %3885 = vmatpush.msra.mxu0 %v722
  %3886 = vmatpush.msra.mxu0 %v720
  %3887 = vmatpush.msra.mxu0 %v718
  %3888 = vmatpush.msra.mxu0 %v716
  %3889 = vmatpush.msra.mxu0 %v714
  %3890 = vmatpush.msra.mxu0 %v712
  %3891 = vmatpush.msra.mxu0 %v710
  %3892 = vmatpush.msra.mxu0 %v708
  %3893 = vmatmul.f32.gmra.mxu0 %v109
  %v3894 = vpop.f32.mrf.mxu0
  %v3895 = vadd.f32 %v3857, %v3894
  %3896 = vmatmul.f32.gmra.mxu0 %v121
  %v3897 = vpop.f32.mrf.mxu0
  %v3898 = vadd.f32 %v3860, %v3897
  %3899 = vmatmul.f32.gmra.mxu0 %v133
  %v3900 = vpop.f32.mrf.mxu0
  %v3901 = vadd.f32 %v3863, %v3900
  %3902 = vmatmul.f32.gmra.mxu0 %v145
  %v3903 = vpop.f32.mrf.mxu0
  %v3904 = vadd.f32 %v3866, %v3903
  %3905 = vmatmul.f32.gmra.mxu0 %v157
  %v3906 = vpop.f32.mrf.mxu0
  %v3907 = vadd.f32 %v3869, %v3906
  %3908 = vmatmul.f32.gmra.mxu0 %v169
  %v3909 = vpop.f32.mrf.mxu0
  %v3910 = vadd.f32 %v3872, %v3909
  %3911 = vmatmul.f32.gmra.mxu0 %v181
  %v3912 = vpop.f32.mrf.mxu0
  %v3913 = vadd.f32 %v3875, %v3912
  %3914 = vdwg.mxu0
  %3915 = vmatpush.msra.mxu0 %v770
  %3916 = vmatpush.msra.mxu0 %v768
  %3917 = vmatpush.msra.mxu0 %v766
  %3918 = vmatpush.msra.mxu0 %v764
  %3919 = vmatpush.msra.mxu0 %v762
  %3920 = vmatpush.msra.mxu0 %v760
  %3921 = vmatpush.msra.mxu0 %v758
  %3922 = vmatpush.msra.mxu0 %v756
  %3923 = vmatpush.msra.mxu0 %v754
  %3924 = vmatpush.msra.mxu0 %v752
  %3925 = vmatpush.msra.mxu0 %v750
  %3926 = vmatpush.msra.mxu0 %v748
  %3927 = vmatpush.msra.mxu0 %v746
  %3928 = vmatpush.msra.mxu0 %v744
  %3929 = vmatpush.msra.mxu0 %v742
  %3930 = vmatpush.msra.mxu0 %v740
  %3931 = vmatmul.f32.gmra.mxu0 %v110
  %v3932 = vpop.f32.mrf.mxu0
  %v3933 = vadd.f32 %v3895, %v3932
  %3934 = vmatmul.f32.gmra.mxu0 %v122
  %v3935 = vpop.f32.mrf.mxu0
  %v3936 = vadd.f32 %v3898, %v3935
  %3937 = vmatmul.f32.gmra.mxu0 %v134
  %v3938 = vpop.f32.mrf.mxu0
  %v3939 = vadd.f32 %v3901, %v3938
  %3940 = vmatmul.f32.gmra.mxu0 %v146
  %v3941 = vpop.f32.mrf.mxu0
  %v3942 = vadd.f32 %v3904, %v3941
  %3943 = vmatmul.f32.gmra.mxu0 %v158
  %v3944 = vpop.f32.mrf.mxu0
  %v3945 = vadd.f32 %v3907, %v3944
  %3946 = vmatmul.f32.gmra.mxu0 %v170
  %v3947 = vpop.f32.mrf.mxu0
  %v3948 = vadd.f32 %v3910, %v3947
  %3949 = vmatmul.f32.gmra.mxu0 %v182
  %v3950 = vpop.f32.mrf.mxu0
  %v3951 = vadd.f32 %v3913, %v3950
  %3952 = vdwg.mxu0
  %3953 = vmatpush.msra.mxu0 %v802
  %3954 = vmatpush.msra.mxu0 %v800
  %3955 = vmatpush.msra.mxu0 %v798
  %3956 = vmatpush.msra.mxu0 %v796
  %3957 = vmatpush.msra.mxu0 %v794
  %3958 = vmatpush.msra.mxu0 %v792
  %3959 = vmatpush.msra.mxu0 %v790
  %3960 = vmatpush.msra.mxu0 %v788
  %3961 = vmatpush.msra.mxu0 %v786
  %3962 = vmatpush.msra.mxu0 %v784
  %3963 = vmatpush.msra.mxu0 %v782
  %3964 = vmatpush.msra.mxu0 %v780
  %3965 = vmatpush.msra.mxu0 %v778
  %3966 = vmatpush.msra.mxu0 %v776
  %3967 = vmatpush.msra.mxu0 %v774
  %3968 = vmatpush.msra.mxu0 %v772
  %3969 = vmatmul.f32.gmra.mxu0 %v111
  %v3970 = vpop.f32.mrf.mxu0
  %v3971 = vadd.f32 %v3933, %v3970
  %3972 = vmatmul.f32.gmra.mxu0 %v123
  %v3973 = vpop.f32.mrf.mxu0
  %v3974 = vadd.f32 %v3936, %v3973
  %3975 = vmatmul.f32.gmra.mxu0 %v135
  %v3976 = vpop.f32.mrf.mxu0
  %v3977 = vadd.f32 %v3939, %v3976
  %3978 = vmatmul.f32.gmra.mxu0 %v147
  %v3979 = vpop.f32.mrf.mxu0
  %v3980 = vadd.f32 %v3942, %v3979
  %3981 = vmatmul.f32.gmra.mxu0 %v159
  %v3982 = vpop.f32.mrf.mxu0
  %v3983 = vadd.f32 %v3945, %v3982
  %3984 = vmatmul.f32.gmra.mxu0 %v171
  %v3985 = vpop.f32.mrf.mxu0
  %v3986 = vadd.f32 %v3948, %v3985
  %3987 = vmatmul.f32.gmra.mxu0 %v183
  %v3988 = vpop.f32.mrf.mxu0
  %v3989 = vadd.f32 %v3951, %v3988
  %3990 = vdwg.mxu0
  %3991 = vmatpush.msra.mxu0 %v834
  %3992 = vmatpush.msra.mxu0 %v832
  %3993 = vmatpush.msra.mxu0 %v830
  %3994 = vmatpush.msra.mxu0 %v828
  %3995 = vmatpush.msra.mxu0 %v826
  %3996 = vmatpush.msra.mxu0 %v824
  %3997 = vmatpush.msra.mxu0 %v822
  %3998 = vmatpush.msra.mxu0 %v820
  %3999 = vmatpush.msra.mxu0 %v818
  %4000 = vmatpush.msra.mxu0 %v816
  %4001 = vmatpush.msra.mxu0 %v814
  %4002 = vmatpush.msra.mxu0 %v812
  %4003 = vmatpush.msra.mxu0 %v810
  %4004 = vmatpush.msra.mxu0 %v808
  %4005 = vmatpush.msra.mxu0 %v806
  %4006 = vmatpush.msra.mxu0 %v804
  %4007 = vmatmul.f32.gmra.mxu0 %v112
  %v4008 = vpop.f32.mrf.mxu0
  %v4009 = vadd.f32 %v3971, %v4008
  %4010 = vmatmul.f32.gmra.mxu0 %v124
  %v4011 = vpop.f32.mrf.mxu0
  %v4012 = vadd.f32 %v3974, %v4011
  %4013 = vmatmul.f32.gmra.mxu0 %v136
  %v4014 = vpop.f32.mrf.mxu0
  %v4015 = vadd.f32 %v3977, %v4014
  %4016 = vmatmul.f32.gmra.mxu0 %v148
  %v4017 = vpop.f32.mrf.mxu0
  %v4018 = vadd.f32 %v3980, %v4017
  %4019 = vmatmul.f32.gmra.mxu0 %v160
  %v4020 = vpop.f32.mrf.mxu0
  %v4021 = vadd.f32 %v3983, %v4020
  %4022 = vmatmul.f32.gmra.mxu0 %v172
  %v4023 = vpop.f32.mrf.mxu0
  %v4024 = vadd.f32 %v3986, %v4023
  %4025 = vmatmul.f32.gmra.mxu0 %v184
  %v4026 = vpop.f32.mrf.mxu0
  %v4027 = vadd.f32 %v3989, %v4026
  %4028 = vdwg.mxu0
  %4029 = vmatpush.msra.mxu0 %v866
  %4030 = vmatpush.msra.mxu0 %v864
  %4031 = vmatpush.msra.mxu0 %v862
  %4032 = vmatpush.msra.mxu0 %v860
  %4033 = vmatpush.msra.mxu0 %v858
  %4034 = vmatpush.msra.mxu0 %v856
  %4035 = vmatpush.msra.mxu0 %v854
  %4036 = vmatpush.msra.mxu0 %v852
  %4037 = vmatpush.msra.mxu0 %v850
  %4038 = vmatpush.msra.mxu0 %v848
  %4039 = vmatpush.msra.mxu0 %v846
  %4040 = vmatpush.msra.mxu0 %v844
  %4041 = vmatpush.msra.mxu0 %v842
  %4042 = vmatpush.msra.mxu0 %v840
  %4043 = vmatpush.msra.mxu0 %v838
  %4044 = vmatpush.msra.mxu0 %v836
  %4045 = vmatmul.f32.gmra.mxu0 %v113
  %v4046 = vpop.f32.mrf.mxu0
  %v4047 = vadd.f32 %v4009, %v4046
  %4048 = vmatmul.f32.gmra.mxu0 %v125
  %v4049 = vpop.f32.mrf.mxu0
  %v4050 = vadd.f32 %v4012, %v4049
  %4051 = vmatmul.f32.gmra.mxu0 %v137
  %v4052 = vpop.f32.mrf.mxu0
  %v4053 = vadd.f32 %v4015, %v4052
  %4054 = vmatmul.f32.gmra.mxu0 %v149
  %v4055 = vpop.f32.mrf.mxu0
  %v4056 = vadd.f32 %v4018, %v4055
  %4057 = vmatmul.f32.gmra.mxu0 %v161
  %v4058 = vpop.f32.mrf.mxu0
  %v4059 = vadd.f32 %v4021, %v4058
  %4060 = vmatmul.f32.gmra.mxu0 %v173
  %v4061 = vpop.f32.mrf.mxu0
  %v4062 = vadd.f32 %v4024, %v4061
  %4063 = vmatmul.f32.gmra.mxu0 %v185
  %v4064 = vpop.f32.mrf.mxu0
  %v4065 = vadd.f32 %v4027, %v4064
  %4066 = vdwg.mxu0
  %4067 = vmatpush.msra.mxu0 %v898
  %4068 = vmatpush.msra.mxu0 %v896
  %4069 = vmatpush.msra.mxu0 %v894
  %4070 = vmatpush.msra.mxu0 %v892
  %4071 = vmatpush.msra.mxu0 %v890
  %4072 = vmatpush.msra.mxu0 %v888
  %4073 = vmatpush.msra.mxu0 %v886
  %4074 = vmatpush.msra.mxu0 %v884
  %4075 = vmatpush.msra.mxu0 %v882
  %4076 = vmatpush.msra.mxu0 %v880
  %4077 = vmatpush.msra.mxu0 %v878
  %4078 = vmatpush.msra.mxu0 %v876
  %4079 = vmatpush.msra.mxu0 %v874
  %4080 = vmatpush.msra.mxu0 %v872
  %4081 = vmatpush.msra.mxu0 %v870
  %4082 = vmatpush.msra.mxu0 %v868
  %4083 = vmatmul.f32.gmra.mxu0 %v114
  %v4084 = vpop.f32.mrf.mxu0
  %v4085 = vadd.f32 %v4047, %v4084
  %4086 = vmatmul.f32.gmra.mxu0 %v126
  %v4087 = vpop.f32.mrf.mxu0
  %v4088 = vadd.f32 %v4050, %v4087
  %4089 = vmatmul.f32.gmra.mxu0 %v138
  %v4090 = vpop.f32.mrf.mxu0
  %v4091 = vadd.f32 %v4053, %v4090
  %4092 = vmatmul.f32.gmra.mxu0 %v150
  %v4093 = vpop.f32.mrf.mxu0
  %v4094 = vadd.f32 %v4056, %v4093
  %4095 = vmatmul.f32.gmra.mxu0 %v162
  %v4096 = vpop.f32.mrf.mxu0
  %v4097 = vadd.f32 %v4059, %v4096
  %4098 = vmatmul.f32.gmra.mxu0 %v174
  %v4099 = vpop.f32.mrf.mxu0
  %v4100 = vadd.f32 %v4062, %v4099
  %4101 = vmatmul.f32.gmra.mxu0 %v186
  %v4102 = vpop.f32.mrf.mxu0
  %v4103 = vadd.f32 %v4065, %v4102
  %4104 = vdwg.mxu0
  %4105 = vmatpush.msra.mxu0 0.0
  %4106 = vmatpush.msra.mxu0 0.0
  %4107 = vmatpush.msra.mxu0 0.0
  %4108 = vmatpush.msra.mxu0 0.0
  %4109 = vmatpush.msra.mxu0 0.0
  %4110 = vmatpush.msra.mxu0 0.0
  %4111 = vmatpush.msra.mxu0 0.0
  %4112 = vmatpush.msra.mxu0 0.0
  %4113 = vmatpush.msra.mxu0 0.0
  %4114 = vmatpush.msra.mxu0 0.0
  %4115 = vmatpush.msra.mxu0 0.0
  %4116 = vmatpush.msra.mxu0 0.0
  %4117 = vmatpush.msra.mxu0 %v906
  %4118 = vmatpush.msra.mxu0 %v904
  %4119 = vmatpush.msra.mxu0 %v902
  %4120 = vmatpush.msra.mxu0 %v900
  %4121 = vmatmul.f32.gmra.mxu0 %v2755
  %v4122 = vpop.f32.mrf.mxu0
  %v4123 = vadd.f32 %v4085, %v4122
  %4124 = vmatmul.f32.gmra.mxu0 %v2758
  %v4125 = vpop.f32.mrf.mxu0
  %v4126 = vadd.f32 %v4088, %v4125
  %4127 = vmatmul.f32.gmra.mxu0 %v2761
  %v4128 = vpop.f32.mrf.mxu0
  %v4129 = vadd.f32 %v4091, %v4128
  %4130 = vmatmul.f32.gmra.mxu0 %v2764
  %v4131 = vpop.f32.mrf.mxu0
  %v4132 = vadd.f32 %v4094, %v4131
  %4133 = vmatmul.f32.gmra.mxu0 %v2767
  %v4134 = vpop.f32.mrf.mxu0
  %v4135 = vadd.f32 %v4097, %v4134
  %4136 = vmatmul.f32.gmra.mxu0 %v2770
  %v4137 = vpop.f32.mrf.mxu0
  %v4138 = vadd.f32 %v4100, %v4137
  %4139 = vmatmul.f32.gmra.mxu0 %v2773
  %v4140 = vpop.f32.mrf.mxu0
  %v4141 = vadd.f32 %v4103, %v4140
  %4142 = vdwg.mxu0
  %4143 = vmatpush.msra.mxu0 %v579
  %4144 = vmatpush.msra.mxu0 %v577
  %4145 = vmatpush.msra.mxu0 %v575
  %4146 = vmatpush.msra.mxu0 %v573
  %4147 = vmatpush.msra.mxu0 %v571
  %4148 = vmatpush.msra.mxu0 %v569
  %4149 = vmatpush.msra.mxu0 %v567
  %4150 = vmatpush.msra.mxu0 %v565
  %4151 = vmatpush.msra.mxu0 %v563
  %4152 = vmatpush.msra.mxu0 %v561
  %4153 = vmatpush.msra.mxu0 %v559
  %4154 = vmatpush.msra.mxu0 %v557
  %4155 = vmatpush.msra.mxu0 %v555
  %4156 = vmatpush.msra.mxu0 %v553
  %4157 = vmatpush.msra.mxu0 %v551
  %4158 = vmatpush.msra.mxu0 %v549
  %4159 = vmatmul.f32.gmra.mxu0 %v104
  %v4160 = vpop.f32.mrf.mxu0
  %v4161 = vadd.f32 0.0, %v4160
  %4162 = vmatmul.f32.gmra.mxu0 %v116
  %v4163 = vpop.f32.mrf.mxu0
  %v4164 = vadd.f32 0.0, %v4163
  %4165 = vmatmul.f32.gmra.mxu0 %v128
  %v4166 = vpop.f32.mrf.mxu0
  %v4167 = vadd.f32 0.0, %v4166
  %4168 = vmatmul.f32.gmra.mxu0 %v140
  %v4169 = vpop.f32.mrf.mxu0
  %v4170 = vadd.f32 0.0, %v4169
  %4171 = vmatmul.f32.gmra.mxu0 %v152
  %v4172 = vpop.f32.mrf.mxu0
  %v4173 = vadd.f32 0.0, %v4172
  %4174 = vmatmul.f32.gmra.mxu0 %v164
  %v4175 = vpop.f32.mrf.mxu0
  %v4176 = vadd.f32 0.0, %v4175
  %4177 = vmatmul.f32.gmra.mxu0 %v176
  %v4178 = vpop.f32.mrf.mxu0
  %v4179 = vadd.f32 0.0, %v4178
  %4180 = vdwg.mxu0
  %4181 = vmatpush.msra.mxu0 %v611
  %4182 = vmatpush.msra.mxu0 %v609
  %4183 = vmatpush.msra.mxu0 %v607
  %4184 = vmatpush.msra.mxu0 %v605
  %4185 = vmatpush.msra.mxu0 %v603
  %4186 = vmatpush.msra.mxu0 %v601
  %4187 = vmatpush.msra.mxu0 %v599
  %4188 = vmatpush.msra.mxu0 %v597
  %4189 = vmatpush.msra.mxu0 %v595
  %4190 = vmatpush.msra.mxu0 %v593
  %4191 = vmatpush.msra.mxu0 %v591
  %4192 = vmatpush.msra.mxu0 %v589
  %4193 = vmatpush.msra.mxu0 %v587
  %4194 = vmatpush.msra.mxu0 %v585
  %4195 = vmatpush.msra.mxu0 %v583
  %4196 = vmatpush.msra.mxu0 %v581
  %4197 = vmatmul.f32.gmra.mxu0 %v105
  %v4198 = vpop.f32.mrf.mxu0
  %v4199 = vadd.f32 %v4161, %v4198
  %4200 = vmatmul.f32.gmra.mxu0 %v117
  %v4201 = vpop.f32.mrf.mxu0
  %v4202 = vadd.f32 %v4164, %v4201
  %4203 = vmatmul.f32.gmra.mxu0 %v129
  %v4204 = vpop.f32.mrf.mxu0
  %v4205 = vadd.f32 %v4167, %v4204
  %4206 = vmatmul.f32.gmra.mxu0 %v141
  %v4207 = vpop.f32.mrf.mxu0
  %v4208 = vadd.f32 %v4170, %v4207
  %4209 = vmatmul.f32.gmra.mxu0 %v153
  %v4210 = vpop.f32.mrf.mxu0
  %v4211 = vadd.f32 %v4173, %v4210
  %4212 = vmatmul.f32.gmra.mxu0 %v165
  %v4213 = vpop.f32.mrf.mxu0
  %v4214 = vadd.f32 %v4176, %v4213
  %4215 = vmatmul.f32.gmra.mxu0 %v177
  %v4216 = vpop.f32.mrf.mxu0
  %v4217 = vadd.f32 %v4179, %v4216
  %4218 = vdwg.mxu0
  %4219 = vmatpush.msra.mxu0 %v643
  %4220 = vmatpush.msra.mxu0 %v641
  %4221 = vmatpush.msra.mxu0 %v639
  %4222 = vmatpush.msra.mxu0 %v637
  %4223 = vmatpush.msra.mxu0 %v635
  %4224 = vmatpush.msra.mxu0 %v633
  %4225 = vmatpush.msra.mxu0 %v631
  %4226 = vmatpush.msra.mxu0 %v629
  %4227 = vmatpush.msra.mxu0 %v627
  %4228 = vmatpush.msra.mxu0 %v625
  %4229 = vmatpush.msra.mxu0 %v623
  %4230 = vmatpush.msra.mxu0 %v621
  %4231 = vmatpush.msra.mxu0 %v619
  %4232 = vmatpush.msra.mxu0 %v617
  %4233 = vmatpush.msra.mxu0 %v615
  %4234 = vmatpush.msra.mxu0 %v613
  %4235 = vmatmul.f32.gmra.mxu0 %v106
  %v4236 = vpop.f32.mrf.mxu0
  %v4237 = vadd.f32 %v4199, %v4236
  %4238 = vmatmul.f32.gmra.mxu0 %v118
  %v4239 = vpop.f32.mrf.mxu0
  %v4240 = vadd.f32 %v4202, %v4239
  %4241 = vmatmul.f32.gmra.mxu0 %v130
  %v4242 = vpop.f32.mrf.mxu0
  %v4243 = vadd.f32 %v4205, %v4242
  %4244 = vmatmul.f32.gmra.mxu0 %v142
  %v4245 = vpop.f32.mrf.mxu0
  %v4246 = vadd.f32 %v4208, %v4245
  %4247 = vmatmul.f32.gmra.mxu0 %v154
  %v4248 = vpop.f32.mrf.mxu0
  %v4249 = vadd.f32 %v4211, %v4248
  %4250 = vmatmul.f32.gmra.mxu0 %v166
  %v4251 = vpop.f32.mrf.mxu0
  %v4252 = vadd.f32 %v4214, %v4251
  %4253 = vmatmul.f32.gmra.mxu0 %v178
  %v4254 = vpop.f32.mrf.mxu0
  %v4255 = vadd.f32 %v4217, %v4254
  %4256 = vdwg.mxu0
  %4257 = vmatpush.msra.mxu0 %v675
  %4258 = vmatpush.msra.mxu0 %v673
  %4259 = vmatpush.msra.mxu0 %v671
  %4260 = vmatpush.msra.mxu0 %v669
  %4261 = vmatpush.msra.mxu0 %v667
  %4262 = vmatpush.msra.mxu0 %v665
  %4263 = vmatpush.msra.mxu0 %v663
  %4264 = vmatpush.msra.mxu0 %v661
  %4265 = vmatpush.msra.mxu0 %v659
  %4266 = vmatpush.msra.mxu0 %v657
  %4267 = vmatpush.msra.mxu0 %v655
  %4268 = vmatpush.msra.mxu0 %v653
  %4269 = vmatpush.msra.mxu0 %v651
  %4270 = vmatpush.msra.mxu0 %v649
  %4271 = vmatpush.msra.mxu0 %v647
  %4272 = vmatpush.msra.mxu0 %v645
  %4273 = vmatmul.f32.gmra.mxu0 %v107
  %v4274 = vpop.f32.mrf.mxu0
  %v4275 = vadd.f32 %v4237, %v4274
  %4276 = vmatmul.f32.gmra.mxu0 %v119
  %v4277 = vpop.f32.mrf.mxu0
  %v4278 = vadd.f32 %v4240, %v4277
  %4279 = vmatmul.f32.gmra.mxu0 %v131
  %v4280 = vpop.f32.mrf.mxu0
  %v4281 = vadd.f32 %v4243, %v4280
  %4282 = vmatmul.f32.gmra.mxu0 %v143
  %v4283 = vpop.f32.mrf.mxu0
  %v4284 = vadd.f32 %v4246, %v4283
  %4285 = vmatmul.f32.gmra.mxu0 %v155
  %v4286 = vpop.f32.mrf.mxu0
  %v4287 = vadd.f32 %v4249, %v4286
  %4288 = vmatmul.f32.gmra.mxu0 %v167
  %v4289 = vpop.f32.mrf.mxu0
  %v4290 = vadd.f32 %v4252, %v4289
  %4291 = vmatmul.f32.gmra.mxu0 %v179
  %v4292 = vpop.f32.mrf.mxu0
  %v4293 = vadd.f32 %v4255, %v4292
  %4294 = vdwg.mxu0
  %4295 = vmatpush.msra.mxu0 %v707
  %4296 = vmatpush.msra.mxu0 %v705
  %4297 = vmatpush.msra.mxu0 %v703
  %4298 = vmatpush.msra.mxu0 %v701
  %4299 = vmatpush.msra.mxu0 %v699
  %4300 = vmatpush.msra.mxu0 %v697
  %4301 = vmatpush.msra.mxu0 %v695
  %4302 = vmatpush.msra.mxu0 %v693
  %4303 = vmatpush.msra.mxu0 %v691
  %4304 = vmatpush.msra.mxu0 %v689
  %4305 = vmatpush.msra.mxu0 %v687
  %4306 = vmatpush.msra.mxu0 %v685
  %4307 = vmatpush.msra.mxu0 %v683
  %4308 = vmatpush.msra.mxu0 %v681
  %4309 = vmatpush.msra.mxu0 %v679
  %4310 = vmatpush.msra.mxu0 %v677
  %4311 = vmatmul.f32.gmra.mxu0 %v108
  %v4312 = vpop.f32.mrf.mxu0
  %v4313 = vadd.f32 %v4275, %v4312
  %4314 = vmatmul.f32.gmra.mxu0 %v120
  %v4315 = vpop.f32.mrf.mxu0
  %v4316 = vadd.f32 %v4278, %v4315
  %4317 = vmatmul.f32.gmra.mxu0 %v132
  %v4318 = vpop.f32.mrf.mxu0
  %v4319 = vadd.f32 %v4281, %v4318
  %4320 = vmatmul.f32.gmra.mxu0 %v144
  %v4321 = vpop.f32.mrf.mxu0
  %v4322 = vadd.f32 %v4284, %v4321
  %4323 = vmatmul.f32.gmra.mxu0 %v156
  %v4324 = vpop.f32.mrf.mxu0
  %v4325 = vadd.f32 %v4287, %v4324
  %4326 = vmatmul.f32.gmra.mxu0 %v168
  %v4327 = vpop.f32.mrf.mxu0
  %v4328 = vadd.f32 %v4290, %v4327
  %4329 = vmatmul.f32.gmra.mxu0 %v180
  %v4330 = vpop.f32.mrf.mxu0
  %v4331 = vadd.f32 %v4293, %v4330
  %4332 = vdwg.mxu0
  %4333 = vmatpush.msra.mxu0 %v739
  %4334 = vmatpush.msra.mxu0 %v737
  %4335 = vmatpush.msra.mxu0 %v735
  %4336 = vmatpush.msra.mxu0 %v733
  %4337 = vmatpush.msra.mxu0 %v731
  %4338 = vmatpush.msra.mxu0 %v729
  %4339 = vmatpush.msra.mxu0 %v727
  %4340 = vmatpush.msra.mxu0 %v725
  %4341 = vmatpush.msra.mxu0 %v723
  %4342 = vmatpush.msra.mxu0 %v721
  %4343 = vmatpush.msra.mxu0 %v719
  %4344 = vmatpush.msra.mxu0 %v717
  %4345 = vmatpush.msra.mxu0 %v715
  %4346 = vmatpush.msra.mxu0 %v713
  %4347 = vmatpush.msra.mxu0 %v711
  %4348 = vmatpush.msra.mxu0 %v709
  %4349 = vmatmul.f32.gmra.mxu0 %v109
  %v4350 = vpop.f32.mrf.mxu0
  %v4351 = vadd.f32 %v4313, %v4350
  %4352 = vmatmul.f32.gmra.mxu0 %v121
  %v4353 = vpop.f32.mrf.mxu0
  %v4354 = vadd.f32 %v4316, %v4353
  %4355 = vmatmul.f32.gmra.mxu0 %v133
  %v4356 = vpop.f32.mrf.mxu0
  %v4357 = vadd.f32 %v4319, %v4356
  %4358 = vmatmul.f32.gmra.mxu0 %v145
  %v4359 = vpop.f32.mrf.mxu0
  %v4360 = vadd.f32 %v4322, %v4359
  %4361 = vmatmul.f32.gmra.mxu0 %v157
  %v4362 = vpop.f32.mrf.mxu0
  %v4363 = vadd.f32 %v4325, %v4362
  %4364 = vmatmul.f32.gmra.mxu0 %v169
  %v4365 = vpop.f32.mrf.mxu0
  %v4366 = vadd.f32 %v4328, %v4365
  %4367 = vmatmul.f32.gmra.mxu0 %v181
  %v4368 = vpop.f32.mrf.mxu0
  %v4369 = vadd.f32 %v4331, %v4368
  %4370 = vdwg.mxu0
  %4371 = vmatpush.msra.mxu0 %v771
  %4372 = vmatpush.msra.mxu0 %v769
  %4373 = vmatpush.msra.mxu0 %v767
  %4374 = vmatpush.msra.mxu0 %v765
  %4375 = vmatpush.msra.mxu0 %v763
  %4376 = vmatpush.msra.mxu0 %v761
  %4377 = vmatpush.msra.mxu0 %v759
  %4378 = vmatpush.msra.mxu0 %v757
  %4379 = vmatpush.msra.mxu0 %v755
  %4380 = vmatpush.msra.mxu0 %v753
  %4381 = vmatpush.msra.mxu0 %v751
  %4382 = vmatpush.msra.mxu0 %v749
  %4383 = vmatpush.msra.mxu0 %v747
  %4384 = vmatpush.msra.mxu0 %v745
  %4385 = vmatpush.msra.mxu0 %v743
  %4386 = vmatpush.msra.mxu0 %v741
  %4387 = vmatmul.f32.gmra.mxu0 %v110
  %v4388 = vpop.f32.mrf.mxu0
  %v4389 = vadd.f32 %v4351, %v4388
  %4390 = vmatmul.f32.gmra.mxu0 %v122
  %v4391 = vpop.f32.mrf.mxu0
  %v4392 = vadd.f32 %v4354, %v4391
  %4393 = vmatmul.f32.gmra.mxu0 %v134
  %v4394 = vpop.f32.mrf.mxu0
  %v4395 = vadd.f32 %v4357, %v4394
  %4396 = vmatmul.f32.gmra.mxu0 %v146
  %v4397 = vpop.f32.mrf.mxu0
  %v4398 = vadd.f32 %v4360, %v4397
  %4399 = vmatmul.f32.gmra.mxu0 %v158
  %v4400 = vpop.f32.mrf.mxu0
  %v4401 = vadd.f32 %v4363, %v4400
  %4402 = vmatmul.f32.gmra.mxu0 %v170
  %v4403 = vpop.f32.mrf.mxu0
  %v4404 = vadd.f32 %v4366, %v4403
  %4405 = vmatmul.f32.gmra.mxu0 %v182
  %v4406 = vpop.f32.mrf.mxu0
  %v4407 = vadd.f32 %v4369, %v4406
  %4408 = vdwg.mxu0
  %4409 = vmatpush.msra.mxu0 %v803
  %4410 = vmatpush.msra.mxu0 %v801
  %4411 = vmatpush.msra.mxu0 %v799
  %4412 = vmatpush.msra.mxu0 %v797
  %4413 = vmatpush.msra.mxu0 %v795
  %4414 = vmatpush.msra.mxu0 %v793
  %4415 = vmatpush.msra.mxu0 %v791
  %4416 = vmatpush.msra.mxu0 %v789
  %4417 = vmatpush.msra.mxu0 %v787
  %4418 = vmatpush.msra.mxu0 %v785
  %4419 = vmatpush.msra.mxu0 %v783
  %4420 = vmatpush.msra.mxu0 %v781
  %4421 = vmatpush.msra.mxu0 %v779
  %4422 = vmatpush.msra.mxu0 %v777
  %4423 = vmatpush.msra.mxu0 %v775
  %4424 = vmatpush.msra.mxu0 %v773
  %4425 = vmatmul.f32.gmra.mxu0 %v111
  %v4426 = vpop.f32.mrf.mxu0
  %v4427 = vadd.f32 %v4389, %v4426
  %4428 = vmatmul.f32.gmra.mxu0 %v123
  %v4429 = vpop.f32.mrf.mxu0
  %v4430 = vadd.f32 %v4392, %v4429
  %4431 = vmatmul.f32.gmra.mxu0 %v135
  %v4432 = vpop.f32.mrf.mxu0
  %v4433 = vadd.f32 %v4395, %v4432
  %4434 = vmatmul.f32.gmra.mxu0 %v147
  %v4435 = vpop.f32.mrf.mxu0
  %v4436 = vadd.f32 %v4398, %v4435
  %4437 = vmatmul.f32.gmra.mxu0 %v159
  %v4438 = vpop.f32.mrf.mxu0
  %v4439 = vadd.f32 %v4401, %v4438
  %4440 = vmatmul.f32.gmra.mxu0 %v171
  %v4441 = vpop.f32.mrf.mxu0
  %v4442 = vadd.f32 %v4404, %v4441
  %4443 = vmatmul.f32.gmra.mxu0 %v183
  %v4444 = vpop.f32.mrf.mxu0
  %v4445 = vadd.f32 %v4407, %v4444
  %4446 = vdwg.mxu0
  %4447 = vmatpush.msra.mxu0 %v835
  %4448 = vmatpush.msra.mxu0 %v833
  %4449 = vmatpush.msra.mxu0 %v831
  %4450 = vmatpush.msra.mxu0 %v829
  %4451 = vmatpush.msra.mxu0 %v827
  %4452 = vmatpush.msra.mxu0 %v825
  %4453 = vmatpush.msra.mxu0 %v823
  %4454 = vmatpush.msra.mxu0 %v821
  %4455 = vmatpush.msra.mxu0 %v819
  %4456 = vmatpush.msra.mxu0 %v817
  %4457 = vmatpush.msra.mxu0 %v815
  %4458 = vmatpush.msra.mxu0 %v813
  %4459 = vmatpush.msra.mxu0 %v811
  %4460 = vmatpush.msra.mxu0 %v809
  %4461 = vmatpush.msra.mxu0 %v807
  %4462 = vmatpush.msra.mxu0 %v805
  %4463 = vmatmul.f32.gmra.mxu0 %v112
  %v4464 = vpop.f32.mrf.mxu0
  %v4465 = vadd.f32 %v4427, %v4464
  %4466 = vmatmul.f32.gmra.mxu0 %v124
  %v4467 = vpop.f32.mrf.mxu0
  %v4468 = vadd.f32 %v4430, %v4467
  %4469 = vmatmul.f32.gmra.mxu0 %v136
  %v4470 = vpop.f32.mrf.mxu0
  %v4471 = vadd.f32 %v4433, %v4470
  %4472 = vmatmul.f32.gmra.mxu0 %v148
  %v4473 = vpop.f32.mrf.mxu0
  %v4474 = vadd.f32 %v4436, %v4473
  %4475 = vmatmul.f32.gmra.mxu0 %v160
  %v4476 = vpop.f32.mrf.mxu0
  %v4477 = vadd.f32 %v4439, %v4476
  %4478 = vmatmul.f32.gmra.mxu0 %v172
  %v4479 = vpop.f32.mrf.mxu0
  %v4480 = vadd.f32 %v4442, %v4479
  %4481 = vmatmul.f32.gmra.mxu0 %v184
  %v4482 = vpop.f32.mrf.mxu0
  %v4483 = vadd.f32 %v4445, %v4482
  %4484 = vdwg.mxu0
  %4485 = vmatpush.msra.mxu0 %v867
  %4486 = vmatpush.msra.mxu0 %v865
  %4487 = vmatpush.msra.mxu0 %v863
  %4488 = vmatpush.msra.mxu0 %v861
  %4489 = vmatpush.msra.mxu0 %v859
  %4490 = vmatpush.msra.mxu0 %v857
  %4491 = vmatpush.msra.mxu0 %v855
  %4492 = vmatpush.msra.mxu0 %v853
  %4493 = vmatpush.msra.mxu0 %v851
  %4494 = vmatpush.msra.mxu0 %v849
  %4495 = vmatpush.msra.mxu0 %v847
  %4496 = vmatpush.msra.mxu0 %v845
  %4497 = vmatpush.msra.mxu0 %v843
  %4498 = vmatpush.msra.mxu0 %v841
  %4499 = vmatpush.msra.mxu0 %v839
  %4500 = vmatpush.msra.mxu0 %v837
  %4501 = vmatmul.f32.gmra.mxu0 %v113
  %v4502 = vpop.f32.mrf.mxu0
  %v4503 = vadd.f32 %v4465, %v4502
  %4504 = vmatmul.f32.gmra.mxu0 %v125
  %v4505 = vpop.f32.mrf.mxu0
  %v4506 = vadd.f32 %v4468, %v4505
  %4507 = vmatmul.f32.gmra.mxu0 %v137
  %v4508 = vpop.f32.mrf.mxu0
  %v4509 = vadd.f32 %v4471, %v4508
  %4510 = vmatmul.f32.gmra.mxu0 %v149
  %v4511 = vpop.f32.mrf.mxu0
  %v4512 = vadd.f32 %v4474, %v4511
  %4513 = vmatmul.f32.gmra.mxu0 %v161
  %v4514 = vpop.f32.mrf.mxu0
  %v4515 = vadd.f32 %v4477, %v4514
  %4516 = vmatmul.f32.gmra.mxu0 %v173
  %v4517 = vpop.f32.mrf.mxu0
  %v4518 = vadd.f32 %v4480, %v4517
  %4519 = vmatmul.f32.gmra.mxu0 %v185
  %v4520 = vpop.f32.mrf.mxu0
  %v4521 = vadd.f32 %v4483, %v4520
  %4522 = vdwg.mxu0
  %4523 = vmatpush.msra.mxu0 %v899
  %4524 = vmatpush.msra.mxu0 %v897
  %4525 = vmatpush.msra.mxu0 %v895
  %4526 = vmatpush.msra.mxu0 %v893
  %4527 = vmatpush.msra.mxu0 %v891
  %4528 = vmatpush.msra.mxu0 %v889
  %4529 = vmatpush.msra.mxu0 %v887
  %4530 = vmatpush.msra.mxu0 %v885
  %4531 = vmatpush.msra.mxu0 %v883
  %4532 = vmatpush.msra.mxu0 %v881
  %4533 = vmatpush.msra.mxu0 %v879
  %4534 = vmatpush.msra.mxu0 %v877
  %4535 = vmatpush.msra.mxu0 %v875
  %4536 = vmatpush.msra.mxu0 %v873
  %4537 = vmatpush.msra.mxu0 %v871
  %4538 = vmatpush.msra.mxu0 %v869
  %4539 = vmatmul.f32.gmra.mxu0 %v114
  %v4540 = vpop.f32.mrf.mxu0
  %v4541 = vadd.f32 %v4503, %v4540
  %4542 = vmatmul.f32.gmra.mxu0 %v126
  %v4543 = vpop.f32.mrf.mxu0
  %v4544 = vadd.f32 %v4506, %v4543
  %4545 = vmatmul.f32.gmra.mxu0 %v138
  %v4546 = vpop.f32.mrf.mxu0
  %v4547 = vadd.f32 %v4509, %v4546
  %4548 = vmatmul.f32.gmra.mxu0 %v150
  %v4549 = vpop.f32.mrf.mxu0
  %v4550 = vadd.f32 %v4512, %v4549
  %4551 = vmatmul.f32.gmra.mxu0 %v162
  %v4552 = vpop.f32.mrf.mxu0
  %v4553 = vadd.f32 %v4515, %v4552
  %4554 = vmatmul.f32.gmra.mxu0 %v174
  %v4555 = vpop.f32.mrf.mxu0
  %v4556 = vadd.f32 %v4518, %v4555
  %4557 = vmatmul.f32.gmra.mxu0 %v186
  %v4558 = vpop.f32.mrf.mxu0
  %v4559 = vadd.f32 %v4521, %v4558
  %4560 = vdwg.mxu0
  %4561 = vmatpush.msra.mxu0 0.0
  %4562 = vmatpush.msra.mxu0 0.0
  %4563 = vmatpush.msra.mxu0 0.0
  %4564 = vmatpush.msra.mxu0 0.0
  %4565 = vmatpush.msra.mxu0 0.0
  %4566 = vmatpush.msra.mxu0 0.0
  %4567 = vmatpush.msra.mxu0 0.0
  %4568 = vmatpush.msra.mxu0 0.0
  %4569 = vmatpush.msra.mxu0 0.0
  %4570 = vmatpush.msra.mxu0 0.0
  %4571 = vmatpush.msra.mxu0 0.0
  %4572 = vmatpush.msra.mxu0 0.0
  %4573 = vmatpush.msra.mxu0 %v907
  %4574 = vmatpush.msra.mxu0 %v905
  %4575 = vmatpush.msra.mxu0 %v903
  %4576 = vmatpush.msra.mxu0 %v901
  %4577 = vmatmul.f32.gmra.mxu0 %v2755
  %v4578 = vpop.f32.mrf.mxu0
  %v4579 = vadd.f32 %v4541, %v4578
  %4580 = vmatmul.f32.gmra.mxu0 %v2758
  %v4581 = vpop.f32.mrf.mxu0
  %v4582 = vadd.f32 %v4544, %v4581
  %4583 = vmatmul.f32.gmra.mxu0 %v2761
  %v4584 = vpop.f32.mrf.mxu0
  %v4585 = vadd.f32 %v4547, %v4584
  %4586 = vmatmul.f32.gmra.mxu0 %v2764
  %v4587 = vpop.f32.mrf.mxu0
  %v4588 = vadd.f32 %v4550, %v4587
  %4589 = vmatmul.f32.gmra.mxu0 %v2767
  %v4590 = vpop.f32.mrf.mxu0
  %v4591 = vadd.f32 %v4553, %v4590
  %4592 = vmatmul.f32.gmra.mxu0 %v2770
  %v4593 = vpop.f32.mrf.mxu0
  %v4594 = vadd.f32 %v4556, %v4593
  %4595 = vmatmul.f32.gmra.mxu0 %v2773
  %v4596 = vpop.f32.mrf.mxu0
  %v4597 = vadd.f32 %v4559, %v4596
  %4598 = vdwg.mxu0
  %v4599 = vmax.f32 %v1366, %v2278
  %v4600 = vmax.f32 %v1822, %v2734
  %v4601 = vmax.f32 %v1369, %v2281
  %v4602 = vmax.f32 %v1825, %v2737
  %v4603 = vmax.f32 %v1372, %v2284
  %v4604 = vmax.f32 %v1828, %v2740
  %v4605 = vmax.f32 %v1375, %v2287
  %v4606 = vmax.f32 %v1831, %v2743
  %v4607 = vmax.f32 %v1378, %v2290
  %v4608 = vmax.f32 %v1834, %v2746
  %v4609 = vmax.f32 %v1381, %v2293
  %v4610 = vmax.f32 %v1837, %v2749
  %v4611 = vmax.f32 %v1384, %v2296
  %v4612 = vmax.f32 %v1840, %v2752
  %v4613 = vmax.f32 %v3211, %v4123
  %v4614 = vmax.f32 %v3667, %v4579
  %v4615 = vmax.f32 %v3214, %v4126
  %v4616 = vmax.f32 %v3670, %v4582
  %v4617 = vmax.f32 %v3217, %v4129
  %v4618 = vmax.f32 %v3673, %v4585
  %v4619 = vmax.f32 %v3220, %v4132
  %v4620 = vmax.f32 %v3676, %v4588
  %v4621 = vmax.f32 %v3223, %v4135
  %v4622 = vmax.f32 %v3679, %v4591
  %v4623 = vmax.f32 %v3226, %v4138
  %v4624 = vmax.f32 %v3682, %v4594
  %v4625 = vmax.f32 %v3229, %v4141
  %v4626 = vmax.f32 %v3685, %v4597
  %v4627 = vmax.f32 %v4599, %v4613
  %v4628 = vmax.f32 %v4600, %v4614
  %v4629 = vmax.f32 %v4601, %v4615
  %v4630 = vmax.f32 %v4602, %v4616
  %v4631 = vmax.f32 %v4603, %v4617
  %v4632 = vmax.f32 %v4604, %v4618
  %v4633 = vmax.f32 %v4605, %v4619
  %v4634 = vmax.f32 %v4606, %v4620
  %v4635 = vmax.f32 %v4607, %v4621
  %v4636 = vmax.f32 %v4608, %v4622
  %v4637 = vmax.f32 %v4609, %v4623
  %v4638 = vmax.f32 %v4610, %v4624
  %v4639 = vmax.f32 %v4611, %v4625
  %v4640 = vmax.f32 %v4612, %v4626
  %v4641 = vld [vmem:[%s4] sm:$0x3]
  %v4643 = vperm.slane %v4641, 0
  %v4644 = vperm.slane %v4641, 1
  %v4647 = vadd.f32 %v4627, %v4643
  %v4648 = vadd.f32 %v4628, %v4644
  %v4649 = vadd.f32 %v4629, %v4643
  %v4650 = vadd.f32 %v4630, %v4644
  %v4651 = vadd.f32 %v4631, %v4643
  %v4652 = vadd.f32 %v4632, %v4644
  %v4653 = vadd.f32 %v4633, %v4643
  %v4654 = vadd.f32 %v4634, %v4644
  %v4655 = vadd.f32 %v4635, %v4643
  %v4656 = vadd.f32 %v4636, %v4644
  %v4657 = vadd.f32 %v4637, %v4643
  %v4658 = vadd.f32 %v4638, %v4644
  %v4659 = vadd.f32 %v4639, %v4643
  %v4660 = vadd.f32 %v4640, %v4644
  %v4661 = vmax.f32 %v4647, 0.0
  %v4662 = vmax.f32 %v4648, 0.0
  %v4663 = vmax.f32 %v4649, 0.0
  %v4664 = vmax.f32 %v4650, 0.0
  %v4665 = vmax.f32 %v4651, 0.0
  %v4666 = vmax.f32 %v4652, 0.0
  %v4667 = vmax.f32 %v4653, 0.0
  %v4668 = vmax.f32 %v4654, 0.0
  %v4669 = vmax.f32 %v4655, 0.0
  %v4670 = vmax.f32 %v4656, 0.0
  %v4671 = vmax.f32 %v4657, 0.0
  %v4672 = vmax.f32 %v4658, 0.0
  %v4673 = vmax.f32 %v4659, 0.0
  %v4674 = vmax.f32 %v4660, 0.0
  %4675 = vst [vmem:[%s5] sm:$0xff] %v4661
  %vm4676 = vcmask 785408
  %4677 = vst.msk [vmem:[%s5 + $0x8] sm:$0xff] %vm4676, %v4662
  %4678 = vst [vmem:[%s5 + $0x10] sm:$0xff] %v4663
  %4679 = vst.msk [vmem:[%s5 + $0x18] sm:$0xff] %vm4676, %v4664
  %4680 = vst [vmem:[%s5 + $0x20] sm:$0xff] %v4665
  %4681 = vst.msk [vmem:[%s5 + $0x28] sm:$0xff] %vm4676, %v4666
  %4682 = vst [vmem:[%s5 + $0x30] sm:$0xff] %v4667
  %4683 = vst.msk [vmem:[%s5 + $0x38] sm:$0xff] %vm4676, %v4668
  %4684 = vst [vmem:[%s5 + $0x40] sm:$0xff] %v4669
  %4685 = vst.msk [vmem:[%s5 + $0x48] sm:$0xff] %vm4676, %v4670
  %4686 = vst [vmem:[%s5 + $0x50] sm:$0xff] %v4671
  %4687 = vst.msk [vmem:[%s5 + $0x58] sm:$0xff] %vm4676, %v4672
  %4688 = vst [vmem:[%s5 + $0x60] sm:$0xff] %v4673
  %4689 = vst.msk [vmem:[%s5 + $0x68] sm:$0xff] %vm4676, %v4674
  // Predicated region
  $region22: #{convnet_forward.4} parent=0 // pred_check
    _
  $region23: #{convnet_forward.4} parent=0 // pred_check_branch
    %4691 = sbr.rel (0) target = $region25
  $region24: #{convnet_forward.4} parent=0 // pred_region
    _
  $region25: #{convnet_forward.4} parent=0 // pred_fallthru
    _
  // Predicated region
  $region26: #{convnet_forward.4} parent=0 // pred_check
    _
  $region27: #{convnet_forward.4} parent=0 // pred_check_branch
    %4693 = sbr.rel (0) target = $region29
  $region28: #{convnet_forward.4} parent=0 // pred_region
    _
  $region29: #{convnet_forward.4} parent=0 // pred_fallthru
    _

</llo_original>
